<compile_context>
chip_gen: v7x
topology: tpu7x:2x2x1
jax: 0.10.0
libtpu: 0.0.40
codegen_flags: <defaults>
</compile_context>

<pallas_src>
import functools

import jax
import jax.numpy as jnp
from jax.experimental import pallas as pl
from jax.experimental.pallas import tpu as pltpu

# -------------------- small synthetic config (keeps module structure) --------------------
EMB = 32                 # emb_size
TEXTDIM = 48             # stands in for 768 (bert-base)
C_VISU = [64, 32, 16]    # stands in for [1024, 512, 256]
SPATIALS = [2, 4, 8]     # stride-32/16/8 feature maps for a 64x64 image
EMBIN = 2 * EMB + 8      # coordmap=True
VOCAB = 50
N_OUT = 3 * 5            # anchors * (4 + 1)
OUT_PAD = 128            # lane-dense output channel padding (stripped in wrapper)
E2P = 32                 # emb//2 (=16) zero-padded to 32 lanes (lane-occupancy, review item 7)

_NL = 5                  # language-branch kernel inputs
_NP = 16                 # per-scale kernel inputs


# ------------------------------------ Pallas kernel --------------------------------------
def _fused_grounding_kernel(*refs, scales, B, E):
    """Single fused kernel (no grid, everything resident in VMEM):
         mapping_lang -> per scale: mapping_visu -> implicit concat [fvisu|flang|coord]
         -> fcn_emb (1x1, 3x3, 1x1 CBR) -> fcn_out (1x1 CBR, 1x1 conv).
       All activations stay 2-D (B*HW, C); the 3x3 conv is 9 shifted row-slice matmuls
       against a zero-padded flat VMEM scratch with precomputed boundary masks."""
    f32 = jnp.float32
    ns = len(scales)
    lang = refs[:_NL]
    per_scale = refs[_NL:_NL + _NP * ns]
    outs = refs[_NL + _NP * ns:_NL + _NP * ns + ns]
    scrs = refs[_NL + _NP * ns + ns:]

    # ---- mapping_lang: Linear+BN+ReLU -> Dropout(eval no-op) -> Linear+BN+ReLU -> L2 norm ----
    rfl, mw1, mb1, mw2, mb2 = lang
    t = jnp.maximum(jnp.dot(rfl[...], mw1[...], preferred_element_type=f32) + mb1[...], 0.0)
    t = jnp.maximum(jnp.dot(t, mw2[...], preferred_element_type=f32) + mb2[...], 0.0)
    flang = t * jax.lax.rsqrt(jnp.maximum(jnp.sum(t * t, axis=-1, keepdims=True), 1e-24))  # (B, E)

    for si, (H, W, Cin) in enumerate(scales):
        (fv, sel, cb, msk, wv, bv, w0v, w0l,
         w1, b1, w2, b2, w3, b3, w4, b4) = per_scale[si * _NP:(si + 1) * _NP]
        o_ref = outs[si]
        scr = scrs[si]
        HW = H * W
        M = B * HW
        P = W + 1                               # halo rows: covers every shift |dy*W + dx| <= W+1

        # mapping_visu: 1x1 conv (BN folded into weight) + ReLU + per-pixel L2 normalize
        v = jnp.maximum(jnp.dot(fv[...], wv[...], preferred_element_type=f32) + bv[...], 0.0)
        v = v * jax.lax.rsqrt(jnp.maximum(jnp.sum(v * v, axis=-1, keepdims=True), 1e-24))  # (M, E)

        # fcn_emb[si][0]: 1x1 CBR over the implicit concat [fvisu | flang_tile | coord]
        lang_t = jnp.dot(flang, w0l[...], preferred_element_type=f32)            # (B, E)
        y = (jnp.dot(v, w0v[...], preferred_element_type=f32)                    # visu columns
             + jnp.dot(sel[...], lang_t, preferred_element_type=f32)             # tiled language cols
             + cb[...])                                                          # coord cols + BN bias
        y = jnp.maximum(y, 0.0)                                                  # (M, E)

        # fcn_emb[si][1]: 3x3 CBR (stride 1, pad 1) = 9 shifted row-slice matmuls.
        # scratch rows: [P zero halo | M activation rows | P zero halo]; reads that cross an
        # image/row/batch boundary are zeroed by the precomputed per-tap mask column.
        scr[0:P, :] = jnp.zeros((P, E), f32)
        scr[P + M:P + M + P, :] = jnp.zeros((P, E), f32)
        scr[P:P + M, :] = y
        acc = None
        for tap_i in range(9):
            dy, dx = tap_i // 3 - 1, tap_i % 3 - 1
            off = dy * W + dx
            tap = scr[P + off:P + off + M, :] * msk[:, tap_i:tap_i + 1]
            c = jnp.dot(tap, w1[tap_i * E:(tap_i + 1) * E, :], preferred_element_type=f32)
            acc = c if acc is None else acc + c
        y = jnp.maximum(acc + b1[...], 0.0)

        # fcn_emb[si][2]: 1x1 CBR
        y = jnp.maximum(jnp.dot(y, w2[...], preferred_element_type=f32) + b2[...], 0.0)

        # fcn_out[si]: 1x1 CBR (E -> E//2, lane-padded to 32) then 1x1 conv (-> 15, padded to 128)
        y = jnp.maximum(jnp.dot(y, w3[...], preferred_element_type=f32) + b3[...], 0.0)
        y = jnp.dot(y, w4[...], preferred_element_type=f32) + b4[...]            # (M, OUT_PAD)
        o_ref[...] = y.astype(o_ref.dtype)                                       # lane-dense store


# ------------------------------------ Pallas wrapper --------------------------------------
def fused_grounding_heads(raw_flang, raw_fvisu, params):
    """One pallas_call for mapping_lang + all three per-scale heads."""
    f32 = jnp.float32
    B = raw_flang.shape[0]
    ml1, ml2 = params["mapping_lang"]
    inputs = [raw_flang, ml1["w"], ml1["b"], ml2["w"], ml2["b"]]
    scales, out_shapes, scratch = [], [], []
    for fv, h in zip(raw_fvisu, params["head"]):
        _, H, W, Cin = (int(d) for d in fv.shape)
        HW, M = H * W, B * H * W
        scales.append((H, W, Cin))
        fv_flat = fv.reshape(M, Cin)                                   # NHWC rows are (b, h, w)-major
        sel = jnp.repeat(jnp.eye(B, dtype=f32), HW, axis=0)            # (M, B) batch one-hot
        cb = jnp.tile(h["cb"], (B, 1))                                 # (M, E) coord@w0c + bias
        msk = jnp.tile(h["mask"], (B, 1))                              # (M, 9) 3x3 validity mask
        inputs += [fv_flat, sel, cb, msk,
                   h["wv"], h["bv"], h["w0v"], h["w0l"],
                   h["w1"], h["b1"], h["w2"], h["b2"],
                   h["w3"], h["b3"], h["w4"], h["b4"]]
        out_shapes.append(jax.ShapeDtypeStruct((M, OUT_PAD), f32))
        scratch.append(pltpu.VMEM((M + 2 * W + 2, EMB), f32))
    kern = functools.partial(_fused_grounding_kernel, scales=tuple(scales), B=B, E=EMB)
    outs = pl.pallas_call(                      # no grid: whole (tiny) problem in one VMEM block
        kern,
        out_shape=tuple(out_shapes),
        scratch_shapes=scratch,
    )(*inputs)

    outbox = []
    for (H, W, _), o in zip(scales, outs):
        o = o[:, :N_OUT].reshape(B, H, W, N_OUT)                       # strip lane padding
        outbox.append(jnp.transpose(o, (0, 3, 1, 2)))                  # NCHW like the PyTorch module
    return outbox


# ------------------------------------ plain-JAX glue --------------------------------------
def backbone_stub(params, image_nchw):
    # TODO(synk): stand-in for Darknet; avg-pool to each scale + fixed random channel projection.
    x = jnp.transpose(image_nchw, (0, 2, 3, 1))  # NHWC
    B, Himg = x.shape[0], x.shape[1]
    feats = []
    for s, proj in zip(SPATIALS, params["backbone_proj"]):
        k = Himg // s
        pooled = x.reshape(B, s, k, s, k, 3).mean(axis=(2, 4))         # (B, s, s, 3)
        feats.append(jax.nn.relu(pooled @ proj))                       # (B, s, s, C)
    return feats


def text_stub(params, word_id, word_mask):
    # TODO(synk): stand-in for BertModel; masked-mean of a fixed random embedding table.
    emb = params["word_emb"][word_id]                                  # (B, L, TEXTDIM)
    m = word_mask.astype(jnp.float32)[..., None]
    return (emb * m).sum(1) / jnp.maximum(m.sum(1), 1.0)               # (B, TEXTDIM)


# --------------------------------- parameter construction ---------------------------------
def _bn_fold(key, c, eps=1e-5):
    """Eval-mode BatchNorm folded to per-channel (scale, bias)."""
    k1, k2, k3, k4 = jax.random.split(key, 4)
    gamma = 1.0 + 0.1 * jax.random.normal(k1, (c,), jnp.float32)
    beta = 0.1 * jax.random.normal(k2, (c,), jnp.float32)
    mean = 0.1 * jax.random.normal(k3, (c,), jnp.float32)
    var = 0.5 + jax.random.uniform(k4, (c,), jnp.float32)
    scale = gamma / jnp.sqrt(var + eps)
    bias = beta - mean * scale
    return scale, bias


def _conv_w(key, cin, cout, k=1):
    std = (2.0 / (cin * k * k)) ** 0.5
    if k == 1:
        return std * jax.random.normal(key, (cin, cout), jnp.float32)
    return std * jax.random.normal(key, (k, k, cin, cout), jnp.float32)


def _coord_features(H, W):
    """Exact port of generate_coord, channels-last, flattened to (HW, 8)."""
    xv, yv = jnp.meshgrid(jnp.arange(H, dtype=jnp.float32),
                          jnp.arange(W, dtype=jnp.float32), indexing="ij")
    xv_min = (xv * 2 - W) / W
    yv_min = (yv * 2 - H) / H
    xv_max = ((xv + 1) * 2 - W) / W
    yv_max = ((yv + 1) * 2 - H) / H
    xv_ctr = (xv_min + xv_max) / 2
    yv_ctr = (yv_min + yv_max) / 2
    hmap = jnp.full((H, W), 1.0 / H, jnp.float32)
    wmap = jnp.full((H, W), 1.0 / W, jnp.float32)
    coord = jnp.stack([xv_min, yv_min, xv_max, yv_max, xv_ctr, yv_ctr, hmap, wmap], axis=-1)
    return coord.reshape(H * W, 8)


def _conv3x3_masks(H, W):
    """(HW, 9) validity mask: tap (dy,dx) valid iff the 3x3 neighbour is inside the image."""
    hh, ww = jnp.meshgrid(jnp.arange(H), jnp.arange(W), indexing="ij")
    cols = []
    for dy in (-1, 0, 1):
        for dx in (-1, 0, 1):
            valid = (hh + dy >= 0) & (hh + dy < H) & (ww + dx >= 0) & (ww + dx < W)
            cols.append(valid.reshape(H * W).astype(jnp.float32))
    return jnp.stack(cols, axis=-1)


def init_params(key):
    keys = iter(jax.random.split(key, 128))
    params = {}
    params["backbone_proj"] = [0.5 * jax.random.normal(next(keys), (3, c), jnp.float32) for c in C_VISU]
    params["word_emb"] = 0.1 * jax.random.normal(next(keys), (VOCAB, TEXTDIM), jnp.float32)

    # mapping_lang: Linear -> BN1d -> ReLU -> Dropout -> Linear -> BN1d -> ReLU
    # (linear bias + BN folded:  relu(x @ (W*s) + (b_lin*s + b_bn)) )
    ml = []
    for cin, cout in [(TEXTDIM, EMB), (EMB, EMB)]:
        w = (1.0 / cin ** 0.5) * jax.random.normal(next(keys), (cin, cout), jnp.float32)
        b_lin = (1.0 / cin ** 0.5) * jax.random.normal(next(keys), (cout,), jnp.float32)
        s, b_bn = _bn_fold(next(keys), cout)
        ml.append(dict(w=w * s, b=(b_lin * s + b_bn).reshape(1, cout)))
    params["mapping_lang"] = ml

    # per-scale fused-head params (all BN scales pre-folded into weights)
    heads = []
    for c, sp in zip(C_VISU, SPATIALS):
        H = W = sp
        h = {}
        # mapping_visu: ConvBatchNormReLU(Cin, emb, 1, 1, 0, 1)
        w = _conv_w(next(keys), c, EMB); s, b = _bn_fold(next(keys), EMB)
        h["wv"] = w * s
        h["bv"] = b.reshape(1, EMB)
        # fcn_emb[0]: 1x1 CBR embin->emb, split into visu / lang / coord column blocks.
        # The coord block + BN bias is precomputed into a per-pixel bias map (review item 3).
        w = _conv_w(next(keys), EMBIN, EMB); s, b = _bn_fold(next(keys), EMB)
        wf = w * s
        h["w0v"] = wf[:EMB]
        h["w0l"] = wf[EMB:2 * EMB]
        h["cb"] = _coord_features(H, W) @ wf[2 * EMB:] + b.reshape(1, EMB)     # (HW, EMB)
        # fcn_emb[1]: 3x3 CBR emb->emb, stored tap-major (9*EMB, EMB); plus boundary masks
        w = _conv_w(next(keys), EMB, EMB, k=3); s, b = _bn_fold(next(keys), EMB)
        h["w1"] = (w * s).reshape(9 * EMB, EMB)
        h["b1"] = b.reshape(1, EMB)
        h["mask"] = _conv3x3_masks(H, W)                                       # (HW, 9)
        # fcn_emb[2]: 1x1 CBR emb->emb
        w = _conv_w(next(keys), EMB, EMB); s, b = _bn_fold(next(keys), EMB)
        h["w2"] = w * s
        h["b2"] = b.reshape(1, EMB)
        # fcn_out[0]: 1x1 CBR emb->emb//2, output zero-padded to E2P lanes
        w = _conv_w(next(keys), EMB, EMB // 2); s, b = _bn_fold(next(keys), EMB // 2)
        h["w3"] = jnp.pad(w * s, ((0, 0), (0, E2P - EMB // 2)))
        h["b3"] = jnp.pad(b, (0, E2P - EMB // 2)).reshape(1, E2P)
        # fcn_out[1]: 1x1 Conv emb//2 -> 15 (with bias); input padded to E2P, output to 128 lanes
        w4 = _conv_w(next(keys), EMB // 2, N_OUT)
        b4 = 0.01 * jax.random.normal(next(keys), (N_OUT,), jnp.float32)
        h["w4"] = jnp.pad(w4, ((0, E2P - EMB // 2), (0, OUT_PAD - N_OUT)))
        h["b4"] = jnp.pad(b4, (0, OUT_PAD - N_OUT)).reshape(1, OUT_PAD)
        heads.append(h)
    params["head"] = heads
    return params


# ------------------------------------- forward pass ---------------------------------------
def grounding_forward(params, image, word_id, word_mask):
    raw_fvisu = backbone_stub(params, image)             # list of NHWC features (Darknet stub)
    raw_flang = text_stub(params, word_id, word_mask)    # (B, TEXTDIM)          (BERT stub)
    # mapping_lang + mapping_visu + concat + fcn_emb + fcn_out for all scales: ONE kernel launch
    return fused_grounding_heads(raw_flang, raw_fvisu, params)


# ----------------------------------------- main --------------------------------------------
if __name__ == "__main__":
    root = jax.random.PRNGKey(0)
    k_img, k_wid, _ = jax.random.split(root, 3)

    B, L = 2, 8
    image = jax.random.normal(k_img, (B, 3, 64, 64), jnp.float32)          # NCHW, like PyTorch
    word_id = jax.random.randint(k_wid, (B, L), 1, VOCAB).astype(jnp.int32)
    word_id = word_id.at[:, -2:].set(0)                                     # some padding tokens
    word_mask = (word_id != 0).astype(jnp.int32)

    params = init_params(jax.random.PRNGKey(42))

    fwd = jax.jit(grounding_forward)
    outbox = jax.block_until_ready(fwd(params, image, word_id, word_mask))

    expected = [(B, N_OUT, s, s) for s in SPATIALS]
    got = [tuple(map(int, o.shape)) for o in outbox]
    assert got == expected, (got, expected)
    assert all(bool(jnp.all(jnp.isfinite(o))) for o in outbox)
    print("KERNEL_OK")
</pallas_src>

<mosaic_0001>
module attributes {stable_mosaic.version = 11 : i64} {
  func.func @_fused_grounding_kernel(%arg0: memref<2x48xf32, #tpu.memory_space<vmem>>, %arg1: memref<48x32xf32, #tpu.memory_space<vmem>>, %arg2: memref<1x32xf32, #tpu.memory_space<vmem>>, %arg3: memref<32x32xf32, #tpu.memory_space<vmem>>, %arg4: memref<1x32xf32, #tpu.memory_space<vmem>>, %arg5: memref<8x64xf32, #tpu.memory_space<vmem>>, %arg6: memref<8x2xf32, #tpu.memory_space<vmem>>, %arg7: memref<8x32xf32, #tpu.memory_space<vmem>>, %arg8: memref<8x9xf32, #tpu.memory_space<vmem>>, %arg9: memref<64x32xf32, #tpu.memory_space<vmem>>, %arg10: memref<1x32xf32, #tpu.memory_space<vmem>>, %arg11: memref<32x32xf32, #tpu.memory_space<vmem>>, %arg12: memref<32x32xf32, #tpu.memory_space<vmem>>, %arg13: memref<288x32xf32, #tpu.memory_space<vmem>>, %arg14: memref<1x32xf32, #tpu.memory_space<vmem>>, %arg15: memref<32x32xf32, #tpu.memory_space<vmem>>, %arg16: memref<1x32xf32, #tpu.memory_space<vmem>>, %arg17: memref<32x32xf32, #tpu.memory_space<vmem>>, %arg18: memref<1x32xf32, #tpu.memory_space<vmem>>, %arg19: memref<32x128xf32, #tpu.memory_space<vmem>>, %arg20: memref<1x128xf32, #tpu.memory_space<vmem>>, %arg21: memref<32x32xf32, #tpu.memory_space<vmem>>, %arg22: memref<32x2xf32, #tpu.memory_space<vmem>>, %arg23: memref<32x32xf32, #tpu.memory_space<vmem>>, %arg24: memref<32x9xf32, #tpu.memory_space<vmem>>, %arg25: memref<32x32xf32, #tpu.memory_space<vmem>>, %arg26: memref<1x32xf32, #tpu.memory_space<vmem>>, %arg27: memref<32x32xf32, #tpu.memory_space<vmem>>, %arg28: memref<32x32xf32, #tpu.memory_space<vmem>>, %arg29: memref<288x32xf32, #tpu.memory_space<vmem>>, %arg30: memref<1x32xf32, #tpu.memory_space<vmem>>, %arg31: memref<32x32xf32, #tpu.memory_space<vmem>>, %arg32: memref<1x32xf32, #tpu.memory_space<vmem>>, %arg33: memref<32x32xf32, #tpu.memory_space<vmem>>, %arg34: memref<1x32xf32, #tpu.memory_space<vmem>>, %arg35: memref<32x128xf32, #tpu.memory_space<vmem>>, %arg36: memref<1x128xf32, #tpu.memory_space<vmem>>, %arg37: memref<128x16xf32, #tpu.memory_space<vmem>>, %arg38: memref<128x2xf32, #tpu.memory_space<vmem>>, %arg39: memref<128x32xf32, #tpu.memory_space<vmem>>, %arg40: memref<128x9xf32, #tpu.memory_space<vmem>>, %arg41: memref<16x32xf32, #tpu.memory_space<vmem>>, %arg42: memref<1x32xf32, #tpu.memory_space<vmem>>, %arg43: memref<32x32xf32, #tpu.memory_space<vmem>>, %arg44: memref<32x32xf32, #tpu.memory_space<vmem>>, %arg45: memref<288x32xf32, #tpu.memory_space<vmem>>, %arg46: memref<1x32xf32, #tpu.memory_space<vmem>>, %arg47: memref<32x32xf32, #tpu.memory_space<vmem>>, %arg48: memref<1x32xf32, #tpu.memory_space<vmem>>, %arg49: memref<32x32xf32, #tpu.memory_space<vmem>>, %arg50: memref<1x32xf32, #tpu.memory_space<vmem>>, %arg51: memref<32x128xf32, #tpu.memory_space<vmem>>, %arg52: memref<1x128xf32, #tpu.memory_space<vmem>>, %arg53: memref<8x128xf32, #tpu.memory_space<vmem>>, %arg54: memref<32x128xf32, #tpu.memory_space<vmem>>, %arg55: memref<128x128xf32, #tpu.memory_space<vmem>>, %arg56: memref<14x32xf32, #tpu.memory_space<vmem>>, %arg57: memref<42x32xf32, #tpu.memory_space<vmem>>, %arg58: memref<146x32xf32, #tpu.memory_space<vmem>>) attributes {dimension_semantics = [], scalar_prefetch = 0 : i64, scratch_operands = 3 : i64, tpu.core_type = #tpu.core_type<tc>} {
    %c0 = arith.constant 0 : index
    %c0_0 = arith.constant 0 : index
    %0 = vector.load %arg0[%c0, %c0_0] : memref<2x48xf32, #tpu.memory_space<vmem>>, vector<2x48xf32>
    %c0_1 = arith.constant 0 : index
    %c0_2 = arith.constant 0 : index
    %1 = vector.load %arg1[%c0_1, %c0_2] : memref<48x32xf32, #tpu.memory_space<vmem>>, vector<48x32xf32>
    %cst = arith.constant dense<0.000000e+00> : vector<2x32xf32>
    %2 = tpu.matmul %0, %1, %cst {dimension_numbers = #tpu.dot_dimension_numbers<[1], [0], [0], [1], [0, 0, 1, 1], [], []>} : vector<2x48xf32>, vector<48x32xf32>, vector<2x32xf32> -> vector<2x32xf32>
    %c0_3 = arith.constant 0 : index
    %c0_4 = arith.constant 0 : index
    %3 = vector.load %arg2[%c0_3, %c0_4] : memref<1x32xf32, #tpu.memory_space<vmem>>, vector<1x32xf32>
    %4 = vector.broadcast %3 : vector<1x32xf32> to vector<2x32xf32>
    %5 = arith.addf %2, %4 : vector<2x32xf32>
    %cst_5 = arith.constant 0.000000e+00 : f32
    %6 = vector.broadcast %cst_5 : f32 to vector<2x32xf32>
    %7 = arith.maximumf %5, %6 : vector<2x32xf32>
    %c0_6 = arith.constant 0 : index
    %c0_7 = arith.constant 0 : index
    %8 = vector.load %arg3[%c0_6, %c0_7] : memref<32x32xf32, #tpu.memory_space<vmem>>, vector<32x32xf32>
    %cst_8 = arith.constant dense<0.000000e+00> : vector<2x32xf32>
    %9 = tpu.matmul %7, %8, %cst_8 {dimension_numbers = #tpu.dot_dimension_numbers<[1], [0], [0], [1], [0, 0, 1, 1], [], []>} : vector<2x32xf32>, vector<32x32xf32>, vector<2x32xf32> -> vector<2x32xf32>
    %c0_9 = arith.constant 0 : index
    %c0_10 = arith.constant 0 : index
    %10 = vector.load %arg4[%c0_9, %c0_10] : memref<1x32xf32, #tpu.memory_space<vmem>>, vector<1x32xf32>
    %11 = vector.broadcast %10 : vector<1x32xf32> to vector<2x32xf32>
    %12 = arith.addf %9, %11 : vector<2x32xf32>
    %cst_11 = arith.constant 0.000000e+00 : f32
    %13 = vector.broadcast %cst_11 : f32 to vector<2x32xf32>
    %14 = arith.maximumf %12, %13 : vector<2x32xf32>
    %15 = arith.mulf %14, %14 : vector<2x32xf32>
    %cst_12 = arith.constant dense<0.000000e+00> : vector<2xf32>
    %16 = vector.multi_reduction <add>, %15, %cst_12 [1] : vector<2x32xf32> to vector<2xf32>
    %17 = vector.shape_cast %16 : vector<2xf32> to vector<2x1xf32>
    %cst_13 = arith.constant 1.000000e-24 : f32
    %18 = vector.broadcast %cst_13 : f32 to vector<2x1xf32>
    %19 = arith.maximumf %17, %18 : vector<2x1xf32>
    %20 = math.rsqrt %19 : vector<2x1xf32>
    %21 = vector.broadcast %20 : vector<2x1xf32> to vector<2x32xf32>
    %22 = arith.mulf %14, %21 : vector<2x32xf32>
    %c0_14 = arith.constant 0 : index
    %c0_15 = arith.constant 0 : index
    %23 = vector.load %arg5[%c0_14, %c0_15] : memref<8x64xf32, #tpu.memory_space<vmem>>, vector<8x64xf32>
    %c0_16 = arith.constant 0 : index
    %c0_17 = arith.constant 0 : index
    %24 = vector.load %arg9[%c0_16, %c0_17] : memref<64x32xf32, #tpu.memory_space<vmem>>, vector<64x32xf32>
    %cst_18 = arith.constant dense<0.000000e+00> : vector<8x32xf32>
    %25 = tpu.matmul %23, %24, %cst_18 {dimension_numbers = #tpu.dot_dimension_numbers<[1], [0], [0], [1], [0, 0, 1, 1], [], []>} : vector<8x64xf32>, vector<64x32xf32>, vector<8x32xf32> -> vector<8x32xf32>
    %c0_19 = arith.constant 0 : index
    %c0_20 = arith.constant 0 : index
    %26 = vector.load %arg10[%c0_19, %c0_20] : memref<1x32xf32, #tpu.memory_space<vmem>>, vector<1x32xf32>
    %27 = vector.broadcast %26 : vector<1x32xf32> to vector<8x32xf32>
    %28 = arith.addf %25, %27 : vector<8x32xf32>
    %cst_21 = arith.constant 0.000000e+00 : f32
    %29 = vector.broadcast %cst_21 : f32 to vector<8x32xf32>
    %30 = arith.maximumf %28, %29 : vector<8x32xf32>
    %31 = arith.mulf %30, %30 : vector<8x32xf32>
    %cst_22 = arith.constant dense<0.000000e+00> : vector<8xf32>
    %32 = vector.multi_reduction <add>, %31, %cst_22 [1] : vector<8x32xf32> to vector<8xf32>
    %33 = vector.shape_cast %32 : vector<8xf32> to vector<8x1xf32>
    %cst_23 = arith.constant 1.000000e-24 : f32
    %34 = vector.broadcast %cst_23 : f32 to vector<8x1xf32>
    %35 = arith.maximumf %33, %34 : vector<8x1xf32>
    %36 = math.rsqrt %35 : vector<8x1xf32>
    %37 = vector.broadcast %36 : vector<8x1xf32> to vector<8x32xf32>
    %38 = arith.mulf %30, %37 : vector<8x32xf32>
    %c0_24 = arith.constant 0 : index
    %c0_25 = arith.constant 0 : index
    %39 = vector.load %arg12[%c0_24, %c0_25] : memref<32x32xf32, #tpu.memory_space<vmem>>, vector<32x32xf32>
    %cst_26 = arith.constant dense<0.000000e+00> : vector<2x32xf32>
    %40 = tpu.matmul %22, %39, %cst_26 {dimension_numbers = #tpu.dot_dimension_numbers<[1], [0], [0], [1], [0, 0, 1, 1], [], []>} : vector<2x32xf32>, vector<32x32xf32>, vector<2x32xf32> -> vector<2x32xf32>
    %c0_27 = arith.constant 0 : index
    %c0_28 = arith.constant 0 : index
    %41 = vector.load %arg11[%c0_27, %c0_28] : memref<32x32xf32, #tpu.memory_space<vmem>>, vector<32x32xf32>
    %cst_29 = arith.constant dense<0.000000e+00> : vector<8x32xf32>
    %42 = tpu.matmul %38, %41, %cst_29 {dimension_numbers = #tpu.dot_dimension_numbers<[1], [0], [0], [1], [0, 0, 1, 1], [], []>} : vector<8x32xf32>, vector<32x32xf32>, vector<8x32xf32> -> vector<8x32xf32>
    %c0_30 = arith.constant 0 : index
    %c0_31 = arith.constant 0 : index
    %43 = vector.load %arg6[%c0_30, %c0_31] : memref<8x2xf32, #tpu.memory_space<vmem>>, vector<8x2xf32>
    %cst_32 = arith.constant dense<0.000000e+00> : vector<8x32xf32>
    %44 = tpu.matmul %43, %40, %cst_32 {dimension_numbers = #tpu.dot_dimension_numbers<[1], [0], [0], [1], [0, 0, 1, 1], [], []>} : vector<8x2xf32>, vector<2x32xf32>, vector<8x32xf32> -> vector<8x32xf32>
    %45 = arith.addf %42, %44 : vector<8x32xf32>
    %c0_33 = arith.constant 0 : index
    %c0_34 = arith.constant 0 : index
    %46 = vector.load %arg7[%c0_33, %c0_34] : memref<8x32xf32, #tpu.memory_space<vmem>>, vector<8x32xf32>
    %47 = arith.addf %45, %46 : vector<8x32xf32>
    %cst_35 = arith.constant 0.000000e+00 : f32
    %48 = vector.broadcast %cst_35 : f32 to vector<8x32xf32>
    %49 = arith.maximumf %47, %48 : vector<8x32xf32>
    %cst_36 = arith.constant 0.000000e+00 : f32
    %50 = vector.broadcast %cst_36 : f32 to vector<3x32xf32>
    %c0_37 = arith.constant 0 : index
    %c0_38 = arith.constant 0 : index
    %51 = vector.load %arg56[%c0_37, %c0_38] : memref<14x32xf32, #tpu.memory_space<vmem>>, vector<3x32xf32>
    tpu.vector_store %arg56[%c0_37, %c0_38], %50 {strides = array<i32>} : memref<14x32xf32, #tpu.memory_space<vmem>>, vector<3x32xf32>,
    %cst_39 = arith.constant 0.000000e+00 : f32
    %52 = vector.broadcast %cst_39 : f32 to vector<3x32xf32>
    %c11 = arith.constant 11 : index
    %c0_40 = arith.constant 0 : index
    %53 = vector.load %arg56[%c11, %c0_40] : memref<14x32xf32, #tpu.memory_space<vmem>>, vector<3x32xf32>
    tpu.vector_store %arg56[%c11, %c0_40], %52 {strides = array<i32>} : memref<14x32xf32, #tpu.memory_space<vmem>>, vector<3x32xf32>,
    %c3 = arith.constant 3 : index
    %c0_41 = arith.constant 0 : index
    %54 = vector.load %arg56[%c3, %c0_41] : memref<14x32xf32, #tpu.memory_space<vmem>>, vector<8x32xf32>
    tpu.vector_store %arg56[%c3, %c0_41], %49 {strides = array<i32>} : memref<14x32xf32, #tpu.memory_space<vmem>>, vector<8x32xf32>,
    %c0_42 = arith.constant 0 : index
    %c0_43 = arith.constant 0 : index
    %55 = vector.load %arg56[%c0_42, %c0_43] : memref<14x32xf32, #tpu.memory_space<vmem>>, vector<8x32xf32>
    %c0_44 = arith.constant 0 : index
    %c0_45 = arith.constant 0 : index
    %56 = vector.load %arg8[%c0_44, %c0_45] : memref<8x9xf32, #tpu.memory_space<vmem>>, vector<8x1xf32>
    %57 = vector.broadcast %56 : vector<8x1xf32> to vector<8x32xf32>
    %58 = arith.mulf %55, %57 : vector<8x32xf32>
    %c0_46 = arith.constant 0 : index
    %c0_47 = arith.constant 0 : index
    %59 = vector.load %arg13[%c0_46, %c0_47] : memref<288x32xf32, #tpu.memory_space<vmem>>, vector<32x32xf32>
    %cst_48 = arith.constant dense<0.000000e+00> : vector<8x32xf32>
    %60 = tpu.matmul %58, %59, %cst_48 {dimension_numbers = #tpu.dot_dimension_numbers<[1], [0], [0], [1], [0, 0, 1, 1], [], []>} : vector<8x32xf32>, vector<32x32xf32>, vector<8x32xf32> -> vector<8x32xf32>
    %c1 = arith.constant 1 : index
    %c0_49 = arith.constant 0 : index
    %61 = vector.load %arg56[%c1, %c0_49] : memref<14x32xf32, #tpu.memory_space<vmem>>, vector<8x32xf32>
    %c0_50 = arith.constant 0 : index
    %c1_51 = arith.constant 1 : index
    %62 = vector.load %arg8[%c0_50, %c1_51] : memref<8x9xf32, #tpu.memory_space<vmem>>, vector<8x1xf32>
    %63 = vector.broadcast %62 : vector<8x1xf32> to vector<8x32xf32>
    %64 = arith.mulf %61, %63 : vector<8x32xf32>
    %c32 = arith.constant 32 : index
    %c0_52 = arith.constant 0 : index
    %65 = vector.load %arg13[%c32, %c0_52] : memref<288x32xf32, #tpu.memory_space<vmem>>, vector<32x32xf32>
    %cst_53 = arith.constant dense<0.000000e+00> : vector<8x32xf32>
    %66 = tpu.matmul %64, %65, %cst_53 {dimension_numbers = #tpu.dot_dimension_numbers<[1], [0], [0], [1], [0, 0, 1, 1], [], []>} : vector<8x32xf32>, vector<32x32xf32>, vector<8x32xf32> -> vector<8x32xf32>
    %67 = arith.addf %60, %66 : vector<8x32xf32>
    %c2 = arith.constant 2 : index
    %c0_54 = arith.constant 0 : index
    %68 = vector.load %arg56[%c2, %c0_54] : memref<14x32xf32, #tpu.memory_space<vmem>>, vector<8x32xf32>
    %c0_55 = arith.constant 0 : index
    %c2_56 = arith.constant 2 : index
    %69 = vector.load %arg8[%c0_55, %c2_56] : memref<8x9xf32, #tpu.memory_space<vmem>>, vector<8x1xf32>
    %70 = vector.broadcast %69 : vector<8x1xf32> to vector<8x32xf32>
    %71 = arith.mulf %68, %70 : vector<8x32xf32>
    %c64 = arith.constant 64 : index
    %c0_57 = arith.constant 0 : index
    %72 = vector.load %arg13[%c64, %c0_57] : memref<288x32xf32, #tpu.memory_space<vmem>>, vector<32x32xf32>
    %cst_58 = arith.constant dense<0.000000e+00> : vector<8x32xf32>
    %73 = tpu.matmul %71, %72, %cst_58 {dimension_numbers = #tpu.dot_dimension_numbers<[1], [0], [0], [1], [0, 0, 1, 1], [], []>} : vector<8x32xf32>, vector<32x32xf32>, vector<8x32xf32> -> vector<8x32xf32>
    %74 = arith.addf %67, %73 : vector<8x32xf32>
    %c2_59 = arith.constant 2 : index
    %c0_60 = arith.constant 0 : index
    %75 = vector.load %arg56[%c2_59, %c0_60] : memref<14x32xf32, #tpu.memory_space<vmem>>, vector<8x32xf32>
    %c0_61 = arith.constant 0 : index
    %c3_62 = arith.constant 3 : index
    %76 = vector.load %arg8[%c0_61, %c3_62] : memref<8x9xf32, #tpu.memory_space<vmem>>, vector<8x1xf32>
    %77 = vector.broadcast %76 : vector<8x1xf32> to vector<8x32xf32>
    %78 = arith.mulf %75, %77 : vector<8x32xf32>
    %c96 = arith.constant 96 : index
    %c0_63 = arith.constant 0 : index
    %79 = vector.load %arg13[%c96, %c0_63] : memref<288x32xf32, #tpu.memory_space<vmem>>, vector<32x32xf32>
    %cst_64 = arith.constant dense<0.000000e+00> : vector<8x32xf32>
    %80 = tpu.matmul %78, %79, %cst_64 {dimension_numbers = #tpu.dot_dimension_numbers<[1], [0], [0], [1], [0, 0, 1, 1], [], []>} : vector<8x32xf32>, vector<32x32xf32>, vector<8x32xf32> -> vector<8x32xf32>
    %81 = arith.addf %74, %80 : vector<8x32xf32>
    %c3_65 = arith.constant 3 : index
    %c0_66 = arith.constant 0 : index
    %82 = vector.load %arg56[%c3_65, %c0_66] : memref<14x32xf32, #tpu.memory_space<vmem>>, vector<8x32xf32>
    %c0_67 = arith.constant 0 : index
    %c4 = arith.constant 4 : index
    %83 = vector.load %arg8[%c0_67, %c4] : memref<8x9xf32, #tpu.memory_space<vmem>>, vector<8x1xf32>
    %84 = vector.broadcast %83 : vector<8x1xf32> to vector<8x32xf32>
    %85 = arith.mulf %82, %84 : vector<8x32xf32>
    %c128 = arith.constant 128 : index
    %c0_68 = arith.constant 0 : index
    %86 = vector.load %arg13[%c128, %c0_68] : memref<288x32xf32, #tpu.memory_space<vmem>>, vector<32x32xf32>
    %cst_69 = arith.constant dense<0.000000e+00> : vector<8x32xf32>
    %87 = tpu.matmul %85, %86, %cst_69 {dimension_numbers = #tpu.dot_dimension_numbers<[1], [0], [0], [1], [0, 0, 1, 1], [], []>} : vector<8x32xf32>, vector<32x32xf32>, vector<8x32xf32> -> vector<8x32xf32>
    %88 = arith.addf %81, %87 : vector<8x32xf32>
    %c4_70 = arith.constant 4 : index
    %c0_71 = arith.constant 0 : index
    %89 = vector.load %arg56[%c4_70, %c0_71] : memref<14x32xf32, #tpu.memory_space<vmem>>, vector<8x32xf32>
    %c0_72 = arith.constant 0 : index
    %c5 = arith.constant 5 : index
    %90 = vector.load %arg8[%c0_72, %c5] : memref<8x9xf32, #tpu.memory_space<vmem>>, vector<8x1xf32>
    %91 = vector.broadcast %90 : vector<8x1xf32> to vector<8x32xf32>
    %92 = arith.mulf %89, %91 : vector<8x32xf32>
    %c160 = arith.constant 160 : index
    %c0_73 = arith.constant 0 : index
    %93 = vector.load %arg13[%c160, %c0_73] : memref<288x32xf32, #tpu.memory_space<vmem>>, vector<32x32xf32>
    %cst_74 = arith.constant dense<0.000000e+00> : vector<8x32xf32>
    %94 = tpu.matmul %92, %93, %cst_74 {dimension_numbers = #tpu.dot_dimension_numbers<[1], [0], [0], [1], [0, 0, 1, 1], [], []>} : vector<8x32xf32>, vector<32x32xf32>, vector<8x32xf32> -> vector<8x32xf32>
    %95 = arith.addf %88, %94 : vector<8x32xf32>
    %c4_75 = arith.constant 4 : index
    %c0_76 = arith.constant 0 : index
    %96 = vector.load %arg56[%c4_75, %c0_76] : memref<14x32xf32, #tpu.memory_space<vmem>>, vector<8x32xf32>
    %c0_77 = arith.constant 0 : index
    %c6 = arith.constant 6 : index
    %97 = vector.load %arg8[%c0_77, %c6] : memref<8x9xf32, #tpu.memory_space<vmem>>, vector<8x1xf32>
    %98 = vector.broadcast %97 : vector<8x1xf32> to vector<8x32xf32>
    %99 = arith.mulf %96, %98 : vector<8x32xf32>
    %c192 = arith.constant 192 : index
    %c0_78 = arith.constant 0 : index
    %100 = vector.load %arg13[%c192, %c0_78] : memref<288x32xf32, #tpu.memory_space<vmem>>, vector<32x32xf32>
    %cst_79 = arith.constant dense<0.000000e+00> : vector<8x32xf32>
    %101 = tpu.matmul %99, %100, %cst_79 {dimension_numbers = #tpu.dot_dimension_numbers<[1], [0], [0], [1], [0, 0, 1, 1], [], []>} : vector<8x32xf32>, vector<32x32xf32>, vector<8x32xf32> -> vector<8x32xf32>
    %102 = arith.addf %95, %101 : vector<8x32xf32>
    %c5_80 = arith.constant 5 : index
    %c0_81 = arith.constant 0 : index
    %103 = vector.load %arg56[%c5_80, %c0_81] : memref<14x32xf32, #tpu.memory_space<vmem>>, vector<8x32xf32>
    %c0_82 = arith.constant 0 : index
    %c7 = arith.constant 7 : index
    %104 = vector.load %arg8[%c0_82, %c7] : memref<8x9xf32, #tpu.memory_space<vmem>>, vector<8x1xf32>
    %105 = vector.broadcast %104 : vector<8x1xf32> to vector<8x32xf32>
    %106 = arith.mulf %103, %105 : vector<8x32xf32>
    %c224 = arith.constant 224 : index
    %c0_83 = arith.constant 0 : index
    %107 = vector.load %arg13[%c224, %c0_83] : memref<288x32xf32, #tpu.memory_space<vmem>>, vector<32x32xf32>
    %cst_84 = arith.constant dense<0.000000e+00> : vector<8x32xf32>
    %108 = tpu.matmul %106, %107, %cst_84 {dimension_numbers = #tpu.dot_dimension_numbers<[1], [0], [0], [1], [0, 0, 1, 1], [], []>} : vector<8x32xf32>, vector<32x32xf32>, vector<8x32xf32> -> vector<8x32xf32>
    %109 = arith.addf %102, %108 : vector<8x32xf32>
    %c6_85 = arith.constant 6 : index
    %c0_86 = arith.constant 0 : index
    %110 = vector.load %arg56[%c6_85, %c0_86] : memref<14x32xf32, #tpu.memory_space<vmem>>, vector<8x32xf32>
    %c0_87 = arith.constant 0 : index
    %c8 = arith.constant 8 : index
    %111 = vector.load %arg8[%c0_87, %c8] : memref<8x9xf32, #tpu.memory_space<vmem>>, vector<8x1xf32>
    %112 = vector.broadcast %111 : vector<8x1xf32> to vector<8x32xf32>
    %113 = arith.mulf %110, %112 : vector<8x32xf32>
    %c256 = arith.constant 256 : index
    %c0_88 = arith.constant 0 : index
    %114 = vector.load %arg13[%c256, %c0_88] : memref<288x32xf32, #tpu.memory_space<vmem>>, vector<32x32xf32>
    %cst_89 = arith.constant dense<0.000000e+00> : vector<8x32xf32>
    %115 = tpu.matmul %113, %114, %cst_89 {dimension_numbers = #tpu.dot_dimension_numbers<[1], [0], [0], [1], [0, 0, 1, 1], [], []>} : vector<8x32xf32>, vector<32x32xf32>, vector<8x32xf32> -> vector<8x32xf32>
    %116 = arith.addf %109, %115 : vector<8x32xf32>
    %c0_90 = arith.constant 0 : index
    %c0_91 = arith.constant 0 : index
    %117 = vector.load %arg14[%c0_90, %c0_91] : memref<1x32xf32, #tpu.memory_space<vmem>>, vector<1x32xf32>
    %118 = vector.broadcast %117 : vector<1x32xf32> to vector<8x32xf32>
    %119 = arith.addf %116, %118 : vector<8x32xf32>
    %cst_92 = arith.constant 0.000000e+00 : f32
    %120 = vector.broadcast %cst_92 : f32 to vector<8x32xf32>
    %121 = arith.maximumf %119, %120 : vector<8x32xf32>
    %c0_93 = arith.constant 0 : index
    %c0_94 = arith.constant 0 : index
    %122 = vector.load %arg15[%c0_93, %c0_94] : memref<32x32xf32, #tpu.memory_space<vmem>>, vector<32x32xf32>
    %cst_95 = arith.constant dense<0.000000e+00> : vector<8x32xf32>
    %123 = tpu.matmul %121, %122, %cst_95 {dimension_numbers = #tpu.dot_dimension_numbers<[1], [0], [0], [1], [0, 0, 1, 1], [], []>} : vector<8x32xf32>, vector<32x32xf32>, vector<8x32xf32> -> vector<8x32xf32>
    %c0_96 = arith.constant 0 : index
    %c0_97 = arith.constant 0 : index
    %124 = vector.load %arg16[%c0_96, %c0_97] : memref<1x32xf32, #tpu.memory_space<vmem>>, vector<1x32xf32>
    %125 = vector.broadcast %124 : vector<1x32xf32> to vector<8x32xf32>
    %126 = arith.addf %123, %125 : vector<8x32xf32>
    %cst_98 = arith.constant 0.000000e+00 : f32
    %127 = vector.broadcast %cst_98 : f32 to vector<8x32xf32>
    %128 = arith.maximumf %126, %127 : vector<8x32xf32>
    %c0_99 = arith.constant 0 : index
    %c0_100 = arith.constant 0 : index
    %129 = vector.load %arg17[%c0_99, %c0_100] : memref<32x32xf32, #tpu.memory_space<vmem>>, vector<32x32xf32>
    %cst_101 = arith.constant dense<0.000000e+00> : vector<8x32xf32>
    %130 = tpu.matmul %128, %129, %cst_101 {dimension_numbers = #tpu.dot_dimension_numbers<[1], [0], [0], [1], [0, 0, 1, 1], [], []>} : vector<8x32xf32>, vector<32x32xf32>, vector<8x32xf32> -> vector<8x32xf32>
    %c0_102 = arith.constant 0 : index
    %c0_103 = arith.constant 0 : index
    %131 = vector.load %arg18[%c0_102, %c0_103] : memref<1x32xf32, #tpu.memory_space<vmem>>, vector<1x32xf32>
    %132 = vector.broadcast %131 : vector<1x32xf32> to vector<8x32xf32>
    %133 = arith.addf %130, %132 : vector<8x32xf32>
    %cst_104 = arith.constant 0.000000e+00 : f32
    %134 = vector.broadcast %cst_104 : f32 to vector<8x32xf32>
    %135 = arith.maximumf %133, %134 : vector<8x32xf32>
    %c0_105 = arith.constant 0 : index
    %c0_106 = arith.constant 0 : index
    %136 = vector.load %arg19[%c0_105, %c0_106] : memref<32x128xf32, #tpu.memory_space<vmem>>, vector<32x128xf32>
    %cst_107 = arith.constant dense<0.000000e+00> : vector<8x128xf32>
    %137 = tpu.matmul %135, %136, %cst_107 {dimension_numbers = #tpu.dot_dimension_numbers<[1], [0], [0], [1], [0, 0, 1, 1], [], []>} : vector<8x32xf32>, vector<32x128xf32>, vector<8x128xf32> -> vector<8x128xf32>
    %c0_108 = arith.constant 0 : index
    %c0_109 = arith.constant 0 : index
    %138 = vector.load %arg20[%c0_108, %c0_109] : memref<1x128xf32, #tpu.memory_space<vmem>>, vector<1x128xf32>
    %139 = vector.broadcast %138 : vector<1x128xf32> to vector<8x128xf32>
    %140 = arith.addf %137, %139 : vector<8x128xf32>
    %c0_110 = arith.constant 0 : index
    %c0_111 = arith.constant 0 : index
    %141 = vector.load %arg53[%c0_110, %c0_111] : memref<8x128xf32, #tpu.memory_space<vmem>>, vector<8x128xf32>
    tpu.vector_store %arg53[%c0_110, %c0_111], %140 {strides = array<i32>} : memref<8x128xf32, #tpu.memory_space<vmem>>, vector<8x128xf32>,
    %c0_112 = arith.constant 0 : index
    %c0_113 = arith.constant 0 : index
    %142 = vector.load %arg21[%c0_112, %c0_113] : memref<32x32xf32, #tpu.memory_space<vmem>>, vector<32x32xf32>
    %c0_114 = arith.constant 0 : index
    %c0_115 = arith.constant 0 : index
    %143 = vector.load %arg25[%c0_114, %c0_115] : memref<32x32xf32, #tpu.memory_space<vmem>>, vector<32x32xf32>
    %cst_116 = arith.constant dense<0.000000e+00> : vector<32x32xf32>
    %144 = tpu.matmul %142, %143, %cst_116 {dimension_numbers = #tpu.dot_dimension_numbers<[1], [0], [0], [1], [0, 0, 1, 1], [], []>} : vector<32x32xf32>, vector<32x32xf32>, vector<32x32xf32> -> vector<32x32xf32>
    %c0_117 = arith.constant 0 : index
    %c0_118 = arith.constant 0 : index
    %145 = vector.load %arg26[%c0_117, %c0_118] : memref<1x32xf32, #tpu.memory_space<vmem>>, vector<1x32xf32>
    %146 = vector.broadcast %145 : vector<1x32xf32> to vector<32x32xf32>
    %147 = arith.addf %144, %146 : vector<32x32xf32>
    %cst_119 = arith.constant 0.000000e+00 : f32
    %148 = vector.broadcast %cst_119 : f32 to vector<32x32xf32>
    %149 = arith.maximumf %147, %148 : vector<32x32xf32>
    %150 = arith.mulf %149, %149 : vector<32x32xf32>
    %cst_120 = arith.constant dense<0.000000e+00> : vector<32xf32>
    %151 = vector.multi_reduction <add>, %150, %cst_120 [1] : vector<32x32xf32> to vector<32xf32>
    %152 = vector.shape_cast %151 : vector<32xf32> to vector<32x1xf32>
    %cst_121 = arith.constant 1.000000e-24 : f32
    %153 = vector.broadcast %cst_121 : f32 to vector<32x1xf32>
    %154 = arith.maximumf %152, %153 : vector<32x1xf32>
    %155 = math.rsqrt %154 : vector<32x1xf32>
    %156 = vector.broadcast %155 : vector<32x1xf32> to vector<32x32xf32>
    %157 = arith.mulf %149, %156 : vector<32x32xf32>
    %c0_122 = arith.constant 0 : index
    %c0_123 = arith.constant 0 : index
    %158 = vector.load %arg28[%c0_122, %c0_123] : memref<32x32xf32, #tpu.memory_space<vmem>>, vector<32x32xf32>
    %cst_124 = arith.constant dense<0.000000e+00> : vector<2x32xf32>
    %159 = tpu.matmul %22, %158, %cst_124 {dimension_numbers = #tpu.dot_dimension_numbers<[1], [0], [0], [1], [0, 0, 1, 1], [], []>} : vector<2x32xf32>, vector<32x32xf32>, vector<2x32xf32> -> vector<2x32xf32>
    %c0_125 = arith.constant 0 : index
    %c0_126 = arith.constant 0 : index
    %160 = vector.load %arg27[%c0_125, %c0_126] : memref<32x32xf32, #tpu.memory_space<vmem>>, vector<32x32xf32>
    %cst_127 = arith.constant dense<0.000000e+00> : vector<32x32xf32>
    %161 = tpu.matmul %157, %160, %cst_127 {dimension_numbers = #tpu.dot_dimension_numbers<[1], [0], [0], [1], [0, 0, 1, 1], [], []>} : vector<32x32xf32>, vector<32x32xf32>, vector<32x32xf32> -> vector<32x32xf32>
    %c0_128 = arith.constant 0 : index
    %c0_129 = arith.constant 0 : index
    %162 = vector.load %arg22[%c0_128, %c0_129] : memref<32x2xf32, #tpu.memory_space<vmem>>, vector<32x2xf32>
    %cst_130 = arith.constant dense<0.000000e+00> : vector<32x32xf32>
    %163 = tpu.matmul %162, %159, %cst_130 {dimension_numbers = #tpu.dot_dimension_numbers<[1], [0], [0], [1], [0, 0, 1, 1], [], []>} : vector<32x2xf32>, vector<2x32xf32>, vector<32x32xf32> -> vector<32x32xf32>
    %164 = arith.addf %161, %163 : vector<32x32xf32>
    %c0_131 = arith.constant 0 : index
    %c0_132 = arith.constant 0 : index
    %165 = vector.load %arg23[%c0_131, %c0_132] : memref<32x32xf32, #tpu.memory_space<vmem>>, vector<32x32xf32>
    %166 = arith.addf %164, %165 : vector<32x32xf32>
    %cst_133 = arith.constant 0.000000e+00 : f32
    %167 = vector.broadcast %cst_133 : f32 to vector<32x32xf32>
    %168 = arith.maximumf %166, %167 : vector<32x32xf32>
    %cst_134 = arith.constant 0.000000e+00 : f32
    %169 = vector.broadcast %cst_134 : f32 to vector<5x32xf32>
    %c0_135 = arith.constant 0 : index
    %c0_136 = arith.constant 0 : index
    %170 = vector.load %arg57[%c0_135, %c0_136] : memref<42x32xf32, #tpu.memory_space<vmem>>, vector<5x32xf32>
    tpu.vector_store %arg57[%c0_135, %c0_136], %169 {strides = array<i32>} : memref<42x32xf32, #tpu.memory_space<vmem>>, vector<5x32xf32>,
    %cst_137 = arith.constant 0.000000e+00 : f32
    %171 = vector.broadcast %cst_137 : f32 to vector<5x32xf32>
    %c37 = arith.constant 37 : index
    %c0_138 = arith.constant 0 : index
    %172 = vector.load %arg57[%c37, %c0_138] : memref<42x32xf32, #tpu.memory_space<vmem>>, vector<5x32xf32>
    tpu.vector_store %arg57[%c37, %c0_138], %171 {strides = array<i32>} : memref<42x32xf32, #tpu.memory_space<vmem>>, vector<5x32xf32>,
    %c5_139 = arith.constant 5 : index
    %c0_140 = arith.constant 0 : index
    %173 = vector.load %arg57[%c5_139, %c0_140] : memref<42x32xf32, #tpu.memory_space<vmem>>, vector<32x32xf32>
    tpu.vector_store %arg57[%c5_139, %c0_140], %168 {strides = array<i32>} : memref<42x32xf32, #tpu.memory_space<vmem>>, vector<32x32xf32>,
    %c0_141 = arith.constant 0 : index
    %c0_142 = arith.constant 0 : index
    %174 = vector.load %arg57[%c0_141, %c0_142] : memref<42x32xf32, #tpu.memory_space<vmem>>, vector<32x32xf32>
    %c0_143 = arith.constant 0 : index
    %c0_144 = arith.constant 0 : index
    %175 = vector.load %arg24[%c0_143, %c0_144] : memref<32x9xf32, #tpu.memory_space<vmem>>, vector<32x1xf32>
    %176 = vector.broadcast %175 : vector<32x1xf32> to vector<32x32xf32>
    %177 = arith.mulf %174, %176 : vector<32x32xf32>
    %c0_145 = arith.constant 0 : index
    %c0_146 = arith.constant 0 : index
    %178 = vector.load %arg29[%c0_145, %c0_146] : memref<288x32xf32, #tpu.memory_space<vmem>>, vector<32x32xf32>
    %cst_147 = arith.constant dense<0.000000e+00> : vector<32x32xf32>
    %179 = tpu.matmul %177, %178, %cst_147 {dimension_numbers = #tpu.dot_dimension_numbers<[1], [0], [0], [1], [0, 0, 1, 1], [], []>} : vector<32x32xf32>, vector<32x32xf32>, vector<32x32xf32> -> vector<32x32xf32>
    %c1_148 = arith.constant 1 : index
    %c0_149 = arith.constant 0 : index
    %180 = vector.load %arg57[%c1_148, %c0_149] : memref<42x32xf32, #tpu.memory_space<vmem>>, vector<32x32xf32>
    %c0_150 = arith.constant 0 : index
    %c1_151 = arith.constant 1 : index
    %181 = vector.load %arg24[%c0_150, %c1_151] : memref<32x9xf32, #tpu.memory_space<vmem>>, vector<32x1xf32>
    %182 = vector.broadcast %181 : vector<32x1xf32> to vector<32x32xf32>
    %183 = arith.mulf %180, %182 : vector<32x32xf32>
    %c32_152 = arith.constant 32 : index
    %c0_153 = arith.constant 0 : index
    %184 = vector.load %arg29[%c32_152, %c0_153] : memref<288x32xf32, #tpu.memory_space<vmem>>, vector<32x32xf32>
    %cst_154 = arith.constant dense<0.000000e+00> : vector<32x32xf32>
    %185 = tpu.matmul %183, %184, %cst_154 {dimension_numbers = #tpu.dot_dimension_numbers<[1], [0], [0], [1], [0, 0, 1, 1], [], []>} : vector<32x32xf32>, vector<32x32xf32>, vector<32x32xf32> -> vector<32x32xf32>
    %186 = arith.addf %179, %185 : vector<32x32xf32>
    %c2_155 = arith.constant 2 : index
    %c0_156 = arith.constant 0 : index
    %187 = vector.load %arg57[%c2_155, %c0_156] : memref<42x32xf32, #tpu.memory_space<vmem>>, vector<32x32xf32>
    %c0_157 = arith.constant 0 : index
    %c2_158 = arith.constant 2 : index
    %188 = vector.load %arg24[%c0_157, %c2_158] : memref<32x9xf32, #tpu.memory_space<vmem>>, vector<32x1xf32>
    %189 = vector.broadcast %188 : vector<32x1xf32> to vector<32x32xf32>
    %190 = arith.mulf %187, %189 : vector<32x32xf32>
    %c64_159 = arith.constant 64 : index
    %c0_160 = arith.constant 0 : index
    %191 = vector.load %arg29[%c64_159, %c0_160] : memref<288x32xf32, #tpu.memory_space<vmem>>, vector<32x32xf32>
    %cst_161 = arith.constant dense<0.000000e+00> : vector<32x32xf32>
    %192 = tpu.matmul %190, %191, %cst_161 {dimension_numbers = #tpu.dot_dimension_numbers<[1], [0], [0], [1], [0, 0, 1, 1], [], []>} : vector<32x32xf32>, vector<32x32xf32>, vector<32x32xf32> -> vector<32x32xf32>
    %193 = arith.addf %186, %192 : vector<32x32xf32>
    %c4_162 = arith.constant 4 : index
    %c0_163 = arith.constant 0 : index
    %194 = vector.load %arg57[%c4_162, %c0_163] : memref<42x32xf32, #tpu.memory_space<vmem>>, vector<32x32xf32>
    %c0_164 = arith.constant 0 : index
    %c3_165 = arith.constant 3 : index
    %195 = vector.load %arg24[%c0_164, %c3_165] : memref<32x9xf32, #tpu.memory_space<vmem>>, vector<32x1xf32>
    %196 = vector.broadcast %195 : vector<32x1xf32> to vector<32x32xf32>
    %197 = arith.mulf %194, %196 : vector<32x32xf32>
    %c96_166 = arith.constant 96 : index
    %c0_167 = arith.constant 0 : index
    %198 = vector.load %arg29[%c96_166, %c0_167] : memref<288x32xf32, #tpu.memory_space<vmem>>, vector<32x32xf32>
    %cst_168 = arith.constant dense<0.000000e+00> : vector<32x32xf32>
    %199 = tpu.matmul %197, %198, %cst_168 {dimension_numbers = #tpu.dot_dimension_numbers<[1], [0], [0], [1], [0, 0, 1, 1], [], []>} : vector<32x32xf32>, vector<32x32xf32>, vector<32x32xf32> -> vector<32x32xf32>
    %200 = arith.addf %193, %199 : vector<32x32xf32>
    %c5_169 = arith.constant 5 : index
    %c0_170 = arith.constant 0 : index
    %201 = vector.load %arg57[%c5_169, %c0_170] : memref<42x32xf32, #tpu.memory_space<vmem>>, vector<32x32xf32>
    %c0_171 = arith.constant 0 : index
    %c4_172 = arith.constant 4 : index
    %202 = vector.load %arg24[%c0_171, %c4_172] : memref<32x9xf32, #tpu.memory_space<vmem>>, vector<32x1xf32>
    %203 = vector.broadcast %202 : vector<32x1xf32> to vector<32x32xf32>
    %204 = arith.mulf %201, %203 : vector<32x32xf32>
    %c128_173 = arith.constant 128 : index
    %c0_174 = arith.constant 0 : index
    %205 = vector.load %arg29[%c128_173, %c0_174] : memref<288x32xf32, #tpu.memory_space<vmem>>, vector<32x32xf32>
    %cst_175 = arith.constant dense<0.000000e+00> : vector<32x32xf32>
    %206 = tpu.matmul %204, %205, %cst_175 {dimension_numbers = #tpu.dot_dimension_numbers<[1], [0], [0], [1], [0, 0, 1, 1], [], []>} : vector<32x32xf32>, vector<32x32xf32>, vector<32x32xf32> -> vector<32x32xf32>
    %207 = arith.addf %200, %206 : vector<32x32xf32>
    %c6_176 = arith.constant 6 : index
    %c0_177 = arith.constant 0 : index
    %208 = vector.load %arg57[%c6_176, %c0_177] : memref<42x32xf32, #tpu.memory_space<vmem>>, vector<32x32xf32>
    %c0_178 = arith.constant 0 : index
    %c5_179 = arith.constant 5 : index
    %209 = vector.load %arg24[%c0_178, %c5_179] : memref<32x9xf32, #tpu.memory_space<vmem>>, vector<32x1xf32>
    %210 = vector.broadcast %209 : vector<32x1xf32> to vector<32x32xf32>
    %211 = arith.mulf %208, %210 : vector<32x32xf32>
    %c160_180 = arith.constant 160 : index
    %c0_181 = arith.constant 0 : index
    %212 = vector.load %arg29[%c160_180, %c0_181] : memref<288x32xf32, #tpu.memory_space<vmem>>, vector<32x32xf32>
    %cst_182 = arith.constant dense<0.000000e+00> : vector<32x32xf32>
    %213 = tpu.matmul %211, %212, %cst_182 {dimension_numbers = #tpu.dot_dimension_numbers<[1], [0], [0], [1], [0, 0, 1, 1], [], []>} : vector<32x32xf32>, vector<32x32xf32>, vector<32x32xf32> -> vector<32x32xf32>
    %214 = arith.addf %207, %213 : vector<32x32xf32>
    %c8_183 = arith.constant 8 : index
    %c0_184 = arith.constant 0 : index
    %215 = vector.load %arg57[%c8_183, %c0_184] : memref<42x32xf32, #tpu.memory_space<vmem>>, vector<32x32xf32>
    %c0_185 = arith.constant 0 : index
    %c6_186 = arith.constant 6 : index
    %216 = vector.load %arg24[%c0_185, %c6_186] : memref<32x9xf32, #tpu.memory_space<vmem>>, vector<32x1xf32>
    %217 = vector.broadcast %216 : vector<32x1xf32> to vector<32x32xf32>
    %218 = arith.mulf %215, %217 : vector<32x32xf32>
    %c192_187 = arith.constant 192 : index
    %c0_188 = arith.constant 0 : index
    %219 = vector.load %arg29[%c192_187, %c0_188] : memref<288x32xf32, #tpu.memory_space<vmem>>, vector<32x32xf32>
    %cst_189 = arith.constant dense<0.000000e+00> : vector<32x32xf32>
    %220 = tpu.matmul %218, %219, %cst_189 {dimension_numbers = #tpu.dot_dimension_numbers<[1], [0], [0], [1], [0, 0, 1, 1], [], []>} : vector<32x32xf32>, vector<32x32xf32>, vector<32x32xf32> -> vector<32x32xf32>
    %221 = arith.addf %214, %220 : vector<32x32xf32>
    %c9 = arith.constant 9 : index
    %c0_190 = arith.constant 0 : index
    %222 = vector.load %arg57[%c9, %c0_190] : memref<42x32xf32, #tpu.memory_space<vmem>>, vector<32x32xf32>
    %c0_191 = arith.constant 0 : index
    %c7_192 = arith.constant 7 : index
    %223 = vector.load %arg24[%c0_191, %c7_192] : memref<32x9xf32, #tpu.memory_space<vmem>>, vector<32x1xf32>
    %224 = vector.broadcast %223 : vector<32x1xf32> to vector<32x32xf32>
    %225 = arith.mulf %222, %224 : vector<32x32xf32>
    %c224_193 = arith.constant 224 : index
    %c0_194 = arith.constant 0 : index
    %226 = vector.load %arg29[%c224_193, %c0_194] : memref<288x32xf32, #tpu.memory_space<vmem>>, vector<32x32xf32>
    %cst_195 = arith.constant dense<0.000000e+00> : vector<32x32xf32>
    %227 = tpu.matmul %225, %226, %cst_195 {dimension_numbers = #tpu.dot_dimension_numbers<[1], [0], [0], [1], [0, 0, 1, 1], [], []>} : vector<32x32xf32>, vector<32x32xf32>, vector<32x32xf32> -> vector<32x32xf32>
    %228 = arith.addf %221, %227 : vector<32x32xf32>
    %c10 = arith.constant 10 : index
    %c0_196 = arith.constant 0 : index
    %229 = vector.load %arg57[%c10, %c0_196] : memref<42x32xf32, #tpu.memory_space<vmem>>, vector<32x32xf32>
    %c0_197 = arith.constant 0 : index
    %c8_198 = arith.constant 8 : index
    %230 = vector.load %arg24[%c0_197, %c8_198] : memref<32x9xf32, #tpu.memory_space<vmem>>, vector<32x1xf32>
    %231 = vector.broadcast %230 : vector<32x1xf32> to vector<32x32xf32>
    %232 = arith.mulf %229, %231 : vector<32x32xf32>
    %c256_199 = arith.constant 256 : index
    %c0_200 = arith.constant 0 : index
    %233 = vector.load %arg29[%c256_199, %c0_200] : memref<288x32xf32, #tpu.memory_space<vmem>>, vector<32x32xf32>
    %cst_201 = arith.constant dense<0.000000e+00> : vector<32x32xf32>
    %234 = tpu.matmul %232, %233, %cst_201 {dimension_numbers = #tpu.dot_dimension_numbers<[1], [0], [0], [1], [0, 0, 1, 1], [], []>} : vector<32x32xf32>, vector<32x32xf32>, vector<32x32xf32> -> vector<32x32xf32>
    %235 = arith.addf %228, %234 : vector<32x32xf32>
    %c0_202 = arith.constant 0 : index
    %c0_203 = arith.constant 0 : index
    %236 = vector.load %arg30[%c0_202, %c0_203] : memref<1x32xf32, #tpu.memory_space<vmem>>, vector<1x32xf32>
    %237 = vector.broadcast %236 : vector<1x32xf32> to vector<32x32xf32>
    %238 = arith.addf %235, %237 : vector<32x32xf32>
    %cst_204 = arith.constant 0.000000e+00 : f32
    %239 = vector.broadcast %cst_204 : f32 to vector<32x32xf32>
    %240 = arith.maximumf %238, %239 : vector<32x32xf32>
    %c0_205 = arith.constant 0 : index
    %c0_206 = arith.constant 0 : index
    %241 = vector.load %arg31[%c0_205, %c0_206] : memref<32x32xf32, #tpu.memory_space<vmem>>, vector<32x32xf32>
    %cst_207 = arith.constant dense<0.000000e+00> : vector<32x32xf32>
    %242 = tpu.matmul %240, %241, %cst_207 {dimension_numbers = #tpu.dot_dimension_numbers<[1], [0], [0], [1], [0, 0, 1, 1], [], []>} : vector<32x32xf32>, vector<32x32xf32>, vector<32x32xf32> -> vector<32x32xf32>
    %c0_208 = arith.constant 0 : index
    %c0_209 = arith.constant 0 : index
    %243 = vector.load %arg32[%c0_208, %c0_209] : memref<1x32xf32, #tpu.memory_space<vmem>>, vector<1x32xf32>
    %244 = vector.broadcast %243 : vector<1x32xf32> to vector<32x32xf32>
    %245 = arith.addf %242, %244 : vector<32x32xf32>
    %cst_210 = arith.constant 0.000000e+00 : f32
    %246 = vector.broadcast %cst_210 : f32 to vector<32x32xf32>
    %247 = arith.maximumf %245, %246 : vector<32x32xf32>
    %c0_211 = arith.constant 0 : index
    %c0_212 = arith.constant 0 : index
    %248 = vector.load %arg33[%c0_211, %c0_212] : memref<32x32xf32, #tpu.memory_space<vmem>>, vector<32x32xf32>
    %cst_213 = arith.constant dense<0.000000e+00> : vector<32x32xf32>
    %249 = tpu.matmul %247, %248, %cst_213 {dimension_numbers = #tpu.dot_dimension_numbers<[1], [0], [0], [1], [0, 0, 1, 1], [], []>} : vector<32x32xf32>, vector<32x32xf32>, vector<32x32xf32> -> vector<32x32xf32>
    %c0_214 = arith.constant 0 : index
    %c0_215 = arith.constant 0 : index
    %250 = vector.load %arg34[%c0_214, %c0_215] : memref<1x32xf32, #tpu.memory_space<vmem>>, vector<1x32xf32>
    %251 = vector.broadcast %250 : vector<1x32xf32> to vector<32x32xf32>
    %252 = arith.addf %249, %251 : vector<32x32xf32>
    %cst_216 = arith.constant 0.000000e+00 : f32
    %253 = vector.broadcast %cst_216 : f32 to vector<32x32xf32>
    %254 = arith.maximumf %252, %253 : vector<32x32xf32>
    %c0_217 = arith.constant 0 : index
    %c0_218 = arith.constant 0 : index
    %255 = vector.load %arg35[%c0_217, %c0_218] : memref<32x128xf32, #tpu.memory_space<vmem>>, vector<32x128xf32>
    %cst_219 = arith.constant dense<0.000000e+00> : vector<32x128xf32>
    %256 = tpu.matmul %254, %255, %cst_219 {dimension_numbers = #tpu.dot_dimension_numbers<[1], [0], [0], [1], [0, 0, 1, 1], [], []>} : vector<32x32xf32>, vector<32x128xf32>, vector<32x128xf32> -> vector<32x128xf32>
    %c0_220 = arith.constant 0 : index
    %c0_221 = arith.constant 0 : index
    %257 = vector.load %arg36[%c0_220, %c0_221] : memref<1x128xf32, #tpu.memory_space<vmem>>, vector<1x128xf32>
    %258 = vector.broadcast %257 : vector<1x128xf32> to vector<32x128xf32>
    %259 = arith.addf %256, %258 : vector<32x128xf32>
    %c0_222 = arith.constant 0 : index
    %c0_223 = arith.constant 0 : index
    %260 = vector.load %arg54[%c0_222, %c0_223] : memref<32x128xf32, #tpu.memory_space<vmem>>, vector<32x128xf32>
    tpu.vector_store %arg54[%c0_222, %c0_223], %259 {strides = array<i32>} : memref<32x128xf32, #tpu.memory_space<vmem>>, vector<32x128xf32>,
    %c0_224 = arith.constant 0 : index
    %c0_225 = arith.constant 0 : index
    %261 = vector.load %arg37[%c0_224, %c0_225] : memref<128x16xf32, #tpu.memory_space<vmem>>, vector<128x16xf32>
    %c0_226 = arith.constant 0 : index
    %c0_227 = arith.constant 0 : index
    %262 = vector.load %arg41[%c0_226, %c0_227] : memref<16x32xf32, #tpu.memory_space<vmem>>, vector<16x32xf32>
    %cst_228 = arith.constant dense<0.000000e+00> : vector<128x32xf32>
    %263 = tpu.matmul %261, %262, %cst_228 {dimension_numbers = #tpu.dot_dimension_numbers<[1], [0], [0], [1], [0, 0, 1, 1], [], []>} : vector<128x16xf32>, vector<16x32xf32>, vector<128x32xf32> -> vector<128x32xf32>
    %c0_229 = arith.constant 0 : index
    %c0_230 = arith.constant 0 : index
    %264 = vector.load %arg42[%c0_229, %c0_230] : memref<1x32xf32, #tpu.memory_space<vmem>>, vector<1x32xf32>
    %265 = vector.broadcast %264 : vector<1x32xf32> to vector<128x32xf32>
    %266 = arith.addf %263, %265 : vector<128x32xf32>
    %cst_231 = arith.constant 0.000000e+00 : f32
    %267 = vector.broadcast %cst_231 : f32 to vector<128x32xf32>
    %268 = arith.maximumf %266, %267 : vector<128x32xf32>
    %269 = arith.mulf %268, %268 : vector<128x32xf32>
    %cst_232 = arith.constant dense<0.000000e+00> : vector<128xf32>
    %270 = vector.multi_reduction <add>, %269, %cst_232 [1] : vector<128x32xf32> to vector<128xf32>
    %271 = vector.shape_cast %270 : vector<128xf32> to vector<128x1xf32>
    %cst_233 = arith.constant 1.000000e-24 : f32
    %272 = vector.broadcast %cst_233 : f32 to vector<128x1xf32>
    %273 = arith.maximumf %271, %272 : vector<128x1xf32>
    %274 = math.rsqrt %273 : vector<128x1xf32>
    %275 = vector.broadcast %274 : vector<128x1xf32> to vector<128x32xf32>
    %276 = arith.mulf %268, %275 : vector<128x32xf32>
    %c0_234 = arith.constant 0 : index
    %c0_235 = arith.constant 0 : index
    %277 = vector.load %arg44[%c0_234, %c0_235] : memref<32x32xf32, #tpu.memory_space<vmem>>, vector<32x32xf32>
    %cst_236 = arith.constant dense<0.000000e+00> : vector<2x32xf32>
    %278 = tpu.matmul %22, %277, %cst_236 {dimension_numbers = #tpu.dot_dimension_numbers<[1], [0], [0], [1], [0, 0, 1, 1], [], []>} : vector<2x32xf32>, vector<32x32xf32>, vector<2x32xf32> -> vector<2x32xf32>
    %c0_237 = arith.constant 0 : index
    %c0_238 = arith.constant 0 : index
    %279 = vector.load %arg43[%c0_237, %c0_238] : memref<32x32xf32, #tpu.memory_space<vmem>>, vector<32x32xf32>
    %cst_239 = arith.constant dense<0.000000e+00> : vector<128x32xf32>
    %280 = tpu.matmul %276, %279, %cst_239 {dimension_numbers = #tpu.dot_dimension_numbers<[1], [0], [0], [1], [0, 0, 1, 1], [], []>} : vector<128x32xf32>, vector<32x32xf32>, vector<128x32xf32> -> vector<128x32xf32>
    %c0_240 = arith.constant 0 : index
    %c0_241 = arith.constant 0 : index
    %281 = vector.load %arg38[%c0_240, %c0_241] : memref<128x2xf32, #tpu.memory_space<vmem>>, vector<128x2xf32>
    %cst_242 = arith.constant dense<0.000000e+00> : vector<128x32xf32>
    %282 = tpu.matmul %281, %278, %cst_242 {dimension_numbers = #tpu.dot_dimension_numbers<[1], [0], [0], [1], [0, 0, 1, 1], [], []>} : vector<128x2xf32>, vector<2x32xf32>, vector<128x32xf32> -> vector<128x32xf32>
    %283 = arith.addf %280, %282 : vector<128x32xf32>
    %c0_243 = arith.constant 0 : index
    %c0_244 = arith.constant 0 : index
    %284 = vector.load %arg39[%c0_243, %c0_244] : memref<128x32xf32, #tpu.memory_space<vmem>>, vector<128x32xf32>
    %285 = arith.addf %283, %284 : vector<128x32xf32>
    %cst_245 = arith.constant 0.000000e+00 : f32
    %286 = vector.broadcast %cst_245 : f32 to vector<128x32xf32>
    %287 = arith.maximumf %285, %286 : vector<128x32xf32>
    %cst_246 = arith.constant 0.000000e+00 : f32
    %288 = vector.broadcast %cst_246 : f32 to vector<9x32xf32>
    %c0_247 = arith.constant 0 : index
    %c0_248 = arith.constant 0 : index
    %289 = vector.load %arg58[%c0_247, %c0_248] : memref<146x32xf32, #tpu.memory_space<vmem>>, vector<9x32xf32>
    tpu.vector_store %arg58[%c0_247, %c0_248], %288 {strides = array<i32>} : memref<146x32xf32, #tpu.memory_space<vmem>>, vector<9x32xf32>,
    %cst_249 = arith.constant 0.000000e+00 : f32
    %290 = vector.broadcast %cst_249 : f32 to vector<9x32xf32>
    %c137 = arith.constant 137 : index
    %c0_250 = arith.constant 0 : index
    %291 = vector.load %arg58[%c137, %c0_250] : memref<146x32xf32, #tpu.memory_space<vmem>>, vector<9x32xf32>
    tpu.vector_store %arg58[%c137, %c0_250], %290 {strides = array<i32>} : memref<146x32xf32, #tpu.memory_space<vmem>>, vector<9x32xf32>,
    %c9_251 = arith.constant 9 : index
    %c0_252 = arith.constant 0 : index
    %292 = vector.load %arg58[%c9_251, %c0_252] : memref<146x32xf32, #tpu.memory_space<vmem>>, vector<128x32xf32>
    tpu.vector_store %arg58[%c9_251, %c0_252], %287 {strides = array<i32>} : memref<146x32xf32, #tpu.memory_space<vmem>>, vector<128x32xf32>,
    %c0_253 = arith.constant 0 : index
    %c0_254 = arith.constant 0 : index
    %293 = vector.load %arg58[%c0_253, %c0_254] : memref<146x32xf32, #tpu.memory_space<vmem>>, vector<128x32xf32>
    %c0_255 = arith.constant 0 : index
    %c0_256 = arith.constant 0 : index
    %294 = vector.load %arg40[%c0_255, %c0_256] : memref<128x9xf32, #tpu.memory_space<vmem>>, vector<128x1xf32>
    %295 = vector.broadcast %294 : vector<128x1xf32> to vector<128x32xf32>
    %296 = arith.mulf %293, %295 : vector<128x32xf32>
    %c0_257 = arith.constant 0 : index
    %c0_258 = arith.constant 0 : index
    %297 = vector.load %arg45[%c0_257, %c0_258] : memref<288x32xf32, #tpu.memory_space<vmem>>, vector<32x32xf32>
    %cst_259 = arith.constant dense<0.000000e+00> : vector<128x32xf32>
    %298 = tpu.matmul %296, %297, %cst_259 {dimension_numbers = #tpu.dot_dimension_numbers<[1], [0], [0], [1], [0, 0, 1, 1], [], []>} : vector<128x32xf32>, vector<32x32xf32>, vector<128x32xf32> -> vector<128x32xf32>
    %c1_260 = arith.constant 1 : index
    %c0_261 = arith.constant 0 : index
    %299 = vector.load %arg58[%c1_260, %c0_261] : memref<146x32xf32, #tpu.memory_space<vmem>>, vector<128x32xf32>
    %c0_262 = arith.constant 0 : index
    %c1_263 = arith.constant 1 : index
    %300 = vector.load %arg40[%c0_262, %c1_263] : memref<128x9xf32, #tpu.memory_space<vmem>>, vector<128x1xf32>
    %301 = vector.broadcast %300 : vector<128x1xf32> to vector<128x32xf32>
    %302 = arith.mulf %299, %301 : vector<128x32xf32>
    %c32_264 = arith.constant 32 : index
    %c0_265 = arith.constant 0 : index
    %303 = vector.load %arg45[%c32_264, %c0_265] : memref<288x32xf32, #tpu.memory_space<vmem>>, vector<32x32xf32>
    %cst_266 = arith.constant dense<0.000000e+00> : vector<128x32xf32>
    %304 = tpu.matmul %302, %303, %cst_266 {dimension_numbers = #tpu.dot_dimension_numbers<[1], [0], [0], [1], [0, 0, 1, 1], [], []>} : vector<128x32xf32>, vector<32x32xf32>, vector<128x32xf32> -> vector<128x32xf32>
    %305 = arith.addf %298, %304 : vector<128x32xf32>
    %c2_267 = arith.constant 2 : index
    %c0_268 = arith.constant 0 : index
    %306 = vector.load %arg58[%c2_267, %c0_268] : memref<146x32xf32, #tpu.memory_space<vmem>>, vector<128x32xf32>
    %c0_269 = arith.constant 0 : index
    %c2_270 = arith.constant 2 : index
    %307 = vector.load %arg40[%c0_269, %c2_270] : memref<128x9xf32, #tpu.memory_space<vmem>>, vector<128x1xf32>
    %308 = vector.broadcast %307 : vector<128x1xf32> to vector<128x32xf32>
    %309 = arith.mulf %306, %308 : vector<128x32xf32>
    %c64_271 = arith.constant 64 : index
    %c0_272 = arith.constant 0 : index
    %310 = vector.load %arg45[%c64_271, %c0_272] : memref<288x32xf32, #tpu.memory_space<vmem>>, vector<32x32xf32>
    %cst_273 = arith.constant dense<0.000000e+00> : vector<128x32xf32>
    %311 = tpu.matmul %309, %310, %cst_273 {dimension_numbers = #tpu.dot_dimension_numbers<[1], [0], [0], [1], [0, 0, 1, 1], [], []>} : vector<128x32xf32>, vector<32x32xf32>, vector<128x32xf32> -> vector<128x32xf32>
    %312 = arith.addf %305, %311 : vector<128x32xf32>
    %c8_274 = arith.constant 8 : index
    %c0_275 = arith.constant 0 : index
    %313 = vector.load %arg58[%c8_274, %c0_275] : memref<146x32xf32, #tpu.memory_space<vmem>>, vector<128x32xf32>
    %c0_276 = arith.constant 0 : index
    %c3_277 = arith.constant 3 : index
    %314 = vector.load %arg40[%c0_276, %c3_277] : memref<128x9xf32, #tpu.memory_space<vmem>>, vector<128x1xf32>
    %315 = vector.broadcast %314 : vector<128x1xf32> to vector<128x32xf32>
    %316 = arith.mulf %313, %315 : vector<128x32xf32>
    %c96_278 = arith.constant 96 : index
    %c0_279 = arith.constant 0 : index
    %317 = vector.load %arg45[%c96_278, %c0_279] : memref<288x32xf32, #tpu.memory_space<vmem>>, vector<32x32xf32>
    %cst_280 = arith.constant dense<0.000000e+00> : vector<128x32xf32>
    %318 = tpu.matmul %316, %317, %cst_280 {dimension_numbers = #tpu.dot_dimension_numbers<[1], [0], [0], [1], [0, 0, 1, 1], [], []>} : vector<128x32xf32>, vector<32x32xf32>, vector<128x32xf32> -> vector<128x32xf32>
    %319 = arith.addf %312, %318 : vector<128x32xf32>
    %c9_281 = arith.constant 9 : index
    %c0_282 = arith.constant 0 : index
    %320 = vector.load %arg58[%c9_281, %c0_282] : memref<146x32xf32, #tpu.memory_space<vmem>>, vector<128x32xf32>
    %c0_283 = arith.constant 0 : index
    %c4_284 = arith.constant 4 : index
    %321 = vector.load %arg40[%c0_283, %c4_284] : memref<128x9xf32, #tpu.memory_space<vmem>>, vector<128x1xf32>
    %322 = vector.broadcast %321 : vector<128x1xf32> to vector<128x32xf32>
    %323 = arith.mulf %320, %322 : vector<128x32xf32>
    %c128_285 = arith.constant 128 : index
    %c0_286 = arith.constant 0 : index
    %324 = vector.load %arg45[%c128_285, %c0_286] : memref<288x32xf32, #tpu.memory_space<vmem>>, vector<32x32xf32>
    %cst_287 = arith.constant dense<0.000000e+00> : vector<128x32xf32>
    %325 = tpu.matmul %323, %324, %cst_287 {dimension_numbers = #tpu.dot_dimension_numbers<[1], [0], [0], [1], [0, 0, 1, 1], [], []>} : vector<128x32xf32>, vector<32x32xf32>, vector<128x32xf32> -> vector<128x32xf32>
    %326 = arith.addf %319, %325 : vector<128x32xf32>
    %c10_288 = arith.constant 10 : index
    %c0_289 = arith.constant 0 : index
    %327 = vector.load %arg58[%c10_288, %c0_289] : memref<146x32xf32, #tpu.memory_space<vmem>>, vector<128x32xf32>
    %c0_290 = arith.constant 0 : index
    %c5_291 = arith.constant 5 : index
    %328 = vector.load %arg40[%c0_290, %c5_291] : memref<128x9xf32, #tpu.memory_space<vmem>>, vector<128x1xf32>
    %329 = vector.broadcast %328 : vector<128x1xf32> to vector<128x32xf32>
    %330 = arith.mulf %327, %329 : vector<128x32xf32>
    %c160_292 = arith.constant 160 : index
    %c0_293 = arith.constant 0 : index
    %331 = vector.load %arg45[%c160_292, %c0_293] : memref<288x32xf32, #tpu.memory_space<vmem>>, vector<32x32xf32>
    %cst_294 = arith.constant dense<0.000000e+00> : vector<128x32xf32>
    %332 = tpu.matmul %330, %331, %cst_294 {dimension_numbers = #tpu.dot_dimension_numbers<[1], [0], [0], [1], [0, 0, 1, 1], [], []>} : vector<128x32xf32>, vector<32x32xf32>, vector<128x32xf32> -> vector<128x32xf32>
    %333 = arith.addf %326, %332 : vector<128x32xf32>
    %c16 = arith.constant 16 : index
    %c0_295 = arith.constant 0 : index
    %334 = vector.load %arg58[%c16, %c0_295] : memref<146x32xf32, #tpu.memory_space<vmem>>, vector<128x32xf32>
    %c0_296 = arith.constant 0 : index
    %c6_297 = arith.constant 6 : index
    %335 = vector.load %arg40[%c0_296, %c6_297] : memref<128x9xf32, #tpu.memory_space<vmem>>, vector<128x1xf32>
    %336 = vector.broadcast %335 : vector<128x1xf32> to vector<128x32xf32>
    %337 = arith.mulf %334, %336 : vector<128x32xf32>
    %c192_298 = arith.constant 192 : index
    %c0_299 = arith.constant 0 : index
    %338 = vector.load %arg45[%c192_298, %c0_299] : memref<288x32xf32, #tpu.memory_space<vmem>>, vector<32x32xf32>
    %cst_300 = arith.constant dense<0.000000e+00> : vector<128x32xf32>
    %339 = tpu.matmul %337, %338, %cst_300 {dimension_numbers = #tpu.dot_dimension_numbers<[1], [0], [0], [1], [0, 0, 1, 1], [], []>} : vector<128x32xf32>, vector<32x32xf32>, vector<128x32xf32> -> vector<128x32xf32>
    %340 = arith.addf %333, %339 : vector<128x32xf32>
    %c17 = arith.constant 17 : index
    %c0_301 = arith.constant 0 : index
    %341 = vector.load %arg58[%c17, %c0_301] : memref<146x32xf32, #tpu.memory_space<vmem>>, vector<128x32xf32>
    %c0_302 = arith.constant 0 : index
    %c7_303 = arith.constant 7 : index
    %342 = vector.load %arg40[%c0_302, %c7_303] : memref<128x9xf32, #tpu.memory_space<vmem>>, vector<128x1xf32>
    %343 = vector.broadcast %342 : vector<128x1xf32> to vector<128x32xf32>
    %344 = arith.mulf %341, %343 : vector<128x32xf32>
    %c224_304 = arith.constant 224 : index
    %c0_305 = arith.constant 0 : index
    %345 = vector.load %arg45[%c224_304, %c0_305] : memref<288x32xf32, #tpu.memory_space<vmem>>, vector<32x32xf32>
    %cst_306 = arith.constant dense<0.000000e+00> : vector<128x32xf32>
    %346 = tpu.matmul %344, %345, %cst_306 {dimension_numbers = #tpu.dot_dimension_numbers<[1], [0], [0], [1], [0, 0, 1, 1], [], []>} : vector<128x32xf32>, vector<32x32xf32>, vector<128x32xf32> -> vector<128x32xf32>
    %347 = arith.addf %340, %346 : vector<128x32xf32>
    %c18 = arith.constant 18 : index
    %c0_307 = arith.constant 0 : index
    %348 = vector.load %arg58[%c18, %c0_307] : memref<146x32xf32, #tpu.memory_space<vmem>>, vector<128x32xf32>
    %c0_308 = arith.constant 0 : index
    %c8_309 = arith.constant 8 : index
    %349 = vector.load %arg40[%c0_308, %c8_309] : memref<128x9xf32, #tpu.memory_space<vmem>>, vector<128x1xf32>
    %350 = vector.broadcast %349 : vector<128x1xf32> to vector<128x32xf32>
    %351 = arith.mulf %348, %350 : vector<128x32xf32>
    %c256_310 = arith.constant 256 : index
    %c0_311 = arith.constant 0 : index
    %352 = vector.load %arg45[%c256_310, %c0_311] : memref<288x32xf32, #tpu.memory_space<vmem>>, vector<32x32xf32>
    %cst_312 = arith.constant dense<0.000000e+00> : vector<128x32xf32>
    %353 = tpu.matmul %351, %352, %cst_312 {dimension_numbers = #tpu.dot_dimension_numbers<[1], [0], [0], [1], [0, 0, 1, 1], [], []>} : vector<128x32xf32>, vector<32x32xf32>, vector<128x32xf32> -> vector<128x32xf32>
    %354 = arith.addf %347, %353 : vector<128x32xf32>
    %c0_313 = arith.constant 0 : index
    %c0_314 = arith.constant 0 : index
    %355 = vector.load %arg46[%c0_313, %c0_314] : memref<1x32xf32, #tpu.memory_space<vmem>>, vector<1x32xf32>
    %356 = vector.broadcast %355 : vector<1x32xf32> to vector<128x32xf32>
    %357 = arith.addf %354, %356 : vector<128x32xf32>
    %cst_315 = arith.constant 0.000000e+00 : f32
    %358 = vector.broadcast %cst_315 : f32 to vector<128x32xf32>
    %359 = arith.maximumf %357, %358 : vector<128x32xf32>
    %c0_316 = arith.constant 0 : index
    %c0_317 = arith.constant 0 : index
    %360 = vector.load %arg47[%c0_316, %c0_317] : memref<32x32xf32, #tpu.memory_space<vmem>>, vector<32x32xf32>
    %cst_318 = arith.constant dense<0.000000e+00> : vector<128x32xf32>
    %361 = tpu.matmul %359, %360, %cst_318 {dimension_numbers = #tpu.dot_dimension_numbers<[1], [0], [0], [1], [0, 0, 1, 1], [], []>} : vector<128x32xf32>, vector<32x32xf32>, vector<128x32xf32> -> vector<128x32xf32>
    %c0_319 = arith.constant 0 : index
    %c0_320 = arith.constant 0 : index
    %362 = vector.load %arg48[%c0_319, %c0_320] : memref<1x32xf32, #tpu.memory_space<vmem>>, vector<1x32xf32>
    %363 = vector.broadcast %362 : vector<1x32xf32> to vector<128x32xf32>
    %364 = arith.addf %361, %363 : vector<128x32xf32>
    %cst_321 = arith.constant 0.000000e+00 : f32
    %365 = vector.broadcast %cst_321 : f32 to vector<128x32xf32>
    %366 = arith.maximumf %364, %365 : vector<128x32xf32>
    %c0_322 = arith.constant 0 : index
    %c0_323 = arith.constant 0 : index
    %367 = vector.load %arg49[%c0_322, %c0_323] : memref<32x32xf32, #tpu.memory_space<vmem>>, vector<32x32xf32>
    %cst_324 = arith.constant dense<0.000000e+00> : vector<128x32xf32>
    %368 = tpu.matmul %366, %367, %cst_324 {dimension_numbers = #tpu.dot_dimension_numbers<[1], [0], [0], [1], [0, 0, 1, 1], [], []>} : vector<128x32xf32>, vector<32x32xf32>, vector<128x32xf32> -> vector<128x32xf32>
    %c0_325 = arith.constant 0 : index
    %c0_326 = arith.constant 0 : index
    %369 = vector.load %arg50[%c0_325, %c0_326] : memref<1x32xf32, #tpu.memory_space<vmem>>, vector<1x32xf32>
    %370 = vector.broadcast %369 : vector<1x32xf32> to vector<128x32xf32>
    %371 = arith.addf %368, %370 : vector<128x32xf32>
    %cst_327 = arith.constant 0.000000e+00 : f32
    %372 = vector.broadcast %cst_327 : f32 to vector<128x32xf32>
    %373 = arith.maximumf %371, %372 : vector<128x32xf32>
    %c0_328 = arith.constant 0 : index
    %c0_329 = arith.constant 0 : index
    %374 = vector.load %arg51[%c0_328, %c0_329] : memref<32x128xf32, #tpu.memory_space<vmem>>, vector<32x128xf32>
    %cst_330 = arith.constant dense<0.000000e+00> : vector<128x128xf32>
    %375 = tpu.matmul %373, %374, %cst_330 {dimension_numbers = #tpu.dot_dimension_numbers<[1], [0], [0], [1], [0, 0, 1, 1], [], []>} : vector<128x32xf32>, vector<32x128xf32>, vector<128x128xf32> -> vector<128x128xf32>
    %c0_331 = arith.constant 0 : index
    %c0_332 = arith.constant 0 : index
    %376 = vector.load %arg52[%c0_331, %c0_332] : memref<1x128xf32, #tpu.memory_space<vmem>>, vector<1x128xf32>
    %377 = vector.broadcast %376 : vector<1x128xf32> to vector<128x128xf32>
    %378 = arith.addf %375, %377 : vector<128x128xf32>
    %c0_333 = arith.constant 0 : index
    %c0_334 = arith.constant 0 : index
    %379 = vector.load %arg55[%c0_333, %c0_334] : memref<128x128xf32, #tpu.memory_space<vmem>>, vector<128x128xf32>
    tpu.vector_store %arg55[%c0_333, %c0_334], %378 {strides = array<i32>} : memref<128x128xf32, #tpu.memory_space<vmem>>, vector<128x128xf32>,
    return
  }
}

</mosaic_0001>

<llo_original>
// kernel: grounding_forward.1
$region0: #{grounding_forward.1}
  #allocation0 [shape = 'u32[]', space=smem, size = 0x4, offset = 0x4, fixed_abs, tag = 'smem constant byte address 0x4 - core index']
  #allocation1 [shape = 'u32[144,128]{1,0:T(1,128)}', space=vmem, size = 0x12000, scoped, tag = 'internal scratch']
  #allocation2 [shape = 'f32[14,32]{1,0:T(8,128)}', space=vmem, size = 0x2000, scoped, tag = 'scratch operand']
  #allocation3 [shape = 'f32[42,32]{1,0:T(8,128)}', space=vmem, size = 0x6000, scoped, tag = 'scratch operand']
  #allocation4 [shape = 'f32[146,32]{1,0:T(8,128)}', space=vmem, size = 0x13000, scoped, tag = 'scratch operand']
  %s0 = inlined_call_operand.smem [shape: u32[56], index: -1, kind: input, shape index: {}]
  %s1 = sld [smem:[%s0]]
  %s2 = scalar_lea.smem %s0, 1
  %s3 = sld [smem:[%s2]]
  %s4 = scalar_lea.smem %s0, 2
  %s5 = sld [smem:[%s4]]
  %s6 = scalar_lea.smem %s0, 3
  %s7 = sld [smem:[%s6]]
  %s8 = scalar_lea.smem %s0, 4
  %s9 = sld [smem:[%s8]]
  %s10 = scalar_lea.smem %s0, 5
  %s11 = sld [smem:[%s10]]
  %s12 = scalar_lea.smem %s0, 6
  %s13 = sld [smem:[%s12]]
  %s14 = scalar_lea.smem %s0, 7
  %s15 = sld [smem:[%s14]]
  %s16 = scalar_lea.smem %s0, 8
  %s17 = sld [smem:[%s16]]
  %s18 = scalar_lea.smem %s0, 9
  %s19 = sld [smem:[%s18]]
  %s20 = scalar_lea.smem %s0, 10
  %s21 = sld [smem:[%s20]]
  %s22 = scalar_lea.smem %s0, 11
  %s23 = sld [smem:[%s22]]
  %s24 = scalar_lea.smem %s0, 12
  %s25 = sld [smem:[%s24]]
  %s26 = scalar_lea.smem %s0, 13
  %s27 = sld [smem:[%s26]]
  %s28 = scalar_lea.smem %s0, 14
  %s29 = sld [smem:[%s28]]
  %s30 = scalar_lea.smem %s0, 15
  %s31 = sld [smem:[%s30]]
  %s32 = scalar_lea.smem %s0, 16
  %s33 = sld [smem:[%s32]]
  %s34 = scalar_lea.smem %s0, 17
  %s35 = sld [smem:[%s34]]
  %s36 = scalar_lea.smem %s0, 18
  %s37 = sld [smem:[%s36]]
  %s38 = scalar_lea.smem %s0, 19
  %s39 = sld [smem:[%s38]]
  %s40 = scalar_lea.smem %s0, 20
  %s41 = sld [smem:[%s40]]
  %s42 = scalar_lea.smem %s0, 21
  %s43 = sld [smem:[%s42]]
  %s44 = scalar_lea.smem %s0, 22
  %s45 = sld [smem:[%s44]]
  %s46 = scalar_lea.smem %s0, 23
  %s47 = sld [smem:[%s46]]
  %s48 = scalar_lea.smem %s0, 24
  %s49 = sld [smem:[%s48]]
  %s50 = scalar_lea.smem %s0, 25
  %s51 = sld [smem:[%s50]]
  %s52 = scalar_lea.smem %s0, 26
  %s53 = sld [smem:[%s52]]
  %s54 = scalar_lea.smem %s0, 27
  %s55 = sld [smem:[%s54]]
  %s56 = scalar_lea.smem %s0, 28
  %s57 = sld [smem:[%s56]]
  %s58 = scalar_lea.smem %s0, 29
  %s59 = sld [smem:[%s58]]
  %s60 = scalar_lea.smem %s0, 30
  %s61 = sld [smem:[%s60]]
  %s62 = scalar_lea.smem %s0, 31
  %s63 = sld [smem:[%s62]]
  %s64 = scalar_lea.smem %s0, 32
  %s65 = sld [smem:[%s64]]
  %s66 = scalar_lea.smem %s0, 33
  %s67 = sld [smem:[%s66]]
  %s68 = scalar_lea.smem %s0, 34
  %s69 = sld [smem:[%s68]]
  %s70 = scalar_lea.smem %s0, 35
  %s71 = sld [smem:[%s70]]
  %s72 = scalar_lea.smem %s0, 36
  %s73 = sld [smem:[%s72]]
  %s74 = scalar_lea.smem %s0, 37
  %s75 = sld [smem:[%s74]]
  %s76 = scalar_lea.smem %s0, 38
  %s77 = sld [smem:[%s76]]
  %s78 = scalar_lea.smem %s0, 39
  %s79 = sld [smem:[%s78]]
  %s80 = scalar_lea.smem %s0, 40
  %s81 = sld [smem:[%s80]]
  %s82 = scalar_lea.smem %s0, 41
  %s83 = sld [smem:[%s82]]
  %s84 = scalar_lea.smem %s0, 42
  %s85 = sld [smem:[%s84]]
  %s86 = scalar_lea.smem %s0, 43
  %s87 = sld [smem:[%s86]]
  %s88 = scalar_lea.smem %s0, 44
  %s89 = sld [smem:[%s88]]
  %s90 = scalar_lea.smem %s0, 45
  %s91 = sld [smem:[%s90]]
  %s92 = scalar_lea.smem %s0, 46
  %s93 = sld [smem:[%s92]]
  %s94 = scalar_lea.smem %s0, 47
  %s95 = sld [smem:[%s94]]
  %s96 = scalar_lea.smem %s0, 48
  %s97 = sld [smem:[%s96]]
  %s98 = scalar_lea.smem %s0, 49
  %s99 = sld [smem:[%s98]]
  %s100 = scalar_lea.smem %s0, 50
  %s101 = sld [smem:[%s100]]
  %s102 = scalar_lea.smem %s0, 51
  %s103 = sld [smem:[%s102]]
  %s104 = scalar_lea.smem %s0, 52
  %s105 = sld [smem:[%s104]]
  %s106 = scalar_lea.smem %s0, 53
  %s107 = sld [smem:[%s106]]
  %s108 = scalar_lea.smem %s0, 54
  %s109 = sld [smem:[%s108]]
  %s110 = scalar_lea.smem %s0, 55
  %s111 = sld [smem:[%s110]]
  %112 = xla_tuple %s107, %s109, %s111
  %s113 = sld [smem:[#allocation0]]
  $region278: #{grounding_forward.1} parent=0
    _
  %s115 = ssub.s32 1, %s113
  %s116 = scalar_select 0, %s115, %s113
  $region1: #{grounding_forward.1} parent=0
    #allocation5 [shape = 'u8[512]{0}', space=vmem, size = 0x400, scoped, tag = 'input window, operand 26, single buffered']
    #allocation6 [shape = 's32[1]{0}', space=sflag, size = 0x4, scoped, tag = 'scoped memory for grounding_forward.1']
    #allocation7 [shape = 's32[1]{0}', space=sflag, size = 0x4, scoped, tag = 'scoped memory for grounding_forward.1']
    #allocation8 [shape = 'u8[512]{0}', space=vmem, size = 0x400, scoped, tag = 'input window, operand 30, single buffered']
    #allocation9 [shape = 's32[1]{0}', space=sflag, size = 0x4, scoped, tag = 'scoped memory for grounding_forward.1']
    #allocation10 [shape = 'u8[512]{0}', space=vmem, size = 0x400, scoped, tag = 'input window, operand 32, single buffered']
    #allocation11 [shape = 'u8[512]{0}', space=vmem, size = 0x400, scoped, tag = 'input window, operand 34, single buffered']
    #allocation12 [shape = 's32[1]{0}', space=sflag, size = 0x4, scoped, tag = 'scoped memory for grounding_forward.1']
    #allocation13 [shape = 'u8[512]{0}', space=vmem, size = 0x400, scoped, tag = 'input window, operand 36, single buffered']
    #allocation14 [shape = 'u8[512]{0}', space=vmem, size = 0x400, scoped, tag = 'input window, operand 42, single buffered']
    #allocation15 [shape = 's32[1]{0}', space=sflag, size = 0x4, scoped, tag = 'scoped memory for grounding_forward.1']
    #allocation16 [shape = 'u8[512]{0}', space=vmem, size = 0x400, scoped, tag = 'input window, operand 46, single buffered']
    #allocation17 [shape = 'u8[512]{0}', space=vmem, size = 0x400, scoped, tag = 'input window, operand 48, single buffered']
    #allocation18 [shape = 's32[1]{0}', space=sflag, size = 0x4, scoped, tag = 'scoped memory for grounding_forward.1']
    #allocation19 [shape = 'u8[512]{0}', space=vmem, size = 0x400, scoped, tag = 'input window, operand 50, single buffered']
    #allocation20 [shape = 'u8[512]{0}', space=vmem, size = 0x400, scoped, tag = 'input window, operand 52, single buffered']
    #allocation21 [shape = 's32[1]{0}', space=sflag, size = 0x4, scoped, tag = 'scoped memory for grounding_forward.1']
    #allocation22 [shape = 'u8[4096]{0}', space=vmem, size = 0x1000, scoped, tag = 'output window, operand 0, single buffered']
    #allocation23 [shape = 'u8[16384]{0}', space=vmem, size = 0x4000, scoped, tag = 'output window, operand 1, single buffered']
    #allocation24 [shape = 's32[1]{0}', space=sflag, size = 0x4, scoped, tag = 'scoped memory for grounding_forward.1']
    #allocation25 [shape = 'u8[65536]{0}', space=vmem, size = 0x10000, scoped, tag = 'output window, operand 2, single buffered']
    %117 = vsyncpa [#allocation6], 0
    %118 = vsyncpa [#allocation9], 0
    %119 = vsyncpa [#allocation12], 0
    %120 = vsyncpa [#allocation15], 0
    %121 = vsyncpa [#allocation18], 0
    %122 = vsyncpa [#allocation21], 0
    %123 = vsyncpa [#allocation7], 0
    %124 = vsyncpa [#allocation24], 0
    // Predicated region
    $region2: #{grounding_forward.1} parent=1 // pred_check
      _
    $region3: #{grounding_forward.1} parent=1 // pred_check_branch
      %126 = sbr.rel (0) target = $region5
    $region4: #{grounding_forward.1} parent=1 // pred_region
      _
    $region5: #{grounding_forward.1} parent=1 // pred_fallthru
      _
    // Predicated region
    $region6: #{grounding_forward.1} parent=1 // pred_check
      _
    $region7: #{grounding_forward.1} parent=1 // pred_check_branch
      %128 = sbr.rel (0) target = $region9
    $region8: #{grounding_forward.1} parent=1 // pred_region
      _
    $region9: #{grounding_forward.1} parent=1 // pred_fallthru
      _
    // Predicated region
    $region10: #{grounding_forward.1} parent=1 // pred_check
      _
    $region11: #{grounding_forward.1} parent=1 // pred_check_branch
      %130 = sbr.rel (0) target = $region13
    $region12: #{grounding_forward.1} parent=1 // pred_region
      _
    $region13: #{grounding_forward.1} parent=1 // pred_fallthru
      _
    // Predicated region
    $region14: #{grounding_forward.1} parent=1 // pred_check
      _
    $region15: #{grounding_forward.1} parent=1 // pred_check_branch
      %132 = sbr.rel (0) target = $region17
    $region16: #{grounding_forward.1} parent=1 // pred_region
      _
    $region17: #{grounding_forward.1} parent=1 // pred_fallthru
      _
    // Predicated region
    $region18: #{grounding_forward.1} parent=1 // pred_check
      _
    $region19: #{grounding_forward.1} parent=1 // pred_check_branch
      %134 = sbr.rel (0) target = $region21
    $region20: #{grounding_forward.1} parent=1 // pred_region
      _
    $region21: #{grounding_forward.1} parent=1 // pred_fallthru
      _
    // Predicated region
    $region22: #{grounding_forward.1} parent=1 // pred_check
      _
    $region23: #{grounding_forward.1} parent=1 // pred_check_branch
      %136 = sbr.rel (0) target = $region25
    $region24: #{grounding_forward.1} parent=1 // pred_region
      _
    $region25: #{grounding_forward.1} parent=1 // pred_fallthru
      _
    // Predicated region
    $region26: #{grounding_forward.1} parent=1 // pred_check
      _
    $region27: #{grounding_forward.1} parent=1 // pred_check_branch
      %138 = sbr.rel (0) target = $region29
    $region28: #{grounding_forward.1} parent=1 // pred_region
      _
    $region29: #{grounding_forward.1} parent=1 // pred_fallthru
      _
    // Predicated region
    $region30: #{grounding_forward.1} parent=1 // pred_check
      _
    $region31: #{grounding_forward.1} parent=1 // pred_check_branch
      %140 = sbr.rel (0) target = $region33
    $region32: #{grounding_forward.1} parent=1 // pred_region
      _
    $region33: #{grounding_forward.1} parent=1 // pred_fallthru
      _
    // Predicated region
    $region34: #{grounding_forward.1} parent=1 // pred_check
      _
    $region35: #{grounding_forward.1} parent=1 // pred_check_branch
      %142 = sbr.rel (0) target = $region37
    $region36: #{grounding_forward.1} parent=1 // pred_region
      _
    $region37: #{grounding_forward.1} parent=1 // pred_fallthru
      _
    // Predicated region
    $region38: #{grounding_forward.1} parent=1 // pred_check
      _
    $region39: #{grounding_forward.1} parent=1 // pred_check_branch
      %144 = sbr.rel (0) target = $region41
    $region40: #{grounding_forward.1} parent=1 // pred_region
      _
    $region41: #{grounding_forward.1} parent=1 // pred_fallthru
      _
    // Predicated region
    $region42: #{grounding_forward.1} parent=1 // pred_check
      _
    $region43: #{grounding_forward.1} parent=1 // pred_check_branch
      %146 = sbr.rel (0) target = $region45
    $region44: #{grounding_forward.1} parent=1 // pred_region
      _
    $region45: #{grounding_forward.1} parent=1 // pred_fallthru
      _
    // Predicated region
    $region46: #{grounding_forward.1} parent=1 // pred_check
      _
    $region47: #{grounding_forward.1} parent=1 // pred_check_branch
      %148 = sbr.rel (0) target = $region49
    $region48: #{grounding_forward.1} parent=1 // pred_region
      _
    $region49: #{grounding_forward.1} parent=1 // pred_fallthru
      _
    // Predicated region
    $region50: #{grounding_forward.1} parent=1 // pred_check
      _
    $region51: #{grounding_forward.1} parent=1 // pred_check_branch
      %150 = sbr.rel (0) target = $region53
    $region52: #{grounding_forward.1} parent=1 // pred_region
      _
    $region53: #{grounding_forward.1} parent=1 // pred_fallthru
      _
    // Predicated region
    $region54: #{grounding_forward.1} parent=1 // pred_check
      _
    $region55: #{grounding_forward.1} parent=1 // pred_check_branch
      %152 = sbr.rel (0) target = $region57
    $region56: #{grounding_forward.1} parent=1 // pred_region
      _
    $region57: #{grounding_forward.1} parent=1 // pred_fallthru
      _
    // Predicated region
    $region58: #{grounding_forward.1} parent=1 // pred_check
      _
    $region59: #{grounding_forward.1} parent=1 // pred_check_branch
      %154 = sbr.rel (0) target = $region61
    $region60: #{grounding_forward.1} parent=1 // pred_region
      _
    $region61: #{grounding_forward.1} parent=1 // pred_fallthru
      _
    // Predicated region
    $region62: #{grounding_forward.1} parent=1 // pred_check
      _
    $region63: #{grounding_forward.1} parent=1 // pred_check_branch
      %156 = sbr.rel (0) target = $region65
    $region64: #{grounding_forward.1} parent=1 // pred_region
      _
    $region65: #{grounding_forward.1} parent=1 // pred_fallthru
      _
    // Predicated region
    $region66: #{grounding_forward.1} parent=1 // pred_check
      _
    $region67: #{grounding_forward.1} parent=1 // pred_check_branch
      %158 = sbr.rel (0) target = $region69
    $region68: #{grounding_forward.1} parent=1 // pred_region
      _
    $region69: #{grounding_forward.1} parent=1 // pred_fallthru
      _
    // Predicated region
    $region70: #{grounding_forward.1} parent=1 // pred_check
      _
    $region71: #{grounding_forward.1} parent=1 // pred_check_branch
      %160 = sbr.rel (0) target = $region73
    $region72: #{grounding_forward.1} parent=1 // pred_region
      _
    $region73: #{grounding_forward.1} parent=1 // pred_fallthru
      _
    // Predicated region
    $region74: #{grounding_forward.1} parent=1 // pred_check
      _
    $region75: #{grounding_forward.1} parent=1 // pred_check_branch
      %162 = sbr.rel (0) target = $region77
    $region76: #{grounding_forward.1} parent=1 // pred_region
      _
    $region77: #{grounding_forward.1} parent=1 // pred_fallthru
      _
    // Predicated region
    $region78: #{grounding_forward.1} parent=1 // pred_check
      _
    $region79: #{grounding_forward.1} parent=1 // pred_check_branch
      %164 = sbr.rel (0) target = $region81
    $region80: #{grounding_forward.1} parent=1 // pred_region
      _
    $region81: #{grounding_forward.1} parent=1 // pred_fallthru
      _
    // Predicated region
    $region82: #{grounding_forward.1} parent=1 // pred_check
      _
    $region83: #{grounding_forward.1} parent=1 // pred_check_branch
      %166 = sbr.rel (0) target = $region85
    $region84: #{grounding_forward.1} parent=1 // pred_region
      _
    $region85: #{grounding_forward.1} parent=1 // pred_fallthru
      _
    // Predicated region
    $region86: #{grounding_forward.1} parent=1 // pred_check
      _
    $region87: #{grounding_forward.1} parent=1 // pred_check_branch
      %168 = sbr.rel (0) target = $region89
    $region88: #{grounding_forward.1} parent=1 // pred_region
      _
    $region89: #{grounding_forward.1} parent=1 // pred_fallthru
      _
    // Predicated region
    $region90: #{grounding_forward.1} parent=1 // pred_check
      _
    $region91: #{grounding_forward.1} parent=1 // pred_check_branch
      %170 = sbr.rel (0) target = $region93
    $region92: #{grounding_forward.1} parent=1 // pred_region
      _
    $region93: #{grounding_forward.1} parent=1 // pred_fallthru
      _
    // Predicated region
    $region94: #{grounding_forward.1} parent=1 // pred_check
      _
    $region95: #{grounding_forward.1} parent=1 // pred_check_branch
      %172 = sbr.rel (0) target = $region97
    $region96: #{grounding_forward.1} parent=1 // pred_region
      _
    $region97: #{grounding_forward.1} parent=1 // pred_fallthru
      _
    // Predicated region
    $region98: #{grounding_forward.1} parent=1 // pred_check
      _
    $region99: #{grounding_forward.1} parent=1 // pred_check_branch
      %174 = sbr.rel (0) target = $region101
    $region100: #{grounding_forward.1} parent=1 // pred_region
      _
    $region101: #{grounding_forward.1} parent=1 // pred_fallthru
      _
    // Predicated region
    $region102: #{grounding_forward.1} parent=1 // pred_check
      _
    $region103: #{grounding_forward.1} parent=1 // pred_check_branch
      %176 = sbr.rel (0) target = $region105
    $region104: #{grounding_forward.1} parent=1 // pred_region
      _
    $region105: #{grounding_forward.1} parent=1 // pred_fallthru
      _
    // Predicated region
    $region106: #{grounding_forward.1} parent=1 // pred_check
      _
    $region107: #{grounding_forward.1} parent=1 // pred_check_branch
      %178 = sbr.rel (0) target = $region109
    $region108: #{grounding_forward.1} parent=1 // pred_region
      %s180 = ssub.s32 16, 16
      %181 = vsyncadd [#allocation6], %s180
      %s183 = sshll.u32 [#allocation5], 4
      %s184 = int_to_ptr.vmem [resolvable:$true] %s183
      %186 = dma.hbm_to_vmem [thread:$0]  %s53, 16, %s184, [#allocation6]
    $region109: #{grounding_forward.1} parent=1 // pred_fallthru
      _
    // Predicated region
    $region110: #{grounding_forward.1} parent=1 // pred_check
      _
    $region111: #{grounding_forward.1} parent=1 // pred_check_branch
      %188 = sbr.rel (0) target = $region113
    $region112: #{grounding_forward.1} parent=1 // pred_region
      _
    $region113: #{grounding_forward.1} parent=1 // pred_fallthru
      _
    // Predicated region
    $region114: #{grounding_forward.1} parent=1 // pred_check
      _
    $region115: #{grounding_forward.1} parent=1 // pred_check_branch
      %190 = sbr.rel (0) target = $region117
    $region116: #{grounding_forward.1} parent=1 // pred_region
      _
    $region117: #{grounding_forward.1} parent=1 // pred_fallthru
      _
    // Predicated region
    $region118: #{grounding_forward.1} parent=1 // pred_check
      _
    $region119: #{grounding_forward.1} parent=1 // pred_check_branch
      %192 = sbr.rel (0) target = $region121
    $region120: #{grounding_forward.1} parent=1 // pred_region
      _
    $region121: #{grounding_forward.1} parent=1 // pred_fallthru
      _
    // Predicated region
    $region122: #{grounding_forward.1} parent=1 // pred_check
      _
    $region123: #{grounding_forward.1} parent=1 // pred_check_branch
      %194 = sbr.rel (0) target = $region125
    $region124: #{grounding_forward.1} parent=1 // pred_region
      %s196 = ssub.s32 16, 16
      %197 = vsyncadd [#allocation9], %s196
      %s199 = sshll.u32 [#allocation8], 4
      %s200 = int_to_ptr.vmem [resolvable:$true] %s199
      %202 = dma.hbm_to_vmem [thread:$0]  %s61, 16, %s200, [#allocation9]
    $region125: #{grounding_forward.1} parent=1 // pred_fallthru
      _
    // Predicated region
    $region126: #{grounding_forward.1} parent=1 // pred_check
      _
    $region127: #{grounding_forward.1} parent=1 // pred_check_branch
      %204 = sbr.rel (0) target = $region129
    $region128: #{grounding_forward.1} parent=1 // pred_region
      _
    $region129: #{grounding_forward.1} parent=1 // pred_fallthru
      _
    // Predicated region
    $region130: #{grounding_forward.1} parent=1 // pred_check
      _
    $region131: #{grounding_forward.1} parent=1 // pred_check_branch
      %206 = sbr.rel (0) target = $region133
    $region132: #{grounding_forward.1} parent=1 // pred_region
      %s208 = ssub.s32 16, 16
      %209 = vsyncadd [#allocation9], %s208
      %s211 = sshll.u32 [#allocation10], 4
      %s212 = int_to_ptr.vmem [resolvable:$true] %s211
      %214 = dma.hbm_to_vmem [thread:$0]  %s65, 16, %s212, [#allocation9]
    $region133: #{grounding_forward.1} parent=1 // pred_fallthru
      _
    // Predicated region
    $region134: #{grounding_forward.1} parent=1 // pred_check
      _
    $region135: #{grounding_forward.1} parent=1 // pred_check_branch
      %216 = sbr.rel (0) target = $region137
    $region136: #{grounding_forward.1} parent=1 // pred_region
      _
    $region137: #{grounding_forward.1} parent=1 // pred_fallthru
      _
    // Predicated region
    $region138: #{grounding_forward.1} parent=1 // pred_check
      _
    $region139: #{grounding_forward.1} parent=1 // pred_check_branch
      %218 = sbr.rel (0) target = $region141
    $region140: #{grounding_forward.1} parent=1 // pred_region
      %s220 = ssub.s32 16, 16
      %221 = vsyncadd [#allocation12], %s220
      %s223 = sshll.u32 [#allocation11], 4
      %s224 = int_to_ptr.vmem [resolvable:$true] %s223
      %226 = dma.hbm_to_vmem [thread:$0]  %s69, 16, %s224, [#allocation12]
    $region141: #{grounding_forward.1} parent=1 // pred_fallthru
      _
    // Predicated region
    $region142: #{grounding_forward.1} parent=1 // pred_check
      _
    $region143: #{grounding_forward.1} parent=1 // pred_check_branch
      %228 = sbr.rel (0) target = $region145
    $region144: #{grounding_forward.1} parent=1 // pred_region
      _
    $region145: #{grounding_forward.1} parent=1 // pred_fallthru
      _
    // Predicated region
    $region146: #{grounding_forward.1} parent=1 // pred_check
      _
    $region147: #{grounding_forward.1} parent=1 // pred_check_branch
      %230 = sbr.rel (0) target = $region149
    $region148: #{grounding_forward.1} parent=1 // pred_region
      %s232 = ssub.s32 16, 16
      %233 = vsyncadd [#allocation12], %s232
      %s235 = sshll.u32 [#allocation13], 4
      %s236 = int_to_ptr.vmem [resolvable:$true] %s235
      %238 = dma.hbm_to_vmem [thread:$0]  %s73, 16, %s236, [#allocation12]
    $region149: #{grounding_forward.1} parent=1 // pred_fallthru
      _
    // Predicated region
    $region150: #{grounding_forward.1} parent=1 // pred_check
      _
    $region151: #{grounding_forward.1} parent=1 // pred_check_branch
      %240 = sbr.rel (0) target = $region153
    $region152: #{grounding_forward.1} parent=1 // pred_region
      _
    $region153: #{grounding_forward.1} parent=1 // pred_fallthru
      _
    // Predicated region
    $region154: #{grounding_forward.1} parent=1 // pred_check
      _
    $region155: #{grounding_forward.1} parent=1 // pred_check_branch
      %242 = sbr.rel (0) target = $region157
    $region156: #{grounding_forward.1} parent=1 // pred_region
      _
    $region157: #{grounding_forward.1} parent=1 // pred_fallthru
      _
    // Predicated region
    $region158: #{grounding_forward.1} parent=1 // pred_check
      _
    $region159: #{grounding_forward.1} parent=1 // pred_check_branch
      %244 = sbr.rel (0) target = $region161
    $region160: #{grounding_forward.1} parent=1 // pred_region
      _
    $region161: #{grounding_forward.1} parent=1 // pred_fallthru
      _
    // Predicated region
    $region162: #{grounding_forward.1} parent=1 // pred_check
      _
    $region163: #{grounding_forward.1} parent=1 // pred_check_branch
      %246 = sbr.rel (0) target = $region165
    $region164: #{grounding_forward.1} parent=1 // pred_region
      _
    $region165: #{grounding_forward.1} parent=1 // pred_fallthru
      _
    // Predicated region
    $region166: #{grounding_forward.1} parent=1 // pred_check
      _
    $region167: #{grounding_forward.1} parent=1 // pred_check_branch
      %248 = sbr.rel (0) target = $region169
    $region168: #{grounding_forward.1} parent=1 // pred_region
      _
    $region169: #{grounding_forward.1} parent=1 // pred_fallthru
      _
    // Predicated region
    $region170: #{grounding_forward.1} parent=1 // pred_check
      _
    $region171: #{grounding_forward.1} parent=1 // pred_check_branch
      %250 = sbr.rel (0) target = $region173
    $region172: #{grounding_forward.1} parent=1 // pred_region
      %s252 = ssub.s32 16, 16
      %253 = vsyncadd [#allocation15], %s252
      %s255 = sshll.u32 [#allocation14], 4
      %s256 = int_to_ptr.vmem [resolvable:$true] %s255
      %258 = dma.hbm_to_vmem [thread:$0]  %s85, 16, %s256, [#allocation15]
    $region173: #{grounding_forward.1} parent=1 // pred_fallthru
      _
    // Predicated region
    $region174: #{grounding_forward.1} parent=1 // pred_check
      _
    $region175: #{grounding_forward.1} parent=1 // pred_check_branch
      %260 = sbr.rel (0) target = $region177
    $region176: #{grounding_forward.1} parent=1 // pred_region
      _
    $region177: #{grounding_forward.1} parent=1 // pred_fallthru
      _
    // Predicated region
    $region178: #{grounding_forward.1} parent=1 // pred_check
      _
    $region179: #{grounding_forward.1} parent=1 // pred_check_branch
      %262 = sbr.rel (0) target = $region181
    $region180: #{grounding_forward.1} parent=1 // pred_region
      _
    $region181: #{grounding_forward.1} parent=1 // pred_fallthru
      _
    // Predicated region
    $region182: #{grounding_forward.1} parent=1 // pred_check
      _
    $region183: #{grounding_forward.1} parent=1 // pred_check_branch
      %264 = sbr.rel (0) target = $region185
    $region184: #{grounding_forward.1} parent=1 // pred_region
      _
    $region185: #{grounding_forward.1} parent=1 // pred_fallthru
      _
    // Predicated region
    $region186: #{grounding_forward.1} parent=1 // pred_check
      _
    $region187: #{grounding_forward.1} parent=1 // pred_check_branch
      %266 = sbr.rel (0) target = $region189
    $region188: #{grounding_forward.1} parent=1 // pred_region
      %s268 = ssub.s32 16, 16
      %269 = vsyncadd [#allocation15], %s268
      %s271 = sshll.u32 [#allocation16], 4
      %s272 = int_to_ptr.vmem [resolvable:$true] %s271
      %274 = dma.hbm_to_vmem [thread:$0]  %s93, 16, %s272, [#allocation15]
    $region189: #{grounding_forward.1} parent=1 // pred_fallthru
      _
    // Predicated region
    $region190: #{grounding_forward.1} parent=1 // pred_check
      _
    $region191: #{grounding_forward.1} parent=1 // pred_check_branch
      %276 = sbr.rel (0) target = $region193
    $region192: #{grounding_forward.1} parent=1 // pred_region
      _
    $region193: #{grounding_forward.1} parent=1 // pred_fallthru
      _
    // Predicated region
    $region194: #{grounding_forward.1} parent=1 // pred_check
      _
    $region195: #{grounding_forward.1} parent=1 // pred_check_branch
      %278 = sbr.rel (0) target = $region197
    $region196: #{grounding_forward.1} parent=1 // pred_region
      %s280 = ssub.s32 16, 16
      %281 = vsyncadd [#allocation18], %s280
      %s283 = sshll.u32 [#allocation17], 4
      %s284 = int_to_ptr.vmem [resolvable:$true] %s283
      %286 = dma.hbm_to_vmem [thread:$0]  %s97, 16, %s284, [#allocation18]
    $region197: #{grounding_forward.1} parent=1 // pred_fallthru
      _
    // Predicated region
    $region198: #{grounding_forward.1} parent=1 // pred_check
      _
    $region199: #{grounding_forward.1} parent=1 // pred_check_branch
      %288 = sbr.rel (0) target = $region201
    $region200: #{grounding_forward.1} parent=1 // pred_region
      _
    $region201: #{grounding_forward.1} parent=1 // pred_fallthru
      _
    // Predicated region
    $region202: #{grounding_forward.1} parent=1 // pred_check
      _
    $region203: #{grounding_forward.1} parent=1 // pred_check_branch
      %290 = sbr.rel (0) target = $region205
    $region204: #{grounding_forward.1} parent=1 // pred_region
      %s292 = ssub.s32 16, 16
      %293 = vsyncadd [#allocation18], %s292
      %s295 = sshll.u32 [#allocation19], 4
      %s296 = int_to_ptr.vmem [resolvable:$true] %s295
      %298 = dma.hbm_to_vmem [thread:$0]  %s101, 16, %s296, [#allocation18]
    $region205: #{grounding_forward.1} parent=1 // pred_fallthru
      _
    // Predicated region
    $region206: #{grounding_forward.1} parent=1 // pred_check
      _
    $region207: #{grounding_forward.1} parent=1 // pred_check_branch
      %300 = sbr.rel (0) target = $region209
    $region208: #{grounding_forward.1} parent=1 // pred_region
      _
    $region209: #{grounding_forward.1} parent=1 // pred_fallthru
      _
    // Predicated region
    $region210: #{grounding_forward.1} parent=1 // pred_check
      _
    $region211: #{grounding_forward.1} parent=1 // pred_check_branch
      %302 = sbr.rel (0) target = $region213
    $region212: #{grounding_forward.1} parent=1 // pred_region
      %s304 = ssub.s32 16, 16
      %305 = vsyncadd [#allocation21], %s304
      %s307 = sshll.u32 [#allocation20], 4
      %s308 = int_to_ptr.vmem [resolvable:$true] %s307
      %310 = dma.hbm_to_vmem [thread:$0]  %s105, 16, %s308, [#allocation21]
    $region213: #{grounding_forward.1} parent=1 // pred_fallthru
      _
    // Predicated region
    $region214: #{grounding_forward.1} parent=1 // pred_check
      _
    $region215: #{grounding_forward.1} parent=1 // pred_check_branch
      %312 = sbr.rel (0) target = $region217
    $region216: #{grounding_forward.1} parent=1 // pred_region
      %313 = dma.done [#allocation6], 16
    $region217: #{grounding_forward.1} parent=1 // pred_fallthru
      _
    // Predicated region
    $region218: #{grounding_forward.1} parent=1 // pred_check
      _
    $region219: #{grounding_forward.1} parent=1 // pred_check_branch
      %315 = sbr.rel (0) target = $region221
    $region220: #{grounding_forward.1} parent=1 // pred_region
      %316 = dma.done [#allocation9], 16
    $region221: #{grounding_forward.1} parent=1 // pred_fallthru
      _
    // Predicated region
    $region222: #{grounding_forward.1} parent=1 // pred_check
      _
    $region223: #{grounding_forward.1} parent=1 // pred_check_branch
      %318 = sbr.rel (0) target = $region225
    $region224: #{grounding_forward.1} parent=1 // pred_region
      %319 = dma.done [#allocation9], 16
    $region225: #{grounding_forward.1} parent=1 // pred_fallthru
      _
    // Predicated region
    $region226: #{grounding_forward.1} parent=1 // pred_check
      _
    $region227: #{grounding_forward.1} parent=1 // pred_check_branch
      %321 = sbr.rel (0) target = $region229
    $region228: #{grounding_forward.1} parent=1 // pred_region
      %322 = dma.done [#allocation12], 16
    $region229: #{grounding_forward.1} parent=1 // pred_fallthru
      _
    // Predicated region
    $region230: #{grounding_forward.1} parent=1 // pred_check
      _
    $region231: #{grounding_forward.1} parent=1 // pred_check_branch
      %324 = sbr.rel (0) target = $region233
    $region232: #{grounding_forward.1} parent=1 // pred_region
      %325 = dma.done [#allocation12], 16
    $region233: #{grounding_forward.1} parent=1 // pred_fallthru
      _
    // Predicated region
    $region234: #{grounding_forward.1} parent=1 // pred_check
      _
    $region235: #{grounding_forward.1} parent=1 // pred_check_branch
      %327 = sbr.rel (0) target = $region237
    $region236: #{grounding_forward.1} parent=1 // pred_region
      %328 = dma.done [#allocation15], 16
    $region237: #{grounding_forward.1} parent=1 // pred_fallthru
      _
    // Predicated region
    $region238: #{grounding_forward.1} parent=1 // pred_check
      _
    $region239: #{grounding_forward.1} parent=1 // pred_check_branch
      %330 = sbr.rel (0) target = $region241
    $region240: #{grounding_forward.1} parent=1 // pred_region
      %331 = dma.done [#allocation15], 16
    $region241: #{grounding_forward.1} parent=1 // pred_fallthru
      _
    // Predicated region
    $region242: #{grounding_forward.1} parent=1 // pred_check
      _
    $region243: #{grounding_forward.1} parent=1 // pred_check_branch
      %333 = sbr.rel (0) target = $region245
    $region244: #{grounding_forward.1} parent=1 // pred_region
      %334 = dma.done [#allocation18], 16
    $region245: #{grounding_forward.1} parent=1 // pred_fallthru
      _
    // Predicated region
    $region246: #{grounding_forward.1} parent=1 // pred_check
      _
    $region247: #{grounding_forward.1} parent=1 // pred_check_branch
      %336 = sbr.rel (0) target = $region249
    $region248: #{grounding_forward.1} parent=1 // pred_region
      %337 = dma.done [#allocation18], 16
    $region249: #{grounding_forward.1} parent=1 // pred_fallthru
      _
    // Predicated region
    $region250: #{grounding_forward.1} parent=1 // pred_check
      _
    $region251: #{grounding_forward.1} parent=1 // pred_check_branch
      %339 = sbr.rel (0) target = $region253
    $region252: #{grounding_forward.1} parent=1 // pred_region
      %340 = dma.done [#allocation21], 16
    $region253: #{grounding_forward.1} parent=1 // pred_fallthru
      _
    %v341 = vld [vmem:[%s1] sm:$0x3]
    %v342 = vld [vmem:[%s3] sm:$0xff]
    %v343 = vld [vmem:[%s3 + $0x8] sm:$0xff]
    %v344 = vld [vmem:[%s3 + $0x10] sm:$0xff]
    %v345 = vld [vmem:[%s3 + $0x18] sm:$0xff]
    %v346 = vld [vmem:[%s3 + $0x20] sm:$0xff]
    %v347 = vld [vmem:[%s3 + $0x28] sm:$0xff]
    %v348 = vld [vmem:[%s5] sm:$0x1]
    %v350 = vlaneseq
    %v351 = vshrl.u32 %v350, 7
    %v352 = vsub.s32 0, %v351
    %v353 = vrot.slane %v348, %v352
    %vm355 = vcmask 392192
    %v357 = vsel %vm355, %v341, 0
    %359 = vmatprep.subr.mxu0 0.0
    %360 = vmatpush1.msra.mxu0 %v342
    %361 = vmatprep.subr.mxu0 0.0
    %362 = vmatpush1.msra.mxu0 %v343
    %363 = vmatprep.subr.mxu0 0.0
    %364 = vmatpush1.msra.mxu0 %v344
    %365 = vmatprep.subr.mxu0 0.0
    %366 = vmatpush1.msra.mxu0 %v345
    %367 = vmatprep.subr.mxu0 0.0
    %368 = vmatpush1.msra.mxu0 %v346
    %369 = vmatprep.subr.mxu0 0.0
    %370 = vmatpush1.msra.mxu0 %v347
    %371 = vmatprep.subr.mxu0 0.0
    %372 = vmatpush1.msra.mxu0 0.0
    %373 = vmatprep.subr.mxu0 0.0
    %374 = vmatpush1.msra.mxu0 0.0
    %375 = vmatprep.subr.mxu0 0.0
    %376 = vmatpush1.msra.mxu0 0.0
    %377 = vmatprep.subr.mxu0 0.0
    %378 = vmatpush1.msra.mxu0 0.0
    %379 = vmatprep.subr.mxu0 0.0
    %380 = vmatpush1.msra.mxu0 0.0
    %381 = vmatprep.subr.mxu0 0.0
    %382 = vmatpush1.msra.mxu0 0.0
    %383 = vmatprep.subr.mxu0 0.0
    %384 = vmatpush1.msra.mxu0 0.0
    %385 = vmatprep.subr.mxu0 0.0
    %386 = vmatpush1.msra.mxu0 0.0
    %387 = vmatprep.subr.mxu0 0.0
    %388 = vmatpush1.msra.mxu0 0.0
    %389 = vmatprep.subr.mxu0 0.0
    %390 = vmatpush1.msra.mxu0 0.0
    %391 = vmatprep.subr.mxu0 0.0
    %392 = vmatpush1.msra.mxu0 0.0
    %393 = vmatprep.subr.mxu0 0.0
    %394 = vmatpush1.msra.mxu0 0.0
    %395 = vmatprep.subr.mxu0 0.0
    %396 = vmatpush1.msra.mxu0 0.0
    %397 = vmatprep.subr.mxu0 0.0
    %398 = vmatpush1.msra.mxu0 0.0
    %399 = vmatprep.subr.mxu0 0.0
    %400 = vmatpush1.msra.mxu0 0.0
    %401 = vmatprep.subr.mxu0 0.0
    %402 = vmatpush1.msra.mxu0 0.0
    %403 = vmatprep.subr.mxu0 0.0
    %404 = vmatpush1.msra.mxu0 0.0
    %405 = vmatprep.subr.mxu0 0.0
    %406 = vmatpush1.msra.mxu0 0.0
    %407 = vmatprep.subr.mxu0 0.0
    %408 = vmatpush1.msra.mxu0 0.0
    %409 = vmatprep.subr.mxu0 0.0
    %410 = vmatpush1.msra.mxu0 0.0
    %411 = vmatprep.subr.mxu0 0.0
    %412 = vmatpush1.msra.mxu0 0.0
    %413 = vmatprep.subr.mxu0 0.0
    %414 = vmatpush1.msra.mxu0 0.0
    %415 = vmatprep.subr.mxu0 0.0
    %416 = vmatpush1.msra.mxu0 0.0
    %417 = vmatprep.subr.mxu0 0.0
    %418 = vmatpush1.msra.mxu0 0.0
    %419 = vmatprep.subr.mxu0 0.0
    %420 = vmatpush1.msra.mxu0 0.0
    %421 = vmatprep.subr.mxu0 0.0
    %422 = vmatpush1.msra.mxu0 0.0
    %423 = vmatprep.mubr.f32.mxu0 0.0
    %424 = vmatmul.mubr.f32.gmra.mrb[0].mxu0 %v357
    %v425 = vpop.f32.mrb[0].mxu0
    %v426 = vadd.f32 %v353, %v425
    %v427 = vpop.f32.mrb[0].mxu0
    %428 = vdwg.mxu0
    %v429 = vmax.f32 %v426, 0.0
    %v430 = vld [vmem:[%s7] sm:$0xff]
    %v431 = vld [vmem:[%s7 + $0x8] sm:$0xff]
    %v432 = vld [vmem:[%s7 + $0x10] sm:$0xff]
    %v433 = vld [vmem:[%s7 + $0x18] sm:$0xff]
    %v434 = vld [vmem:[%s9] sm:$0x1]
    %v436 = vlaneseq
    %v437 = vshrl.u32 %v436, 7
    %v438 = vsub.s32 0, %v437
    %v439 = vrot.slane %v434, %v438
    %vm441 = vcmask 261120
    %v443 = vsel %vm441, %v429, 0
    %445 = vmatprep.subr.mxu0 0.0
    %446 = vmatpush1.msra.mxu0 %v430
    %447 = vmatprep.subr.mxu0 0.0
    %448 = vmatpush1.msra.mxu0 %v431
    %449 = vmatprep.subr.mxu0 0.0
    %450 = vmatpush1.msra.mxu0 %v432
    %451 = vmatprep.subr.mxu0 0.0
    %452 = vmatpush1.msra.mxu0 %v433
    %453 = vmatprep.subr.mxu0 0.0
    %454 = vmatpush1.msra.mxu0 0.0
    %455 = vmatprep.subr.mxu0 0.0
    %456 = vmatpush1.msra.mxu0 0.0
    %457 = vmatprep.subr.mxu0 0.0
    %458 = vmatpush1.msra.mxu0 0.0
    %459 = vmatprep.subr.mxu0 0.0
    %460 = vmatpush1.msra.mxu0 0.0
    %461 = vmatprep.subr.mxu0 0.0
    %462 = vmatpush1.msra.mxu0 0.0
    %463 = vmatprep.subr.mxu0 0.0
    %464 = vmatpush1.msra.mxu0 0.0
    %465 = vmatprep.subr.mxu0 0.0
    %466 = vmatpush1.msra.mxu0 0.0
    %467 = vmatprep.subr.mxu0 0.0
    %468 = vmatpush1.msra.mxu0 0.0
    %469 = vmatprep.subr.mxu0 0.0
    %470 = vmatpush1.msra.mxu0 0.0
    %471 = vmatprep.subr.mxu0 0.0
    %472 = vmatpush1.msra.mxu0 0.0
    %473 = vmatprep.subr.mxu0 0.0
    %474 = vmatpush1.msra.mxu0 0.0
    %475 = vmatprep.subr.mxu0 0.0
    %476 = vmatpush1.msra.mxu0 0.0
    %477 = vmatprep.subr.mxu0 0.0
    %478 = vmatpush1.msra.mxu0 0.0
    %479 = vmatprep.subr.mxu0 0.0
    %480 = vmatpush1.msra.mxu0 0.0
    %481 = vmatprep.subr.mxu0 0.0
    %482 = vmatpush1.msra.mxu0 0.0
    %483 = vmatprep.subr.mxu0 0.0
    %484 = vmatpush1.msra.mxu0 0.0
    %485 = vmatprep.subr.mxu0 0.0
    %486 = vmatpush1.msra.mxu0 0.0
    %487 = vmatprep.subr.mxu0 0.0
    %488 = vmatpush1.msra.mxu0 0.0
    %489 = vmatprep.subr.mxu0 0.0
    %490 = vmatpush1.msra.mxu0 0.0
    %491 = vmatprep.subr.mxu0 0.0
    %492 = vmatpush1.msra.mxu0 0.0
    %493 = vmatprep.subr.mxu0 0.0
    %494 = vmatpush1.msra.mxu0 0.0
    %495 = vmatprep.subr.mxu0 0.0
    %496 = vmatpush1.msra.mxu0 0.0
    %497 = vmatprep.subr.mxu0 0.0
    %498 = vmatpush1.msra.mxu0 0.0
    %499 = vmatprep.subr.mxu0 0.0
    %500 = vmatpush1.msra.mxu0 0.0
    %501 = vmatprep.subr.mxu0 0.0
    %502 = vmatpush1.msra.mxu0 0.0
    %503 = vmatprep.subr.mxu0 0.0
    %504 = vmatpush1.msra.mxu0 0.0
    %505 = vmatprep.subr.mxu0 0.0
    %506 = vmatpush1.msra.mxu0 0.0
    %507 = vmatprep.subr.mxu0 0.0
    %508 = vmatpush1.msra.mxu0 0.0
    %509 = vmatprep.mubr.f32.mxu0 0.0
    %510 = vmatmul.mubr.f32.gmra.mrb[0].mxu0 %v443
    %v511 = vpop.f32.mrb[0].mxu0
    %v512 = vadd.f32 %v439, %v511
    %v513 = vpop.f32.mrb[0].mxu0
    %514 = vdwg.mxu0
    %v515 = vmax.f32 %v512, 0.0
    %v516 = vmul.f32 %v515, %v515
    %vm517 = vcmask 254976
    %v518 = vsel %vm517, %v516, 0.0
    %519 = vadd.xlane.f32.xlu0 %v518
    %v520 = vpop.xlane.xlu0 %519
    %v521 = vmax.f32 %v520, 1e-24
    %v522 = vrsqrt.pop %v521
    %v523 = vmul.f32 %v515, %v522
    %v524 = vld [vmem:[%s11] sm:$0xff]
    %v525 = vld [vmem:[%s19] sm:$0xff]
    %v526 = vld [vmem:[%s19 + $0x8] sm:$0xff]
    %v527 = vld [vmem:[%s19 + $0x10] sm:$0xff]
    %v528 = vld [vmem:[%s19 + $0x18] sm:$0xff]
    %v529 = vld [vmem:[%s19 + $0x20] sm:$0xff]
    %v530 = vld [vmem:[%s19 + $0x28] sm:$0xff]
    %v531 = vld [vmem:[%s19 + $0x30] sm:$0xff]
    %v532 = vld [vmem:[%s19 + $0x38] sm:$0xff]
    %v533 = vld [vmem:[%s21] sm:$0x1]
    %v535 = vlaneseq
    %v536 = vshrl.u32 %v535, 7
    %v537 = vsub.s32 0, %v536
    %v538 = vrot.slane %v533, %v537
    %vm540 = vcmask 523264
    %v542 = vsel %vm540, %v524, 0
    %544 = vmatprep.subr.mxu0 0.0
    %545 = vmatpush1.msra.mxu0 %v525
    %546 = vmatprep.subr.mxu0 0.0
    %547 = vmatpush1.msra.mxu0 %v526
    %548 = vmatprep.subr.mxu0 0.0
    %549 = vmatpush1.msra.mxu0 %v527
    %550 = vmatprep.subr.mxu0 0.0
    %551 = vmatpush1.msra.mxu0 %v528
    %552 = vmatprep.subr.mxu0 0.0
    %553 = vmatpush1.msra.mxu0 %v529
    %554 = vmatprep.subr.mxu0 0.0
    %555 = vmatpush1.msra.mxu0 %v530
    %556 = vmatprep.subr.mxu0 0.0
    %557 = vmatpush1.msra.mxu0 %v531
    %558 = vmatprep.subr.mxu0 0.0
    %559 = vmatpush1.msra.mxu0 %v532
    %560 = vmatprep.subr.mxu0 0.0
    %561 = vmatpush1.msra.mxu0 0.0
    %562 = vmatprep.subr.mxu0 0.0
    %563 = vmatpush1.msra.mxu0 0.0
    %564 = vmatprep.subr.mxu0 0.0
    %565 = vmatpush1.msra.mxu0 0.0
    %566 = vmatprep.subr.mxu0 0.0
    %567 = vmatpush1.msra.mxu0 0.0
    %568 = vmatprep.subr.mxu0 0.0
    %569 = vmatpush1.msra.mxu0 0.0
    %570 = vmatprep.subr.mxu0 0.0
    %571 = vmatpush1.msra.mxu0 0.0
    %572 = vmatprep.subr.mxu0 0.0
    %573 = vmatpush1.msra.mxu0 0.0
    %574 = vmatprep.subr.mxu0 0.0
    %575 = vmatpush1.msra.mxu0 0.0
    %576 = vmatprep.subr.mxu0 0.0
    %577 = vmatpush1.msra.mxu0 0.0
    %578 = vmatprep.subr.mxu0 0.0
    %579 = vmatpush1.msra.mxu0 0.0
    %580 = vmatprep.subr.mxu0 0.0
    %581 = vmatpush1.msra.mxu0 0.0
    %582 = vmatprep.subr.mxu0 0.0
    %583 = vmatpush1.msra.mxu0 0.0
    %584 = vmatprep.subr.mxu0 0.0
    %585 = vmatpush1.msra.mxu0 0.0
    %586 = vmatprep.subr.mxu0 0.0
    %587 = vmatpush1.msra.mxu0 0.0
    %588 = vmatprep.subr.mxu0 0.0
    %589 = vmatpush1.msra.mxu0 0.0
    %590 = vmatprep.subr.mxu0 0.0
    %591 = vmatpush1.msra.mxu0 0.0
    %592 = vmatprep.subr.mxu0 0.0
    %593 = vmatpush1.msra.mxu0 0.0
    %594 = vmatprep.subr.mxu0 0.0
    %595 = vmatpush1.msra.mxu0 0.0
    %596 = vmatprep.subr.mxu0 0.0
    %597 = vmatpush1.msra.mxu0 0.0
    %598 = vmatprep.subr.mxu0 0.0
    %599 = vmatpush1.msra.mxu0 0.0
    %600 = vmatprep.subr.mxu0 0.0
    %601 = vmatpush1.msra.mxu0 0.0
    %602 = vmatprep.subr.mxu0 0.0
    %603 = vmatpush1.msra.mxu0 0.0
    %604 = vmatprep.subr.mxu0 0.0
    %605 = vmatpush1.msra.mxu0 0.0
    %606 = vmatprep.subr.mxu0 0.0
    %607 = vmatpush1.msra.mxu0 0.0
    %608 = vmatprep.mubr.f32.mxu0 0.0
    %609 = vmatmul.mubr.f32.gmra.mrb[0].mxu0 %v542
    %v610 = vpop.f32.mrb[0].mxu0
    %v611 = vadd.f32 %v538, %v610
    %v612 = vpop.f32.mrb[0].mxu0
    %613 = vdwg.mxu0
    %v614 = vmax.f32 %v611, 0.0
    %v615 = vmul.f32 %v614, %v614
    %v616 = vsel %vm441, %v615, 0.0
    %617 = vadd.xlane.f32.xlu0 %v616
    %v618 = vpop.xlane.xlu0 %617
    %v619 = vmax.f32 %v618, 1e-24
    %v620 = vrsqrt.pop %v619
    %v621 = vmul.f32 %v614, %v620
    %v622 = vld [vmem:[%s25] sm:$0xff]
    %v623 = vld [vmem:[%s25 + $0x8] sm:$0xff]
    %v624 = vld [vmem:[%s25 + $0x10] sm:$0xff]
    %v625 = vld [vmem:[%s25 + $0x18] sm:$0xff]
    %v627 = vsel %vm441, %v523, 0
    %629 = vmatprep.subr.mxu0 0.0
    %630 = vmatpush1.msra.mxu0 %v622
    %631 = vmatprep.subr.mxu0 0.0
    %632 = vmatpush1.msra.mxu0 %v623
    %633 = vmatprep.subr.mxu0 0.0
    %634 = vmatpush1.msra.mxu0 %v624
    %635 = vmatprep.subr.mxu0 0.0
    %636 = vmatpush1.msra.mxu0 %v625
    %637 = vmatprep.subr.mxu0 0.0
    %638 = vmatpush1.msra.mxu0 0.0
    %639 = vmatprep.subr.mxu0 0.0
    %640 = vmatpush1.msra.mxu0 0.0
    %641 = vmatprep.subr.mxu0 0.0
    %642 = vmatpush1.msra.mxu0 0.0
    %643 = vmatprep.subr.mxu0 0.0
    %644 = vmatpush1.msra.mxu0 0.0
    %645 = vmatprep.subr.mxu0 0.0
    %646 = vmatpush1.msra.mxu0 0.0
    %647 = vmatprep.subr.mxu0 0.0
    %648 = vmatpush1.msra.mxu0 0.0
    %649 = vmatprep.subr.mxu0 0.0
    %650 = vmatpush1.msra.mxu0 0.0
    %651 = vmatprep.subr.mxu0 0.0
    %652 = vmatpush1.msra.mxu0 0.0
    %653 = vmatprep.subr.mxu0 0.0
    %654 = vmatpush1.msra.mxu0 0.0
    %655 = vmatprep.subr.mxu0 0.0
    %656 = vmatpush1.msra.mxu0 0.0
    %657 = vmatprep.subr.mxu0 0.0
    %658 = vmatpush1.msra.mxu0 0.0
    %659 = vmatprep.subr.mxu0 0.0
    %660 = vmatpush1.msra.mxu0 0.0
    %661 = vmatprep.subr.mxu0 0.0
    %662 = vmatpush1.msra.mxu0 0.0
    %663 = vmatprep.subr.mxu0 0.0
    %664 = vmatpush1.msra.mxu0 0.0
    %665 = vmatprep.subr.mxu0 0.0
    %666 = vmatpush1.msra.mxu0 0.0
    %667 = vmatprep.subr.mxu0 0.0
    %668 = vmatpush1.msra.mxu0 0.0
    %669 = vmatprep.subr.mxu0 0.0
    %670 = vmatpush1.msra.mxu0 0.0
    %671 = vmatprep.subr.mxu0 0.0
    %672 = vmatpush1.msra.mxu0 0.0
    %673 = vmatprep.subr.mxu0 0.0
    %674 = vmatpush1.msra.mxu0 0.0
    %675 = vmatprep.subr.mxu0 0.0
    %676 = vmatpush1.msra.mxu0 0.0
    %677 = vmatprep.subr.mxu0 0.0
    %678 = vmatpush1.msra.mxu0 0.0
    %679 = vmatprep.subr.mxu0 0.0
    %680 = vmatpush1.msra.mxu0 0.0
    %681 = vmatprep.subr.mxu0 0.0
    %682 = vmatpush1.msra.mxu0 0.0
    %683 = vmatprep.subr.mxu0 0.0
    %684 = vmatpush1.msra.mxu0 0.0
    %685 = vmatprep.subr.mxu0 0.0
    %686 = vmatpush1.msra.mxu0 0.0
    %687 = vmatprep.subr.mxu0 0.0
    %688 = vmatpush1.msra.mxu0 0.0
    %689 = vmatprep.subr.mxu0 0.0
    %690 = vmatpush1.msra.mxu0 0.0
    %691 = vmatprep.subr.mxu0 0.0
    %692 = vmatpush1.msra.mxu0 0.0
    %693 = vmatprep.mubr.f32.mxu0 0.0
    %694 = vmatmul.mubr.f32.gmra.mrb[0].mxu0 %v627
    %v695 = vpop.f32.mrb[0].mxu0
    %v696 = vadd.f32 0.0, %v695
    %v697 = vpop.f32.mrb[0].mxu0
    %698 = vdwg.mxu0
    %v699 = vld [vmem:[%s23] sm:$0xff]
    %v700 = vld [vmem:[%s23 + $0x8] sm:$0xff]
    %v701 = vld [vmem:[%s23 + $0x10] sm:$0xff]
    %v702 = vld [vmem:[%s23 + $0x18] sm:$0xff]
    %v703 = vld [vmem:[%s13] sm:$0xff]
    %vm704 = vcmask 15360
    %v706 = vsel %vm704, %v703, 0
    %vm708 = vcmask 1041408
    %v710 = vsel %vm708, %v696, 0
    %712 = vmatprep.subr.mxu0 0.0
    %713 = vmatpush1.msra.mxu0 %v710
    %714 = vmatprep.subr.mxu0 0.0
    %715 = vmatpush1.msra.mxu0 0.0
    %716 = vmatprep.subr.mxu0 0.0
    %717 = vmatpush1.msra.mxu0 0.0
    %718 = vmatprep.subr.mxu0 0.0
    %719 = vmatpush1.msra.mxu0 0.0
    %720 = vmatprep.subr.mxu0 0.0
    %721 = vmatpush1.msra.mxu0 0.0
    %722 = vmatprep.subr.mxu0 0.0
    %723 = vmatpush1.msra.mxu0 0.0
    %724 = vmatprep.subr.mxu0 0.0
    %725 = vmatpush1.msra.mxu0 0.0
    %726 = vmatprep.subr.mxu0 0.0
    %727 = vmatpush1.msra.mxu0 0.0
    %728 = vmatprep.subr.mxu0 0.0
    %729 = vmatpush1.msra.mxu0 0.0
    %730 = vmatprep.subr.mxu0 0.0
    %731 = vmatpush1.msra.mxu0 0.0
    %732 = vmatprep.subr.mxu0 0.0
    %733 = vmatpush1.msra.mxu0 0.0
    %734 = vmatprep.subr.mxu0 0.0
    %735 = vmatpush1.msra.mxu0 0.0
    %736 = vmatprep.subr.mxu0 0.0
    %737 = vmatpush1.msra.mxu0 0.0
    %738 = vmatprep.subr.mxu0 0.0
    %739 = vmatpush1.msra.mxu0 0.0
    %740 = vmatprep.subr.mxu0 0.0
    %741 = vmatpush1.msra.mxu0 0.0
    %742 = vmatprep.subr.mxu0 0.0
    %743 = vmatpush1.msra.mxu0 0.0
    %744 = vmatprep.subr.mxu0 0.0
    %745 = vmatpush1.msra.mxu0 0.0
    %746 = vmatprep.subr.mxu0 0.0
    %747 = vmatpush1.msra.mxu0 0.0
    %748 = vmatprep.subr.mxu0 0.0
    %749 = vmatpush1.msra.mxu0 0.0
    %750 = vmatprep.subr.mxu0 0.0
    %751 = vmatpush1.msra.mxu0 0.0
    %752 = vmatprep.subr.mxu0 0.0
    %753 = vmatpush1.msra.mxu0 0.0
    %754 = vmatprep.subr.mxu0 0.0
    %755 = vmatpush1.msra.mxu0 0.0
    %756 = vmatprep.subr.mxu0 0.0
    %757 = vmatpush1.msra.mxu0 0.0
    %758 = vmatprep.subr.mxu0 0.0
    %759 = vmatpush1.msra.mxu0 0.0
    %760 = vmatprep.subr.mxu0 0.0
    %761 = vmatpush1.msra.mxu0 0.0
    %762 = vmatprep.subr.mxu0 0.0
    %763 = vmatpush1.msra.mxu0 0.0
    %764 = vmatprep.subr.mxu0 0.0
    %765 = vmatpush1.msra.mxu0 0.0
    %766 = vmatprep.subr.mxu0 0.0
    %767 = vmatpush1.msra.mxu0 0.0
    %768 = vmatprep.subr.mxu0 0.0
    %769 = vmatpush1.msra.mxu0 0.0
    %770 = vmatprep.subr.mxu0 0.0
    %771 = vmatpush1.msra.mxu0 0.0
    %772 = vmatprep.subr.mxu0 0.0
    %773 = vmatpush1.msra.mxu0 0.0
    %774 = vmatprep.subr.mxu0 0.0
    %775 = vmatpush1.msra.mxu0 0.0
    %776 = vmatprep.mubr.f32.mxu0 0.0
    %777 = vmatmul.mubr.f32.gmra.mrb[0].mxu0 %v706
    %v778 = vpop.f32.mrb[0].mxu0
    %v779 = vadd.f32 0.0, %v778
    %v780 = vpop.f32.mrb[0].mxu0
    %781 = vdwg.mxu0
    %v783 = vsel %vm441, %v621, 0
    %785 = vmatprep.subr.mxu0 0.0
    %786 = vmatpush1.msra.mxu0 %v699
    %787 = vmatprep.subr.mxu0 0.0
    %788 = vmatpush1.msra.mxu0 %v700
    %789 = vmatprep.subr.mxu0 0.0
    %790 = vmatpush1.msra.mxu0 %v701
    %791 = vmatprep.subr.mxu0 0.0
    %792 = vmatpush1.msra.mxu0 %v702
    %793 = vmatprep.subr.mxu0 0.0
    %794 = vmatpush1.msra.mxu0 0.0
    %795 = vmatprep.subr.mxu0 0.0
    %796 = vmatpush1.msra.mxu0 0.0
    %797 = vmatprep.subr.mxu0 0.0
    %798 = vmatpush1.msra.mxu0 0.0
    %799 = vmatprep.subr.mxu0 0.0
    %800 = vmatpush1.msra.mxu0 0.0
    %801 = vmatprep.subr.mxu0 0.0
    %802 = vmatpush1.msra.mxu0 0.0
    %803 = vmatprep.subr.mxu0 0.0
    %804 = vmatpush1.msra.mxu0 0.0
    %805 = vmatprep.subr.mxu0 0.0
    %806 = vmatpush1.msra.mxu0 0.0
    %807 = vmatprep.subr.mxu0 0.0
    %808 = vmatpush1.msra.mxu0 0.0
    %809 = vmatprep.subr.mxu0 0.0
    %810 = vmatpush1.msra.mxu0 0.0
    %811 = vmatprep.subr.mxu0 0.0
    %812 = vmatpush1.msra.mxu0 0.0
    %813 = vmatprep.subr.mxu0 0.0
    %814 = vmatpush1.msra.mxu0 0.0
    %815 = vmatprep.subr.mxu0 0.0
    %816 = vmatpush1.msra.mxu0 0.0
    %817 = vmatprep.subr.mxu0 0.0
    %818 = vmatpush1.msra.mxu0 0.0
    %819 = vmatprep.subr.mxu0 0.0
    %820 = vmatpush1.msra.mxu0 0.0
    %821 = vmatprep.subr.mxu0 0.0
    %822 = vmatpush1.msra.mxu0 0.0
    %823 = vmatprep.subr.mxu0 0.0
    %824 = vmatpush1.msra.mxu0 0.0
    %825 = vmatprep.subr.mxu0 0.0
    %826 = vmatpush1.msra.mxu0 0.0
    %827 = vmatprep.subr.mxu0 0.0
    %828 = vmatpush1.msra.mxu0 0.0
    %829 = vmatprep.subr.mxu0 0.0
    %830 = vmatpush1.msra.mxu0 0.0
    %831 = vmatprep.subr.mxu0 0.0
    %832 = vmatpush1.msra.mxu0 0.0
    %833 = vmatprep.subr.mxu0 0.0
    %834 = vmatpush1.msra.mxu0 0.0
    %835 = vmatprep.subr.mxu0 0.0
    %836 = vmatpush1.msra.mxu0 0.0
    %837 = vmatprep.subr.mxu0 0.0
    %838 = vmatpush1.msra.mxu0 0.0
    %839 = vmatprep.subr.mxu0 0.0
    %840 = vmatpush1.msra.mxu0 0.0
    %841 = vmatprep.subr.mxu0 0.0
    %842 = vmatpush1.msra.mxu0 0.0
    %843 = vmatprep.subr.mxu0 0.0
    %844 = vmatpush1.msra.mxu0 0.0
    %845 = vmatprep.subr.mxu0 0.0
    %846 = vmatpush1.msra.mxu0 0.0
    %847 = vmatprep.subr.mxu0 0.0
    %848 = vmatpush1.msra.mxu0 0.0
    %849 = vmatprep.mubr.f32.mxu0 0.0
    %850 = vmatmul.mubr.f32.gmra.mrb[0].mxu0 %v783
    %v851 = vpop.f32.mrb[0].mxu0
    %v852 = vadd.f32 %v779, %v851
    %v853 = vpop.f32.mrb[0].mxu0
    %854 = vdwg.mxu0
    %v855 = vld [vmem:[%s15] sm:$0xff]
    %v856 = vadd.f32 %v852, %v855
    %v857 = vmax.f32 %v856, 0.0
    %vm858 = vcmask 256000
    %859 = vst.msk [vmem:[#allocation2] sm:$0x7] %vm858, 0.0
    %860 = vst.msk [vmem:[#allocation2 + $0xb] sm:$0x7] %vm858, 0.0
    %861 = vst.msk [vmem:[#allocation2 + $0x3] sm:$0xff] %vm441, %v857
    %v862 = vld [vmem:[#allocation2] sm:$0xff]
    %v863 = vld [vmem:[%s17] sm:$0xff]
    %865 = vset.pattern.permute.xlu0 0
    %866 = vperm.xlu0 %865, %v863
    %v867 = vpop.permute.xlu0 %866
    %v869 = vmul.f32 %v862, %v867
    %v870 = vld [vmem:[%s27] sm:$0xff]
    %v871 = vld [vmem:[%s27 + $0x8] sm:$0xff]
    %v872 = vld [vmem:[%s27 + $0x10] sm:$0xff]
    %v873 = vld [vmem:[%s27 + $0x18] sm:$0xff]
    %v874 = vld [vmem:[#allocation2 + $0x1] sm:$0xff]
    %875 = vset.pattern.permute.xlu0 1
    %876 = vperm.xlu0 %875, %v863
    %v877 = vpop.permute.xlu0 %876
    %v879 = vmul.f32 %v874, %v877
    %v880 = vld [vmem:[%s27 + $0x20] sm:$0xff]
    %v881 = vld [vmem:[%s27 + $0x28] sm:$0xff]
    %v882 = vld [vmem:[%s27 + $0x30] sm:$0xff]
    %v883 = vld [vmem:[%s27 + $0x38] sm:$0xff]
    %v885 = vsel %vm441, %v879, 0
    %887 = vmatprep.subr.mxu0 0.0
    %888 = vmatpush1.msra.mxu0 %v880
    %889 = vmatprep.subr.mxu0 0.0
    %890 = vmatpush1.msra.mxu0 %v881
    %891 = vmatprep.subr.mxu0 0.0
    %892 = vmatpush1.msra.mxu0 %v882
    %893 = vmatprep.subr.mxu0 0.0
    %894 = vmatpush1.msra.mxu0 %v883
    %895 = vmatprep.subr.mxu0 0.0
    %896 = vmatpush1.msra.mxu0 0.0
    %897 = vmatprep.subr.mxu0 0.0
    %898 = vmatpush1.msra.mxu0 0.0
    %899 = vmatprep.subr.mxu0 0.0
    %900 = vmatpush1.msra.mxu0 0.0
    %901 = vmatprep.subr.mxu0 0.0
    %902 = vmatpush1.msra.mxu0 0.0
    %903 = vmatprep.subr.mxu0 0.0
    %904 = vmatpush1.msra.mxu0 0.0
    %905 = vmatprep.subr.mxu0 0.0
    %906 = vmatpush1.msra.mxu0 0.0
    %907 = vmatprep.subr.mxu0 0.0
    %908 = vmatpush1.msra.mxu0 0.0
    %909 = vmatprep.subr.mxu0 0.0
    %910 = vmatpush1.msra.mxu0 0.0
    %911 = vmatprep.subr.mxu0 0.0
    %912 = vmatpush1.msra.mxu0 0.0
    %913 = vmatprep.subr.mxu0 0.0
    %914 = vmatpush1.msra.mxu0 0.0
    %915 = vmatprep.subr.mxu0 0.0
    %916 = vmatpush1.msra.mxu0 0.0
    %917 = vmatprep.subr.mxu0 0.0
    %918 = vmatpush1.msra.mxu0 0.0
    %919 = vmatprep.subr.mxu0 0.0
    %920 = vmatpush1.msra.mxu0 0.0
    %921 = vmatprep.subr.mxu0 0.0
    %922 = vmatpush1.msra.mxu0 0.0
    %923 = vmatprep.subr.mxu0 0.0
    %924 = vmatpush1.msra.mxu0 0.0
    %925 = vmatprep.subr.mxu0 0.0
    %926 = vmatpush1.msra.mxu0 0.0
    %927 = vmatprep.subr.mxu0 0.0
    %928 = vmatpush1.msra.mxu0 0.0
    %929 = vmatprep.subr.mxu0 0.0
    %930 = vmatpush1.msra.mxu0 0.0
    %931 = vmatprep.subr.mxu0 0.0
    %932 = vmatpush1.msra.mxu0 0.0
    %933 = vmatprep.subr.mxu0 0.0
    %934 = vmatpush1.msra.mxu0 0.0
    %935 = vmatprep.subr.mxu0 0.0
    %936 = vmatpush1.msra.mxu0 0.0
    %937 = vmatprep.subr.mxu0 0.0
    %938 = vmatpush1.msra.mxu0 0.0
    %939 = vmatprep.subr.mxu0 0.0
    %940 = vmatpush1.msra.mxu0 0.0
    %941 = vmatprep.subr.mxu0 0.0
    %942 = vmatpush1.msra.mxu0 0.0
    %943 = vmatprep.subr.mxu0 0.0
    %944 = vmatpush1.msra.mxu0 0.0
    %945 = vmatprep.subr.mxu0 0.0
    %946 = vmatpush1.msra.mxu0 0.0
    %947 = vmatprep.subr.mxu0 0.0
    %948 = vmatpush1.msra.mxu0 0.0
    %949 = vmatprep.subr.mxu0 0.0
    %950 = vmatpush1.msra.mxu0 0.0
    %951 = vmatprep.mubr.f32.mxu0 0.0
    %952 = vmatmul.mubr.f32.gmra.mrb[0].mxu0 %v885
    %v953 = vpop.f32.mrb[0].mxu0
    %v954 = vadd.f32 0.0, %v953
    %v955 = vpop.f32.mrb[0].mxu0
    %956 = vdwg.mxu0
    %v958 = vsel %vm441, %v869, 0
    %960 = vmatprep.subr.mxu0 0.0
    %961 = vmatpush1.msra.mxu0 %v870
    %962 = vmatprep.subr.mxu0 0.0
    %963 = vmatpush1.msra.mxu0 %v871
    %964 = vmatprep.subr.mxu0 0.0
    %965 = vmatpush1.msra.mxu0 %v872
    %966 = vmatprep.subr.mxu0 0.0
    %967 = vmatpush1.msra.mxu0 %v873
    %968 = vmatprep.subr.mxu0 0.0
    %969 = vmatpush1.msra.mxu0 0.0
    %970 = vmatprep.subr.mxu0 0.0
    %971 = vmatpush1.msra.mxu0 0.0
    %972 = vmatprep.subr.mxu0 0.0
    %973 = vmatpush1.msra.mxu0 0.0
    %974 = vmatprep.subr.mxu0 0.0
    %975 = vmatpush1.msra.mxu0 0.0
    %976 = vmatprep.subr.mxu0 0.0
    %977 = vmatpush1.msra.mxu0 0.0
    %978 = vmatprep.subr.mxu0 0.0
    %979 = vmatpush1.msra.mxu0 0.0
    %980 = vmatprep.subr.mxu0 0.0
    %981 = vmatpush1.msra.mxu0 0.0
    %982 = vmatprep.subr.mxu0 0.0
    %983 = vmatpush1.msra.mxu0 0.0
    %984 = vmatprep.subr.mxu0 0.0
    %985 = vmatpush1.msra.mxu0 0.0
    %986 = vmatprep.subr.mxu0 0.0
    %987 = vmatpush1.msra.mxu0 0.0
    %988 = vmatprep.subr.mxu0 0.0
    %989 = vmatpush1.msra.mxu0 0.0
    %990 = vmatprep.subr.mxu0 0.0
    %991 = vmatpush1.msra.mxu0 0.0
    %992 = vmatprep.subr.mxu0 0.0
    %993 = vmatpush1.msra.mxu0 0.0
    %994 = vmatprep.subr.mxu0 0.0
    %995 = vmatpush1.msra.mxu0 0.0
    %996 = vmatprep.subr.mxu0 0.0
    %997 = vmatpush1.msra.mxu0 0.0
    %998 = vmatprep.subr.mxu0 0.0
    %999 = vmatpush1.msra.mxu0 0.0
    %1000 = vmatprep.subr.mxu0 0.0
    %1001 = vmatpush1.msra.mxu0 0.0
    %1002 = vmatprep.subr.mxu0 0.0
    %1003 = vmatpush1.msra.mxu0 0.0
    %1004 = vmatprep.subr.mxu0 0.0
    %1005 = vmatpush1.msra.mxu0 0.0
    %1006 = vmatprep.subr.mxu0 0.0
    %1007 = vmatpush1.msra.mxu0 0.0
    %1008 = vmatprep.subr.mxu0 0.0
    %1009 = vmatpush1.msra.mxu0 0.0
    %1010 = vmatprep.subr.mxu0 0.0
    %1011 = vmatpush1.msra.mxu0 0.0
    %1012 = vmatprep.subr.mxu0 0.0
    %1013 = vmatpush1.msra.mxu0 0.0
    %1014 = vmatprep.subr.mxu0 0.0
    %1015 = vmatpush1.msra.mxu0 0.0
    %1016 = vmatprep.subr.mxu0 0.0
    %1017 = vmatpush1.msra.mxu0 0.0
    %1018 = vmatprep.subr.mxu0 0.0
    %1019 = vmatpush1.msra.mxu0 0.0
    %1020 = vmatprep.subr.mxu0 0.0
    %1021 = vmatpush1.msra.mxu0 0.0
    %1022 = vmatprep.subr.mxu0 0.0
    %1023 = vmatpush1.msra.mxu0 0.0
    %1024 = vmatprep.mubr.f32.mxu0 0.0
    %1025 = vmatmul.mubr.f32.gmra.mrb[0].mxu0 %v958
    %v1026 = vpop.f32.mrb[0].mxu0
    %v1027 = vadd.f32 %v954, %v1026
    %v1028 = vpop.f32.mrb[0].mxu0
    %1029 = vdwg.mxu0
    %v1030 = vld [vmem:[#allocation2 + $0x2] sm:$0xff]
    %1031 = vset.pattern.permute.xlu0 2
    %1032 = vperm.xlu0 %1031, %v863
    %v1033 = vpop.permute.xlu0 %1032
    %v1035 = vmul.f32 %v1030, %v1033
    %v1036 = vld [vmem:[%s27 + $0x40] sm:$0xff]
    %v1037 = vld [vmem:[%s27 + $0x48] sm:$0xff]
    %v1038 = vld [vmem:[%s27 + $0x50] sm:$0xff]
    %v1039 = vld [vmem:[%s27 + $0x58] sm:$0xff]
    %v1041 = vsel %vm441, %v1035, 0
    %1043 = vmatprep.subr.mxu0 0.0
    %1044 = vmatpush1.msra.mxu0 %v1036
    %1045 = vmatprep.subr.mxu0 0.0
    %1046 = vmatpush1.msra.mxu0 %v1037
    %1047 = vmatprep.subr.mxu0 0.0
    %1048 = vmatpush1.msra.mxu0 %v1038
    %1049 = vmatprep.subr.mxu0 0.0
    %1050 = vmatpush1.msra.mxu0 %v1039
    %1051 = vmatprep.subr.mxu0 0.0
    %1052 = vmatpush1.msra.mxu0 0.0
    %1053 = vmatprep.subr.mxu0 0.0
    %1054 = vmatpush1.msra.mxu0 0.0
    %1055 = vmatprep.subr.mxu0 0.0
    %1056 = vmatpush1.msra.mxu0 0.0
    %1057 = vmatprep.subr.mxu0 0.0
    %1058 = vmatpush1.msra.mxu0 0.0
    %1059 = vmatprep.subr.mxu0 0.0
    %1060 = vmatpush1.msra.mxu0 0.0
    %1061 = vmatprep.subr.mxu0 0.0
    %1062 = vmatpush1.msra.mxu0 0.0
    %1063 = vmatprep.subr.mxu0 0.0
    %1064 = vmatpush1.msra.mxu0 0.0
    %1065 = vmatprep.subr.mxu0 0.0
    %1066 = vmatpush1.msra.mxu0 0.0
    %1067 = vmatprep.subr.mxu0 0.0
    %1068 = vmatpush1.msra.mxu0 0.0
    %1069 = vmatprep.subr.mxu0 0.0
    %1070 = vmatpush1.msra.mxu0 0.0
    %1071 = vmatprep.subr.mxu0 0.0
    %1072 = vmatpush1.msra.mxu0 0.0
    %1073 = vmatprep.subr.mxu0 0.0
    %1074 = vmatpush1.msra.mxu0 0.0
    %1075 = vmatprep.subr.mxu0 0.0
    %1076 = vmatpush1.msra.mxu0 0.0
    %1077 = vmatprep.subr.mxu0 0.0
    %1078 = vmatpush1.msra.mxu0 0.0
    %1079 = vmatprep.subr.mxu0 0.0
    %1080 = vmatpush1.msra.mxu0 0.0
    %1081 = vmatprep.subr.mxu0 0.0
    %1082 = vmatpush1.msra.mxu0 0.0
    %1083 = vmatprep.subr.mxu0 0.0
    %1084 = vmatpush1.msra.mxu0 0.0
    %1085 = vmatprep.subr.mxu0 0.0
    %1086 = vmatpush1.msra.mxu0 0.0
    %1087 = vmatprep.subr.mxu0 0.0
    %1088 = vmatpush1.msra.mxu0 0.0
    %1089 = vmatprep.subr.mxu0 0.0
    %1090 = vmatpush1.msra.mxu0 0.0
    %1091 = vmatprep.subr.mxu0 0.0
    %1092 = vmatpush1.msra.mxu0 0.0
    %1093 = vmatprep.subr.mxu0 0.0
    %1094 = vmatpush1.msra.mxu0 0.0
    %1095 = vmatprep.subr.mxu0 0.0
    %1096 = vmatpush1.msra.mxu0 0.0
    %1097 = vmatprep.subr.mxu0 0.0
    %1098 = vmatpush1.msra.mxu0 0.0
    %1099 = vmatprep.subr.mxu0 0.0
    %1100 = vmatpush1.msra.mxu0 0.0
    %1101 = vmatprep.subr.mxu0 0.0
    %1102 = vmatpush1.msra.mxu0 0.0
    %1103 = vmatprep.subr.mxu0 0.0
    %1104 = vmatpush1.msra.mxu0 0.0
    %1105 = vmatprep.subr.mxu0 0.0
    %1106 = vmatpush1.msra.mxu0 0.0
    %1107 = vmatprep.mubr.f32.mxu0 0.0
    %1108 = vmatmul.mubr.f32.gmra.mrb[0].mxu0 %v1041
    %v1109 = vpop.f32.mrb[0].mxu0
    %v1110 = vadd.f32 0.0, %v1109
    %v1111 = vpop.f32.mrb[0].mxu0
    %1112 = vdwg.mxu0
    %v1113 = vadd.f32 %v1027, %v1110
    %1114 = vset.pattern.permute.xlu0 3
    %1115 = vperm.xlu0 %1114, %v863
    %v1116 = vpop.permute.xlu0 %1115
    %v1118 = vmul.f32 %v1030, %v1116
    %v1119 = vld [vmem:[%s27 + $0x60] sm:$0xff]
    %v1120 = vld [vmem:[%s27 + $0x68] sm:$0xff]
    %v1121 = vld [vmem:[%s27 + $0x70] sm:$0xff]
    %v1122 = vld [vmem:[%s27 + $0x78] sm:$0xff]
    %v1124 = vsel %vm441, %v1118, 0
    %1126 = vmatprep.subr.mxu0 0.0
    %1127 = vmatpush1.msra.mxu0 %v1119
    %1128 = vmatprep.subr.mxu0 0.0
    %1129 = vmatpush1.msra.mxu0 %v1120
    %1130 = vmatprep.subr.mxu0 0.0
    %1131 = vmatpush1.msra.mxu0 %v1121
    %1132 = vmatprep.subr.mxu0 0.0
    %1133 = vmatpush1.msra.mxu0 %v1122
    %1134 = vmatprep.subr.mxu0 0.0
    %1135 = vmatpush1.msra.mxu0 0.0
    %1136 = vmatprep.subr.mxu0 0.0
    %1137 = vmatpush1.msra.mxu0 0.0
    %1138 = vmatprep.subr.mxu0 0.0
    %1139 = vmatpush1.msra.mxu0 0.0
    %1140 = vmatprep.subr.mxu0 0.0
    %1141 = vmatpush1.msra.mxu0 0.0
    %1142 = vmatprep.subr.mxu0 0.0
    %1143 = vmatpush1.msra.mxu0 0.0
    %1144 = vmatprep.subr.mxu0 0.0
    %1145 = vmatpush1.msra.mxu0 0.0
    %1146 = vmatprep.subr.mxu0 0.0
    %1147 = vmatpush1.msra.mxu0 0.0
    %1148 = vmatprep.subr.mxu0 0.0
    %1149 = vmatpush1.msra.mxu0 0.0
    %1150 = vmatprep.subr.mxu0 0.0
    %1151 = vmatpush1.msra.mxu0 0.0
    %1152 = vmatprep.subr.mxu0 0.0
    %1153 = vmatpush1.msra.mxu0 0.0
    %1154 = vmatprep.subr.mxu0 0.0
    %1155 = vmatpush1.msra.mxu0 0.0
    %1156 = vmatprep.subr.mxu0 0.0
    %1157 = vmatpush1.msra.mxu0 0.0
    %1158 = vmatprep.subr.mxu0 0.0
    %1159 = vmatpush1.msra.mxu0 0.0
    %1160 = vmatprep.subr.mxu0 0.0
    %1161 = vmatpush1.msra.mxu0 0.0
    %1162 = vmatprep.subr.mxu0 0.0
    %1163 = vmatpush1.msra.mxu0 0.0
    %1164 = vmatprep.subr.mxu0 0.0
    %1165 = vmatpush1.msra.mxu0 0.0
    %1166 = vmatprep.subr.mxu0 0.0
    %1167 = vmatpush1.msra.mxu0 0.0
    %1168 = vmatprep.subr.mxu0 0.0
    %1169 = vmatpush1.msra.mxu0 0.0
    %1170 = vmatprep.subr.mxu0 0.0
    %1171 = vmatpush1.msra.mxu0 0.0
    %1172 = vmatprep.subr.mxu0 0.0
    %1173 = vmatpush1.msra.mxu0 0.0
    %1174 = vmatprep.subr.mxu0 0.0
    %1175 = vmatpush1.msra.mxu0 0.0
    %1176 = vmatprep.subr.mxu0 0.0
    %1177 = vmatpush1.msra.mxu0 0.0
    %1178 = vmatprep.subr.mxu0 0.0
    %1179 = vmatpush1.msra.mxu0 0.0
    %1180 = vmatprep.subr.mxu0 0.0
    %1181 = vmatpush1.msra.mxu0 0.0
    %1182 = vmatprep.subr.mxu0 0.0
    %1183 = vmatpush1.msra.mxu0 0.0
    %1184 = vmatprep.subr.mxu0 0.0
    %1185 = vmatpush1.msra.mxu0 0.0
    %1186 = vmatprep.subr.mxu0 0.0
    %1187 = vmatpush1.msra.mxu0 0.0
    %1188 = vmatprep.subr.mxu0 0.0
    %1189 = vmatpush1.msra.mxu0 0.0
    %1190 = vmatprep.mubr.f32.mxu0 0.0
    %1191 = vmatmul.mubr.f32.gmra.mrb[0].mxu0 %v1124
    %v1192 = vpop.f32.mrb[0].mxu0
    %v1193 = vadd.f32 0.0, %v1192
    %v1194 = vpop.f32.mrb[0].mxu0
    %1195 = vdwg.mxu0
    %v1196 = vadd.f32 %v1113, %v1193
    %v1197 = vld [vmem:[#allocation2 + $0x3] sm:$0xff]
    %1198 = vset.pattern.permute.xlu0 4
    %1199 = vperm.xlu0 %1198, %v863
    %v1200 = vpop.permute.xlu0 %1199
    %v1202 = vmul.f32 %v1197, %v1200
    %v1203 = vld [vmem:[%s27 + $0x80] sm:$0xff]
    %v1204 = vld [vmem:[%s27 + $0x88] sm:$0xff]
    %v1205 = vld [vmem:[%s27 + $0x90] sm:$0xff]
    %v1206 = vld [vmem:[%s27 + $0x98] sm:$0xff]
    %v1208 = vsel %vm441, %v1202, 0
    %1210 = vmatprep.subr.mxu0 0.0
    %1211 = vmatpush1.msra.mxu0 %v1203
    %1212 = vmatprep.subr.mxu0 0.0
    %1213 = vmatpush1.msra.mxu0 %v1204
    %1214 = vmatprep.subr.mxu0 0.0
    %1215 = vmatpush1.msra.mxu0 %v1205
    %1216 = vmatprep.subr.mxu0 0.0
    %1217 = vmatpush1.msra.mxu0 %v1206
    %1218 = vmatprep.subr.mxu0 0.0
    %1219 = vmatpush1.msra.mxu0 0.0
    %1220 = vmatprep.subr.mxu0 0.0
    %1221 = vmatpush1.msra.mxu0 0.0
    %1222 = vmatprep.subr.mxu0 0.0
    %1223 = vmatpush1.msra.mxu0 0.0
    %1224 = vmatprep.subr.mxu0 0.0
    %1225 = vmatpush1.msra.mxu0 0.0
    %1226 = vmatprep.subr.mxu0 0.0
    %1227 = vmatpush1.msra.mxu0 0.0
    %1228 = vmatprep.subr.mxu0 0.0
    %1229 = vmatpush1.msra.mxu0 0.0
    %1230 = vmatprep.subr.mxu0 0.0
    %1231 = vmatpush1.msra.mxu0 0.0
    %1232 = vmatprep.subr.mxu0 0.0
    %1233 = vmatpush1.msra.mxu0 0.0
    %1234 = vmatprep.subr.mxu0 0.0
    %1235 = vmatpush1.msra.mxu0 0.0
    %1236 = vmatprep.subr.mxu0 0.0
    %1237 = vmatpush1.msra.mxu0 0.0
    %1238 = vmatprep.subr.mxu0 0.0
    %1239 = vmatpush1.msra.mxu0 0.0
    %1240 = vmatprep.subr.mxu0 0.0
    %1241 = vmatpush1.msra.mxu0 0.0
    %1242 = vmatprep.subr.mxu0 0.0
    %1243 = vmatpush1.msra.mxu0 0.0
    %1244 = vmatprep.subr.mxu0 0.0
    %1245 = vmatpush1.msra.mxu0 0.0
    %1246 = vmatprep.subr.mxu0 0.0
    %1247 = vmatpush1.msra.mxu0 0.0
    %1248 = vmatprep.subr.mxu0 0.0
    %1249 = vmatpush1.msra.mxu0 0.0
    %1250 = vmatprep.subr.mxu0 0.0
    %1251 = vmatpush1.msra.mxu0 0.0
    %1252 = vmatprep.subr.mxu0 0.0
    %1253 = vmatpush1.msra.mxu0 0.0
    %1254 = vmatprep.subr.mxu0 0.0
    %1255 = vmatpush1.msra.mxu0 0.0
    %1256 = vmatprep.subr.mxu0 0.0
    %1257 = vmatpush1.msra.mxu0 0.0
    %1258 = vmatprep.subr.mxu0 0.0
    %1259 = vmatpush1.msra.mxu0 0.0
    %1260 = vmatprep.subr.mxu0 0.0
    %1261 = vmatpush1.msra.mxu0 0.0
    %1262 = vmatprep.subr.mxu0 0.0
    %1263 = vmatpush1.msra.mxu0 0.0
    %1264 = vmatprep.subr.mxu0 0.0
    %1265 = vmatpush1.msra.mxu0 0.0
    %1266 = vmatprep.subr.mxu0 0.0
    %1267 = vmatpush1.msra.mxu0 0.0
    %1268 = vmatprep.subr.mxu0 0.0
    %1269 = vmatpush1.msra.mxu0 0.0
    %1270 = vmatprep.subr.mxu0 0.0
    %1271 = vmatpush1.msra.mxu0 0.0
    %1272 = vmatprep.subr.mxu0 0.0
    %1273 = vmatpush1.msra.mxu0 0.0
    %1274 = vmatprep.mubr.f32.mxu0 0.0
    %1275 = vmatmul.mubr.f32.gmra.mrb[0].mxu0 %v1208
    %v1276 = vpop.f32.mrb[0].mxu0
    %v1277 = vadd.f32 0.0, %v1276
    %v1278 = vpop.f32.mrb[0].mxu0
    %1279 = vdwg.mxu0
    %v1280 = vadd.f32 %v1196, %v1277
    %v1281 = vld [vmem:[#allocation2 + $0x4] sm:$0xff]
    %1282 = vset.pattern.permute.xlu0 5
    %1283 = vperm.xlu0 %1282, %v863
    %v1284 = vpop.permute.xlu0 %1283
    %v1286 = vmul.f32 %v1281, %v1284
    %v1287 = vld [vmem:[%s27 + $0xa0] sm:$0xff]
    %v1288 = vld [vmem:[%s27 + $0xa8] sm:$0xff]
    %v1289 = vld [vmem:[%s27 + $0xb0] sm:$0xff]
    %v1290 = vld [vmem:[%s27 + $0xb8] sm:$0xff]
    %v1292 = vsel %vm441, %v1286, 0
    %1294 = vmatprep.subr.mxu0 0.0
    %1295 = vmatpush1.msra.mxu0 %v1287
    %1296 = vmatprep.subr.mxu0 0.0
    %1297 = vmatpush1.msra.mxu0 %v1288
    %1298 = vmatprep.subr.mxu0 0.0
    %1299 = vmatpush1.msra.mxu0 %v1289
    %1300 = vmatprep.subr.mxu0 0.0
    %1301 = vmatpush1.msra.mxu0 %v1290
    %1302 = vmatprep.subr.mxu0 0.0
    %1303 = vmatpush1.msra.mxu0 0.0
    %1304 = vmatprep.subr.mxu0 0.0
    %1305 = vmatpush1.msra.mxu0 0.0
    %1306 = vmatprep.subr.mxu0 0.0
    %1307 = vmatpush1.msra.mxu0 0.0
    %1308 = vmatprep.subr.mxu0 0.0
    %1309 = vmatpush1.msra.mxu0 0.0
    %1310 = vmatprep.subr.mxu0 0.0
    %1311 = vmatpush1.msra.mxu0 0.0
    %1312 = vmatprep.subr.mxu0 0.0
    %1313 = vmatpush1.msra.mxu0 0.0
    %1314 = vmatprep.subr.mxu0 0.0
    %1315 = vmatpush1.msra.mxu0 0.0
    %1316 = vmatprep.subr.mxu0 0.0
    %1317 = vmatpush1.msra.mxu0 0.0
    %1318 = vmatprep.subr.mxu0 0.0
    %1319 = vmatpush1.msra.mxu0 0.0
    %1320 = vmatprep.subr.mxu0 0.0
    %1321 = vmatpush1.msra.mxu0 0.0
    %1322 = vmatprep.subr.mxu0 0.0
    %1323 = vmatpush1.msra.mxu0 0.0
    %1324 = vmatprep.subr.mxu0 0.0
    %1325 = vmatpush1.msra.mxu0 0.0
    %1326 = vmatprep.subr.mxu0 0.0
    %1327 = vmatpush1.msra.mxu0 0.0
    %1328 = vmatprep.subr.mxu0 0.0
    %1329 = vmatpush1.msra.mxu0 0.0
    %1330 = vmatprep.subr.mxu0 0.0
    %1331 = vmatpush1.msra.mxu0 0.0
    %1332 = vmatprep.subr.mxu0 0.0
    %1333 = vmatpush1.msra.mxu0 0.0
    %1334 = vmatprep.subr.mxu0 0.0
    %1335 = vmatpush1.msra.mxu0 0.0
    %1336 = vmatprep.subr.mxu0 0.0
    %1337 = vmatpush1.msra.mxu0 0.0
    %1338 = vmatprep.subr.mxu0 0.0
    %1339 = vmatpush1.msra.mxu0 0.0
    %1340 = vmatprep.subr.mxu0 0.0
    %1341 = vmatpush1.msra.mxu0 0.0
    %1342 = vmatprep.subr.mxu0 0.0
    %1343 = vmatpush1.msra.mxu0 0.0
    %1344 = vmatprep.subr.mxu0 0.0
    %1345 = vmatpush1.msra.mxu0 0.0
    %1346 = vmatprep.subr.mxu0 0.0
    %1347 = vmatpush1.msra.mxu0 0.0
    %1348 = vmatprep.subr.mxu0 0.0
    %1349 = vmatpush1.msra.mxu0 0.0
    %1350 = vmatprep.subr.mxu0 0.0
    %1351 = vmatpush1.msra.mxu0 0.0
    %1352 = vmatprep.subr.mxu0 0.0
    %1353 = vmatpush1.msra.mxu0 0.0
    %1354 = vmatprep.subr.mxu0 0.0
    %1355 = vmatpush1.msra.mxu0 0.0
    %1356 = vmatprep.subr.mxu0 0.0
    %1357 = vmatpush1.msra.mxu0 0.0
    %1358 = vmatprep.mubr.f32.mxu0 0.0
    %1359 = vmatmul.mubr.f32.gmra.mrb[0].mxu0 %v1292
    %v1360 = vpop.f32.mrb[0].mxu0
    %v1361 = vadd.f32 0.0, %v1360
    %v1362 = vpop.f32.mrb[0].mxu0
    %1363 = vdwg.mxu0
    %v1364 = vadd.f32 %v1280, %v1361
    %1365 = vset.pattern.permute.xlu0 6
    %1366 = vperm.xlu0 %1365, %v863
    %v1367 = vpop.permute.xlu0 %1366
    %v1369 = vmul.f32 %v1281, %v1367
    %v1370 = vld [vmem:[%s27 + $0xc0] sm:$0xff]
    %v1371 = vld [vmem:[%s27 + $0xc8] sm:$0xff]
    %v1372 = vld [vmem:[%s27 + $0xd0] sm:$0xff]
    %v1373 = vld [vmem:[%s27 + $0xd8] sm:$0xff]
    %v1375 = vsel %vm441, %v1369, 0
    %1377 = vmatprep.subr.mxu0 0.0
    %1378 = vmatpush1.msra.mxu0 %v1370
    %1379 = vmatprep.subr.mxu0 0.0
    %1380 = vmatpush1.msra.mxu0 %v1371
    %1381 = vmatprep.subr.mxu0 0.0
    %1382 = vmatpush1.msra.mxu0 %v1372
    %1383 = vmatprep.subr.mxu0 0.0
    %1384 = vmatpush1.msra.mxu0 %v1373
    %1385 = vmatprep.subr.mxu0 0.0
    %1386 = vmatpush1.msra.mxu0 0.0
    %1387 = vmatprep.subr.mxu0 0.0
    %1388 = vmatpush1.msra.mxu0 0.0
    %1389 = vmatprep.subr.mxu0 0.0
    %1390 = vmatpush1.msra.mxu0 0.0
    %1391 = vmatprep.subr.mxu0 0.0
    %1392 = vmatpush1.msra.mxu0 0.0
    %1393 = vmatprep.subr.mxu0 0.0
    %1394 = vmatpush1.msra.mxu0 0.0
    %1395 = vmatprep.subr.mxu0 0.0
    %1396 = vmatpush1.msra.mxu0 0.0
    %1397 = vmatprep.subr.mxu0 0.0
    %1398 = vmatpush1.msra.mxu0 0.0
    %1399 = vmatprep.subr.mxu0 0.0
    %1400 = vmatpush1.msra.mxu0 0.0
    %1401 = vmatprep.subr.mxu0 0.0
    %1402 = vmatpush1.msra.mxu0 0.0
    %1403 = vmatprep.subr.mxu0 0.0
    %1404 = vmatpush1.msra.mxu0 0.0
    %1405 = vmatprep.subr.mxu0 0.0
    %1406 = vmatpush1.msra.mxu0 0.0
    %1407 = vmatprep.subr.mxu0 0.0
    %1408 = vmatpush1.msra.mxu0 0.0
    %1409 = vmatprep.subr.mxu0 0.0
    %1410 = vmatpush1.msra.mxu0 0.0
    %1411 = vmatprep.subr.mxu0 0.0
    %1412 = vmatpush1.msra.mxu0 0.0
    %1413 = vmatprep.subr.mxu0 0.0
    %1414 = vmatpush1.msra.mxu0 0.0
    %1415 = vmatprep.subr.mxu0 0.0
    %1416 = vmatpush1.msra.mxu0 0.0
    %1417 = vmatprep.subr.mxu0 0.0
    %1418 = vmatpush1.msra.mxu0 0.0
    %1419 = vmatprep.subr.mxu0 0.0
    %1420 = vmatpush1.msra.mxu0 0.0
    %1421 = vmatprep.subr.mxu0 0.0
    %1422 = vmatpush1.msra.mxu0 0.0
    %1423 = vmatprep.subr.mxu0 0.0
    %1424 = vmatpush1.msra.mxu0 0.0
    %1425 = vmatprep.subr.mxu0 0.0
    %1426 = vmatpush1.msra.mxu0 0.0
    %1427 = vmatprep.subr.mxu0 0.0
    %1428 = vmatpush1.msra.mxu0 0.0
    %1429 = vmatprep.subr.mxu0 0.0
    %1430 = vmatpush1.msra.mxu0 0.0
    %1431 = vmatprep.subr.mxu0 0.0
    %1432 = vmatpush1.msra.mxu0 0.0
    %1433 = vmatprep.subr.mxu0 0.0
    %1434 = vmatpush1.msra.mxu0 0.0
    %1435 = vmatprep.subr.mxu0 0.0
    %1436 = vmatpush1.msra.mxu0 0.0
    %1437 = vmatprep.subr.mxu0 0.0
    %1438 = vmatpush1.msra.mxu0 0.0
    %1439 = vmatprep.subr.mxu0 0.0
    %1440 = vmatpush1.msra.mxu0 0.0
    %1441 = vmatprep.mubr.f32.mxu0 0.0
    %1442 = vmatmul.mubr.f32.gmra.mrb[0].mxu0 %v1375
    %v1443 = vpop.f32.mrb[0].mxu0
    %v1444 = vadd.f32 0.0, %v1443
    %v1445 = vpop.f32.mrb[0].mxu0
    %1446 = vdwg.mxu0
    %v1447 = vadd.f32 %v1364, %v1444
    %v1448 = vld [vmem:[#allocation2 + $0x5] sm:$0xff]
    %1449 = vset.pattern.permute.xlu0 7
    %1450 = vperm.xlu0 %1449, %v863
    %v1451 = vpop.permute.xlu0 %1450
    %v1453 = vmul.f32 %v1448, %v1451
    %v1454 = vld [vmem:[%s27 + $0xe0] sm:$0xff]
    %v1455 = vld [vmem:[%s27 + $0xe8] sm:$0xff]
    %v1456 = vld [vmem:[%s27 + $0xf0] sm:$0xff]
    %v1457 = vld [vmem:[%s27 + $0xf8] sm:$0xff]
    %v1459 = vsel %vm441, %v1453, 0
    %1461 = vmatprep.subr.mxu0 0.0
    %1462 = vmatpush1.msra.mxu0 %v1454
    %1463 = vmatprep.subr.mxu0 0.0
    %1464 = vmatpush1.msra.mxu0 %v1455
    %1465 = vmatprep.subr.mxu0 0.0
    %1466 = vmatpush1.msra.mxu0 %v1456
    %1467 = vmatprep.subr.mxu0 0.0
    %1468 = vmatpush1.msra.mxu0 %v1457
    %1469 = vmatprep.subr.mxu0 0.0
    %1470 = vmatpush1.msra.mxu0 0.0
    %1471 = vmatprep.subr.mxu0 0.0
    %1472 = vmatpush1.msra.mxu0 0.0
    %1473 = vmatprep.subr.mxu0 0.0
    %1474 = vmatpush1.msra.mxu0 0.0
    %1475 = vmatprep.subr.mxu0 0.0
    %1476 = vmatpush1.msra.mxu0 0.0
    %1477 = vmatprep.subr.mxu0 0.0
    %1478 = vmatpush1.msra.mxu0 0.0
    %1479 = vmatprep.subr.mxu0 0.0
    %1480 = vmatpush1.msra.mxu0 0.0
    %1481 = vmatprep.subr.mxu0 0.0
    %1482 = vmatpush1.msra.mxu0 0.0
    %1483 = vmatprep.subr.mxu0 0.0
    %1484 = vmatpush1.msra.mxu0 0.0
    %1485 = vmatprep.subr.mxu0 0.0
    %1486 = vmatpush1.msra.mxu0 0.0
    %1487 = vmatprep.subr.mxu0 0.0
    %1488 = vmatpush1.msra.mxu0 0.0
    %1489 = vmatprep.subr.mxu0 0.0
    %1490 = vmatpush1.msra.mxu0 0.0
    %1491 = vmatprep.subr.mxu0 0.0
    %1492 = vmatpush1.msra.mxu0 0.0
    %1493 = vmatprep.subr.mxu0 0.0
    %1494 = vmatpush1.msra.mxu0 0.0
    %1495 = vmatprep.subr.mxu0 0.0
    %1496 = vmatpush1.msra.mxu0 0.0
    %1497 = vmatprep.subr.mxu0 0.0
    %1498 = vmatpush1.msra.mxu0 0.0
    %1499 = vmatprep.subr.mxu0 0.0
    %1500 = vmatpush1.msra.mxu0 0.0
    %1501 = vmatprep.subr.mxu0 0.0
    %1502 = vmatpush1.msra.mxu0 0.0
    %1503 = vmatprep.subr.mxu0 0.0
    %1504 = vmatpush1.msra.mxu0 0.0
    %1505 = vmatprep.subr.mxu0 0.0
    %1506 = vmatpush1.msra.mxu0 0.0
    %1507 = vmatprep.subr.mxu0 0.0
    %1508 = vmatpush1.msra.mxu0 0.0
    %1509 = vmatprep.subr.mxu0 0.0
    %1510 = vmatpush1.msra.mxu0 0.0
    %1511 = vmatprep.subr.mxu0 0.0
    %1512 = vmatpush1.msra.mxu0 0.0
    %1513 = vmatprep.subr.mxu0 0.0
    %1514 = vmatpush1.msra.mxu0 0.0
    %1515 = vmatprep.subr.mxu0 0.0
    %1516 = vmatpush1.msra.mxu0 0.0
    %1517 = vmatprep.subr.mxu0 0.0
    %1518 = vmatpush1.msra.mxu0 0.0
    %1519 = vmatprep.subr.mxu0 0.0
    %1520 = vmatpush1.msra.mxu0 0.0
    %1521 = vmatprep.subr.mxu0 0.0
    %1522 = vmatpush1.msra.mxu0 0.0
    %1523 = vmatprep.subr.mxu0 0.0
    %1524 = vmatpush1.msra.mxu0 0.0
    %1525 = vmatprep.mubr.f32.mxu0 0.0
    %1526 = vmatmul.mubr.f32.gmra.mrb[0].mxu0 %v1459
    %v1527 = vpop.f32.mrb[0].mxu0
    %v1528 = vadd.f32 0.0, %v1527
    %v1529 = vpop.f32.mrb[0].mxu0
    %1530 = vdwg.mxu0
    %v1531 = vadd.f32 %v1447, %v1528
    %v1532 = vld [vmem:[#allocation2 + $0x6] sm:$0xff]
    %1533 = vset.pattern.permute.xlu0 8
    %1534 = vperm.xlu0 %1533, %v863
    %v1535 = vpop.permute.xlu0 %1534
    %v1537 = vmul.f32 %v1532, %v1535
    %v1538 = vld [vmem:[%s27 + $0x100] sm:$0xff]
    %v1539 = vld [vmem:[%s27 + $0x108] sm:$0xff]
    %v1540 = vld [vmem:[%s27 + $0x110] sm:$0xff]
    %v1541 = vld [vmem:[%s27 + $0x118] sm:$0xff]
    %v1543 = vsel %vm441, %v1537, 0
    %1545 = vmatprep.subr.mxu0 0.0
    %1546 = vmatpush1.msra.mxu0 %v1538
    %1547 = vmatprep.subr.mxu0 0.0
    %1548 = vmatpush1.msra.mxu0 %v1539
    %1549 = vmatprep.subr.mxu0 0.0
    %1550 = vmatpush1.msra.mxu0 %v1540
    %1551 = vmatprep.subr.mxu0 0.0
    %1552 = vmatpush1.msra.mxu0 %v1541
    %1553 = vmatprep.subr.mxu0 0.0
    %1554 = vmatpush1.msra.mxu0 0.0
    %1555 = vmatprep.subr.mxu0 0.0
    %1556 = vmatpush1.msra.mxu0 0.0
    %1557 = vmatprep.subr.mxu0 0.0
    %1558 = vmatpush1.msra.mxu0 0.0
    %1559 = vmatprep.subr.mxu0 0.0
    %1560 = vmatpush1.msra.mxu0 0.0
    %1561 = vmatprep.subr.mxu0 0.0
    %1562 = vmatpush1.msra.mxu0 0.0
    %1563 = vmatprep.subr.mxu0 0.0
    %1564 = vmatpush1.msra.mxu0 0.0
    %1565 = vmatprep.subr.mxu0 0.0
    %1566 = vmatpush1.msra.mxu0 0.0
    %1567 = vmatprep.subr.mxu0 0.0
    %1568 = vmatpush1.msra.mxu0 0.0
    %1569 = vmatprep.subr.mxu0 0.0
    %1570 = vmatpush1.msra.mxu0 0.0
    %1571 = vmatprep.subr.mxu0 0.0
    %1572 = vmatpush1.msra.mxu0 0.0
    %1573 = vmatprep.subr.mxu0 0.0
    %1574 = vmatpush1.msra.mxu0 0.0
    %1575 = vmatprep.subr.mxu0 0.0
    %1576 = vmatpush1.msra.mxu0 0.0
    %1577 = vmatprep.subr.mxu0 0.0
    %1578 = vmatpush1.msra.mxu0 0.0
    %1579 = vmatprep.subr.mxu0 0.0
    %1580 = vmatpush1.msra.mxu0 0.0
    %1581 = vmatprep.subr.mxu0 0.0
    %1582 = vmatpush1.msra.mxu0 0.0
    %1583 = vmatprep.subr.mxu0 0.0
    %1584 = vmatpush1.msra.mxu0 0.0
    %1585 = vmatprep.subr.mxu0 0.0
    %1586 = vmatpush1.msra.mxu0 0.0
    %1587 = vmatprep.subr.mxu0 0.0
    %1588 = vmatpush1.msra.mxu0 0.0
    %1589 = vmatprep.subr.mxu0 0.0
    %1590 = vmatpush1.msra.mxu0 0.0
    %1591 = vmatprep.subr.mxu0 0.0
    %1592 = vmatpush1.msra.mxu0 0.0
    %1593 = vmatprep.subr.mxu0 0.0
    %1594 = vmatpush1.msra.mxu0 0.0
    %1595 = vmatprep.subr.mxu0 0.0
    %1596 = vmatpush1.msra.mxu0 0.0
    %1597 = vmatprep.subr.mxu0 0.0
    %1598 = vmatpush1.msra.mxu0 0.0
    %1599 = vmatprep.subr.mxu0 0.0
    %1600 = vmatpush1.msra.mxu0 0.0
    %1601 = vmatprep.subr.mxu0 0.0
    %1602 = vmatpush1.msra.mxu0 0.0
    %1603 = vmatprep.subr.mxu0 0.0
    %1604 = vmatpush1.msra.mxu0 0.0
    %1605 = vmatprep.subr.mxu0 0.0
    %1606 = vmatpush1.msra.mxu0 0.0
    %1607 = vmatprep.subr.mxu0 0.0
    %1608 = vmatpush1.msra.mxu0 0.0
    %1609 = vmatprep.mubr.f32.mxu0 0.0
    %1610 = vmatmul.mubr.f32.gmra.mrb[0].mxu0 %v1543
    %v1611 = vpop.f32.mrb[0].mxu0
    %v1612 = vadd.f32 0.0, %v1611
    %v1613 = vpop.f32.mrb[0].mxu0
    %1614 = vdwg.mxu0
    %v1615 = vadd.f32 %v1531, %v1612
    %v1616 = vld [vmem:[%s29] sm:$0x1]
    %v1618 = vlaneseq
    %v1619 = vshrl.u32 %v1618, 7
    %v1620 = vsub.s32 0, %v1619
    %v1621 = vrot.slane %v1616, %v1620
    %v1623 = vadd.f32 %v1615, %v1621
    %v1624 = vmax.f32 %v1623, 0.0
    %v1625 = vld [vmem:[%s31] sm:$0xff]
    %v1626 = vld [vmem:[%s31 + $0x8] sm:$0xff]
    %v1627 = vld [vmem:[%s31 + $0x10] sm:$0xff]
    %v1628 = vld [vmem:[%s31 + $0x18] sm:$0xff]
    %v1629 = vld [vmem:[%s33] sm:$0x1]
    %v1631 = vlaneseq
    %v1632 = vshrl.u32 %v1631, 7
    %v1633 = vsub.s32 0, %v1632
    %v1634 = vrot.slane %v1629, %v1633
    %v1637 = vsel %vm441, %v1624, 0
    %1639 = vmatprep.subr.mxu0 0.0
    %1640 = vmatpush1.msra.mxu0 %v1625
    %1641 = vmatprep.subr.mxu0 0.0
    %1642 = vmatpush1.msra.mxu0 %v1626
    %1643 = vmatprep.subr.mxu0 0.0
    %1644 = vmatpush1.msra.mxu0 %v1627
    %1645 = vmatprep.subr.mxu0 0.0
    %1646 = vmatpush1.msra.mxu0 %v1628
    %1647 = vmatprep.subr.mxu0 0.0
    %1648 = vmatpush1.msra.mxu0 0.0
    %1649 = vmatprep.subr.mxu0 0.0
    %1650 = vmatpush1.msra.mxu0 0.0
    %1651 = vmatprep.subr.mxu0 0.0
    %1652 = vmatpush1.msra.mxu0 0.0
    %1653 = vmatprep.subr.mxu0 0.0
    %1654 = vmatpush1.msra.mxu0 0.0
    %1655 = vmatprep.subr.mxu0 0.0
    %1656 = vmatpush1.msra.mxu0 0.0
    %1657 = vmatprep.subr.mxu0 0.0
    %1658 = vmatpush1.msra.mxu0 0.0
    %1659 = vmatprep.subr.mxu0 0.0
    %1660 = vmatpush1.msra.mxu0 0.0
    %1661 = vmatprep.subr.mxu0 0.0
    %1662 = vmatpush1.msra.mxu0 0.0
    %1663 = vmatprep.subr.mxu0 0.0
    %1664 = vmatpush1.msra.mxu0 0.0
    %1665 = vmatprep.subr.mxu0 0.0
    %1666 = vmatpush1.msra.mxu0 0.0
    %1667 = vmatprep.subr.mxu0 0.0
    %1668 = vmatpush1.msra.mxu0 0.0
    %1669 = vmatprep.subr.mxu0 0.0
    %1670 = vmatpush1.msra.mxu0 0.0
    %1671 = vmatprep.subr.mxu0 0.0
    %1672 = vmatpush1.msra.mxu0 0.0
    %1673 = vmatprep.subr.mxu0 0.0
    %1674 = vmatpush1.msra.mxu0 0.0
    %1675 = vmatprep.subr.mxu0 0.0
    %1676 = vmatpush1.msra.mxu0 0.0
    %1677 = vmatprep.subr.mxu0 0.0
    %1678 = vmatpush1.msra.mxu0 0.0
    %1679 = vmatprep.subr.mxu0 0.0
    %1680 = vmatpush1.msra.mxu0 0.0
    %1681 = vmatprep.subr.mxu0 0.0
    %1682 = vmatpush1.msra.mxu0 0.0
    %1683 = vmatprep.subr.mxu0 0.0
    %1684 = vmatpush1.msra.mxu0 0.0
    %1685 = vmatprep.subr.mxu0 0.0
    %1686 = vmatpush1.msra.mxu0 0.0
    %1687 = vmatprep.subr.mxu0 0.0
    %1688 = vmatpush1.msra.mxu0 0.0
    %1689 = vmatprep.subr.mxu0 0.0
    %1690 = vmatpush1.msra.mxu0 0.0
    %1691 = vmatprep.subr.mxu0 0.0
    %1692 = vmatpush1.msra.mxu0 0.0
    %1693 = vmatprep.subr.mxu0 0.0
    %1694 = vmatpush1.msra.mxu0 0.0
    %1695 = vmatprep.subr.mxu0 0.0
    %1696 = vmatpush1.msra.mxu0 0.0
    %1697 = vmatprep.subr.mxu0 0.0
    %1698 = vmatpush1.msra.mxu0 0.0
    %1699 = vmatprep.subr.mxu0 0.0
    %1700 = vmatpush1.msra.mxu0 0.0
    %1701 = vmatprep.subr.mxu0 0.0
    %1702 = vmatpush1.msra.mxu0 0.0
    %1703 = vmatprep.mubr.f32.mxu0 0.0
    %1704 = vmatmul.mubr.f32.gmra.mrb[0].mxu0 %v1637
    %v1705 = vpop.f32.mrb[0].mxu0
    %v1706 = vadd.f32 %v1634, %v1705
    %v1707 = vpop.f32.mrb[0].mxu0
    %1708 = vdwg.mxu0
    %v1709 = vmax.f32 %v1706, 0.0
    %v1710 = vld [vmem:[%s35] sm:$0xff]
    %v1711 = vld [vmem:[%s35 + $0x8] sm:$0xff]
    %v1712 = vld [vmem:[%s35 + $0x10] sm:$0xff]
    %v1713 = vld [vmem:[%s35 + $0x18] sm:$0xff]
    %v1714 = vld [vmem:[%s37] sm:$0x1]
    %v1716 = vlaneseq
    %v1717 = vshrl.u32 %v1716, 7
    %v1718 = vsub.s32 0, %v1717
    %v1719 = vrot.slane %v1714, %v1718
    %v1722 = vsel %vm441, %v1709, 0
    %1724 = vmatprep.subr.mxu0 0.0
    %1725 = vmatpush1.msra.mxu0 %v1710
    %1726 = vmatprep.subr.mxu0 0.0
    %1727 = vmatpush1.msra.mxu0 %v1711
    %1728 = vmatprep.subr.mxu0 0.0
    %1729 = vmatpush1.msra.mxu0 %v1712
    %1730 = vmatprep.subr.mxu0 0.0
    %1731 = vmatpush1.msra.mxu0 %v1713
    %1732 = vmatprep.subr.mxu0 0.0
    %1733 = vmatpush1.msra.mxu0 0.0
    %1734 = vmatprep.subr.mxu0 0.0
    %1735 = vmatpush1.msra.mxu0 0.0
    %1736 = vmatprep.subr.mxu0 0.0
    %1737 = vmatpush1.msra.mxu0 0.0
    %1738 = vmatprep.subr.mxu0 0.0
    %1739 = vmatpush1.msra.mxu0 0.0
    %1740 = vmatprep.subr.mxu0 0.0
    %1741 = vmatpush1.msra.mxu0 0.0
    %1742 = vmatprep.subr.mxu0 0.0
    %1743 = vmatpush1.msra.mxu0 0.0
    %1744 = vmatprep.subr.mxu0 0.0
    %1745 = vmatpush1.msra.mxu0 0.0
    %1746 = vmatprep.subr.mxu0 0.0
    %1747 = vmatpush1.msra.mxu0 0.0
    %1748 = vmatprep.subr.mxu0 0.0
    %1749 = vmatpush1.msra.mxu0 0.0
    %1750 = vmatprep.subr.mxu0 0.0
    %1751 = vmatpush1.msra.mxu0 0.0
    %1752 = vmatprep.subr.mxu0 0.0
    %1753 = vmatpush1.msra.mxu0 0.0
    %1754 = vmatprep.subr.mxu0 0.0
    %1755 = vmatpush1.msra.mxu0 0.0
    %1756 = vmatprep.subr.mxu0 0.0
    %1757 = vmatpush1.msra.mxu0 0.0
    %1758 = vmatprep.subr.mxu0 0.0
    %1759 = vmatpush1.msra.mxu0 0.0
    %1760 = vmatprep.subr.mxu0 0.0
    %1761 = vmatpush1.msra.mxu0 0.0
    %1762 = vmatprep.subr.mxu0 0.0
    %1763 = vmatpush1.msra.mxu0 0.0
    %1764 = vmatprep.subr.mxu0 0.0
    %1765 = vmatpush1.msra.mxu0 0.0
    %1766 = vmatprep.subr.mxu0 0.0
    %1767 = vmatpush1.msra.mxu0 0.0
    %1768 = vmatprep.subr.mxu0 0.0
    %1769 = vmatpush1.msra.mxu0 0.0
    %1770 = vmatprep.subr.mxu0 0.0
    %1771 = vmatpush1.msra.mxu0 0.0
    %1772 = vmatprep.subr.mxu0 0.0
    %1773 = vmatpush1.msra.mxu0 0.0
    %1774 = vmatprep.subr.mxu0 0.0
    %1775 = vmatpush1.msra.mxu0 0.0
    %1776 = vmatprep.subr.mxu0 0.0
    %1777 = vmatpush1.msra.mxu0 0.0
    %1778 = vmatprep.subr.mxu0 0.0
    %1779 = vmatpush1.msra.mxu0 0.0
    %1780 = vmatprep.subr.mxu0 0.0
    %1781 = vmatpush1.msra.mxu0 0.0
    %1782 = vmatprep.subr.mxu0 0.0
    %1783 = vmatpush1.msra.mxu0 0.0
    %1784 = vmatprep.subr.mxu0 0.0
    %1785 = vmatpush1.msra.mxu0 0.0
    %1786 = vmatprep.subr.mxu0 0.0
    %1787 = vmatpush1.msra.mxu0 0.0
    %1788 = vmatprep.mubr.f32.mxu0 0.0
    %1789 = vmatmul.mubr.f32.gmra.mrb[0].mxu0 %v1722
    %v1790 = vpop.f32.mrb[0].mxu0
    %v1791 = vadd.f32 %v1719, %v1790
    %v1792 = vpop.f32.mrb[0].mxu0
    %1793 = vdwg.mxu0
    %v1794 = vmax.f32 %v1791, 0.0
    %v1795 = vld [vmem:[%s39] sm:$0xff]
    %v1796 = vld [vmem:[%s39 + $0x8] sm:$0xff]
    %v1797 = vld [vmem:[%s39 + $0x10] sm:$0xff]
    %v1798 = vld [vmem:[%s39 + $0x18] sm:$0xff]
    %v1799 = vld [vmem:[%s41] sm:$0x1]
    %v1801 = vlaneseq
    %v1802 = vshrl.u32 %v1801, 7
    %v1803 = vsub.s32 0, %v1802
    %v1804 = vrot.slane %v1799, %v1803
    %v1807 = vsel %vm441, %v1794, 0
    %1809 = vmatprep.subr.mxu0 0.0
    %1810 = vmatpush1.msra.mxu0 %v1795
    %1811 = vmatprep.subr.mxu0 0.0
    %1812 = vmatpush1.msra.mxu0 %v1796
    %1813 = vmatprep.subr.mxu0 0.0
    %1814 = vmatpush1.msra.mxu0 %v1797
    %1815 = vmatprep.subr.mxu0 0.0
    %1816 = vmatpush1.msra.mxu0 %v1798
    %1817 = vmatprep.subr.mxu0 0.0
    %1818 = vmatpush1.msra.mxu0 0.0
    %1819 = vmatprep.subr.mxu0 0.0
    %1820 = vmatpush1.msra.mxu0 0.0
    %1821 = vmatprep.subr.mxu0 0.0
    %1822 = vmatpush1.msra.mxu0 0.0
    %1823 = vmatprep.subr.mxu0 0.0
    %1824 = vmatpush1.msra.mxu0 0.0
    %1825 = vmatprep.subr.mxu0 0.0
    %1826 = vmatpush1.msra.mxu0 0.0
    %1827 = vmatprep.subr.mxu0 0.0
    %1828 = vmatpush1.msra.mxu0 0.0
    %1829 = vmatprep.subr.mxu0 0.0
    %1830 = vmatpush1.msra.mxu0 0.0
    %1831 = vmatprep.subr.mxu0 0.0
    %1832 = vmatpush1.msra.mxu0 0.0
    %1833 = vmatprep.subr.mxu0 0.0
    %1834 = vmatpush1.msra.mxu0 0.0
    %1835 = vmatprep.subr.mxu0 0.0
    %1836 = vmatpush1.msra.mxu0 0.0
    %1837 = vmatprep.subr.mxu0 0.0
    %1838 = vmatpush1.msra.mxu0 0.0
    %1839 = vmatprep.subr.mxu0 0.0
    %1840 = vmatpush1.msra.mxu0 0.0
    %1841 = vmatprep.subr.mxu0 0.0
    %1842 = vmatpush1.msra.mxu0 0.0
    %1843 = vmatprep.subr.mxu0 0.0
    %1844 = vmatpush1.msra.mxu0 0.0
    %1845 = vmatprep.subr.mxu0 0.0
    %1846 = vmatpush1.msra.mxu0 0.0
    %1847 = vmatprep.subr.mxu0 0.0
    %1848 = vmatpush1.msra.mxu0 0.0
    %1849 = vmatprep.subr.mxu0 0.0
    %1850 = vmatpush1.msra.mxu0 0.0
    %1851 = vmatprep.subr.mxu0 0.0
    %1852 = vmatpush1.msra.mxu0 0.0
    %1853 = vmatprep.subr.mxu0 0.0
    %1854 = vmatpush1.msra.mxu0 0.0
    %1855 = vmatprep.subr.mxu0 0.0
    %1856 = vmatpush1.msra.mxu0 0.0
    %1857 = vmatprep.subr.mxu0 0.0
    %1858 = vmatpush1.msra.mxu0 0.0
    %1859 = vmatprep.subr.mxu0 0.0
    %1860 = vmatpush1.msra.mxu0 0.0
    %1861 = vmatprep.subr.mxu0 0.0
    %1862 = vmatpush1.msra.mxu0 0.0
    %1863 = vmatprep.subr.mxu0 0.0
    %1864 = vmatpush1.msra.mxu0 0.0
    %1865 = vmatprep.subr.mxu0 0.0
    %1866 = vmatpush1.msra.mxu0 0.0
    %1867 = vmatprep.subr.mxu0 0.0
    %1868 = vmatpush1.msra.mxu0 0.0
    %1869 = vmatprep.subr.mxu0 0.0
    %1870 = vmatpush1.msra.mxu0 0.0
    %1871 = vmatprep.subr.mxu0 0.0
    %1872 = vmatpush1.msra.mxu0 0.0
    %1873 = vmatprep.mubr.f32.mxu0 0.0
    %1874 = vmatmul.mubr.f32.gmra.mrb[0].mxu0 %v1807
    %v1875 = vpop.f32.mrb[0].mxu0
    %v1876 = vadd.f32 %v1804, %v1875
    %v1877 = vpop.f32.mrb[0].mxu0
    %1878 = vdwg.mxu0
    %1879 = vst [vmem:[#allocation22] sm:$0xff] %v1876
    %v1880 = vld [vmem:[%s43] sm:$0xff]
    %v1881 = vld [vmem:[%s43 + $0x8] sm:$0xff]
    %v1882 = vld [vmem:[%s43 + $0x10] sm:$0xff]
    %v1883 = vld [vmem:[%s43 + $0x18] sm:$0xff]
    %v1884 = vld [vmem:[%s51] sm:$0xff]
    %v1885 = vld [vmem:[%s51 + $0x8] sm:$0xff]
    %v1886 = vld [vmem:[%s51 + $0x10] sm:$0xff]
    %v1887 = vld [vmem:[%s51 + $0x18] sm:$0xff]
    %v1888 = vld [vmem:[#allocation5] sm:$0x1]
    %v1890 = vlaneseq
    %v1891 = vshrl.u32 %v1890, 7
    %v1892 = vsub.s32 0, %v1891
    %v1893 = vrot.slane %v1888, %v1892
    %v1896 = vsel %vm441, %v1880, 0
    %v1899 = vsel %vm441, %v1881, 0
    %v1902 = vsel %vm441, %v1882, 0
    %v1905 = vsel %vm441, %v1883, 0
    %1907 = vmatprep.subr.mxu0 0.0
    %1908 = vmatpush1.msra.mxu0 %v1884
    %1909 = vmatprep.subr.mxu0 0.0
    %1910 = vmatpush1.msra.mxu0 %v1885
    %1911 = vmatprep.subr.mxu0 0.0
    %1912 = vmatpush1.msra.mxu0 %v1886
    %1913 = vmatprep.subr.mxu0 0.0
    %1914 = vmatpush1.msra.mxu0 %v1887
    %1915 = vmatprep.subr.mxu0 0.0
    %1916 = vmatpush1.msra.mxu0 0.0
    %1917 = vmatprep.subr.mxu0 0.0
    %1918 = vmatpush1.msra.mxu0 0.0
    %1919 = vmatprep.subr.mxu0 0.0
    %1920 = vmatpush1.msra.mxu0 0.0
    %1921 = vmatprep.subr.mxu0 0.0
    %1922 = vmatpush1.msra.mxu0 0.0
    %1923 = vmatprep.subr.mxu0 0.0
    %1924 = vmatpush1.msra.mxu0 0.0
    %1925 = vmatprep.subr.mxu0 0.0
    %1926 = vmatpush1.msra.mxu0 0.0
    %1927 = vmatprep.subr.mxu0 0.0
    %1928 = vmatpush1.msra.mxu0 0.0
    %1929 = vmatprep.subr.mxu0 0.0
    %1930 = vmatpush1.msra.mxu0 0.0
    %1931 = vmatprep.subr.mxu0 0.0
    %1932 = vmatpush1.msra.mxu0 0.0
    %1933 = vmatprep.subr.mxu0 0.0
    %1934 = vmatpush1.msra.mxu0 0.0
    %1935 = vmatprep.subr.mxu0 0.0
    %1936 = vmatpush1.msra.mxu0 0.0
    %1937 = vmatprep.subr.mxu0 0.0
    %1938 = vmatpush1.msra.mxu0 0.0
    %1939 = vmatprep.subr.mxu0 0.0
    %1940 = vmatpush1.msra.mxu0 0.0
    %1941 = vmatprep.subr.mxu0 0.0
    %1942 = vmatpush1.msra.mxu0 0.0
    %1943 = vmatprep.subr.mxu0 0.0
    %1944 = vmatpush1.msra.mxu0 0.0
    %1945 = vmatprep.subr.mxu0 0.0
    %1946 = vmatpush1.msra.mxu0 0.0
    %1947 = vmatprep.subr.mxu0 0.0
    %1948 = vmatpush1.msra.mxu0 0.0
    %1949 = vmatprep.subr.mxu0 0.0
    %1950 = vmatpush1.msra.mxu0 0.0
    %1951 = vmatprep.subr.mxu0 0.0
    %1952 = vmatpush1.msra.mxu0 0.0
    %1953 = vmatprep.subr.mxu0 0.0
    %1954 = vmatpush1.msra.mxu0 0.0
    %1955 = vmatprep.subr.mxu0 0.0
    %1956 = vmatpush1.msra.mxu0 0.0
    %1957 = vmatprep.subr.mxu0 0.0
    %1958 = vmatpush1.msra.mxu0 0.0
    %1959 = vmatprep.subr.mxu0 0.0
    %1960 = vmatpush1.msra.mxu0 0.0
    %1961 = vmatprep.subr.mxu0 0.0
    %1962 = vmatpush1.msra.mxu0 0.0
    %1963 = vmatprep.subr.mxu0 0.0
    %1964 = vmatpush1.msra.mxu0 0.0
    %1965 = vmatprep.subr.mxu0 0.0
    %1966 = vmatpush1.msra.mxu0 0.0
    %1967 = vmatprep.subr.mxu0 0.0
    %1968 = vmatpush1.msra.mxu0 0.0
    %1969 = vmatprep.subr.mxu0 0.0
    %1970 = vmatpush1.msra.mxu0 0.0
    %1971 = vmatprep.mubr.f32.mxu0 0.0
    %1972 = vmatmul.mubr.f32.gmra.mrb[0].mxu0 %v1896
    %v1973 = vpop.f32.mrb[0].mxu0
    %v1974 = vadd.f32 %v1893, %v1973
    %v1975 = vpop.f32.mrb[0].mxu0
    %1976 = vmatprep.mubr.f32.mxu0 0.0
    %1977 = vmatmul.mubr.f32.gmra.mrb[0].mxu0 %v1899
    %v1978 = vpop.f32.mrb[0].mxu0
    %v1979 = vadd.f32 %v1893, %v1978
    %v1980 = vpop.f32.mrb[0].mxu0
    %1981 = vmatprep.mubr.f32.mxu0 0.0
    %1982 = vmatmul.mubr.f32.gmra.mrb[0].mxu0 %v1902
    %v1983 = vpop.f32.mrb[0].mxu0
    %v1984 = vadd.f32 %v1893, %v1983
    %v1985 = vpop.f32.mrb[0].mxu0
    %1986 = vmatprep.mubr.f32.mxu0 0.0
    %1987 = vmatmul.mubr.f32.gmra.mrb[0].mxu0 %v1905
    %v1988 = vpop.f32.mrb[0].mxu0
    %v1989 = vadd.f32 %v1893, %v1988
    %v1990 = vpop.f32.mrb[0].mxu0
    %1991 = vdwg.mxu0
    %v1992 = vmax.f32 %v1974, 0.0
    %v1993 = vmax.f32 %v1979, 0.0
    %v1994 = vmax.f32 %v1984, 0.0
    %v1995 = vmax.f32 %v1989, 0.0
    %v1996 = vmul.f32 %v1992, %v1992
    %v1997 = vmul.f32 %v1993, %v1993
    %v1998 = vmul.f32 %v1994, %v1994
    %v1999 = vmul.f32 %v1995, %v1995
    %v2000 = vsel %vm441, %v1996, 0.0
    %2001 = vadd.xlane.f32.xlu0 %v2000
    %v2002 = vpop.xlane.xlu0 %2001
    %v2003 = vsel %vm441, %v1997, 0.0
    %2004 = vadd.xlane.f32.xlu0 %v2003
    %v2005 = vpop.xlane.xlu0 %2004
    %v2006 = vsel %vm441, %v1998, 0.0
    %2007 = vadd.xlane.f32.xlu0 %v2006
    %v2008 = vpop.xlane.xlu0 %2007
    %v2009 = vsel %vm441, %v1999, 0.0
    %2010 = vadd.xlane.f32.xlu0 %v2009
    %v2011 = vpop.xlane.xlu0 %2010
    %v2012 = vmax.f32 %v2002, 1e-24
    %v2013 = vmax.f32 %v2005, 1e-24
    %v2014 = vmax.f32 %v2008, 1e-24
    %v2015 = vmax.f32 %v2011, 1e-24
    %v2016 = vrsqrt.pop %v2012
    %v2017 = vrsqrt.pop %v2013
    %v2018 = vrsqrt.pop %v2014
    %v2019 = vrsqrt.pop %v2015
    %v2020 = vmul.f32 %v1992, %v2016
    %v2021 = vmul.f32 %v1993, %v2017
    %v2022 = vmul.f32 %v1994, %v2018
    %v2023 = vmul.f32 %v1995, %v2019
    %v2024 = vld [vmem:[%s57] sm:$0xff]
    %v2025 = vld [vmem:[%s57 + $0x8] sm:$0xff]
    %v2026 = vld [vmem:[%s57 + $0x10] sm:$0xff]
    %v2027 = vld [vmem:[%s57 + $0x18] sm:$0xff]
    %2028 = vmatprep.subr.mxu0 0.0
    %2029 = vmatpush1.msra.mxu0 %v2024
    %2030 = vmatprep.subr.mxu0 0.0
    %2031 = vmatpush1.msra.mxu0 %v2025
    %2032 = vmatprep.subr.mxu0 0.0
    %2033 = vmatpush1.msra.mxu0 %v2026
    %2034 = vmatprep.subr.mxu0 0.0
    %2035 = vmatpush1.msra.mxu0 %v2027
    %2036 = vmatprep.subr.mxu0 0.0
    %2037 = vmatpush1.msra.mxu0 0.0
    %2038 = vmatprep.subr.mxu0 0.0
    %2039 = vmatpush1.msra.mxu0 0.0
    %2040 = vmatprep.subr.mxu0 0.0
    %2041 = vmatpush1.msra.mxu0 0.0
    %2042 = vmatprep.subr.mxu0 0.0
    %2043 = vmatpush1.msra.mxu0 0.0
    %2044 = vmatprep.subr.mxu0 0.0
    %2045 = vmatpush1.msra.mxu0 0.0
    %2046 = vmatprep.subr.mxu0 0.0
    %2047 = vmatpush1.msra.mxu0 0.0
    %2048 = vmatprep.subr.mxu0 0.0
    %2049 = vmatpush1.msra.mxu0 0.0
    %2050 = vmatprep.subr.mxu0 0.0
    %2051 = vmatpush1.msra.mxu0 0.0
    %2052 = vmatprep.subr.mxu0 0.0
    %2053 = vmatpush1.msra.mxu0 0.0
    %2054 = vmatprep.subr.mxu0 0.0
    %2055 = vmatpush1.msra.mxu0 0.0
    %2056 = vmatprep.subr.mxu0 0.0
    %2057 = vmatpush1.msra.mxu0 0.0
    %2058 = vmatprep.subr.mxu0 0.0
    %2059 = vmatpush1.msra.mxu0 0.0
    %2060 = vmatprep.subr.mxu0 0.0
    %2061 = vmatpush1.msra.mxu0 0.0
    %2062 = vmatprep.subr.mxu0 0.0
    %2063 = vmatpush1.msra.mxu0 0.0
    %2064 = vmatprep.subr.mxu0 0.0
    %2065 = vmatpush1.msra.mxu0 0.0
    %2066 = vmatprep.subr.mxu0 0.0
    %2067 = vmatpush1.msra.mxu0 0.0
    %2068 = vmatprep.subr.mxu0 0.0
    %2069 = vmatpush1.msra.mxu0 0.0
    %2070 = vmatprep.subr.mxu0 0.0
    %2071 = vmatpush1.msra.mxu0 0.0
    %2072 = vmatprep.subr.mxu0 0.0
    %2073 = vmatpush1.msra.mxu0 0.0
    %2074 = vmatprep.subr.mxu0 0.0
    %2075 = vmatpush1.msra.mxu0 0.0
    %2076 = vmatprep.subr.mxu0 0.0
    %2077 = vmatpush1.msra.mxu0 0.0
    %2078 = vmatprep.subr.mxu0 0.0
    %2079 = vmatpush1.msra.mxu0 0.0
    %2080 = vmatprep.subr.mxu0 0.0
    %2081 = vmatpush1.msra.mxu0 0.0
    %2082 = vmatprep.subr.mxu0 0.0
    %2083 = vmatpush1.msra.mxu0 0.0
    %2084 = vmatprep.subr.mxu0 0.0
    %2085 = vmatpush1.msra.mxu0 0.0
    %2086 = vmatprep.subr.mxu0 0.0
    %2087 = vmatpush1.msra.mxu0 0.0
    %2088 = vmatprep.subr.mxu0 0.0
    %2089 = vmatpush1.msra.mxu0 0.0
    %2090 = vmatprep.subr.mxu0 0.0
    %2091 = vmatpush1.msra.mxu0 0.0
    %2092 = vmatprep.mubr.f32.mxu0 0.0
    %2093 = vmatmul.mubr.f32.gmra.mrb[0].mxu0 %v627
    %v2094 = vpop.f32.mrb[0].mxu0
    %v2095 = vadd.f32 0.0, %v2094
    %v2096 = vpop.f32.mrb[0].mxu0
    %2097 = vdwg.mxu0
    %v2098 = vld [vmem:[%s55] sm:$0xff]
    %v2099 = vld [vmem:[%s55 + $0x8] sm:$0xff]
    %v2100 = vld [vmem:[%s55 + $0x10] sm:$0xff]
    %v2101 = vld [vmem:[%s55 + $0x18] sm:$0xff]
    %v2102 = vld [vmem:[%s45] sm:$0xff]
    %v2103 = vld [vmem:[%s45 + $0x8] sm:$0xff]
    %v2104 = vld [vmem:[%s45 + $0x10] sm:$0xff]
    %v2105 = vld [vmem:[%s45 + $0x18] sm:$0xff]
    %v2107 = vsel %vm704, %v2102, 0
    %v2110 = vsel %vm704, %v2103, 0
    %v2113 = vsel %vm704, %v2104, 0
    %v2116 = vsel %vm704, %v2105, 0
    %v2119 = vsel %vm708, %v2095, 0
    %2121 = vmatprep.subr.mxu0 0.0
    %2122 = vmatpush1.msra.mxu0 %v2119
    %2123 = vmatprep.subr.mxu0 0.0
    %2124 = vmatpush1.msra.mxu0 0.0
    %2125 = vmatprep.subr.mxu0 0.0
    %2126 = vmatpush1.msra.mxu0 0.0
    %2127 = vmatprep.subr.mxu0 0.0
    %2128 = vmatpush1.msra.mxu0 0.0
    %2129 = vmatprep.subr.mxu0 0.0
    %2130 = vmatpush1.msra.mxu0 0.0
    %2131 = vmatprep.subr.mxu0 0.0
    %2132 = vmatpush1.msra.mxu0 0.0
    %2133 = vmatprep.subr.mxu0 0.0
    %2134 = vmatpush1.msra.mxu0 0.0
    %2135 = vmatprep.subr.mxu0 0.0
    %2136 = vmatpush1.msra.mxu0 0.0
    %2137 = vmatprep.subr.mxu0 0.0
    %2138 = vmatpush1.msra.mxu0 0.0
    %2139 = vmatprep.subr.mxu0 0.0
    %2140 = vmatpush1.msra.mxu0 0.0
    %2141 = vmatprep.subr.mxu0 0.0
    %2142 = vmatpush1.msra.mxu0 0.0
    %2143 = vmatprep.subr.mxu0 0.0
    %2144 = vmatpush1.msra.mxu0 0.0
    %2145 = vmatprep.subr.mxu0 0.0
    %2146 = vmatpush1.msra.mxu0 0.0
    %2147 = vmatprep.subr.mxu0 0.0
    %2148 = vmatpush1.msra.mxu0 0.0
    %2149 = vmatprep.subr.mxu0 0.0
    %2150 = vmatpush1.msra.mxu0 0.0
    %2151 = vmatprep.subr.mxu0 0.0
    %2152 = vmatpush1.msra.mxu0 0.0
    %2153 = vmatprep.subr.mxu0 0.0
    %2154 = vmatpush1.msra.mxu0 0.0
    %2155 = vmatprep.subr.mxu0 0.0
    %2156 = vmatpush1.msra.mxu0 0.0
    %2157 = vmatprep.subr.mxu0 0.0
    %2158 = vmatpush1.msra.mxu0 0.0
    %2159 = vmatprep.subr.mxu0 0.0
    %2160 = vmatpush1.msra.mxu0 0.0
    %2161 = vmatprep.subr.mxu0 0.0
    %2162 = vmatpush1.msra.mxu0 0.0
    %2163 = vmatprep.subr.mxu0 0.0
    %2164 = vmatpush1.msra.mxu0 0.0
    %2165 = vmatprep.subr.mxu0 0.0
    %2166 = vmatpush1.msra.mxu0 0.0
    %2167 = vmatprep.subr.mxu0 0.0
    %2168 = vmatpush1.msra.mxu0 0.0
    %2169 = vmatprep.subr.mxu0 0.0
    %2170 = vmatpush1.msra.mxu0 0.0
    %2171 = vmatprep.subr.mxu0 0.0
    %2172 = vmatpush1.msra.mxu0 0.0
    %2173 = vmatprep.subr.mxu0 0.0
    %2174 = vmatpush1.msra.mxu0 0.0
    %2175 = vmatprep.subr.mxu0 0.0
    %2176 = vmatpush1.msra.mxu0 0.0
    %2177 = vmatprep.subr.mxu0 0.0
    %2178 = vmatpush1.msra.mxu0 0.0
    %2179 = vmatprep.subr.mxu0 0.0
    %2180 = vmatpush1.msra.mxu0 0.0
    %2181 = vmatprep.subr.mxu0 0.0
    %2182 = vmatpush1.msra.mxu0 0.0
    %2183 = vmatprep.subr.mxu0 0.0
    %2184 = vmatpush1.msra.mxu0 0.0
    %2185 = vmatprep.mubr.f32.mxu0 0.0
    %2186 = vmatmul.mubr.f32.gmra.mrb[0].mxu0 %v2107
    %v2187 = vpop.f32.mrb[0].mxu0
    %v2188 = vadd.f32 0.0, %v2187
    %v2189 = vpop.f32.mrb[0].mxu0
    %2190 = vmatprep.mubr.f32.mxu0 0.0
    %2191 = vmatmul.mubr.f32.gmra.mrb[0].mxu0 %v2110
    %v2192 = vpop.f32.mrb[0].mxu0
    %v2193 = vadd.f32 0.0, %v2192
    %v2194 = vpop.f32.mrb[0].mxu0
    %2195 = vmatprep.mubr.f32.mxu0 0.0
    %2196 = vmatmul.mubr.f32.gmra.mrb[0].mxu0 %v2113
    %v2197 = vpop.f32.mrb[0].mxu0
    %v2198 = vadd.f32 0.0, %v2197
    %v2199 = vpop.f32.mrb[0].mxu0
    %2200 = vmatprep.mubr.f32.mxu0 0.0
    %2201 = vmatmul.mubr.f32.gmra.mrb[0].mxu0 %v2116
    %v2202 = vpop.f32.mrb[0].mxu0
    %v2203 = vadd.f32 0.0, %v2202
    %v2204 = vpop.f32.mrb[0].mxu0
    %2205 = vdwg.mxu0
    %v2207 = vsel %vm441, %v2020, 0
    %v2210 = vsel %vm441, %v2021, 0
    %v2213 = vsel %vm441, %v2022, 0
    %v2216 = vsel %vm441, %v2023, 0
    %2218 = vmatprep.subr.mxu0 0.0
    %2219 = vmatpush1.msra.mxu0 %v2098
    %2220 = vmatprep.subr.mxu0 0.0
    %2221 = vmatpush1.msra.mxu0 %v2099
    %2222 = vmatprep.subr.mxu0 0.0
    %2223 = vmatpush1.msra.mxu0 %v2100
    %2224 = vmatprep.subr.mxu0 0.0
    %2225 = vmatpush1.msra.mxu0 %v2101
    %2226 = vmatprep.subr.mxu0 0.0
    %2227 = vmatpush1.msra.mxu0 0.0
    %2228 = vmatprep.subr.mxu0 0.0
    %2229 = vmatpush1.msra.mxu0 0.0
    %2230 = vmatprep.subr.mxu0 0.0
    %2231 = vmatpush1.msra.mxu0 0.0
    %2232 = vmatprep.subr.mxu0 0.0
    %2233 = vmatpush1.msra.mxu0 0.0
    %2234 = vmatprep.subr.mxu0 0.0
    %2235 = vmatpush1.msra.mxu0 0.0
    %2236 = vmatprep.subr.mxu0 0.0
    %2237 = vmatpush1.msra.mxu0 0.0
    %2238 = vmatprep.subr.mxu0 0.0
    %2239 = vmatpush1.msra.mxu0 0.0
    %2240 = vmatprep.subr.mxu0 0.0
    %2241 = vmatpush1.msra.mxu0 0.0
    %2242 = vmatprep.subr.mxu0 0.0
    %2243 = vmatpush1.msra.mxu0 0.0
    %2244 = vmatprep.subr.mxu0 0.0
    %2245 = vmatpush1.msra.mxu0 0.0
    %2246 = vmatprep.subr.mxu0 0.0
    %2247 = vmatpush1.msra.mxu0 0.0
    %2248 = vmatprep.subr.mxu0 0.0
    %2249 = vmatpush1.msra.mxu0 0.0
    %2250 = vmatprep.subr.mxu0 0.0
    %2251 = vmatpush1.msra.mxu0 0.0
    %2252 = vmatprep.subr.mxu0 0.0
    %2253 = vmatpush1.msra.mxu0 0.0
    %2254 = vmatprep.subr.mxu0 0.0
    %2255 = vmatpush1.msra.mxu0 0.0
    %2256 = vmatprep.subr.mxu0 0.0
    %2257 = vmatpush1.msra.mxu0 0.0
    %2258 = vmatprep.subr.mxu0 0.0
    %2259 = vmatpush1.msra.mxu0 0.0
    %2260 = vmatprep.subr.mxu0 0.0
    %2261 = vmatpush1.msra.mxu0 0.0
    %2262 = vmatprep.subr.mxu0 0.0
    %2263 = vmatpush1.msra.mxu0 0.0
    %2264 = vmatprep.subr.mxu0 0.0
    %2265 = vmatpush1.msra.mxu0 0.0
    %2266 = vmatprep.subr.mxu0 0.0
    %2267 = vmatpush1.msra.mxu0 0.0
    %2268 = vmatprep.subr.mxu0 0.0
    %2269 = vmatpush1.msra.mxu0 0.0
    %2270 = vmatprep.subr.mxu0 0.0
    %2271 = vmatpush1.msra.mxu0 0.0
    %2272 = vmatprep.subr.mxu0 0.0
    %2273 = vmatpush1.msra.mxu0 0.0
    %2274 = vmatprep.subr.mxu0 0.0
    %2275 = vmatpush1.msra.mxu0 0.0
    %2276 = vmatprep.subr.mxu0 0.0
    %2277 = vmatpush1.msra.mxu0 0.0
    %2278 = vmatprep.subr.mxu0 0.0
    %2279 = vmatpush1.msra.mxu0 0.0
    %2280 = vmatprep.subr.mxu0 0.0
    %2281 = vmatpush1.msra.mxu0 0.0
    %2282 = vmatprep.mubr.f32.mxu0 0.0
    %2283 = vmatmul.mubr.f32.gmra.mrb[0].mxu0 %v2207
    %v2284 = vpop.f32.mrb[0].mxu0
    %v2285 = vadd.f32 %v2188, %v2284
    %v2286 = vpop.f32.mrb[0].mxu0
    %2287 = vmatprep.mubr.f32.mxu0 0.0
    %2288 = vmatmul.mubr.f32.gmra.mrb[0].mxu0 %v2210
    %v2289 = vpop.f32.mrb[0].mxu0
    %v2290 = vadd.f32 %v2193, %v2289
    %v2291 = vpop.f32.mrb[0].mxu0
    %2292 = vmatprep.mubr.f32.mxu0 0.0
    %2293 = vmatmul.mubr.f32.gmra.mrb[0].mxu0 %v2213
    %v2294 = vpop.f32.mrb[0].mxu0
    %v2295 = vadd.f32 %v2198, %v2294
    %v2296 = vpop.f32.mrb[0].mxu0
    %2297 = vmatprep.mubr.f32.mxu0 0.0
    %2298 = vmatmul.mubr.f32.gmra.mrb[0].mxu0 %v2216
    %v2299 = vpop.f32.mrb[0].mxu0
    %v2300 = vadd.f32 %v2203, %v2299
    %v2301 = vpop.f32.mrb[0].mxu0
    %2302 = vdwg.mxu0
    %v2303 = vld [vmem:[%s47] sm:$0xff]
    %v2304 = vld [vmem:[%s47 + $0x8] sm:$0xff]
    %v2305 = vld [vmem:[%s47 + $0x10] sm:$0xff]
    %v2306 = vld [vmem:[%s47 + $0x18] sm:$0xff]
    %v2307 = vadd.f32 %v2285, %v2303
    %v2308 = vadd.f32 %v2290, %v2304
    %v2309 = vadd.f32 %v2295, %v2305
    %v2310 = vadd.f32 %v2300, %v2306
    %v2311 = vmax.f32 %v2307, 0.0
    %v2312 = vmax.f32 %v2308, 0.0
    %v2313 = vmax.f32 %v2309, 0.0
    %v2314 = vmax.f32 %v2310, 0.0
    %vm2315 = vcmask 258048
    %2316 = vst.msk [vmem:[#allocation3] sm:$0x1f] %vm2315, 0.0
    %2317 = vst.msk [vmem:[#allocation3 + $0x25] sm:$0x1f] %vm2315, 0.0
    %2318 = vst.msk [vmem:[#allocation3 + $0x5] sm:$0xff] %vm441, %v2311
    %2319 = vst.msk [vmem:[#allocation3 + $0xd] sm:$0xff] %vm441, %v2312
    %2320 = vst.msk [vmem:[#allocation3 + $0x15] sm:$0xff] %vm441, %v2313
    %2321 = vst.msk [vmem:[#allocation3 + $0x1d] sm:$0xff] %vm441, %v2314
    %v2322 = vld [vmem:[#allocation3] sm:$0xff]
    %v2323 = vld [vmem:[#allocation3 + $0x8] sm:$0xff]
    %v2324 = vld [vmem:[#allocation3 + $0x10] sm:$0xff]
    %v2325 = vld [vmem:[#allocation3 + $0x18] sm:$0xff]
    %v2326 = vld [vmem:[%s49] sm:$0xff]
    %v2327 = vld [vmem:[%s49 + $0x8] sm:$0xff]
    %v2328 = vld [vmem:[%s49 + $0x10] sm:$0xff]
    %v2329 = vld [vmem:[%s49 + $0x18] sm:$0xff]
    %2331 = vset.pattern.permute.xlu0 0
    %2332 = vperm.xlu0 %2331, %v2326
    %v2333 = vpop.permute.xlu0 %2332
    %2336 = vset.pattern.permute.xlu0 0
    %2337 = vperm.xlu0 %2336, %v2327
    %v2338 = vpop.permute.xlu0 %2337
    %2341 = vset.pattern.permute.xlu0 0
    %2342 = vperm.xlu0 %2341, %v2328
    %v2343 = vpop.permute.xlu0 %2342
    %2346 = vset.pattern.permute.xlu0 0
    %2347 = vperm.xlu0 %2346, %v2329
    %v2348 = vpop.permute.xlu0 %2347
    %v2350 = vmul.f32 %v2322, %v2333
    %v2351 = vmul.f32 %v2323, %v2338
    %v2352 = vmul.f32 %v2324, %v2343
    %v2353 = vmul.f32 %v2325, %v2348
    %v2354 = vld [vmem:[%s59] sm:$0xff]
    %v2355 = vld [vmem:[%s59 + $0x8] sm:$0xff]
    %v2356 = vld [vmem:[%s59 + $0x10] sm:$0xff]
    %v2357 = vld [vmem:[%s59 + $0x18] sm:$0xff]
    %v2358 = vld [vmem:[#allocation3 + $0x1] sm:$0xff]
    %v2359 = vld [vmem:[#allocation3 + $0x9] sm:$0xff]
    %v2360 = vld [vmem:[#allocation3 + $0x11] sm:$0xff]
    %v2361 = vld [vmem:[#allocation3 + $0x19] sm:$0xff]
    %2362 = vset.pattern.permute.xlu0 1
    %2363 = vperm.xlu0 %2362, %v2326
    %v2364 = vpop.permute.xlu0 %2363
    %2366 = vset.pattern.permute.xlu0 1
    %2367 = vperm.xlu0 %2366, %v2327
    %v2368 = vpop.permute.xlu0 %2367
    %2370 = vset.pattern.permute.xlu0 1
    %2371 = vperm.xlu0 %2370, %v2328
    %v2372 = vpop.permute.xlu0 %2371
    %2374 = vset.pattern.permute.xlu0 1
    %2375 = vperm.xlu0 %2374, %v2329
    %v2376 = vpop.permute.xlu0 %2375
    %v2378 = vmul.f32 %v2358, %v2364
    %v2379 = vmul.f32 %v2359, %v2368
    %v2380 = vmul.f32 %v2360, %v2372
    %v2381 = vmul.f32 %v2361, %v2376
    %v2382 = vld [vmem:[%s59 + $0x20] sm:$0xff]
    %v2383 = vld [vmem:[%s59 + $0x28] sm:$0xff]
    %v2384 = vld [vmem:[%s59 + $0x30] sm:$0xff]
    %v2385 = vld [vmem:[%s59 + $0x38] sm:$0xff]
    %v2387 = vsel %vm441, %v2378, 0
    %v2390 = vsel %vm441, %v2379, 0
    %v2393 = vsel %vm441, %v2380, 0
    %v2396 = vsel %vm441, %v2381, 0
    %2398 = vmatprep.subr.mxu0 0.0
    %2399 = vmatpush1.msra.mxu0 %v2382
    %2400 = vmatprep.subr.mxu0 0.0
    %2401 = vmatpush1.msra.mxu0 %v2383
    %2402 = vmatprep.subr.mxu0 0.0
    %2403 = vmatpush1.msra.mxu0 %v2384
    %2404 = vmatprep.subr.mxu0 0.0
    %2405 = vmatpush1.msra.mxu0 %v2385
    %2406 = vmatprep.subr.mxu0 0.0
    %2407 = vmatpush1.msra.mxu0 0.0
    %2408 = vmatprep.subr.mxu0 0.0
    %2409 = vmatpush1.msra.mxu0 0.0
    %2410 = vmatprep.subr.mxu0 0.0
    %2411 = vmatpush1.msra.mxu0 0.0
    %2412 = vmatprep.subr.mxu0 0.0
    %2413 = vmatpush1.msra.mxu0 0.0
    %2414 = vmatprep.subr.mxu0 0.0
    %2415 = vmatpush1.msra.mxu0 0.0
    %2416 = vmatprep.subr.mxu0 0.0
    %2417 = vmatpush1.msra.mxu0 0.0
    %2418 = vmatprep.subr.mxu0 0.0
    %2419 = vmatpush1.msra.mxu0 0.0
    %2420 = vmatprep.subr.mxu0 0.0
    %2421 = vmatpush1.msra.mxu0 0.0
    %2422 = vmatprep.subr.mxu0 0.0
    %2423 = vmatpush1.msra.mxu0 0.0
    %2424 = vmatprep.subr.mxu0 0.0
    %2425 = vmatpush1.msra.mxu0 0.0
    %2426 = vmatprep.subr.mxu0 0.0
    %2427 = vmatpush1.msra.mxu0 0.0
    %2428 = vmatprep.subr.mxu0 0.0
    %2429 = vmatpush1.msra.mxu0 0.0
    %2430 = vmatprep.subr.mxu0 0.0
    %2431 = vmatpush1.msra.mxu0 0.0
    %2432 = vmatprep.subr.mxu0 0.0
    %2433 = vmatpush1.msra.mxu0 0.0
    %2434 = vmatprep.subr.mxu0 0.0
    %2435 = vmatpush1.msra.mxu0 0.0
    %2436 = vmatprep.subr.mxu0 0.0
    %2437 = vmatpush1.msra.mxu0 0.0
    %2438 = vmatprep.subr.mxu0 0.0
    %2439 = vmatpush1.msra.mxu0 0.0
    %2440 = vmatprep.subr.mxu0 0.0
    %2441 = vmatpush1.msra.mxu0 0.0
    %2442 = vmatprep.subr.mxu0 0.0
    %2443 = vmatpush1.msra.mxu0 0.0
    %2444 = vmatprep.subr.mxu0 0.0
    %2445 = vmatpush1.msra.mxu0 0.0
    %2446 = vmatprep.subr.mxu0 0.0
    %2447 = vmatpush1.msra.mxu0 0.0
    %2448 = vmatprep.subr.mxu0 0.0
    %2449 = vmatpush1.msra.mxu0 0.0
    %2450 = vmatprep.subr.mxu0 0.0
    %2451 = vmatpush1.msra.mxu0 0.0
    %2452 = vmatprep.subr.mxu0 0.0
    %2453 = vmatpush1.msra.mxu0 0.0
    %2454 = vmatprep.subr.mxu0 0.0
    %2455 = vmatpush1.msra.mxu0 0.0
    %2456 = vmatprep.subr.mxu0 0.0
    %2457 = vmatpush1.msra.mxu0 0.0
    %2458 = vmatprep.subr.mxu0 0.0
    %2459 = vmatpush1.msra.mxu0 0.0
    %2460 = vmatprep.subr.mxu0 0.0
    %2461 = vmatpush1.msra.mxu0 0.0
    %2462 = vmatprep.mubr.f32.mxu0 0.0
    %2463 = vmatmul.mubr.f32.gmra.mrb[0].mxu0 %v2387
    %v2464 = vpop.f32.mrb[0].mxu0
    %v2465 = vadd.f32 0.0, %v2464
    %v2466 = vpop.f32.mrb[0].mxu0
    %2467 = vmatprep.mubr.f32.mxu0 0.0
    %2468 = vmatmul.mubr.f32.gmra.mrb[0].mxu0 %v2390
    %v2469 = vpop.f32.mrb[0].mxu0
    %v2470 = vadd.f32 0.0, %v2469
    %v2471 = vpop.f32.mrb[0].mxu0
    %2472 = vmatprep.mubr.f32.mxu0 0.0
    %2473 = vmatmul.mubr.f32.gmra.mrb[0].mxu0 %v2393
    %v2474 = vpop.f32.mrb[0].mxu0
    %v2475 = vadd.f32 0.0, %v2474
    %v2476 = vpop.f32.mrb[0].mxu0
    %2477 = vmatprep.mubr.f32.mxu0 0.0
    %2478 = vmatmul.mubr.f32.gmra.mrb[0].mxu0 %v2396
    %v2479 = vpop.f32.mrb[0].mxu0
    %v2480 = vadd.f32 0.0, %v2479
    %v2481 = vpop.f32.mrb[0].mxu0
    %2482 = vdwg.mxu0
    %v2484 = vsel %vm441, %v2350, 0
    %v2487 = vsel %vm441, %v2351, 0
    %v2490 = vsel %vm441, %v2352, 0
    %v2493 = vsel %vm441, %v2353, 0
    %2495 = vmatprep.subr.mxu0 0.0
    %2496 = vmatpush1.msra.mxu0 %v2354
    %2497 = vmatprep.subr.mxu0 0.0
    %2498 = vmatpush1.msra.mxu0 %v2355
    %2499 = vmatprep.subr.mxu0 0.0
    %2500 = vmatpush1.msra.mxu0 %v2356
    %2501 = vmatprep.subr.mxu0 0.0
    %2502 = vmatpush1.msra.mxu0 %v2357
    %2503 = vmatprep.subr.mxu0 0.0
    %2504 = vmatpush1.msra.mxu0 0.0
    %2505 = vmatprep.subr.mxu0 0.0
    %2506 = vmatpush1.msra.mxu0 0.0
    %2507 = vmatprep.subr.mxu0 0.0
    %2508 = vmatpush1.msra.mxu0 0.0
    %2509 = vmatprep.subr.mxu0 0.0
    %2510 = vmatpush1.msra.mxu0 0.0
    %2511 = vmatprep.subr.mxu0 0.0
    %2512 = vmatpush1.msra.mxu0 0.0
    %2513 = vmatprep.subr.mxu0 0.0
    %2514 = vmatpush1.msra.mxu0 0.0
    %2515 = vmatprep.subr.mxu0 0.0
    %2516 = vmatpush1.msra.mxu0 0.0
    %2517 = vmatprep.subr.mxu0 0.0
    %2518 = vmatpush1.msra.mxu0 0.0
    %2519 = vmatprep.subr.mxu0 0.0
    %2520 = vmatpush1.msra.mxu0 0.0
    %2521 = vmatprep.subr.mxu0 0.0
    %2522 = vmatpush1.msra.mxu0 0.0
    %2523 = vmatprep.subr.mxu0 0.0
    %2524 = vmatpush1.msra.mxu0 0.0
    %2525 = vmatprep.subr.mxu0 0.0
    %2526 = vmatpush1.msra.mxu0 0.0
    %2527 = vmatprep.subr.mxu0 0.0
    %2528 = vmatpush1.msra.mxu0 0.0
    %2529 = vmatprep.subr.mxu0 0.0
    %2530 = vmatpush1.msra.mxu0 0.0
    %2531 = vmatprep.subr.mxu0 0.0
    %2532 = vmatpush1.msra.mxu0 0.0
    %2533 = vmatprep.subr.mxu0 0.0
    %2534 = vmatpush1.msra.mxu0 0.0
    %2535 = vmatprep.subr.mxu0 0.0
    %2536 = vmatpush1.msra.mxu0 0.0
    %2537 = vmatprep.subr.mxu0 0.0
    %2538 = vmatpush1.msra.mxu0 0.0
    %2539 = vmatprep.subr.mxu0 0.0
    %2540 = vmatpush1.msra.mxu0 0.0
    %2541 = vmatprep.subr.mxu0 0.0
    %2542 = vmatpush1.msra.mxu0 0.0
    %2543 = vmatprep.subr.mxu0 0.0
    %2544 = vmatpush1.msra.mxu0 0.0
    %2545 = vmatprep.subr.mxu0 0.0
    %2546 = vmatpush1.msra.mxu0 0.0
    %2547 = vmatprep.subr.mxu0 0.0
    %2548 = vmatpush1.msra.mxu0 0.0
    %2549 = vmatprep.subr.mxu0 0.0
    %2550 = vmatpush1.msra.mxu0 0.0
    %2551 = vmatprep.subr.mxu0 0.0
    %2552 = vmatpush1.msra.mxu0 0.0
    %2553 = vmatprep.subr.mxu0 0.0
    %2554 = vmatpush1.msra.mxu0 0.0
    %2555 = vmatprep.subr.mxu0 0.0
    %2556 = vmatpush1.msra.mxu0 0.0
    %2557 = vmatprep.subr.mxu0 0.0
    %2558 = vmatpush1.msra.mxu0 0.0
    %2559 = vmatprep.mubr.f32.mxu0 0.0
    %2560 = vmatmul.mubr.f32.gmra.mrb[0].mxu0 %v2484
    %v2561 = vpop.f32.mrb[0].mxu0
    %v2562 = vadd.f32 %v2465, %v2561
    %v2563 = vpop.f32.mrb[0].mxu0
    %2564 = vmatprep.mubr.f32.mxu0 0.0
    %2565 = vmatmul.mubr.f32.gmra.mrb[0].mxu0 %v2487
    %v2566 = vpop.f32.mrb[0].mxu0
    %v2567 = vadd.f32 %v2470, %v2566
    %v2568 = vpop.f32.mrb[0].mxu0
    %2569 = vmatprep.mubr.f32.mxu0 0.0
    %2570 = vmatmul.mubr.f32.gmra.mrb[0].mxu0 %v2490
    %v2571 = vpop.f32.mrb[0].mxu0
    %v2572 = vadd.f32 %v2475, %v2571
    %v2573 = vpop.f32.mrb[0].mxu0
    %2574 = vmatprep.mubr.f32.mxu0 0.0
    %2575 = vmatmul.mubr.f32.gmra.mrb[0].mxu0 %v2493
    %v2576 = vpop.f32.mrb[0].mxu0
    %v2577 = vadd.f32 %v2480, %v2576
    %v2578 = vpop.f32.mrb[0].mxu0
    %2579 = vdwg.mxu0
    %v2580 = vld [vmem:[#allocation3 + $0x2] sm:$0xff]
    %v2581 = vld [vmem:[#allocation3 + $0xa] sm:$0xff]
    %v2582 = vld [vmem:[#allocation3 + $0x12] sm:$0xff]
    %v2583 = vld [vmem:[#allocation3 + $0x1a] sm:$0xff]
    %2584 = vset.pattern.permute.xlu0 2
    %2585 = vperm.xlu0 %2584, %v2326
    %v2586 = vpop.permute.xlu0 %2585
    %2588 = vset.pattern.permute.xlu0 2
    %2589 = vperm.xlu0 %2588, %v2327
    %v2590 = vpop.permute.xlu0 %2589
    %2592 = vset.pattern.permute.xlu0 2
    %2593 = vperm.xlu0 %2592, %v2328
    %v2594 = vpop.permute.xlu0 %2593
    %2596 = vset.pattern.permute.xlu0 2
    %2597 = vperm.xlu0 %2596, %v2329
    %v2598 = vpop.permute.xlu0 %2597
    %v2600 = vmul.f32 %v2580, %v2586
    %v2601 = vmul.f32 %v2581, %v2590
    %v2602 = vmul.f32 %v2582, %v2594
    %v2603 = vmul.f32 %v2583, %v2598
    %v2604 = vld [vmem:[%s59 + $0x40] sm:$0xff]
    %v2605 = vld [vmem:[%s59 + $0x48] sm:$0xff]
    %v2606 = vld [vmem:[%s59 + $0x50] sm:$0xff]
    %v2607 = vld [vmem:[%s59 + $0x58] sm:$0xff]
    %v2609 = vsel %vm441, %v2600, 0
    %v2612 = vsel %vm441, %v2601, 0
    %v2615 = vsel %vm441, %v2602, 0
    %v2618 = vsel %vm441, %v2603, 0
    %2620 = vmatprep.subr.mxu0 0.0
    %2621 = vmatpush1.msra.mxu0 %v2604
    %2622 = vmatprep.subr.mxu0 0.0
    %2623 = vmatpush1.msra.mxu0 %v2605
    %2624 = vmatprep.subr.mxu0 0.0
    %2625 = vmatpush1.msra.mxu0 %v2606
    %2626 = vmatprep.subr.mxu0 0.0
    %2627 = vmatpush1.msra.mxu0 %v2607
    %2628 = vmatprep.subr.mxu0 0.0
    %2629 = vmatpush1.msra.mxu0 0.0
    %2630 = vmatprep.subr.mxu0 0.0
    %2631 = vmatpush1.msra.mxu0 0.0
    %2632 = vmatprep.subr.mxu0 0.0
    %2633 = vmatpush1.msra.mxu0 0.0
    %2634 = vmatprep.subr.mxu0 0.0
    %2635 = vmatpush1.msra.mxu0 0.0
    %2636 = vmatprep.subr.mxu0 0.0
    %2637 = vmatpush1.msra.mxu0 0.0
    %2638 = vmatprep.subr.mxu0 0.0
    %2639 = vmatpush1.msra.mxu0 0.0
    %2640 = vmatprep.subr.mxu0 0.0
    %2641 = vmatpush1.msra.mxu0 0.0
    %2642 = vmatprep.subr.mxu0 0.0
    %2643 = vmatpush1.msra.mxu0 0.0
    %2644 = vmatprep.subr.mxu0 0.0
    %2645 = vmatpush1.msra.mxu0 0.0
    %2646 = vmatprep.subr.mxu0 0.0
    %2647 = vmatpush1.msra.mxu0 0.0
    %2648 = vmatprep.subr.mxu0 0.0
    %2649 = vmatpush1.msra.mxu0 0.0
    %2650 = vmatprep.subr.mxu0 0.0
    %2651 = vmatpush1.msra.mxu0 0.0
    %2652 = vmatprep.subr.mxu0 0.0
    %2653 = vmatpush1.msra.mxu0 0.0
    %2654 = vmatprep.subr.mxu0 0.0
    %2655 = vmatpush1.msra.mxu0 0.0
    %2656 = vmatprep.subr.mxu0 0.0
    %2657 = vmatpush1.msra.mxu0 0.0
    %2658 = vmatprep.subr.mxu0 0.0
    %2659 = vmatpush1.msra.mxu0 0.0
    %2660 = vmatprep.subr.mxu0 0.0
    %2661 = vmatpush1.msra.mxu0 0.0
    %2662 = vmatprep.subr.mxu0 0.0
    %2663 = vmatpush1.msra.mxu0 0.0
    %2664 = vmatprep.subr.mxu0 0.0
    %2665 = vmatpush1.msra.mxu0 0.0
    %2666 = vmatprep.subr.mxu0 0.0
    %2667 = vmatpush1.msra.mxu0 0.0
    %2668 = vmatprep.subr.mxu0 0.0
    %2669 = vmatpush1.msra.mxu0 0.0
    %2670 = vmatprep.subr.mxu0 0.0
    %2671 = vmatpush1.msra.mxu0 0.0
    %2672 = vmatprep.subr.mxu0 0.0
    %2673 = vmatpush1.msra.mxu0 0.0
    %2674 = vmatprep.subr.mxu0 0.0
    %2675 = vmatpush1.msra.mxu0 0.0
    %2676 = vmatprep.subr.mxu0 0.0
    %2677 = vmatpush1.msra.mxu0 0.0
    %2678 = vmatprep.subr.mxu0 0.0
    %2679 = vmatpush1.msra.mxu0 0.0
    %2680 = vmatprep.subr.mxu0 0.0
    %2681 = vmatpush1.msra.mxu0 0.0
    %2682 = vmatprep.subr.mxu0 0.0
    %2683 = vmatpush1.msra.mxu0 0.0
    %2684 = vmatprep.mubr.f32.mxu0 0.0
    %2685 = vmatmul.mubr.f32.gmra.mrb[0].mxu0 %v2609
    %v2686 = vpop.f32.mrb[0].mxu0
    %v2687 = vadd.f32 0.0, %v2686
    %v2688 = vpop.f32.mrb[0].mxu0
    %2689 = vmatprep.mubr.f32.mxu0 0.0
    %2690 = vmatmul.mubr.f32.gmra.mrb[0].mxu0 %v2612
    %v2691 = vpop.f32.mrb[0].mxu0
    %v2692 = vadd.f32 0.0, %v2691
    %v2693 = vpop.f32.mrb[0].mxu0
    %2694 = vmatprep.mubr.f32.mxu0 0.0
    %2695 = vmatmul.mubr.f32.gmra.mrb[0].mxu0 %v2615
    %v2696 = vpop.f32.mrb[0].mxu0
    %v2697 = vadd.f32 0.0, %v2696
    %v2698 = vpop.f32.mrb[0].mxu0
    %2699 = vmatprep.mubr.f32.mxu0 0.0
    %2700 = vmatmul.mubr.f32.gmra.mrb[0].mxu0 %v2618
    %v2701 = vpop.f32.mrb[0].mxu0
    %v2702 = vadd.f32 0.0, %v2701
    %v2703 = vpop.f32.mrb[0].mxu0
    %2704 = vdwg.mxu0
    %v2705 = vadd.f32 %v2562, %v2687
    %v2706 = vadd.f32 %v2567, %v2692
    %v2707 = vadd.f32 %v2572, %v2697
    %v2708 = vadd.f32 %v2577, %v2702
    %v2709 = vld [vmem:[#allocation3 + $0x4] sm:$0xff]
    %v2710 = vld [vmem:[#allocation3 + $0xc] sm:$0xff]
    %v2711 = vld [vmem:[#allocation3 + $0x14] sm:$0xff]
    %v2712 = vld [vmem:[#allocation3 + $0x1c] sm:$0xff]
    %2713 = vset.pattern.permute.xlu0 3
    %2714 = vperm.xlu0 %2713, %v2326
    %v2715 = vpop.permute.xlu0 %2714
    %2717 = vset.pattern.permute.xlu0 3
    %2718 = vperm.xlu0 %2717, %v2327
    %v2719 = vpop.permute.xlu0 %2718
    %2721 = vset.pattern.permute.xlu0 3
    %2722 = vperm.xlu0 %2721, %v2328
    %v2723 = vpop.permute.xlu0 %2722
    %2725 = vset.pattern.permute.xlu0 3
    %2726 = vperm.xlu0 %2725, %v2329
    %v2727 = vpop.permute.xlu0 %2726
    %v2729 = vmul.f32 %v2709, %v2715
    %v2730 = vmul.f32 %v2710, %v2719
    %v2731 = vmul.f32 %v2711, %v2723
    %v2732 = vmul.f32 %v2712, %v2727
    %v2733 = vld [vmem:[%s59 + $0x60] sm:$0xff]
    %v2734 = vld [vmem:[%s59 + $0x68] sm:$0xff]
    %v2735 = vld [vmem:[%s59 + $0x70] sm:$0xff]
    %v2736 = vld [vmem:[%s59 + $0x78] sm:$0xff]
    %v2738 = vsel %vm441, %v2729, 0
    %v2741 = vsel %vm441, %v2730, 0
    %v2744 = vsel %vm441, %v2731, 0
    %v2747 = vsel %vm441, %v2732, 0
    %2749 = vmatprep.subr.mxu0 0.0
    %2750 = vmatpush1.msra.mxu0 %v2733
    %2751 = vmatprep.subr.mxu0 0.0
    %2752 = vmatpush1.msra.mxu0 %v2734
    %2753 = vmatprep.subr.mxu0 0.0
    %2754 = vmatpush1.msra.mxu0 %v2735
    %2755 = vmatprep.subr.mxu0 0.0
    %2756 = vmatpush1.msra.mxu0 %v2736
    %2757 = vmatprep.subr.mxu0 0.0
    %2758 = vmatpush1.msra.mxu0 0.0
    %2759 = vmatprep.subr.mxu0 0.0
    %2760 = vmatpush1.msra.mxu0 0.0
    %2761 = vmatprep.subr.mxu0 0.0
    %2762 = vmatpush1.msra.mxu0 0.0
    %2763 = vmatprep.subr.mxu0 0.0
    %2764 = vmatpush1.msra.mxu0 0.0
    %2765 = vmatprep.subr.mxu0 0.0
    %2766 = vmatpush1.msra.mxu0 0.0
    %2767 = vmatprep.subr.mxu0 0.0
    %2768 = vmatpush1.msra.mxu0 0.0
    %2769 = vmatprep.subr.mxu0 0.0
    %2770 = vmatpush1.msra.mxu0 0.0
    %2771 = vmatprep.subr.mxu0 0.0
    %2772 = vmatpush1.msra.mxu0 0.0
    %2773 = vmatprep.subr.mxu0 0.0
    %2774 = vmatpush1.msra.mxu0 0.0
    %2775 = vmatprep.subr.mxu0 0.0
    %2776 = vmatpush1.msra.mxu0 0.0
    %2777 = vmatprep.subr.mxu0 0.0
    %2778 = vmatpush1.msra.mxu0 0.0
    %2779 = vmatprep.subr.mxu0 0.0
    %2780 = vmatpush1.msra.mxu0 0.0
    %2781 = vmatprep.subr.mxu0 0.0
    %2782 = vmatpush1.msra.mxu0 0.0
    %2783 = vmatprep.subr.mxu0 0.0
    %2784 = vmatpush1.msra.mxu0 0.0
    %2785 = vmatprep.subr.mxu0 0.0
    %2786 = vmatpush1.msra.mxu0 0.0
    %2787 = vmatprep.subr.mxu0 0.0
    %2788 = vmatpush1.msra.mxu0 0.0
    %2789 = vmatprep.subr.mxu0 0.0
    %2790 = vmatpush1.msra.mxu0 0.0
    %2791 = vmatprep.subr.mxu0 0.0
    %2792 = vmatpush1.msra.mxu0 0.0
    %2793 = vmatprep.subr.mxu0 0.0
    %2794 = vmatpush1.msra.mxu0 0.0
    %2795 = vmatprep.subr.mxu0 0.0
    %2796 = vmatpush1.msra.mxu0 0.0
    %2797 = vmatprep.subr.mxu0 0.0
    %2798 = vmatpush1.msra.mxu0 0.0
    %2799 = vmatprep.subr.mxu0 0.0
    %2800 = vmatpush1.msra.mxu0 0.0
    %2801 = vmatprep.subr.mxu0 0.0
    %2802 = vmatpush1.msra.mxu0 0.0
    %2803 = vmatprep.subr.mxu0 0.0
    %2804 = vmatpush1.msra.mxu0 0.0
    %2805 = vmatprep.subr.mxu0 0.0
    %2806 = vmatpush1.msra.mxu0 0.0
    %2807 = vmatprep.subr.mxu0 0.0
    %2808 = vmatpush1.msra.mxu0 0.0
    %2809 = vmatprep.subr.mxu0 0.0
    %2810 = vmatpush1.msra.mxu0 0.0
    %2811 = vmatprep.subr.mxu0 0.0
    %2812 = vmatpush1.msra.mxu0 0.0
    %2813 = vmatprep.mubr.f32.mxu0 0.0
    %2814 = vmatmul.mubr.f32.gmra.mrb[0].mxu0 %v2738
    %v2815 = vpop.f32.mrb[0].mxu0
    %v2816 = vadd.f32 0.0, %v2815
    %v2817 = vpop.f32.mrb[0].mxu0
    %2818 = vmatprep.mubr.f32.mxu0 0.0
    %2819 = vmatmul.mubr.f32.gmra.mrb[0].mxu0 %v2741
    %v2820 = vpop.f32.mrb[0].mxu0
    %v2821 = vadd.f32 0.0, %v2820
    %v2822 = vpop.f32.mrb[0].mxu0
    %2823 = vmatprep.mubr.f32.mxu0 0.0
    %2824 = vmatmul.mubr.f32.gmra.mrb[0].mxu0 %v2744
    %v2825 = vpop.f32.mrb[0].mxu0
    %v2826 = vadd.f32 0.0, %v2825
    %v2827 = vpop.f32.mrb[0].mxu0
    %2828 = vmatprep.mubr.f32.mxu0 0.0
    %2829 = vmatmul.mubr.f32.gmra.mrb[0].mxu0 %v2747
    %v2830 = vpop.f32.mrb[0].mxu0
    %v2831 = vadd.f32 0.0, %v2830
    %v2832 = vpop.f32.mrb[0].mxu0
    %2833 = vdwg.mxu0
    %v2834 = vadd.f32 %v2705, %v2816
    %v2835 = vadd.f32 %v2706, %v2821
    %v2836 = vadd.f32 %v2707, %v2826
    %v2837 = vadd.f32 %v2708, %v2831
    %v2838 = vld [vmem:[#allocation3 + $0x5] sm:$0xff]
    %v2839 = vld [vmem:[#allocation3 + $0xd] sm:$0xff]
    %v2840 = vld [vmem:[#allocation3 + $0x15] sm:$0xff]
    %v2841 = vld [vmem:[#allocation3 + $0x1d] sm:$0xff]
    %2842 = vset.pattern.permute.xlu0 4
    %2843 = vperm.xlu0 %2842, %v2326
    %v2844 = vpop.permute.xlu0 %2843
    %2846 = vset.pattern.permute.xlu0 4
    %2847 = vperm.xlu0 %2846, %v2327
    %v2848 = vpop.permute.xlu0 %2847
    %2850 = vset.pattern.permute.xlu0 4
    %2851 = vperm.xlu0 %2850, %v2328
    %v2852 = vpop.permute.xlu0 %2851
    %2854 = vset.pattern.permute.xlu0 4
    %2855 = vperm.xlu0 %2854, %v2329
    %v2856 = vpop.permute.xlu0 %2855
    %v2858 = vmul.f32 %v2838, %v2844
    %v2859 = vmul.f32 %v2839, %v2848
    %v2860 = vmul.f32 %v2840, %v2852
    %v2861 = vmul.f32 %v2841, %v2856
    %v2862 = vld [vmem:[%s59 + $0x80] sm:$0xff]
    %v2863 = vld [vmem:[%s59 + $0x88] sm:$0xff]
    %v2864 = vld [vmem:[%s59 + $0x90] sm:$0xff]
    %v2865 = vld [vmem:[%s59 + $0x98] sm:$0xff]
    %v2867 = vsel %vm441, %v2858, 0
    %v2870 = vsel %vm441, %v2859, 0
    %v2873 = vsel %vm441, %v2860, 0
    %v2876 = vsel %vm441, %v2861, 0
    %2878 = vmatprep.subr.mxu0 0.0
    %2879 = vmatpush1.msra.mxu0 %v2862
    %2880 = vmatprep.subr.mxu0 0.0
    %2881 = vmatpush1.msra.mxu0 %v2863
    %2882 = vmatprep.subr.mxu0 0.0
    %2883 = vmatpush1.msra.mxu0 %v2864
    %2884 = vmatprep.subr.mxu0 0.0
    %2885 = vmatpush1.msra.mxu0 %v2865
    %2886 = vmatprep.subr.mxu0 0.0
    %2887 = vmatpush1.msra.mxu0 0.0
    %2888 = vmatprep.subr.mxu0 0.0
    %2889 = vmatpush1.msra.mxu0 0.0
    %2890 = vmatprep.subr.mxu0 0.0
    %2891 = vmatpush1.msra.mxu0 0.0
    %2892 = vmatprep.subr.mxu0 0.0
    %2893 = vmatpush1.msra.mxu0 0.0
    %2894 = vmatprep.subr.mxu0 0.0
    %2895 = vmatpush1.msra.mxu0 0.0
    %2896 = vmatprep.subr.mxu0 0.0
    %2897 = vmatpush1.msra.mxu0 0.0
    %2898 = vmatprep.subr.mxu0 0.0
    %2899 = vmatpush1.msra.mxu0 0.0
    %2900 = vmatprep.subr.mxu0 0.0
    %2901 = vmatpush1.msra.mxu0 0.0
    %2902 = vmatprep.subr.mxu0 0.0
    %2903 = vmatpush1.msra.mxu0 0.0
    %2904 = vmatprep.subr.mxu0 0.0
    %2905 = vmatpush1.msra.mxu0 0.0
    %2906 = vmatprep.subr.mxu0 0.0
    %2907 = vmatpush1.msra.mxu0 0.0
    %2908 = vmatprep.subr.mxu0 0.0
    %2909 = vmatpush1.msra.mxu0 0.0
    %2910 = vmatprep.subr.mxu0 0.0
    %2911 = vmatpush1.msra.mxu0 0.0
    %2912 = vmatprep.subr.mxu0 0.0
    %2913 = vmatpush1.msra.mxu0 0.0
    %2914 = vmatprep.subr.mxu0 0.0
    %2915 = vmatpush1.msra.mxu0 0.0
    %2916 = vmatprep.subr.mxu0 0.0
    %2917 = vmatpush1.msra.mxu0 0.0
    %2918 = vmatprep.subr.mxu0 0.0
    %2919 = vmatpush1.msra.mxu0 0.0
    %2920 = vmatprep.subr.mxu0 0.0
    %2921 = vmatpush1.msra.mxu0 0.0
    %2922 = vmatprep.subr.mxu0 0.0
    %2923 = vmatpush1.msra.mxu0 0.0
    %2924 = vmatprep.subr.mxu0 0.0
    %2925 = vmatpush1.msra.mxu0 0.0
    %2926 = vmatprep.subr.mxu0 0.0
    %2927 = vmatpush1.msra.mxu0 0.0
    %2928 = vmatprep.subr.mxu0 0.0
    %2929 = vmatpush1.msra.mxu0 0.0
    %2930 = vmatprep.subr.mxu0 0.0
    %2931 = vmatpush1.msra.mxu0 0.0
    %2932 = vmatprep.subr.mxu0 0.0
    %2933 = vmatpush1.msra.mxu0 0.0
    %2934 = vmatprep.subr.mxu0 0.0
    %2935 = vmatpush1.msra.mxu0 0.0
    %2936 = vmatprep.subr.mxu0 0.0
    %2937 = vmatpush1.msra.mxu0 0.0
    %2938 = vmatprep.subr.mxu0 0.0
    %2939 = vmatpush1.msra.mxu0 0.0
    %2940 = vmatprep.subr.mxu0 0.0
    %2941 = vmatpush1.msra.mxu0 0.0
    %2942 = vmatprep.mubr.f32.mxu0 0.0
    %2943 = vmatmul.mubr.f32.gmra.mrb[0].mxu0 %v2867
    %v2944 = vpop.f32.mrb[0].mxu0
    %v2945 = vadd.f32 0.0, %v2944
    %v2946 = vpop.f32.mrb[0].mxu0
    %2947 = vmatprep.mubr.f32.mxu0 0.0
    %2948 = vmatmul.mubr.f32.gmra.mrb[0].mxu0 %v2870
    %v2949 = vpop.f32.mrb[0].mxu0
    %v2950 = vadd.f32 0.0, %v2949
    %v2951 = vpop.f32.mrb[0].mxu0
    %2952 = vmatprep.mubr.f32.mxu0 0.0
    %2953 = vmatmul.mubr.f32.gmra.mrb[0].mxu0 %v2873
    %v2954 = vpop.f32.mrb[0].mxu0
    %v2955 = vadd.f32 0.0, %v2954
    %v2956 = vpop.f32.mrb[0].mxu0
    %2957 = vmatprep.mubr.f32.mxu0 0.0
    %2958 = vmatmul.mubr.f32.gmra.mrb[0].mxu0 %v2876
    %v2959 = vpop.f32.mrb[0].mxu0
    %v2960 = vadd.f32 0.0, %v2959
    %v2961 = vpop.f32.mrb[0].mxu0
    %2962 = vdwg.mxu0
    %v2963 = vadd.f32 %v2834, %v2945
    %v2964 = vadd.f32 %v2835, %v2950
    %v2965 = vadd.f32 %v2836, %v2955
    %v2966 = vadd.f32 %v2837, %v2960
    %v2967 = vld [vmem:[#allocation3 + $0x6] sm:$0xff]
    %v2968 = vld [vmem:[#allocation3 + $0xe] sm:$0xff]
    %v2969 = vld [vmem:[#allocation3 + $0x16] sm:$0xff]
    %v2970 = vld [vmem:[#allocation3 + $0x1e] sm:$0xff]
    %2971 = vset.pattern.permute.xlu0 5
    %2972 = vperm.xlu0 %2971, %v2326
    %v2973 = vpop.permute.xlu0 %2972
    %2975 = vset.pattern.permute.xlu0 5
    %2976 = vperm.xlu0 %2975, %v2327
    %v2977 = vpop.permute.xlu0 %2976
    %2979 = vset.pattern.permute.xlu0 5
    %2980 = vperm.xlu0 %2979, %v2328
    %v2981 = vpop.permute.xlu0 %2980
    %2983 = vset.pattern.permute.xlu0 5
    %2984 = vperm.xlu0 %2983, %v2329
    %v2985 = vpop.permute.xlu0 %2984
    %v2987 = vmul.f32 %v2967, %v2973
    %v2988 = vmul.f32 %v2968, %v2977
    %v2989 = vmul.f32 %v2969, %v2981
    %v2990 = vmul.f32 %v2970, %v2985
    %v2991 = vld [vmem:[%s59 + $0xa0] sm:$0xff]
    %v2992 = vld [vmem:[%s59 + $0xa8] sm:$0xff]
    %v2993 = vld [vmem:[%s59 + $0xb0] sm:$0xff]
    %v2994 = vld [vmem:[%s59 + $0xb8] sm:$0xff]
    %v2996 = vsel %vm441, %v2987, 0
    %v2999 = vsel %vm441, %v2988, 0
    %v3002 = vsel %vm441, %v2989, 0
    %v3005 = vsel %vm441, %v2990, 0
    %3007 = vmatprep.subr.mxu0 0.0
    %3008 = vmatpush1.msra.mxu0 %v2991
    %3009 = vmatprep.subr.mxu0 0.0
    %3010 = vmatpush1.msra.mxu0 %v2992
    %3011 = vmatprep.subr.mxu0 0.0
    %3012 = vmatpush1.msra.mxu0 %v2993
    %3013 = vmatprep.subr.mxu0 0.0
    %3014 = vmatpush1.msra.mxu0 %v2994
    %3015 = vmatprep.subr.mxu0 0.0
    %3016 = vmatpush1.msra.mxu0 0.0
    %3017 = vmatprep.subr.mxu0 0.0
    %3018 = vmatpush1.msra.mxu0 0.0
    %3019 = vmatprep.subr.mxu0 0.0
    %3020 = vmatpush1.msra.mxu0 0.0
    %3021 = vmatprep.subr.mxu0 0.0
    %3022 = vmatpush1.msra.mxu0 0.0
    %3023 = vmatprep.subr.mxu0 0.0
    %3024 = vmatpush1.msra.mxu0 0.0
    %3025 = vmatprep.subr.mxu0 0.0
    %3026 = vmatpush1.msra.mxu0 0.0
    %3027 = vmatprep.subr.mxu0 0.0
    %3028 = vmatpush1.msra.mxu0 0.0
    %3029 = vmatprep.subr.mxu0 0.0
    %3030 = vmatpush1.msra.mxu0 0.0
    %3031 = vmatprep.subr.mxu0 0.0
    %3032 = vmatpush1.msra.mxu0 0.0
    %3033 = vmatprep.subr.mxu0 0.0
    %3034 = vmatpush1.msra.mxu0 0.0
    %3035 = vmatprep.subr.mxu0 0.0
    %3036 = vmatpush1.msra.mxu0 0.0
    %3037 = vmatprep.subr.mxu0 0.0
    %3038 = vmatpush1.msra.mxu0 0.0
    %3039 = vmatprep.subr.mxu0 0.0
    %3040 = vmatpush1.msra.mxu0 0.0
    %3041 = vmatprep.subr.mxu0 0.0
    %3042 = vmatpush1.msra.mxu0 0.0
    %3043 = vmatprep.subr.mxu0 0.0
    %3044 = vmatpush1.msra.mxu0 0.0
    %3045 = vmatprep.subr.mxu0 0.0
    %3046 = vmatpush1.msra.mxu0 0.0
    %3047 = vmatprep.subr.mxu0 0.0
    %3048 = vmatpush1.msra.mxu0 0.0
    %3049 = vmatprep.subr.mxu0 0.0
    %3050 = vmatpush1.msra.mxu0 0.0
    %3051 = vmatprep.subr.mxu0 0.0
    %3052 = vmatpush1.msra.mxu0 0.0
    %3053 = vmatprep.subr.mxu0 0.0
    %3054 = vmatpush1.msra.mxu0 0.0
    %3055 = vmatprep.subr.mxu0 0.0
    %3056 = vmatpush1.msra.mxu0 0.0
    %3057 = vmatprep.subr.mxu0 0.0
    %3058 = vmatpush1.msra.mxu0 0.0
    %3059 = vmatprep.subr.mxu0 0.0
    %3060 = vmatpush1.msra.mxu0 0.0
    %3061 = vmatprep.subr.mxu0 0.0
    %3062 = vmatpush1.msra.mxu0 0.0
    %3063 = vmatprep.subr.mxu0 0.0
    %3064 = vmatpush1.msra.mxu0 0.0
    %3065 = vmatprep.subr.mxu0 0.0
    %3066 = vmatpush1.msra.mxu0 0.0
    %3067 = vmatprep.subr.mxu0 0.0
    %3068 = vmatpush1.msra.mxu0 0.0
    %3069 = vmatprep.subr.mxu0 0.0
    %3070 = vmatpush1.msra.mxu0 0.0
    %3071 = vmatprep.mubr.f32.mxu0 0.0
    %3072 = vmatmul.mubr.f32.gmra.mrb[0].mxu0 %v2996
    %v3073 = vpop.f32.mrb[0].mxu0
    %v3074 = vadd.f32 0.0, %v3073
    %v3075 = vpop.f32.mrb[0].mxu0
    %3076 = vmatprep.mubr.f32.mxu0 0.0
    %3077 = vmatmul.mubr.f32.gmra.mrb[0].mxu0 %v2999
    %v3078 = vpop.f32.mrb[0].mxu0
    %v3079 = vadd.f32 0.0, %v3078
    %v3080 = vpop.f32.mrb[0].mxu0
    %3081 = vmatprep.mubr.f32.mxu0 0.0
    %3082 = vmatmul.mubr.f32.gmra.mrb[0].mxu0 %v3002
    %v3083 = vpop.f32.mrb[0].mxu0
    %v3084 = vadd.f32 0.0, %v3083
    %v3085 = vpop.f32.mrb[0].mxu0
    %3086 = vmatprep.mubr.f32.mxu0 0.0
    %3087 = vmatmul.mubr.f32.gmra.mrb[0].mxu0 %v3005
    %v3088 = vpop.f32.mrb[0].mxu0
    %v3089 = vadd.f32 0.0, %v3088
    %v3090 = vpop.f32.mrb[0].mxu0
    %3091 = vdwg.mxu0
    %v3092 = vadd.f32 %v2963, %v3074
    %v3093 = vadd.f32 %v2964, %v3079
    %v3094 = vadd.f32 %v2965, %v3084
    %v3095 = vadd.f32 %v2966, %v3089
    %v3096 = vld [vmem:[#allocation3 + $0x8] sm:$0xff]
    %v3097 = vld [vmem:[#allocation3 + $0x10] sm:$0xff]
    %v3098 = vld [vmem:[#allocation3 + $0x18] sm:$0xff]
    %v3099 = vld [vmem:[#allocation3 + $0x20] sm:$0xff]
    %3100 = vset.pattern.permute.xlu0 6
    %3101 = vperm.xlu0 %3100, %v2326
    %v3102 = vpop.permute.xlu0 %3101
    %3104 = vset.pattern.permute.xlu0 6
    %3105 = vperm.xlu0 %3104, %v2327
    %v3106 = vpop.permute.xlu0 %3105
    %3108 = vset.pattern.permute.xlu0 6
    %3109 = vperm.xlu0 %3108, %v2328
    %v3110 = vpop.permute.xlu0 %3109
    %3112 = vset.pattern.permute.xlu0 6
    %3113 = vperm.xlu0 %3112, %v2329
    %v3114 = vpop.permute.xlu0 %3113
    %v3116 = vmul.f32 %v3096, %v3102
    %v3117 = vmul.f32 %v3097, %v3106
    %v3118 = vmul.f32 %v3098, %v3110
    %v3119 = vmul.f32 %v3099, %v3114
    %v3120 = vld [vmem:[%s59 + $0xc0] sm:$0xff]
    %v3121 = vld [vmem:[%s59 + $0xc8] sm:$0xff]
    %v3122 = vld [vmem:[%s59 + $0xd0] sm:$0xff]
    %v3123 = vld [vmem:[%s59 + $0xd8] sm:$0xff]
    %v3125 = vsel %vm441, %v3116, 0
    %v3128 = vsel %vm441, %v3117, 0
    %v3131 = vsel %vm441, %v3118, 0
    %v3134 = vsel %vm441, %v3119, 0
    %3136 = vmatprep.subr.mxu0 0.0
    %3137 = vmatpush1.msra.mxu0 %v3120
    %3138 = vmatprep.subr.mxu0 0.0
    %3139 = vmatpush1.msra.mxu0 %v3121
    %3140 = vmatprep.subr.mxu0 0.0
    %3141 = vmatpush1.msra.mxu0 %v3122
    %3142 = vmatprep.subr.mxu0 0.0
    %3143 = vmatpush1.msra.mxu0 %v3123
    %3144 = vmatprep.subr.mxu0 0.0
    %3145 = vmatpush1.msra.mxu0 0.0
    %3146 = vmatprep.subr.mxu0 0.0
    %3147 = vmatpush1.msra.mxu0 0.0
    %3148 = vmatprep.subr.mxu0 0.0
    %3149 = vmatpush1.msra.mxu0 0.0
    %3150 = vmatprep.subr.mxu0 0.0
    %3151 = vmatpush1.msra.mxu0 0.0
    %3152 = vmatprep.subr.mxu0 0.0
    %3153 = vmatpush1.msra.mxu0 0.0
    %3154 = vmatprep.subr.mxu0 0.0
    %3155 = vmatpush1.msra.mxu0 0.0
    %3156 = vmatprep.subr.mxu0 0.0
    %3157 = vmatpush1.msra.mxu0 0.0
    %3158 = vmatprep.subr.mxu0 0.0
    %3159 = vmatpush1.msra.mxu0 0.0
    %3160 = vmatprep.subr.mxu0 0.0
    %3161 = vmatpush1.msra.mxu0 0.0
    %3162 = vmatprep.subr.mxu0 0.0
    %3163 = vmatpush1.msra.mxu0 0.0
    %3164 = vmatprep.subr.mxu0 0.0
    %3165 = vmatpush1.msra.mxu0 0.0
    %3166 = vmatprep.subr.mxu0 0.0
    %3167 = vmatpush1.msra.mxu0 0.0
    %3168 = vmatprep.subr.mxu0 0.0
    %3169 = vmatpush1.msra.mxu0 0.0
    %3170 = vmatprep.subr.mxu0 0.0
    %3171 = vmatpush1.msra.mxu0 0.0
    %3172 = vmatprep.subr.mxu0 0.0
    %3173 = vmatpush1.msra.mxu0 0.0
    %3174 = vmatprep.subr.mxu0 0.0
    %3175 = vmatpush1.msra.mxu0 0.0
    %3176 = vmatprep.subr.mxu0 0.0
    %3177 = vmatpush1.msra.mxu0 0.0
    %3178 = vmatprep.subr.mxu0 0.0
    %3179 = vmatpush1.msra.mxu0 0.0
    %3180 = vmatprep.subr.mxu0 0.0
    %3181 = vmatpush1.msra.mxu0 0.0
    %3182 = vmatprep.subr.mxu0 0.0
    %3183 = vmatpush1.msra.mxu0 0.0
    %3184 = vmatprep.subr.mxu0 0.0
    %3185 = vmatpush1.msra.mxu0 0.0
    %3186 = vmatprep.subr.mxu0 0.0
    %3187 = vmatpush1.msra.mxu0 0.0
    %3188 = vmatprep.subr.mxu0 0.0
    %3189 = vmatpush1.msra.mxu0 0.0
    %3190 = vmatprep.subr.mxu0 0.0
    %3191 = vmatpush1.msra.mxu0 0.0
    %3192 = vmatprep.subr.mxu0 0.0
    %3193 = vmatpush1.msra.mxu0 0.0
    %3194 = vmatprep.subr.mxu0 0.0
    %3195 = vmatpush1.msra.mxu0 0.0
    %3196 = vmatprep.subr.mxu0 0.0
    %3197 = vmatpush1.msra.mxu0 0.0
    %3198 = vmatprep.subr.mxu0 0.0
    %3199 = vmatpush1.msra.mxu0 0.0
    %3200 = vmatprep.mubr.f32.mxu0 0.0
    %3201 = vmatmul.mubr.f32.gmra.mrb[0].mxu0 %v3125
    %v3202 = vpop.f32.mrb[0].mxu0
    %v3203 = vadd.f32 0.0, %v3202
    %v3204 = vpop.f32.mrb[0].mxu0
    %3205 = vmatprep.mubr.f32.mxu0 0.0
    %3206 = vmatmul.mubr.f32.gmra.mrb[0].mxu0 %v3128
    %v3207 = vpop.f32.mrb[0].mxu0
    %v3208 = vadd.f32 0.0, %v3207
    %v3209 = vpop.f32.mrb[0].mxu0
    %3210 = vmatprep.mubr.f32.mxu0 0.0
    %3211 = vmatmul.mubr.f32.gmra.mrb[0].mxu0 %v3131
    %v3212 = vpop.f32.mrb[0].mxu0
    %v3213 = vadd.f32 0.0, %v3212
    %v3214 = vpop.f32.mrb[0].mxu0
    %3215 = vmatprep.mubr.f32.mxu0 0.0
    %3216 = vmatmul.mubr.f32.gmra.mrb[0].mxu0 %v3134
    %v3217 = vpop.f32.mrb[0].mxu0
    %v3218 = vadd.f32 0.0, %v3217
    %v3219 = vpop.f32.mrb[0].mxu0
    %3220 = vdwg.mxu0
    %v3221 = vadd.f32 %v3092, %v3203
    %v3222 = vadd.f32 %v3093, %v3208
    %v3223 = vadd.f32 %v3094, %v3213
    %v3224 = vadd.f32 %v3095, %v3218
    %v3225 = vld [vmem:[#allocation3 + $0x9] sm:$0xff]
    %v3226 = vld [vmem:[#allocation3 + $0x11] sm:$0xff]
    %v3227 = vld [vmem:[#allocation3 + $0x19] sm:$0xff]
    %v3228 = vld [vmem:[#allocation3 + $0x21] sm:$0xff]
    %3229 = vset.pattern.permute.xlu0 7
    %3230 = vperm.xlu0 %3229, %v2326
    %v3231 = vpop.permute.xlu0 %3230
    %3233 = vset.pattern.permute.xlu0 7
    %3234 = vperm.xlu0 %3233, %v2327
    %v3235 = vpop.permute.xlu0 %3234
    %3237 = vset.pattern.permute.xlu0 7
    %3238 = vperm.xlu0 %3237, %v2328
    %v3239 = vpop.permute.xlu0 %3238
    %3241 = vset.pattern.permute.xlu0 7
    %3242 = vperm.xlu0 %3241, %v2329
    %v3243 = vpop.permute.xlu0 %3242
    %v3245 = vmul.f32 %v3225, %v3231
    %v3246 = vmul.f32 %v3226, %v3235
    %v3247 = vmul.f32 %v3227, %v3239
    %v3248 = vmul.f32 %v3228, %v3243
    %v3249 = vld [vmem:[%s59 + $0xe0] sm:$0xff]
    %v3250 = vld [vmem:[%s59 + $0xe8] sm:$0xff]
    %v3251 = vld [vmem:[%s59 + $0xf0] sm:$0xff]
    %v3252 = vld [vmem:[%s59 + $0xf8] sm:$0xff]
    %v3254 = vsel %vm441, %v3245, 0
    %v3257 = vsel %vm441, %v3246, 0
    %v3260 = vsel %vm441, %v3247, 0
    %v3263 = vsel %vm441, %v3248, 0
    %3265 = vmatprep.subr.mxu0 0.0
    %3266 = vmatpush1.msra.mxu0 %v3249
    %3267 = vmatprep.subr.mxu0 0.0
    %3268 = vmatpush1.msra.mxu0 %v3250
    %3269 = vmatprep.subr.mxu0 0.0
    %3270 = vmatpush1.msra.mxu0 %v3251
    %3271 = vmatprep.subr.mxu0 0.0
    %3272 = vmatpush1.msra.mxu0 %v3252
    %3273 = vmatprep.subr.mxu0 0.0
    %3274 = vmatpush1.msra.mxu0 0.0
    %3275 = vmatprep.subr.mxu0 0.0
    %3276 = vmatpush1.msra.mxu0 0.0
    %3277 = vmatprep.subr.mxu0 0.0
    %3278 = vmatpush1.msra.mxu0 0.0
    %3279 = vmatprep.subr.mxu0 0.0
    %3280 = vmatpush1.msra.mxu0 0.0
    %3281 = vmatprep.subr.mxu0 0.0
    %3282 = vmatpush1.msra.mxu0 0.0
    %3283 = vmatprep.subr.mxu0 0.0
    %3284 = vmatpush1.msra.mxu0 0.0
    %3285 = vmatprep.subr.mxu0 0.0
    %3286 = vmatpush1.msra.mxu0 0.0
    %3287 = vmatprep.subr.mxu0 0.0
    %3288 = vmatpush1.msra.mxu0 0.0
    %3289 = vmatprep.subr.mxu0 0.0
    %3290 = vmatpush1.msra.mxu0 0.0
    %3291 = vmatprep.subr.mxu0 0.0
    %3292 = vmatpush1.msra.mxu0 0.0
    %3293 = vmatprep.subr.mxu0 0.0
    %3294 = vmatpush1.msra.mxu0 0.0
    %3295 = vmatprep.subr.mxu0 0.0
    %3296 = vmatpush1.msra.mxu0 0.0
    %3297 = vmatprep.subr.mxu0 0.0
    %3298 = vmatpush1.msra.mxu0 0.0
    %3299 = vmatprep.subr.mxu0 0.0
    %3300 = vmatpush1.msra.mxu0 0.0
    %3301 = vmatprep.subr.mxu0 0.0
    %3302 = vmatpush1.msra.mxu0 0.0
    %3303 = vmatprep.subr.mxu0 0.0
    %3304 = vmatpush1.msra.mxu0 0.0
    %3305 = vmatprep.subr.mxu0 0.0
    %3306 = vmatpush1.msra.mxu0 0.0
    %3307 = vmatprep.subr.mxu0 0.0
    %3308 = vmatpush1.msra.mxu0 0.0
    %3309 = vmatprep.subr.mxu0 0.0
    %3310 = vmatpush1.msra.mxu0 0.0
    %3311 = vmatprep.subr.mxu0 0.0
    %3312 = vmatpush1.msra.mxu0 0.0
    %3313 = vmatprep.subr.mxu0 0.0
    %3314 = vmatpush1.msra.mxu0 0.0
    %3315 = vmatprep.subr.mxu0 0.0
    %3316 = vmatpush1.msra.mxu0 0.0
    %3317 = vmatprep.subr.mxu0 0.0
    %3318 = vmatpush1.msra.mxu0 0.0
    %3319 = vmatprep.subr.mxu0 0.0
    %3320 = vmatpush1.msra.mxu0 0.0
    %3321 = vmatprep.subr.mxu0 0.0
    %3322 = vmatpush1.msra.mxu0 0.0
    %3323 = vmatprep.subr.mxu0 0.0
    %3324 = vmatpush1.msra.mxu0 0.0
    %3325 = vmatprep.subr.mxu0 0.0
    %3326 = vmatpush1.msra.mxu0 0.0
    %3327 = vmatprep.subr.mxu0 0.0
    %3328 = vmatpush1.msra.mxu0 0.0
    %3329 = vmatprep.mubr.f32.mxu0 0.0
    %3330 = vmatmul.mubr.f32.gmra.mrb[0].mxu0 %v3254
    %v3331 = vpop.f32.mrb[0].mxu0
    %v3332 = vadd.f32 0.0, %v3331
    %v3333 = vpop.f32.mrb[0].mxu0
    %3334 = vmatprep.mubr.f32.mxu0 0.0
    %3335 = vmatmul.mubr.f32.gmra.mrb[0].mxu0 %v3257
    %v3336 = vpop.f32.mrb[0].mxu0
    %v3337 = vadd.f32 0.0, %v3336
    %v3338 = vpop.f32.mrb[0].mxu0
    %3339 = vmatprep.mubr.f32.mxu0 0.0
    %3340 = vmatmul.mubr.f32.gmra.mrb[0].mxu0 %v3260
    %v3341 = vpop.f32.mrb[0].mxu0
    %v3342 = vadd.f32 0.0, %v3341
    %v3343 = vpop.f32.mrb[0].mxu0
    %3344 = vmatprep.mubr.f32.mxu0 0.0
    %3345 = vmatmul.mubr.f32.gmra.mrb[0].mxu0 %v3263
    %v3346 = vpop.f32.mrb[0].mxu0
    %v3347 = vadd.f32 0.0, %v3346
    %v3348 = vpop.f32.mrb[0].mxu0
    %3349 = vdwg.mxu0
    %v3350 = vadd.f32 %v3221, %v3332
    %v3351 = vadd.f32 %v3222, %v3337
    %v3352 = vadd.f32 %v3223, %v3342
    %v3353 = vadd.f32 %v3224, %v3347
    %v3354 = vld [vmem:[#allocation3 + $0xa] sm:$0xff]
    %v3355 = vld [vmem:[#allocation3 + $0x12] sm:$0xff]
    %v3356 = vld [vmem:[#allocation3 + $0x1a] sm:$0xff]
    %v3357 = vld [vmem:[#allocation3 + $0x22] sm:$0xff]
    %3358 = vset.pattern.permute.xlu0 8
    %3359 = vperm.xlu0 %3358, %v2326
    %v3360 = vpop.permute.xlu0 %3359
    %3362 = vset.pattern.permute.xlu0 8
    %3363 = vperm.xlu0 %3362, %v2327
    %v3364 = vpop.permute.xlu0 %3363
    %3366 = vset.pattern.permute.xlu0 8
    %3367 = vperm.xlu0 %3366, %v2328
    %v3368 = vpop.permute.xlu0 %3367
    %3370 = vset.pattern.permute.xlu0 8
    %3371 = vperm.xlu0 %3370, %v2329
    %v3372 = vpop.permute.xlu0 %3371
    %v3374 = vmul.f32 %v3354, %v3360
    %v3375 = vmul.f32 %v3355, %v3364
    %v3376 = vmul.f32 %v3356, %v3368
    %v3377 = vmul.f32 %v3357, %v3372
    %v3378 = vld [vmem:[%s59 + $0x100] sm:$0xff]
    %v3379 = vld [vmem:[%s59 + $0x108] sm:$0xff]
    %v3380 = vld [vmem:[%s59 + $0x110] sm:$0xff]
    %v3381 = vld [vmem:[%s59 + $0x118] sm:$0xff]
    %v3383 = vsel %vm441, %v3374, 0
    %v3386 = vsel %vm441, %v3375, 0
    %v3389 = vsel %vm441, %v3376, 0
    %v3392 = vsel %vm441, %v3377, 0
    %3394 = vmatprep.subr.mxu0 0.0
    %3395 = vmatpush1.msra.mxu0 %v3378
    %3396 = vmatprep.subr.mxu0 0.0
    %3397 = vmatpush1.msra.mxu0 %v3379
    %3398 = vmatprep.subr.mxu0 0.0
    %3399 = vmatpush1.msra.mxu0 %v3380
    %3400 = vmatprep.subr.mxu0 0.0
    %3401 = vmatpush1.msra.mxu0 %v3381
    %3402 = vmatprep.subr.mxu0 0.0
    %3403 = vmatpush1.msra.mxu0 0.0
    %3404 = vmatprep.subr.mxu0 0.0
    %3405 = vmatpush1.msra.mxu0 0.0
    %3406 = vmatprep.subr.mxu0 0.0
    %3407 = vmatpush1.msra.mxu0 0.0
    %3408 = vmatprep.subr.mxu0 0.0
    %3409 = vmatpush1.msra.mxu0 0.0
    %3410 = vmatprep.subr.mxu0 0.0
    %3411 = vmatpush1.msra.mxu0 0.0
    %3412 = vmatprep.subr.mxu0 0.0
    %3413 = vmatpush1.msra.mxu0 0.0
    %3414 = vmatprep.subr.mxu0 0.0
    %3415 = vmatpush1.msra.mxu0 0.0
    %3416 = vmatprep.subr.mxu0 0.0
    %3417 = vmatpush1.msra.mxu0 0.0
    %3418 = vmatprep.subr.mxu0 0.0
    %3419 = vmatpush1.msra.mxu0 0.0
    %3420 = vmatprep.subr.mxu0 0.0
    %3421 = vmatpush1.msra.mxu0 0.0
    %3422 = vmatprep.subr.mxu0 0.0
    %3423 = vmatpush1.msra.mxu0 0.0
    %3424 = vmatprep.subr.mxu0 0.0
    %3425 = vmatpush1.msra.mxu0 0.0
    %3426 = vmatprep.subr.mxu0 0.0
    %3427 = vmatpush1.msra.mxu0 0.0
    %3428 = vmatprep.subr.mxu0 0.0
    %3429 = vmatpush1.msra.mxu0 0.0
    %3430 = vmatprep.subr.mxu0 0.0
    %3431 = vmatpush1.msra.mxu0 0.0
    %3432 = vmatprep.subr.mxu0 0.0
    %3433 = vmatpush1.msra.mxu0 0.0
    %3434 = vmatprep.subr.mxu0 0.0
    %3435 = vmatpush1.msra.mxu0 0.0
    %3436 = vmatprep.subr.mxu0 0.0
    %3437 = vmatpush1.msra.mxu0 0.0
    %3438 = vmatprep.subr.mxu0 0.0
    %3439 = vmatpush1.msra.mxu0 0.0
    %3440 = vmatprep.subr.mxu0 0.0
    %3441 = vmatpush1.msra.mxu0 0.0
    %3442 = vmatprep.subr.mxu0 0.0
    %3443 = vmatpush1.msra.mxu0 0.0
    %3444 = vmatprep.subr.mxu0 0.0
    %3445 = vmatpush1.msra.mxu0 0.0
    %3446 = vmatprep.subr.mxu0 0.0
    %3447 = vmatpush1.msra.mxu0 0.0
    %3448 = vmatprep.subr.mxu0 0.0
    %3449 = vmatpush1.msra.mxu0 0.0
    %3450 = vmatprep.subr.mxu0 0.0
    %3451 = vmatpush1.msra.mxu0 0.0
    %3452 = vmatprep.subr.mxu0 0.0
    %3453 = vmatpush1.msra.mxu0 0.0
    %3454 = vmatprep.subr.mxu0 0.0
    %3455 = vmatpush1.msra.mxu0 0.0
    %3456 = vmatprep.subr.mxu0 0.0
    %3457 = vmatpush1.msra.mxu0 0.0
    %3458 = vmatprep.mubr.f32.mxu0 0.0
    %3459 = vmatmul.mubr.f32.gmra.mrb[0].mxu0 %v3383
    %v3460 = vpop.f32.mrb[0].mxu0
    %v3461 = vadd.f32 0.0, %v3460
    %v3462 = vpop.f32.mrb[0].mxu0
    %3463 = vmatprep.mubr.f32.mxu0 0.0
    %3464 = vmatmul.mubr.f32.gmra.mrb[0].mxu0 %v3386
    %v3465 = vpop.f32.mrb[0].mxu0
    %v3466 = vadd.f32 0.0, %v3465
    %v3467 = vpop.f32.mrb[0].mxu0
    %3468 = vmatprep.mubr.f32.mxu0 0.0
    %3469 = vmatmul.mubr.f32.gmra.mrb[0].mxu0 %v3389
    %v3470 = vpop.f32.mrb[0].mxu0
    %v3471 = vadd.f32 0.0, %v3470
    %v3472 = vpop.f32.mrb[0].mxu0
    %3473 = vmatprep.mubr.f32.mxu0 0.0
    %3474 = vmatmul.mubr.f32.gmra.mrb[0].mxu0 %v3392
    %v3475 = vpop.f32.mrb[0].mxu0
    %v3476 = vadd.f32 0.0, %v3475
    %v3477 = vpop.f32.mrb[0].mxu0
    %3478 = vdwg.mxu0
    %v3479 = vadd.f32 %v3350, %v3461
    %v3480 = vadd.f32 %v3351, %v3466
    %v3481 = vadd.f32 %v3352, %v3471
    %v3482 = vadd.f32 %v3353, %v3476
    %v3483 = vld [vmem:[#allocation8] sm:$0x1]
    %v3485 = vlaneseq
    %v3486 = vshrl.u32 %v3485, 7
    %v3487 = vsub.s32 0, %v3486
    %v3488 = vrot.slane %v3483, %v3487
    %v3490 = vadd.f32 %v3479, %v3488
    %v3491 = vadd.f32 %v3480, %v3488
    %v3492 = vadd.f32 %v3481, %v3488
    %v3493 = vadd.f32 %v3482, %v3488
    %v3494 = vmax.f32 %v3490, 0.0
    %v3495 = vmax.f32 %v3491, 0.0
    %v3496 = vmax.f32 %v3492, 0.0
    %v3497 = vmax.f32 %v3493, 0.0
    %v3498 = vld [vmem:[%s63] sm:$0xff]
    %v3499 = vld [vmem:[%s63 + $0x8] sm:$0xff]
    %v3500 = vld [vmem:[%s63 + $0x10] sm:$0xff]
    %v3501 = vld [vmem:[%s63 + $0x18] sm:$0xff]
    %v3502 = vld [vmem:[#allocation10] sm:$0x1]
    %v3504 = vlaneseq
    %v3505 = vshrl.u32 %v3504, 7
    %v3506 = vsub.s32 0, %v3505
    %v3507 = vrot.slane %v3502, %v3506
    %v3510 = vsel %vm441, %v3494, 0
    %v3513 = vsel %vm441, %v3495, 0
    %v3516 = vsel %vm441, %v3496, 0
    %v3519 = vsel %vm441, %v3497, 0
    %3521 = vmatprep.subr.mxu0 0.0
    %3522 = vmatpush1.msra.mxu0 %v3498
    %3523 = vmatprep.subr.mxu0 0.0
    %3524 = vmatpush1.msra.mxu0 %v3499
    %3525 = vmatprep.subr.mxu0 0.0
    %3526 = vmatpush1.msra.mxu0 %v3500
    %3527 = vmatprep.subr.mxu0 0.0
    %3528 = vmatpush1.msra.mxu0 %v3501
    %3529 = vmatprep.subr.mxu0 0.0
    %3530 = vmatpush1.msra.mxu0 0.0
    %3531 = vmatprep.subr.mxu0 0.0
    %3532 = vmatpush1.msra.mxu0 0.0
    %3533 = vmatprep.subr.mxu0 0.0
    %3534 = vmatpush1.msra.mxu0 0.0
    %3535 = vmatprep.subr.mxu0 0.0
    %3536 = vmatpush1.msra.mxu0 0.0
    %3537 = vmatprep.subr.mxu0 0.0
    %3538 = vmatpush1.msra.mxu0 0.0
    %3539 = vmatprep.subr.mxu0 0.0
    %3540 = vmatpush1.msra.mxu0 0.0
    %3541 = vmatprep.subr.mxu0 0.0
    %3542 = vmatpush1.msra.mxu0 0.0
    %3543 = vmatprep.subr.mxu0 0.0
    %3544 = vmatpush1.msra.mxu0 0.0
    %3545 = vmatprep.subr.mxu0 0.0
    %3546 = vmatpush1.msra.mxu0 0.0
    %3547 = vmatprep.subr.mxu0 0.0
    %3548 = vmatpush1.msra.mxu0 0.0
    %3549 = vmatprep.subr.mxu0 0.0
    %3550 = vmatpush1.msra.mxu0 0.0
    %3551 = vmatprep.subr.mxu0 0.0
    %3552 = vmatpush1.msra.mxu0 0.0
    %3553 = vmatprep.subr.mxu0 0.0
    %3554 = vmatpush1.msra.mxu0 0.0
    %3555 = vmatprep.subr.mxu0 0.0
    %3556 = vmatpush1.msra.mxu0 0.0
    %3557 = vmatprep.subr.mxu0 0.0
    %3558 = vmatpush1.msra.mxu0 0.0
    %3559 = vmatprep.subr.mxu0 0.0
    %3560 = vmatpush1.msra.mxu0 0.0
    %3561 = vmatprep.subr.mxu0 0.0
    %3562 = vmatpush1.msra.mxu0 0.0
    %3563 = vmatprep.subr.mxu0 0.0
    %3564 = vmatpush1.msra.mxu0 0.0
    %3565 = vmatprep.subr.mxu0 0.0
    %3566 = vmatpush1.msra.mxu0 0.0
    %3567 = vmatprep.subr.mxu0 0.0
    %3568 = vmatpush1.msra.mxu0 0.0
    %3569 = vmatprep.subr.mxu0 0.0
    %3570 = vmatpush1.msra.mxu0 0.0
    %3571 = vmatprep.subr.mxu0 0.0
    %3572 = vmatpush1.msra.mxu0 0.0
    %3573 = vmatprep.subr.mxu0 0.0
    %3574 = vmatpush1.msra.mxu0 0.0
    %3575 = vmatprep.subr.mxu0 0.0
    %3576 = vmatpush1.msra.mxu0 0.0
    %3577 = vmatprep.subr.mxu0 0.0
    %3578 = vmatpush1.msra.mxu0 0.0
    %3579 = vmatprep.subr.mxu0 0.0
    %3580 = vmatpush1.msra.mxu0 0.0
    %3581 = vmatprep.subr.mxu0 0.0
    %3582 = vmatpush1.msra.mxu0 0.0
    %3583 = vmatprep.subr.mxu0 0.0
    %3584 = vmatpush1.msra.mxu0 0.0
    %3585 = vmatprep.mubr.f32.mxu0 0.0
    %3586 = vmatmul.mubr.f32.gmra.mrb[0].mxu0 %v3510
    %v3587 = vpop.f32.mrb[0].mxu0
    %v3588 = vadd.f32 %v3507, %v3587
    %v3589 = vpop.f32.mrb[0].mxu0
    %3590 = vmatprep.mubr.f32.mxu0 0.0
    %3591 = vmatmul.mubr.f32.gmra.mrb[0].mxu0 %v3513
    %v3592 = vpop.f32.mrb[0].mxu0
    %v3593 = vadd.f32 %v3507, %v3592
    %v3594 = vpop.f32.mrb[0].mxu0
    %3595 = vmatprep.mubr.f32.mxu0 0.0
    %3596 = vmatmul.mubr.f32.gmra.mrb[0].mxu0 %v3516
    %v3597 = vpop.f32.mrb[0].mxu0
    %v3598 = vadd.f32 %v3507, %v3597
    %v3599 = vpop.f32.mrb[0].mxu0
    %3600 = vmatprep.mubr.f32.mxu0 0.0
    %3601 = vmatmul.mubr.f32.gmra.mrb[0].mxu0 %v3519
    %v3602 = vpop.f32.mrb[0].mxu0
    %v3603 = vadd.f32 %v3507, %v3602
    %v3604 = vpop.f32.mrb[0].mxu0
    %3605 = vdwg.mxu0
    %v3606 = vmax.f32 %v3588, 0.0
    %v3607 = vmax.f32 %v3593, 0.0
    %v3608 = vmax.f32 %v3598, 0.0
    %v3609 = vmax.f32 %v3603, 0.0
    %v3610 = vld [vmem:[%s67] sm:$0xff]
    %v3611 = vld [vmem:[%s67 + $0x8] sm:$0xff]
    %v3612 = vld [vmem:[%s67 + $0x10] sm:$0xff]
    %v3613 = vld [vmem:[%s67 + $0x18] sm:$0xff]
    %v3614 = vld [vmem:[#allocation11] sm:$0x1]
    %v3616 = vlaneseq
    %v3617 = vshrl.u32 %v3616, 7
    %v3618 = vsub.s32 0, %v3617
    %v3619 = vrot.slane %v3614, %v3618
    %v3622 = vsel %vm441, %v3606, 0
    %v3625 = vsel %vm441, %v3607, 0
    %v3628 = vsel %vm441, %v3608, 0
    %v3631 = vsel %vm441, %v3609, 0
    %3633 = vmatprep.subr.mxu0 0.0
    %3634 = vmatpush1.msra.mxu0 %v3610
    %3635 = vmatprep.subr.mxu0 0.0
    %3636 = vmatpush1.msra.mxu0 %v3611
    %3637 = vmatprep.subr.mxu0 0.0
    %3638 = vmatpush1.msra.mxu0 %v3612
    %3639 = vmatprep.subr.mxu0 0.0
    %3640 = vmatpush1.msra.mxu0 %v3613
    %3641 = vmatprep.subr.mxu0 0.0
    %3642 = vmatpush1.msra.mxu0 0.0
    %3643 = vmatprep.subr.mxu0 0.0
    %3644 = vmatpush1.msra.mxu0 0.0
    %3645 = vmatprep.subr.mxu0 0.0
    %3646 = vmatpush1.msra.mxu0 0.0
    %3647 = vmatprep.subr.mxu0 0.0
    %3648 = vmatpush1.msra.mxu0 0.0
    %3649 = vmatprep.subr.mxu0 0.0
    %3650 = vmatpush1.msra.mxu0 0.0
    %3651 = vmatprep.subr.mxu0 0.0
    %3652 = vmatpush1.msra.mxu0 0.0
    %3653 = vmatprep.subr.mxu0 0.0
    %3654 = vmatpush1.msra.mxu0 0.0
    %3655 = vmatprep.subr.mxu0 0.0
    %3656 = vmatpush1.msra.mxu0 0.0
    %3657 = vmatprep.subr.mxu0 0.0
    %3658 = vmatpush1.msra.mxu0 0.0
    %3659 = vmatprep.subr.mxu0 0.0
    %3660 = vmatpush1.msra.mxu0 0.0
    %3661 = vmatprep.subr.mxu0 0.0
    %3662 = vmatpush1.msra.mxu0 0.0
    %3663 = vmatprep.subr.mxu0 0.0
    %3664 = vmatpush1.msra.mxu0 0.0
    %3665 = vmatprep.subr.mxu0 0.0
    %3666 = vmatpush1.msra.mxu0 0.0
    %3667 = vmatprep.subr.mxu0 0.0
    %3668 = vmatpush1.msra.mxu0 0.0
    %3669 = vmatprep.subr.mxu0 0.0
    %3670 = vmatpush1.msra.mxu0 0.0
    %3671 = vmatprep.subr.mxu0 0.0
    %3672 = vmatpush1.msra.mxu0 0.0
    %3673 = vmatprep.subr.mxu0 0.0
    %3674 = vmatpush1.msra.mxu0 0.0
    %3675 = vmatprep.subr.mxu0 0.0
    %3676 = vmatpush1.msra.mxu0 0.0
    %3677 = vmatprep.subr.mxu0 0.0
    %3678 = vmatpush1.msra.mxu0 0.0
    %3679 = vmatprep.subr.mxu0 0.0
    %3680 = vmatpush1.msra.mxu0 0.0
    %3681 = vmatprep.subr.mxu0 0.0
    %3682 = vmatpush1.msra.mxu0 0.0
    %3683 = vmatprep.subr.mxu0 0.0
    %3684 = vmatpush1.msra.mxu0 0.0
    %3685 = vmatprep.subr.mxu0 0.0
    %3686 = vmatpush1.msra.mxu0 0.0
    %3687 = vmatprep.subr.mxu0 0.0
    %3688 = vmatpush1.msra.mxu0 0.0
    %3689 = vmatprep.subr.mxu0 0.0
    %3690 = vmatpush1.msra.mxu0 0.0
    %3691 = vmatprep.subr.mxu0 0.0
    %3692 = vmatpush1.msra.mxu0 0.0
    %3693 = vmatprep.subr.mxu0 0.0
    %3694 = vmatpush1.msra.mxu0 0.0
    %3695 = vmatprep.subr.mxu0 0.0
    %3696 = vmatpush1.msra.mxu0 0.0
    %3697 = vmatprep.mubr.f32.mxu0 0.0
    %3698 = vmatmul.mubr.f32.gmra.mrb[0].mxu0 %v3622
    %v3699 = vpop.f32.mrb[0].mxu0
    %v3700 = vadd.f32 %v3619, %v3699
    %v3701 = vpop.f32.mrb[0].mxu0
    %3702 = vmatprep.mubr.f32.mxu0 0.0
    %3703 = vmatmul.mubr.f32.gmra.mrb[0].mxu0 %v3625
    %v3704 = vpop.f32.mrb[0].mxu0
    %v3705 = vadd.f32 %v3619, %v3704
    %v3706 = vpop.f32.mrb[0].mxu0
    %3707 = vmatprep.mubr.f32.mxu0 0.0
    %3708 = vmatmul.mubr.f32.gmra.mrb[0].mxu0 %v3628
    %v3709 = vpop.f32.mrb[0].mxu0
    %v3710 = vadd.f32 %v3619, %v3709
    %v3711 = vpop.f32.mrb[0].mxu0
    %3712 = vmatprep.mubr.f32.mxu0 0.0
    %3713 = vmatmul.mubr.f32.gmra.mrb[0].mxu0 %v3631
    %v3714 = vpop.f32.mrb[0].mxu0
    %v3715 = vadd.f32 %v3619, %v3714
    %v3716 = vpop.f32.mrb[0].mxu0
    %3717 = vdwg.mxu0
    %v3718 = vmax.f32 %v3700, 0.0
    %v3719 = vmax.f32 %v3705, 0.0
    %v3720 = vmax.f32 %v3710, 0.0
    %v3721 = vmax.f32 %v3715, 0.0
    %v3722 = vld [vmem:[%s71] sm:$0xff]
    %v3723 = vld [vmem:[%s71 + $0x8] sm:$0xff]
    %v3724 = vld [vmem:[%s71 + $0x10] sm:$0xff]
    %v3725 = vld [vmem:[%s71 + $0x18] sm:$0xff]
    %v3726 = vld [vmem:[#allocation13] sm:$0x1]
    %v3728 = vlaneseq
    %v3729 = vshrl.u32 %v3728, 7
    %v3730 = vsub.s32 0, %v3729
    %v3731 = vrot.slane %v3726, %v3730
    %v3734 = vsel %vm441, %v3718, 0
    %v3737 = vsel %vm441, %v3719, 0
    %v3740 = vsel %vm441, %v3720, 0
    %v3743 = vsel %vm441, %v3721, 0
    %3745 = vmatprep.subr.mxu0 0.0
    %3746 = vmatpush1.msra.mxu0 %v3722
    %3747 = vmatprep.subr.mxu0 0.0
    %3748 = vmatpush1.msra.mxu0 %v3723
    %3749 = vmatprep.subr.mxu0 0.0
    %3750 = vmatpush1.msra.mxu0 %v3724
    %3751 = vmatprep.subr.mxu0 0.0
    %3752 = vmatpush1.msra.mxu0 %v3725
    %3753 = vmatprep.subr.mxu0 0.0
    %3754 = vmatpush1.msra.mxu0 0.0
    %3755 = vmatprep.subr.mxu0 0.0
    %3756 = vmatpush1.msra.mxu0 0.0
    %3757 = vmatprep.subr.mxu0 0.0
    %3758 = vmatpush1.msra.mxu0 0.0
    %3759 = vmatprep.subr.mxu0 0.0
    %3760 = vmatpush1.msra.mxu0 0.0
    %3761 = vmatprep.subr.mxu0 0.0
    %3762 = vmatpush1.msra.mxu0 0.0
    %3763 = vmatprep.subr.mxu0 0.0
    %3764 = vmatpush1.msra.mxu0 0.0
    %3765 = vmatprep.subr.mxu0 0.0
    %3766 = vmatpush1.msra.mxu0 0.0
    %3767 = vmatprep.subr.mxu0 0.0
    %3768 = vmatpush1.msra.mxu0 0.0
    %3769 = vmatprep.subr.mxu0 0.0
    %3770 = vmatpush1.msra.mxu0 0.0
    %3771 = vmatprep.subr.mxu0 0.0
    %3772 = vmatpush1.msra.mxu0 0.0
    %3773 = vmatprep.subr.mxu0 0.0
    %3774 = vmatpush1.msra.mxu0 0.0
    %3775 = vmatprep.subr.mxu0 0.0
    %3776 = vmatpush1.msra.mxu0 0.0
    %3777 = vmatprep.subr.mxu0 0.0
    %3778 = vmatpush1.msra.mxu0 0.0
    %3779 = vmatprep.subr.mxu0 0.0
    %3780 = vmatpush1.msra.mxu0 0.0
    %3781 = vmatprep.subr.mxu0 0.0
    %3782 = vmatpush1.msra.mxu0 0.0
    %3783 = vmatprep.subr.mxu0 0.0
    %3784 = vmatpush1.msra.mxu0 0.0
    %3785 = vmatprep.subr.mxu0 0.0
    %3786 = vmatpush1.msra.mxu0 0.0
    %3787 = vmatprep.subr.mxu0 0.0
    %3788 = vmatpush1.msra.mxu0 0.0
    %3789 = vmatprep.subr.mxu0 0.0
    %3790 = vmatpush1.msra.mxu0 0.0
    %3791 = vmatprep.subr.mxu0 0.0
    %3792 = vmatpush1.msra.mxu0 0.0
    %3793 = vmatprep.subr.mxu0 0.0
    %3794 = vmatpush1.msra.mxu0 0.0
    %3795 = vmatprep.subr.mxu0 0.0
    %3796 = vmatpush1.msra.mxu0 0.0
    %3797 = vmatprep.subr.mxu0 0.0
    %3798 = vmatpush1.msra.mxu0 0.0
    %3799 = vmatprep.subr.mxu0 0.0
    %3800 = vmatpush1.msra.mxu0 0.0
    %3801 = vmatprep.subr.mxu0 0.0
    %3802 = vmatpush1.msra.mxu0 0.0
    %3803 = vmatprep.subr.mxu0 0.0
    %3804 = vmatpush1.msra.mxu0 0.0
    %3805 = vmatprep.subr.mxu0 0.0
    %3806 = vmatpush1.msra.mxu0 0.0
    %3807 = vmatprep.subr.mxu0 0.0
    %3808 = vmatpush1.msra.mxu0 0.0
    %3809 = vmatprep.mubr.f32.mxu0 0.0
    %3810 = vmatmul.mubr.f32.gmra.mrb[0].mxu0 %v3734
    %v3811 = vpop.f32.mrb[0].mxu0
    %v3812 = vadd.f32 %v3731, %v3811
    %v3813 = vpop.f32.mrb[0].mxu0
    %3814 = vmatprep.mubr.f32.mxu0 0.0
    %3815 = vmatmul.mubr.f32.gmra.mrb[0].mxu0 %v3737
    %v3816 = vpop.f32.mrb[0].mxu0
    %v3817 = vadd.f32 %v3731, %v3816
    %v3818 = vpop.f32.mrb[0].mxu0
    %3819 = vmatprep.mubr.f32.mxu0 0.0
    %3820 = vmatmul.mubr.f32.gmra.mrb[0].mxu0 %v3740
    %v3821 = vpop.f32.mrb[0].mxu0
    %v3822 = vadd.f32 %v3731, %v3821
    %v3823 = vpop.f32.mrb[0].mxu0
    %3824 = vmatprep.mubr.f32.mxu0 0.0
    %3825 = vmatmul.mubr.f32.gmra.mrb[0].mxu0 %v3743
    %v3826 = vpop.f32.mrb[0].mxu0
    %v3827 = vadd.f32 %v3731, %v3826
    %v3828 = vpop.f32.mrb[0].mxu0
    %3829 = vdwg.mxu0
    %3830 = vst [vmem:[#allocation23] sm:$0xff] %v3812
    %3831 = vst [vmem:[#allocation23 + $0x8] sm:$0xff] %v3817
    %3832 = vst [vmem:[#allocation23 + $0x10] sm:$0xff] %v3822
    %3833 = vst [vmem:[#allocation23 + $0x18] sm:$0xff] %v3827
    %v3834 = vld [vmem:[%s75] sm:$0xff]
    %v3835 = vld [vmem:[%s75 + $0x8] sm:$0xff]
    %v3836 = vld [vmem:[%s75 + $0x10] sm:$0xff]
    %v3837 = vld [vmem:[%s75 + $0x18] sm:$0xff]
    %v3838 = vld [vmem:[%s75 + $0x20] sm:$0xff]
    %v3839 = vld [vmem:[%s75 + $0x28] sm:$0xff]
    %v3840 = vld [vmem:[%s75 + $0x30] sm:$0xff]
    %v3841 = vld [vmem:[%s75 + $0x38] sm:$0xff]
    %v3842 = vld [vmem:[%s75 + $0x40] sm:$0xff]
    %v3843 = vld [vmem:[%s75 + $0x48] sm:$0xff]
    %v3844 = vld [vmem:[%s75 + $0x50] sm:$0xff]
    %v3845 = vld [vmem:[%s75 + $0x58] sm:$0xff]
    %v3846 = vld [vmem:[%s75 + $0x60] sm:$0xff]
    %v3847 = vld [vmem:[%s75 + $0x68] sm:$0xff]
    %v3848 = vld [vmem:[%s75 + $0x70] sm:$0xff]
    %v3849 = vld [vmem:[%s75 + $0x78] sm:$0xff]
    %v3850 = vld [vmem:[%s83] sm:$0xff]
    %v3851 = vld [vmem:[%s83 + $0x8] sm:$0xff]
    %v3852 = vld [vmem:[#allocation14] sm:$0x1]
    %v3854 = vlaneseq
    %v3855 = vshrl.u32 %v3854, 7
    %v3856 = vsub.s32 0, %v3855
    %v3857 = vrot.slane %v3852, %v3856
    %vm3859 = vcmask 130048
    %v3861 = vsel %vm3859, %v3834, 0
    %v3864 = vsel %vm3859, %v3835, 0
    %v3867 = vsel %vm3859, %v3836, 0
    %v3870 = vsel %vm3859, %v3837, 0
    %v3873 = vsel %vm3859, %v3838, 0
    %v3876 = vsel %vm3859, %v3839, 0
    %v3879 = vsel %vm3859, %v3840, 0
    %v3882 = vsel %vm3859, %v3841, 0
    %v3885 = vsel %vm3859, %v3842, 0
    %v3888 = vsel %vm3859, %v3843, 0
    %v3891 = vsel %vm3859, %v3844, 0
    %v3894 = vsel %vm3859, %v3845, 0
    %v3897 = vsel %vm3859, %v3846, 0
    %v3900 = vsel %vm3859, %v3847, 0
    %v3903 = vsel %vm3859, %v3848, 0
    %v3906 = vsel %vm3859, %v3849, 0
    %3908 = vmatprep.subr.mxu0 0.0
    %3909 = vmatpush1.msra.mxu0 %v3850
    %3910 = vmatprep.subr.mxu0 0.0
    %3911 = vmatpush1.msra.mxu0 %v3851
    %3912 = vmatprep.subr.mxu0 0.0
    %3913 = vmatpush1.msra.mxu0 0.0
    %3914 = vmatprep.subr.mxu0 0.0
    %3915 = vmatpush1.msra.mxu0 0.0
    %3916 = vmatprep.subr.mxu0 0.0
    %3917 = vmatpush1.msra.mxu0 0.0
    %3918 = vmatprep.subr.mxu0 0.0
    %3919 = vmatpush1.msra.mxu0 0.0
    %3920 = vmatprep.subr.mxu0 0.0
    %3921 = vmatpush1.msra.mxu0 0.0
    %3922 = vmatprep.subr.mxu0 0.0
    %3923 = vmatpush1.msra.mxu0 0.0
    %3924 = vmatprep.subr.mxu0 0.0
    %3925 = vmatpush1.msra.mxu0 0.0
    %3926 = vmatprep.subr.mxu0 0.0
    %3927 = vmatpush1.msra.mxu0 0.0
    %3928 = vmatprep.subr.mxu0 0.0
    %3929 = vmatpush1.msra.mxu0 0.0
    %3930 = vmatprep.subr.mxu0 0.0
    %3931 = vmatpush1.msra.mxu0 0.0
    %3932 = vmatprep.subr.mxu0 0.0
    %3933 = vmatpush1.msra.mxu0 0.0
    %3934 = vmatprep.subr.mxu0 0.0
    %3935 = vmatpush1.msra.mxu0 0.0
    %3936 = vmatprep.subr.mxu0 0.0
    %3937 = vmatpush1.msra.mxu0 0.0
    %3938 = vmatprep.subr.mxu0 0.0
    %3939 = vmatpush1.msra.mxu0 0.0
    %3940 = vmatprep.subr.mxu0 0.0
    %3941 = vmatpush1.msra.mxu0 0.0
    %3942 = vmatprep.subr.mxu0 0.0
    %3943 = vmatpush1.msra.mxu0 0.0
    %3944 = vmatprep.subr.mxu0 0.0
    %3945 = vmatpush1.msra.mxu0 0.0
    %3946 = vmatprep.subr.mxu0 0.0
    %3947 = vmatpush1.msra.mxu0 0.0
    %3948 = vmatprep.subr.mxu0 0.0
    %3949 = vmatpush1.msra.mxu0 0.0
    %3950 = vmatprep.subr.mxu0 0.0
    %3951 = vmatpush1.msra.mxu0 0.0
    %3952 = vmatprep.subr.mxu0 0.0
    %3953 = vmatpush1.msra.mxu0 0.0
    %3954 = vmatprep.subr.mxu0 0.0
    %3955 = vmatpush1.msra.mxu0 0.0
    %3956 = vmatprep.subr.mxu0 0.0
    %3957 = vmatpush1.msra.mxu0 0.0
    %3958 = vmatprep.subr.mxu0 0.0
    %3959 = vmatpush1.msra.mxu0 0.0
    %3960 = vmatprep.subr.mxu0 0.0
    %3961 = vmatpush1.msra.mxu0 0.0
    %3962 = vmatprep.subr.mxu0 0.0
    %3963 = vmatpush1.msra.mxu0 0.0
    %3964 = vmatprep.subr.mxu0 0.0
    %3965 = vmatpush1.msra.mxu0 0.0
    %3966 = vmatprep.subr.mxu0 0.0
    %3967 = vmatpush1.msra.mxu0 0.0
    %3968 = vmatprep.subr.mxu0 0.0
    %3969 = vmatpush1.msra.mxu0 0.0
    %3970 = vmatprep.subr.mxu0 0.0
    %3971 = vmatpush1.msra.mxu0 0.0
    %3972 = vmatprep.mubr.f32.mxu0 0.0
    %3973 = vmatmul.mubr.f32.gmra.mrb[0].mxu0 %v3861
    %v3974 = vpop.f32.mrb[0].mxu0
    %v3975 = vadd.f32 %v3857, %v3974
    %v3976 = vpop.f32.mrb[0].mxu0
    %3977 = vmatprep.mubr.f32.mxu0 0.0
    %3978 = vmatmul.mubr.f32.gmra.mrb[0].mxu0 %v3864
    %v3979 = vpop.f32.mrb[0].mxu0
    %v3980 = vadd.f32 %v3857, %v3979
    %v3981 = vpop.f32.mrb[0].mxu0
    %3982 = vmatprep.mubr.f32.mxu0 0.0
    %3983 = vmatmul.mubr.f32.gmra.mrb[0].mxu0 %v3867
    %v3984 = vpop.f32.mrb[0].mxu0
    %v3985 = vadd.f32 %v3857, %v3984
    %v3986 = vpop.f32.mrb[0].mxu0
    %3987 = vmatprep.mubr.f32.mxu0 0.0
    %3988 = vmatmul.mubr.f32.gmra.mrb[0].mxu0 %v3870
    %v3989 = vpop.f32.mrb[0].mxu0
    %v3990 = vadd.f32 %v3857, %v3989
    %v3991 = vpop.f32.mrb[0].mxu0
    %3992 = vmatprep.mubr.f32.mxu0 0.0
    %3993 = vmatmul.mubr.f32.gmra.mrb[0].mxu0 %v3873
    %v3994 = vpop.f32.mrb[0].mxu0
    %v3995 = vadd.f32 %v3857, %v3994
    %v3996 = vpop.f32.mrb[0].mxu0
    %3997 = vmatprep.mubr.f32.mxu0 0.0
    %3998 = vmatmul.mubr.f32.gmra.mrb[0].mxu0 %v3876
    %v3999 = vpop.f32.mrb[0].mxu0
    %v4000 = vadd.f32 %v3857, %v3999
    %v4001 = vpop.f32.mrb[0].mxu0
    %4002 = vmatprep.mubr.f32.mxu0 0.0
    %4003 = vmatmul.mubr.f32.gmra.mrb[0].mxu0 %v3879
    %v4004 = vpop.f32.mrb[0].mxu0
    %v4005 = vadd.f32 %v3857, %v4004
    %v4006 = vpop.f32.mrb[0].mxu0
    %4007 = vmatprep.mubr.f32.mxu0 0.0
    %4008 = vmatmul.mubr.f32.gmra.mrb[0].mxu0 %v3882
    %v4009 = vpop.f32.mrb[0].mxu0
    %v4010 = vadd.f32 %v3857, %v4009
    %v4011 = vpop.f32.mrb[0].mxu0
    %4012 = vmatprep.mubr.f32.mxu0 0.0
    %4013 = vmatmul.mubr.f32.gmra.mrb[0].mxu0 %v3885
    %v4014 = vpop.f32.mrb[0].mxu0
    %v4015 = vadd.f32 %v3857, %v4014
    %v4016 = vpop.f32.mrb[0].mxu0
    %4017 = vmatprep.mubr.f32.mxu0 0.0
    %4018 = vmatmul.mubr.f32.gmra.mrb[0].mxu0 %v3888
    %v4019 = vpop.f32.mrb[0].mxu0
    %v4020 = vadd.f32 %v3857, %v4019
    %v4021 = vpop.f32.mrb[0].mxu0
    %4022 = vmatprep.mubr.f32.mxu0 0.0
    %4023 = vmatmul.mubr.f32.gmra.mrb[0].mxu0 %v3891
    %v4024 = vpop.f32.mrb[0].mxu0
    %v4025 = vadd.f32 %v3857, %v4024
    %v4026 = vpop.f32.mrb[0].mxu0
    %4027 = vmatprep.mubr.f32.mxu0 0.0
    %4028 = vmatmul.mubr.f32.gmra.mrb[0].mxu0 %v3894
    %v4029 = vpop.f32.mrb[0].mxu0
    %v4030 = vadd.f32 %v3857, %v4029
    %v4031 = vpop.f32.mrb[0].mxu0
    %4032 = vmatprep.mubr.f32.mxu0 0.0
    %4033 = vmatmul.mubr.f32.gmra.mrb[0].mxu0 %v3897
    %v4034 = vpop.f32.mrb[0].mxu0
    %v4035 = vadd.f32 %v3857, %v4034
    %v4036 = vpop.f32.mrb[0].mxu0
    %4037 = vmatprep.mubr.f32.mxu0 0.0
    %4038 = vmatmul.mubr.f32.gmra.mrb[0].mxu0 %v3900
    %v4039 = vpop.f32.mrb[0].mxu0
    %v4040 = vadd.f32 %v3857, %v4039
    %v4041 = vpop.f32.mrb[0].mxu0
    %4042 = vmatprep.mubr.f32.mxu0 0.0
    %4043 = vmatmul.mubr.f32.gmra.mrb[0].mxu0 %v3903
    %v4044 = vpop.f32.mrb[0].mxu0
    %v4045 = vadd.f32 %v3857, %v4044
    %v4046 = vpop.f32.mrb[0].mxu0
    %4047 = vmatprep.mubr.f32.mxu0 0.0
    %4048 = vmatmul.mubr.f32.gmra.mrb[0].mxu0 %v3906
    %v4049 = vpop.f32.mrb[0].mxu0
    %v4050 = vadd.f32 %v3857, %v4049
    %v4051 = vpop.f32.mrb[0].mxu0
    %4052 = vdwg.mxu0
    %v4053 = vmax.f32 %v3975, 0.0
    %v4054 = vmax.f32 %v3980, 0.0
    %v4055 = vmax.f32 %v3985, 0.0
    %v4056 = vmax.f32 %v3990, 0.0
    %v4057 = vmax.f32 %v3995, 0.0
    %v4058 = vmax.f32 %v4000, 0.0
    %v4059 = vmax.f32 %v4005, 0.0
    %v4060 = vmax.f32 %v4010, 0.0
    %v4061 = vmax.f32 %v4015, 0.0
    %v4062 = vmax.f32 %v4020, 0.0
    %v4063 = vmax.f32 %v4025, 0.0
    %v4064 = vmax.f32 %v4030, 0.0
    %v4065 = vmax.f32 %v4035, 0.0
    %v4066 = vmax.f32 %v4040, 0.0
    %v4067 = vmax.f32 %v4045, 0.0
    %v4068 = vmax.f32 %v4050, 0.0
    %v4069 = vmul.f32 %v4053, %v4053
    %v4070 = vmul.f32 %v4054, %v4054
    %v4071 = vmul.f32 %v4055, %v4055
    %v4072 = vmul.f32 %v4056, %v4056
    %v4073 = vmul.f32 %v4057, %v4057
    %v4074 = vmul.f32 %v4058, %v4058
    %v4075 = vmul.f32 %v4059, %v4059
    %v4076 = vmul.f32 %v4060, %v4060
    %v4077 = vmul.f32 %v4061, %v4061
    %v4078 = vmul.f32 %v4062, %v4062
    %v4079 = vmul.f32 %v4063, %v4063
    %v4080 = vmul.f32 %v4064, %v4064
    %v4081 = vmul.f32 %v4065, %v4065
    %v4082 = vmul.f32 %v4066, %v4066
    %v4083 = vmul.f32 %v4067, %v4067
    %v4084 = vmul.f32 %v4068, %v4068
    %v4085 = vsel %vm441, %v4069, 0.0
    %4086 = vadd.xlane.f32.xlu0 %v4085
    %v4087 = vpop.xlane.xlu0 %4086
    %v4088 = vsel %vm441, %v4070, 0.0
    %4089 = vadd.xlane.f32.xlu0 %v4088
    %v4090 = vpop.xlane.xlu0 %4089
    %v4091 = vsel %vm441, %v4071, 0.0
    %4092 = vadd.xlane.f32.xlu0 %v4091
    %v4093 = vpop.xlane.xlu0 %4092
    %v4094 = vsel %vm441, %v4072, 0.0
    %4095 = vadd.xlane.f32.xlu0 %v4094
    %v4096 = vpop.xlane.xlu0 %4095
    %v4097 = vsel %vm441, %v4073, 0.0
    %4098 = vadd.xlane.f32.xlu0 %v4097
    %v4099 = vpop.xlane.xlu0 %4098
    %v4100 = vsel %vm441, %v4074, 0.0
    %4101 = vadd.xlane.f32.xlu0 %v4100
    %v4102 = vpop.xlane.xlu0 %4101
    %v4103 = vsel %vm441, %v4075, 0.0
    %4104 = vadd.xlane.f32.xlu0 %v4103
    %v4105 = vpop.xlane.xlu0 %4104
    %v4106 = vsel %vm441, %v4076, 0.0
    %4107 = vadd.xlane.f32.xlu0 %v4106
    %v4108 = vpop.xlane.xlu0 %4107
    %v4109 = vsel %vm441, %v4077, 0.0
    %4110 = vadd.xlane.f32.xlu0 %v4109
    %v4111 = vpop.xlane.xlu0 %4110
    %v4112 = vsel %vm441, %v4078, 0.0
    %4113 = vadd.xlane.f32.xlu0 %v4112
    %v4114 = vpop.xlane.xlu0 %4113
    %v4115 = vsel %vm441, %v4079, 0.0
    %4116 = vadd.xlane.f32.xlu0 %v4115
    %v4117 = vpop.xlane.xlu0 %4116
    %v4118 = vsel %vm441, %v4080, 0.0
    %4119 = vadd.xlane.f32.xlu0 %v4118
    %v4120 = vpop.xlane.xlu0 %4119
    %v4121 = vsel %vm441, %v4081, 0.0
    %4122 = vadd.xlane.f32.xlu0 %v4121
    %v4123 = vpop.xlane.xlu0 %4122
    %v4124 = vsel %vm441, %v4082, 0.0
    %4125 = vadd.xlane.f32.xlu0 %v4124
    %v4126 = vpop.xlane.xlu0 %4125
    %v4127 = vsel %vm441, %v4083, 0.0
    %4128 = vadd.xlane.f32.xlu0 %v4127
    %v4129 = vpop.xlane.xlu0 %4128
    %v4130 = vsel %vm441, %v4084, 0.0
    %4131 = vadd.xlane.f32.xlu0 %v4130
    %v4132 = vpop.xlane.xlu0 %4131
    %v4133 = vmax.f32 %v4087, 1e-24
    %v4134 = vmax.f32 %v4090, 1e-24
    %v4135 = vmax.f32 %v4093, 1e-24
    %v4136 = vmax.f32 %v4096, 1e-24
    %v4137 = vmax.f32 %v4099, 1e-24
    %v4138 = vmax.f32 %v4102, 1e-24
    %v4139 = vmax.f32 %v4105, 1e-24
    %v4140 = vmax.f32 %v4108, 1e-24
    %v4141 = vmax.f32 %v4111, 1e-24
    %v4142 = vmax.f32 %v4114, 1e-24
    %v4143 = vmax.f32 %v4117, 1e-24
    %v4144 = vmax.f32 %v4120, 1e-24
    %v4145 = vmax.f32 %v4123, 1e-24
    %v4146 = vmax.f32 %v4126, 1e-24
    %v4147 = vmax.f32 %v4129, 1e-24
    %v4148 = vmax.f32 %v4132, 1e-24
    %v4149 = vrsqrt.pop %v4133
    %v4150 = vrsqrt.pop %v4134
    %v4151 = vrsqrt.pop %v4135
    %v4152 = vrsqrt.pop %v4136
    %v4153 = vrsqrt.pop %v4137
    %v4154 = vrsqrt.pop %v4138
    %v4155 = vrsqrt.pop %v4139
    %v4156 = vrsqrt.pop %v4140
    %v4157 = vrsqrt.pop %v4141
    %v4158 = vrsqrt.pop %v4142
    %v4159 = vrsqrt.pop %v4143
    %v4160 = vrsqrt.pop %v4144
    %v4161 = vrsqrt.pop %v4145
    %v4162 = vrsqrt.pop %v4146
    %v4163 = vrsqrt.pop %v4147
    %v4164 = vrsqrt.pop %v4148
    %v4165 = vmul.f32 %v4053, %v4149
    %v4166 = vmul.f32 %v4054, %v4150
    %v4167 = vmul.f32 %v4055, %v4151
    %v4168 = vmul.f32 %v4056, %v4152
    %v4169 = vmul.f32 %v4057, %v4153
    %v4170 = vmul.f32 %v4058, %v4154
    %v4171 = vmul.f32 %v4059, %v4155
    %v4172 = vmul.f32 %v4060, %v4156
    %v4173 = vmul.f32 %v4061, %v4157
    %v4174 = vmul.f32 %v4062, %v4158
    %v4175 = vmul.f32 %v4063, %v4159
    %v4176 = vmul.f32 %v4064, %v4160
    %v4177 = vmul.f32 %v4065, %v4161
    %v4178 = vmul.f32 %v4066, %v4162
    %v4179 = vmul.f32 %v4067, %v4163
    %v4180 = vmul.f32 %v4068, %v4164
    %v4181 = vld [vmem:[%s89] sm:$0xff]
    %v4182 = vld [vmem:[%s89 + $0x8] sm:$0xff]
    %v4183 = vld [vmem:[%s89 + $0x10] sm:$0xff]
    %v4184 = vld [vmem:[%s89 + $0x18] sm:$0xff]
    %4185 = vmatprep.subr.mxu0 0.0
    %4186 = vmatpush1.msra.mxu0 %v4181
    %4187 = vmatprep.subr.mxu0 0.0
    %4188 = vmatpush1.msra.mxu0 %v4182
    %4189 = vmatprep.subr.mxu0 0.0
    %4190 = vmatpush1.msra.mxu0 %v4183
    %4191 = vmatprep.subr.mxu0 0.0
    %4192 = vmatpush1.msra.mxu0 %v4184
    %4193 = vmatprep.subr.mxu0 0.0
    %4194 = vmatpush1.msra.mxu0 0.0
    %4195 = vmatprep.subr.mxu0 0.0
    %4196 = vmatpush1.msra.mxu0 0.0
    %4197 = vmatprep.subr.mxu0 0.0
    %4198 = vmatpush1.msra.mxu0 0.0
    %4199 = vmatprep.subr.mxu0 0.0
    %4200 = vmatpush1.msra.mxu0 0.0
    %4201 = vmatprep.subr.mxu0 0.0
    %4202 = vmatpush1.msra.mxu0 0.0
    %4203 = vmatprep.subr.mxu0 0.0
    %4204 = vmatpush1.msra.mxu0 0.0
    %4205 = vmatprep.subr.mxu0 0.0
    %4206 = vmatpush1.msra.mxu0 0.0
    %4207 = vmatprep.subr.mxu0 0.0
    %4208 = vmatpush1.msra.mxu0 0.0
    %4209 = vmatprep.subr.mxu0 0.0
    %4210 = vmatpush1.msra.mxu0 0.0
    %4211 = vmatprep.subr.mxu0 0.0
    %4212 = vmatpush1.msra.mxu0 0.0
    %4213 = vmatprep.subr.mxu0 0.0
    %4214 = vmatpush1.msra.mxu0 0.0
    %4215 = vmatprep.subr.mxu0 0.0
    %4216 = vmatpush1.msra.mxu0 0.0
    %4217 = vmatprep.subr.mxu0 0.0
    %4218 = vmatpush1.msra.mxu0 0.0
    %4219 = vmatprep.subr.mxu0 0.0
    %4220 = vmatpush1.msra.mxu0 0.0
    %4221 = vmatprep.subr.mxu0 0.0
    %4222 = vmatpush1.msra.mxu0 0.0
    %4223 = vmatprep.subr.mxu0 0.0
    %4224 = vmatpush1.msra.mxu0 0.0
    %4225 = vmatprep.subr.mxu0 0.0
    %4226 = vmatpush1.msra.mxu0 0.0
    %4227 = vmatprep.subr.mxu0 0.0
    %4228 = vmatpush1.msra.mxu0 0.0
    %4229 = vmatprep.subr.mxu0 0.0
    %4230 = vmatpush1.msra.mxu0 0.0
    %4231 = vmatprep.subr.mxu0 0.0
    %4232 = vmatpush1.msra.mxu0 0.0
    %4233 = vmatprep.subr.mxu0 0.0
    %4234 = vmatpush1.msra.mxu0 0.0
    %4235 = vmatprep.subr.mxu0 0.0
    %4236 = vmatpush1.msra.mxu0 0.0
    %4237 = vmatprep.subr.mxu0 0.0
    %4238 = vmatpush1.msra.mxu0 0.0
    %4239 = vmatprep.subr.mxu0 0.0
    %4240 = vmatpush1.msra.mxu0 0.0
    %4241 = vmatprep.subr.mxu0 0.0
    %4242 = vmatpush1.msra.mxu0 0.0
    %4243 = vmatprep.subr.mxu0 0.0
    %4244 = vmatpush1.msra.mxu0 0.0
    %4245 = vmatprep.subr.mxu0 0.0
    %4246 = vmatpush1.msra.mxu0 0.0
    %4247 = vmatprep.subr.mxu0 0.0
    %4248 = vmatpush1.msra.mxu0 0.0
    %4249 = vmatprep.mubr.f32.mxu0 0.0
    %4250 = vmatmul.mubr.f32.gmra.mrb[0].mxu0 %v627
    %v4251 = vpop.f32.mrb[0].mxu0
    %v4252 = vadd.f32 0.0, %v4251
    %v4253 = vpop.f32.mrb[0].mxu0
    %4254 = vdwg.mxu0
    %v4255 = vld [vmem:[%s87] sm:$0xff]
    %v4256 = vld [vmem:[%s87 + $0x8] sm:$0xff]
    %v4257 = vld [vmem:[%s87 + $0x10] sm:$0xff]
    %v4258 = vld [vmem:[%s87 + $0x18] sm:$0xff]
    %v4259 = vld [vmem:[%s77] sm:$0xff]
    %v4260 = vld [vmem:[%s77 + $0x8] sm:$0xff]
    %v4261 = vld [vmem:[%s77 + $0x10] sm:$0xff]
    %v4262 = vld [vmem:[%s77 + $0x18] sm:$0xff]
    %v4263 = vld [vmem:[%s77 + $0x20] sm:$0xff]
    %v4264 = vld [vmem:[%s77 + $0x28] sm:$0xff]
    %v4265 = vld [vmem:[%s77 + $0x30] sm:$0xff]
    %v4266 = vld [vmem:[%s77 + $0x38] sm:$0xff]
    %v4267 = vld [vmem:[%s77 + $0x40] sm:$0xff]
    %v4268 = vld [vmem:[%s77 + $0x48] sm:$0xff]
    %v4269 = vld [vmem:[%s77 + $0x50] sm:$0xff]
    %v4270 = vld [vmem:[%s77 + $0x58] sm:$0xff]
    %v4271 = vld [vmem:[%s77 + $0x60] sm:$0xff]
    %v4272 = vld [vmem:[%s77 + $0x68] sm:$0xff]
    %v4273 = vld [vmem:[%s77 + $0x70] sm:$0xff]
    %v4274 = vld [vmem:[%s77 + $0x78] sm:$0xff]
    %v4276 = vsel %vm704, %v4259, 0
    %v4279 = vsel %vm704, %v4260, 0
    %v4282 = vsel %vm704, %v4261, 0
    %v4285 = vsel %vm704, %v4262, 0
    %v4288 = vsel %vm704, %v4263, 0
    %v4291 = vsel %vm704, %v4264, 0
    %v4294 = vsel %vm704, %v4265, 0
    %v4297 = vsel %vm704, %v4266, 0
    %v4300 = vsel %vm704, %v4267, 0
    %v4303 = vsel %vm704, %v4268, 0
    %v4306 = vsel %vm704, %v4269, 0
    %v4309 = vsel %vm704, %v4270, 0
    %v4312 = vsel %vm704, %v4271, 0
    %v4315 = vsel %vm704, %v4272, 0
    %v4318 = vsel %vm704, %v4273, 0
    %v4321 = vsel %vm704, %v4274, 0
    %v4324 = vsel %vm708, %v4252, 0
    %4326 = vmatprep.subr.mxu0 0.0
    %4327 = vmatpush1.msra.mxu0 %v4324
    %4328 = vmatprep.subr.mxu0 0.0
    %4329 = vmatpush1.msra.mxu0 0.0
    %4330 = vmatprep.subr.mxu0 0.0
    %4331 = vmatpush1.msra.mxu0 0.0
    %4332 = vmatprep.subr.mxu0 0.0
    %4333 = vmatpush1.msra.mxu0 0.0
    %4334 = vmatprep.subr.mxu0 0.0
    %4335 = vmatpush1.msra.mxu0 0.0
    %4336 = vmatprep.subr.mxu0 0.0
    %4337 = vmatpush1.msra.mxu0 0.0
    %4338 = vmatprep.subr.mxu0 0.0
    %4339 = vmatpush1.msra.mxu0 0.0
    %4340 = vmatprep.subr.mxu0 0.0
    %4341 = vmatpush1.msra.mxu0 0.0
    %4342 = vmatprep.subr.mxu0 0.0
    %4343 = vmatpush1.msra.mxu0 0.0
    %4344 = vmatprep.subr.mxu0 0.0
    %4345 = vmatpush1.msra.mxu0 0.0
    %4346 = vmatprep.subr.mxu0 0.0
    %4347 = vmatpush1.msra.mxu0 0.0
    %4348 = vmatprep.subr.mxu0 0.0
    %4349 = vmatpush1.msra.mxu0 0.0
    %4350 = vmatprep.subr.mxu0 0.0
    %4351 = vmatpush1.msra.mxu0 0.0
    %4352 = vmatprep.subr.mxu0 0.0
    %4353 = vmatpush1.msra.mxu0 0.0
    %4354 = vmatprep.subr.mxu0 0.0
    %4355 = vmatpush1.msra.mxu0 0.0
    %4356 = vmatprep.subr.mxu0 0.0
    %4357 = vmatpush1.msra.mxu0 0.0
    %4358 = vmatprep.subr.mxu0 0.0
    %4359 = vmatpush1.msra.mxu0 0.0
    %4360 = vmatprep.subr.mxu0 0.0
    %4361 = vmatpush1.msra.mxu0 0.0
    %4362 = vmatprep.subr.mxu0 0.0
    %4363 = vmatpush1.msra.mxu0 0.0
    %4364 = vmatprep.subr.mxu0 0.0
    %4365 = vmatpush1.msra.mxu0 0.0
    %4366 = vmatprep.subr.mxu0 0.0
    %4367 = vmatpush1.msra.mxu0 0.0
    %4368 = vmatprep.subr.mxu0 0.0
    %4369 = vmatpush1.msra.mxu0 0.0
    %4370 = vmatprep.subr.mxu0 0.0
    %4371 = vmatpush1.msra.mxu0 0.0
    %4372 = vmatprep.subr.mxu0 0.0
    %4373 = vmatpush1.msra.mxu0 0.0
    %4374 = vmatprep.subr.mxu0 0.0
    %4375 = vmatpush1.msra.mxu0 0.0
    %4376 = vmatprep.subr.mxu0 0.0
    %4377 = vmatpush1.msra.mxu0 0.0
    %4378 = vmatprep.subr.mxu0 0.0
    %4379 = vmatpush1.msra.mxu0 0.0
    %4380 = vmatprep.subr.mxu0 0.0
    %4381 = vmatpush1.msra.mxu0 0.0
    %4382 = vmatprep.subr.mxu0 0.0
    %4383 = vmatpush1.msra.mxu0 0.0
    %4384 = vmatprep.subr.mxu0 0.0
    %4385 = vmatpush1.msra.mxu0 0.0
    %4386 = vmatprep.subr.mxu0 0.0
    %4387 = vmatpush1.msra.mxu0 0.0
    %4388 = vmatprep.subr.mxu0 0.0
    %4389 = vmatpush1.msra.mxu0 0.0
    %4390 = vmatprep.mubr.f32.mxu0 0.0
    %4391 = vmatmul.mubr.f32.gmra.mrb[0].mxu0 %v4276
    %v4392 = vpop.f32.mrb[0].mxu0
    %v4393 = vadd.f32 0.0, %v4392
    %v4394 = vpop.f32.mrb[0].mxu0
    %4395 = vmatprep.mubr.f32.mxu0 0.0
    %4396 = vmatmul.mubr.f32.gmra.mrb[0].mxu0 %v4279
    %v4397 = vpop.f32.mrb[0].mxu0
    %v4398 = vadd.f32 0.0, %v4397
    %v4399 = vpop.f32.mrb[0].mxu0
    %4400 = vmatprep.mubr.f32.mxu0 0.0
    %4401 = vmatmul.mubr.f32.gmra.mrb[0].mxu0 %v4282
    %v4402 = vpop.f32.mrb[0].mxu0
    %v4403 = vadd.f32 0.0, %v4402
    %v4404 = vpop.f32.mrb[0].mxu0
    %4405 = vmatprep.mubr.f32.mxu0 0.0
    %4406 = vmatmul.mubr.f32.gmra.mrb[0].mxu0 %v4285
    %v4407 = vpop.f32.mrb[0].mxu0
    %v4408 = vadd.f32 0.0, %v4407
    %v4409 = vpop.f32.mrb[0].mxu0
    %4410 = vmatprep.mubr.f32.mxu0 0.0
    %4411 = vmatmul.mubr.f32.gmra.mrb[0].mxu0 %v4288
    %v4412 = vpop.f32.mrb[0].mxu0
    %v4413 = vadd.f32 0.0, %v4412
    %v4414 = vpop.f32.mrb[0].mxu0
    %4415 = vmatprep.mubr.f32.mxu0 0.0
    %4416 = vmatmul.mubr.f32.gmra.mrb[0].mxu0 %v4291
    %v4417 = vpop.f32.mrb[0].mxu0
    %v4418 = vadd.f32 0.0, %v4417
    %v4419 = vpop.f32.mrb[0].mxu0
    %4420 = vmatprep.mubr.f32.mxu0 0.0
    %4421 = vmatmul.mubr.f32.gmra.mrb[0].mxu0 %v4294
    %v4422 = vpop.f32.mrb[0].mxu0
    %v4423 = vadd.f32 0.0, %v4422
    %v4424 = vpop.f32.mrb[0].mxu0
    %4425 = vmatprep.mubr.f32.mxu0 0.0
    %4426 = vmatmul.mubr.f32.gmra.mrb[0].mxu0 %v4297
    %v4427 = vpop.f32.mrb[0].mxu0
    %v4428 = vadd.f32 0.0, %v4427
    %v4429 = vpop.f32.mrb[0].mxu0
    %4430 = vmatprep.mubr.f32.mxu0 0.0
    %4431 = vmatmul.mubr.f32.gmra.mrb[0].mxu0 %v4300
    %v4432 = vpop.f32.mrb[0].mxu0
    %v4433 = vadd.f32 0.0, %v4432
    %v4434 = vpop.f32.mrb[0].mxu0
    %4435 = vmatprep.mubr.f32.mxu0 0.0
    %4436 = vmatmul.mubr.f32.gmra.mrb[0].mxu0 %v4303
    %v4437 = vpop.f32.mrb[0].mxu0
    %v4438 = vadd.f32 0.0, %v4437
    %v4439 = vpop.f32.mrb[0].mxu0
    %4440 = vmatprep.mubr.f32.mxu0 0.0
    %4441 = vmatmul.mubr.f32.gmra.mrb[0].mxu0 %v4306
    %v4442 = vpop.f32.mrb[0].mxu0
    %v4443 = vadd.f32 0.0, %v4442
    %v4444 = vpop.f32.mrb[0].mxu0
    %4445 = vmatprep.mubr.f32.mxu0 0.0
    %4446 = vmatmul.mubr.f32.gmra.mrb[0].mxu0 %v4309
    %v4447 = vpop.f32.mrb[0].mxu0
    %v4448 = vadd.f32 0.0, %v4447
    %v4449 = vpop.f32.mrb[0].mxu0
    %4450 = vmatprep.mubr.f32.mxu0 0.0
    %4451 = vmatmul.mubr.f32.gmra.mrb[0].mxu0 %v4312
    %v4452 = vpop.f32.mrb[0].mxu0
    %v4453 = vadd.f32 0.0, %v4452
    %v4454 = vpop.f32.mrb[0].mxu0
    %4455 = vmatprep.mubr.f32.mxu0 0.0
    %4456 = vmatmul.mubr.f32.gmra.mrb[0].mxu0 %v4315
    %v4457 = vpop.f32.mrb[0].mxu0
    %v4458 = vadd.f32 0.0, %v4457
    %v4459 = vpop.f32.mrb[0].mxu0
    %4460 = vmatprep.mubr.f32.mxu0 0.0
    %4461 = vmatmul.mubr.f32.gmra.mrb[0].mxu0 %v4318
    %v4462 = vpop.f32.mrb[0].mxu0
    %v4463 = vadd.f32 0.0, %v4462
    %v4464 = vpop.f32.mrb[0].mxu0
    %4465 = vmatprep.mubr.f32.mxu0 0.0
    %4466 = vmatmul.mubr.f32.gmra.mrb[0].mxu0 %v4321
    %v4467 = vpop.f32.mrb[0].mxu0
    %v4468 = vadd.f32 0.0, %v4467
    %v4469 = vpop.f32.mrb[0].mxu0
    %4470 = vdwg.mxu0
    %v4472 = vsel %vm441, %v4165, 0
    %v4475 = vsel %vm441, %v4166, 0
    %v4478 = vsel %vm441, %v4167, 0
    %v4481 = vsel %vm441, %v4168, 0
    %v4484 = vsel %vm441, %v4169, 0
    %v4487 = vsel %vm441, %v4170, 0
    %v4490 = vsel %vm441, %v4171, 0
    %v4493 = vsel %vm441, %v4172, 0
    %v4496 = vsel %vm441, %v4173, 0
    %v4499 = vsel %vm441, %v4174, 0
    %v4502 = vsel %vm441, %v4175, 0
    %v4505 = vsel %vm441, %v4176, 0
    %v4508 = vsel %vm441, %v4177, 0
    %v4511 = vsel %vm441, %v4178, 0
    %v4514 = vsel %vm441, %v4179, 0
    %v4517 = vsel %vm441, %v4180, 0
    %4519 = vmatprep.subr.mxu0 0.0
    %4520 = vmatpush1.msra.mxu0 %v4255
    %4521 = vmatprep.subr.mxu0 0.0
    %4522 = vmatpush1.msra.mxu0 %v4256
    %4523 = vmatprep.subr.mxu0 0.0
    %4524 = vmatpush1.msra.mxu0 %v4257
    %4525 = vmatprep.subr.mxu0 0.0
    %4526 = vmatpush1.msra.mxu0 %v4258
    %4527 = vmatprep.subr.mxu0 0.0
    %4528 = vmatpush1.msra.mxu0 0.0
    %4529 = vmatprep.subr.mxu0 0.0
    %4530 = vmatpush1.msra.mxu0 0.0
    %4531 = vmatprep.subr.mxu0 0.0
    %4532 = vmatpush1.msra.mxu0 0.0
    %4533 = vmatprep.subr.mxu0 0.0
    %4534 = vmatpush1.msra.mxu0 0.0
    %4535 = vmatprep.subr.mxu0 0.0
    %4536 = vmatpush1.msra.mxu0 0.0
    %4537 = vmatprep.subr.mxu0 0.0
    %4538 = vmatpush1.msra.mxu0 0.0
    %4539 = vmatprep.subr.mxu0 0.0
    %4540 = vmatpush1.msra.mxu0 0.0
    %4541 = vmatprep.subr.mxu0 0.0
    %4542 = vmatpush1.msra.mxu0 0.0
    %4543 = vmatprep.subr.mxu0 0.0
    %4544 = vmatpush1.msra.mxu0 0.0
    %4545 = vmatprep.subr.mxu0 0.0
    %4546 = vmatpush1.msra.mxu0 0.0
    %4547 = vmatprep.subr.mxu0 0.0
    %4548 = vmatpush1.msra.mxu0 0.0
    %4549 = vmatprep.subr.mxu0 0.0
    %4550 = vmatpush1.msra.mxu0 0.0
    %4551 = vmatprep.subr.mxu0 0.0
    %4552 = vmatpush1.msra.mxu0 0.0
    %4553 = vmatprep.subr.mxu0 0.0
    %4554 = vmatpush1.msra.mxu0 0.0
    %4555 = vmatprep.subr.mxu0 0.0
    %4556 = vmatpush1.msra.mxu0 0.0
    %4557 = vmatprep.subr.mxu0 0.0
    %4558 = vmatpush1.msra.mxu0 0.0
    %4559 = vmatprep.subr.mxu0 0.0
    %4560 = vmatpush1.msra.mxu0 0.0
    %4561 = vmatprep.subr.mxu0 0.0
    %4562 = vmatpush1.msra.mxu0 0.0
    %4563 = vmatprep.subr.mxu0 0.0
    %4564 = vmatpush1.msra.mxu0 0.0
    %4565 = vmatprep.subr.mxu0 0.0
    %4566 = vmatpush1.msra.mxu0 0.0
    %4567 = vmatprep.subr.mxu0 0.0
    %4568 = vmatpush1.msra.mxu0 0.0
    %4569 = vmatprep.subr.mxu0 0.0
    %4570 = vmatpush1.msra.mxu0 0.0
    %4571 = vmatprep.subr.mxu0 0.0
    %4572 = vmatpush1.msra.mxu0 0.0
    %4573 = vmatprep.subr.mxu0 0.0
    %4574 = vmatpush1.msra.mxu0 0.0
    %4575 = vmatprep.subr.mxu0 0.0
    %4576 = vmatpush1.msra.mxu0 0.0
    %4577 = vmatprep.subr.mxu0 0.0
    %4578 = vmatpush1.msra.mxu0 0.0
    %4579 = vmatprep.subr.mxu0 0.0
    %4580 = vmatpush1.msra.mxu0 0.0
    %4581 = vmatprep.subr.mxu0 0.0
    %4582 = vmatpush1.msra.mxu0 0.0
    %4583 = vmatprep.mubr.f32.mxu0 0.0
    %4584 = vmatmul.mubr.f32.gmra.mrb[0].mxu0 %v4472
    %v4585 = vpop.f32.mrb[0].mxu0
    %v4586 = vadd.f32 %v4393, %v4585
    %v4587 = vpop.f32.mrb[0].mxu0
    %4588 = vmatprep.mubr.f32.mxu0 0.0
    %4589 = vmatmul.mubr.f32.gmra.mrb[0].mxu0 %v4475
    %v4590 = vpop.f32.mrb[0].mxu0
    %v4591 = vadd.f32 %v4398, %v4590
    %v4592 = vpop.f32.mrb[0].mxu0
    %4593 = vmatprep.mubr.f32.mxu0 0.0
    %4594 = vmatmul.mubr.f32.gmra.mrb[0].mxu0 %v4478
    %v4595 = vpop.f32.mrb[0].mxu0
    %v4596 = vadd.f32 %v4403, %v4595
    %v4597 = vpop.f32.mrb[0].mxu0
    %4598 = vmatprep.mubr.f32.mxu0 0.0
    %4599 = vmatmul.mubr.f32.gmra.mrb[0].mxu0 %v4481
    %v4600 = vpop.f32.mrb[0].mxu0
    %v4601 = vadd.f32 %v4408, %v4600
    %v4602 = vpop.f32.mrb[0].mxu0
    %4603 = vmatprep.mubr.f32.mxu0 0.0
    %4604 = vmatmul.mubr.f32.gmra.mrb[0].mxu0 %v4484
    %v4605 = vpop.f32.mrb[0].mxu0
    %v4606 = vadd.f32 %v4413, %v4605
    %v4607 = vpop.f32.mrb[0].mxu0
    %4608 = vmatprep.mubr.f32.mxu0 0.0
    %4609 = vmatmul.mubr.f32.gmra.mrb[0].mxu0 %v4487
    %v4610 = vpop.f32.mrb[0].mxu0
    %v4611 = vadd.f32 %v4418, %v4610
    %v4612 = vpop.f32.mrb[0].mxu0
    %4613 = vmatprep.mubr.f32.mxu0 0.0
    %4614 = vmatmul.mubr.f32.gmra.mrb[0].mxu0 %v4490
    %v4615 = vpop.f32.mrb[0].mxu0
    %v4616 = vadd.f32 %v4423, %v4615
    %v4617 = vpop.f32.mrb[0].mxu0
    %4618 = vmatprep.mubr.f32.mxu0 0.0
    %4619 = vmatmul.mubr.f32.gmra.mrb[0].mxu0 %v4493
    %v4620 = vpop.f32.mrb[0].mxu0
    %v4621 = vadd.f32 %v4428, %v4620
    %v4622 = vpop.f32.mrb[0].mxu0
    %4623 = vmatprep.mubr.f32.mxu0 0.0
    %4624 = vmatmul.mubr.f32.gmra.mrb[0].mxu0 %v4496
    %v4625 = vpop.f32.mrb[0].mxu0
    %v4626 = vadd.f32 %v4433, %v4625
    %v4627 = vpop.f32.mrb[0].mxu0
    %4628 = vmatprep.mubr.f32.mxu0 0.0
    %4629 = vmatmul.mubr.f32.gmra.mrb[0].mxu0 %v4499
    %v4630 = vpop.f32.mrb[0].mxu0
    %v4631 = vadd.f32 %v4438, %v4630
    %v4632 = vpop.f32.mrb[0].mxu0
    %4633 = vmatprep.mubr.f32.mxu0 0.0
    %4634 = vmatmul.mubr.f32.gmra.mrb[0].mxu0 %v4502
    %v4635 = vpop.f32.mrb[0].mxu0
    %v4636 = vadd.f32 %v4443, %v4635
    %v4637 = vpop.f32.mrb[0].mxu0
    %4638 = vmatprep.mubr.f32.mxu0 0.0
    %4639 = vmatmul.mubr.f32.gmra.mrb[0].mxu0 %v4505
    %v4640 = vpop.f32.mrb[0].mxu0
    %v4641 = vadd.f32 %v4448, %v4640
    %v4642 = vpop.f32.mrb[0].mxu0
    %4643 = vmatprep.mubr.f32.mxu0 0.0
    %4644 = vmatmul.mubr.f32.gmra.mrb[0].mxu0 %v4508
    %v4645 = vpop.f32.mrb[0].mxu0
    %v4646 = vadd.f32 %v4453, %v4645
    %v4647 = vpop.f32.mrb[0].mxu0
    %4648 = vmatprep.mubr.f32.mxu0 0.0
    %4649 = vmatmul.mubr.f32.gmra.mrb[0].mxu0 %v4511
    %v4650 = vpop.f32.mrb[0].mxu0
    %v4651 = vadd.f32 %v4458, %v4650
    %v4652 = vpop.f32.mrb[0].mxu0
    %4653 = vmatprep.mubr.f32.mxu0 0.0
    %4654 = vmatmul.mubr.f32.gmra.mrb[0].mxu0 %v4514
    %v4655 = vpop.f32.mrb[0].mxu0
    %v4656 = vadd.f32 %v4463, %v4655
    %v4657 = vpop.f32.mrb[0].mxu0
    %4658 = vmatprep.mubr.f32.mxu0 0.0
    %4659 = vmatmul.mubr.f32.gmra.mrb[0].mxu0 %v4517
    %v4660 = vpop.f32.mrb[0].mxu0
    %v4661 = vadd.f32 %v4468, %v4660
    %v4662 = vpop.f32.mrb[0].mxu0
    %4663 = vdwg.mxu0
    %v4664 = vld [vmem:[%s79] sm:$0xff]
    %v4665 = vld [vmem:[%s79 + $0x8] sm:$0xff]
    %v4666 = vld [vmem:[%s79 + $0x10] sm:$0xff]
    %v4667 = vld [vmem:[%s79 + $0x18] sm:$0xff]
    %v4668 = vld [vmem:[%s79 + $0x20] sm:$0xff]
    %v4669 = vld [vmem:[%s79 + $0x28] sm:$0xff]
    %v4670 = vld [vmem:[%s79 + $0x30] sm:$0xff]
    %v4671 = vld [vmem:[%s79 + $0x38] sm:$0xff]
    %v4672 = vld [vmem:[%s79 + $0x40] sm:$0xff]
    %v4673 = vld [vmem:[%s79 + $0x48] sm:$0xff]
    %v4674 = vld [vmem:[%s79 + $0x50] sm:$0xff]
    %v4675 = vld [vmem:[%s79 + $0x58] sm:$0xff]
    %v4676 = vld [vmem:[%s79 + $0x60] sm:$0xff]
    %v4677 = vld [vmem:[%s79 + $0x68] sm:$0xff]
    %v4678 = vld [vmem:[%s79 + $0x70] sm:$0xff]
    %v4679 = vld [vmem:[%s79 + $0x78] sm:$0xff]
    %v4680 = vadd.f32 %v4586, %v4664
    %v4681 = vadd.f32 %v4591, %v4665
    %v4682 = vadd.f32 %v4596, %v4666
    %v4683 = vadd.f32 %v4601, %v4667
    %v4684 = vadd.f32 %v4606, %v4668
    %v4685 = vadd.f32 %v4611, %v4669
    %v4686 = vadd.f32 %v4616, %v4670
    %v4687 = vadd.f32 %v4621, %v4671
    %v4688 = vadd.f32 %v4626, %v4672
    %v4689 = vadd.f32 %v4631, %v4673
    %v4690 = vadd.f32 %v4636, %v4674
    %v4691 = vadd.f32 %v4641, %v4675
    %v4692 = vadd.f32 %v4646, %v4676
    %v4693 = vadd.f32 %v4651, %v4677
    %v4694 = vadd.f32 %v4656, %v4678
    %v4695 = vadd.f32 %v4661, %v4679
    %v4696 = vmax.f32 %v4680, 0.0
    %v4697 = vmax.f32 %v4681, 0.0
    %v4698 = vmax.f32 %v4682, 0.0
    %v4699 = vmax.f32 %v4683, 0.0
    %v4700 = vmax.f32 %v4684, 0.0
    %v4701 = vmax.f32 %v4685, 0.0
    %v4702 = vmax.f32 %v4686, 0.0
    %v4703 = vmax.f32 %v4687, 0.0
    %v4704 = vmax.f32 %v4688, 0.0
    %v4705 = vmax.f32 %v4689, 0.0
    %v4706 = vmax.f32 %v4690, 0.0
    %v4707 = vmax.f32 %v4691, 0.0
    %v4708 = vmax.f32 %v4692, 0.0
    %v4709 = vmax.f32 %v4693, 0.0
    %v4710 = vmax.f32 %v4694, 0.0
    %v4711 = vmax.f32 %v4695, 0.0
    %4712 = vst.msk [vmem:[#allocation4] sm:$0xff] %vm441, 0.0
    %vm4713 = vcmask 253952
    %4714 = vst.msk [vmem:[#allocation4 + $0x8] sm:$0x1] %vm4713, 0.0
    %4715 = vst.msk [vmem:[#allocation4 + $0x89] sm:$0xff] %vm441, 0.0
    %4716 = vst.msk [vmem:[#allocation4 + $0x91] sm:$0x1] %vm4713, 0.0
    %4717 = vst.msk [vmem:[#allocation4 + $0x9] sm:$0xff] %vm441, %v4696
    %4718 = vst.msk [vmem:[#allocation4 + $0x11] sm:$0xff] %vm441, %v4697
    %4719 = vst.msk [vmem:[#allocation4 + $0x19] sm:$0xff] %vm441, %v4698
    %4720 = vst.msk [vmem:[#allocation4 + $0x21] sm:$0xff] %vm441, %v4699
    %4721 = vst.msk [vmem:[#allocation4 + $0x29] sm:$0xff] %vm441, %v4700
    %4722 = vst.msk [vmem:[#allocation4 + $0x31] sm:$0xff] %vm441, %v4701
    %4723 = vst.msk [vmem:[#allocation4 + $0x39] sm:$0xff] %vm441, %v4702
    %4724 = vst.msk [vmem:[#allocation4 + $0x41] sm:$0xff] %vm441, %v4703
    %4725 = vst.msk [vmem:[#allocation4 + $0x49] sm:$0xff] %vm441, %v4704
    %4726 = vst.msk [vmem:[#allocation4 + $0x51] sm:$0xff] %vm441, %v4705
    %4727 = vst.msk [vmem:[#allocation4 + $0x59] sm:$0xff] %vm441, %v4706
    %4728 = vst.msk [vmem:[#allocation4 + $0x61] sm:$0xff] %vm441, %v4707
    %4729 = vst.msk [vmem:[#allocation4 + $0x69] sm:$0xff] %vm441, %v4708
    %4730 = vst.msk [vmem:[#allocation4 + $0x71] sm:$0xff] %vm441, %v4709
    %4731 = vst.msk [vmem:[#allocation4 + $0x79] sm:$0xff] %vm441, %v4710
    %4732 = vst.msk [vmem:[#allocation4 + $0x81] sm:$0xff] %vm441, %v4711
    %v4733 = vld [vmem:[#allocation4] sm:$0xff]
    %v4734 = vld [vmem:[#allocation4 + $0x8] sm:$0xff]
    %v4735 = vld [vmem:[#allocation4 + $0x10] sm:$0xff]
    %v4736 = vld [vmem:[#allocation4 + $0x18] sm:$0xff]
    %v4737 = vld [vmem:[#allocation4 + $0x20] sm:$0xff]
    %v4738 = vld [vmem:[#allocation4 + $0x28] sm:$0xff]
    %v4739 = vld [vmem:[#allocation4 + $0x30] sm:$0xff]
    %v4740 = vld [vmem:[#allocation4 + $0x38] sm:$0xff]
    %v4741 = vld [vmem:[#allocation4 + $0x40] sm:$0xff]
    %v4742 = vld [vmem:[#allocation4 + $0x48] sm:$0xff]
    %v4743 = vld [vmem:[#allocation4 + $0x50] sm:$0xff]
    %v4744 = vld [vmem:[#allocation4 + $0x58] sm:$0xff]
    %v4745 = vld [vmem:[#allocation4 + $0x60] sm:$0xff]
    %v4746 = vld [vmem:[#allocation4 + $0x68] sm:$0xff]
    %v4747 = vld [vmem:[#allocation4 + $0x70] sm:$0xff]
    %v4748 = vld [vmem:[#allocation4 + $0x78] sm:$0xff]
    %v4749 = vld [vmem:[%s81] sm:$0xff]
    %v4750 = vld [vmem:[%s81 + $0x8] sm:$0xff]
    %v4751 = vld [vmem:[%s81 + $0x10] sm:$0xff]
    %v4752 = vld [vmem:[%s81 + $0x18] sm:$0xff]
    %v4753 = vld [vmem:[%s81 + $0x20] sm:$0xff]
    %v4754 = vld [vmem:[%s81 + $0x28] sm:$0xff]
    %v4755 = vld [vmem:[%s81 + $0x30] sm:$0xff]
    %v4756 = vld [vmem:[%s81 + $0x38] sm:$0xff]
    %v4757 = vld [vmem:[%s81 + $0x40] sm:$0xff]
    %v4758 = vld [vmem:[%s81 + $0x48] sm:$0xff]
    %v4759 = vld [vmem:[%s81 + $0x50] sm:$0xff]
    %v4760 = vld [vmem:[%s81 + $0x58] sm:$0xff]
    %v4761 = vld [vmem:[%s81 + $0x60] sm:$0xff]
    %v4762 = vld [vmem:[%s81 + $0x68] sm:$0xff]
    %v4763 = vld [vmem:[%s81 + $0x70] sm:$0xff]
    %v4764 = vld [vmem:[%s81 + $0x78] sm:$0xff]
    %4766 = vset.pattern.permute.xlu0 0
    %4767 = vperm.xlu0 %4766, %v4749
    %v4768 = vpop.permute.xlu0 %4767
    %4771 = vset.pattern.permute.xlu0 0
    %4772 = vperm.xlu0 %4771, %v4750
    %v4773 = vpop.permute.xlu0 %4772
    %4776 = vset.pattern.permute.xlu0 0
    %4777 = vperm.xlu0 %4776, %v4751
    %v4778 = vpop.permute.xlu0 %4777
    %4781 = vset.pattern.permute.xlu0 0
    %4782 = vperm.xlu0 %4781, %v4752
    %v4783 = vpop.permute.xlu0 %4782
    %4786 = vset.pattern.permute.xlu0 0
    %4787 = vperm.xlu0 %4786, %v4753
    %v4788 = vpop.permute.xlu0 %4787
    %4791 = vset.pattern.permute.xlu0 0
    %4792 = vperm.xlu0 %4791, %v4754
    %v4793 = vpop.permute.xlu0 %4792
    %4796 = vset.pattern.permute.xlu0 0
    %4797 = vperm.xlu0 %4796, %v4755
    %v4798 = vpop.permute.xlu0 %4797
    %4801 = vset.pattern.permute.xlu0 0
    %4802 = vperm.xlu0 %4801, %v4756
    %v4803 = vpop.permute.xlu0 %4802
    %4806 = vset.pattern.permute.xlu0 0
    %4807 = vperm.xlu0 %4806, %v4757
    %v4808 = vpop.permute.xlu0 %4807
    %4811 = vset.pattern.permute.xlu0 0
    %4812 = vperm.xlu0 %4811, %v4758
    %v4813 = vpop.permute.xlu0 %4812
    %4816 = vset.pattern.permute.xlu0 0
    %4817 = vperm.xlu0 %4816, %v4759
    %v4818 = vpop.permute.xlu0 %4817
    %4821 = vset.pattern.permute.xlu0 0
    %4822 = vperm.xlu0 %4821, %v4760
    %v4823 = vpop.permute.xlu0 %4822
    %4826 = vset.pattern.permute.xlu0 0
    %4827 = vperm.xlu0 %4826, %v4761
    %v4828 = vpop.permute.xlu0 %4827
    %4831 = vset.pattern.permute.xlu0 0
    %4832 = vperm.xlu0 %4831, %v4762
    %v4833 = vpop.permute.xlu0 %4832
    %4836 = vset.pattern.permute.xlu0 0
    %4837 = vperm.xlu0 %4836, %v4763
    %v4838 = vpop.permute.xlu0 %4837
    %4841 = vset.pattern.permute.xlu0 0
    %4842 = vperm.xlu0 %4841, %v4764
    %v4843 = vpop.permute.xlu0 %4842
    %v4845 = vmul.f32 %v4733, %v4768
    %v4846 = vmul.f32 %v4734, %v4773
    %v4847 = vmul.f32 %v4735, %v4778
    %v4848 = vmul.f32 %v4736, %v4783
    %v4849 = vmul.f32 %v4737, %v4788
    %v4850 = vmul.f32 %v4738, %v4793
    %v4851 = vmul.f32 %v4739, %v4798
    %v4852 = vmul.f32 %v4740, %v4803
    %v4853 = vmul.f32 %v4741, %v4808
    %v4854 = vmul.f32 %v4742, %v4813
    %v4855 = vmul.f32 %v4743, %v4818
    %v4856 = vmul.f32 %v4744, %v4823
    %v4857 = vmul.f32 %v4745, %v4828
    %v4858 = vmul.f32 %v4746, %v4833
    %v4859 = vmul.f32 %v4747, %v4838
    %v4860 = vmul.f32 %v4748, %v4843
    %v4861 = vld [vmem:[%s91] sm:$0xff]
    %v4862 = vld [vmem:[%s91 + $0x8] sm:$0xff]
    %v4863 = vld [vmem:[%s91 + $0x10] sm:$0xff]
    %v4864 = vld [vmem:[%s91 + $0x18] sm:$0xff]
    %v4865 = vld [vmem:[#allocation4 + $0x1] sm:$0xff]
    %v4866 = vld [vmem:[#allocation4 + $0x9] sm:$0xff]
    %v4867 = vld [vmem:[#allocation4 + $0x11] sm:$0xff]
    %v4868 = vld [vmem:[#allocation4 + $0x19] sm:$0xff]
    %v4869 = vld [vmem:[#allocation4 + $0x21] sm:$0xff]
    %v4870 = vld [vmem:[#allocation4 + $0x29] sm:$0xff]
    %v4871 = vld [vmem:[#allocation4 + $0x31] sm:$0xff]
    %v4872 = vld [vmem:[#allocation4 + $0x39] sm:$0xff]
    %v4873 = vld [vmem:[#allocation4 + $0x41] sm:$0xff]
    %v4874 = vld [vmem:[#allocation4 + $0x49] sm:$0xff]
    %v4875 = vld [vmem:[#allocation4 + $0x51] sm:$0xff]
    %v4876 = vld [vmem:[#allocation4 + $0x59] sm:$0xff]
    %v4877 = vld [vmem:[#allocation4 + $0x61] sm:$0xff]
    %v4878 = vld [vmem:[#allocation4 + $0x69] sm:$0xff]
    %v4879 = vld [vmem:[#allocation4 + $0x71] sm:$0xff]
    %v4880 = vld [vmem:[#allocation4 + $0x79] sm:$0xff]
    %4881 = vset.pattern.permute.xlu0 1
    %4882 = vperm.xlu0 %4881, %v4749
    %v4883 = vpop.permute.xlu0 %4882
    %4885 = vset.pattern.permute.xlu0 1
    %4886 = vperm.xlu0 %4885, %v4750
    %v4887 = vpop.permute.xlu0 %4886
    %4889 = vset.pattern.permute.xlu0 1
    %4890 = vperm.xlu0 %4889, %v4751
    %v4891 = vpop.permute.xlu0 %4890
    %4893 = vset.pattern.permute.xlu0 1
    %4894 = vperm.xlu0 %4893, %v4752
    %v4895 = vpop.permute.xlu0 %4894
    %4897 = vset.pattern.permute.xlu0 1
    %4898 = vperm.xlu0 %4897, %v4753
    %v4899 = vpop.permute.xlu0 %4898
    %4901 = vset.pattern.permute.xlu0 1
    %4902 = vperm.xlu0 %4901, %v4754
    %v4903 = vpop.permute.xlu0 %4902
    %4905 = vset.pattern.permute.xlu0 1
    %4906 = vperm.xlu0 %4905, %v4755
    %v4907 = vpop.permute.xlu0 %4906
    %4909 = vset.pattern.permute.xlu0 1
    %4910 = vperm.xlu0 %4909, %v4756
    %v4911 = vpop.permute.xlu0 %4910
    %4913 = vset.pattern.permute.xlu0 1
    %4914 = vperm.xlu0 %4913, %v4757
    %v4915 = vpop.permute.xlu0 %4914
    %4917 = vset.pattern.permute.xlu0 1
    %4918 = vperm.xlu0 %4917, %v4758
    %v4919 = vpop.permute.xlu0 %4918
    %4921 = vset.pattern.permute.xlu0 1
    %4922 = vperm.xlu0 %4921, %v4759
    %v4923 = vpop.permute.xlu0 %4922
    %4925 = vset.pattern.permute.xlu0 1
    %4926 = vperm.xlu0 %4925, %v4760
    %v4927 = vpop.permute.xlu0 %4926
    %4929 = vset.pattern.permute.xlu0 1
    %4930 = vperm.xlu0 %4929, %v4761
    %v4931 = vpop.permute.xlu0 %4930
    %4933 = vset.pattern.permute.xlu0 1
    %4934 = vperm.xlu0 %4933, %v4762
    %v4935 = vpop.permute.xlu0 %4934
    %4937 = vset.pattern.permute.xlu0 1
    %4938 = vperm.xlu0 %4937, %v4763
    %v4939 = vpop.permute.xlu0 %4938
    %4941 = vset.pattern.permute.xlu0 1
    %4942 = vperm.xlu0 %4941, %v4764
    %v4943 = vpop.permute.xlu0 %4942
    %v4945 = vmul.f32 %v4865, %v4883
    %v4946 = vmul.f32 %v4866, %v4887
    %v4947 = vmul.f32 %v4867, %v4891
    %v4948 = vmul.f32 %v4868, %v4895
    %v4949 = vmul.f32 %v4869, %v4899
    %v4950 = vmul.f32 %v4870, %v4903
    %v4951 = vmul.f32 %v4871, %v4907
    %v4952 = vmul.f32 %v4872, %v4911
    %v4953 = vmul.f32 %v4873, %v4915
    %v4954 = vmul.f32 %v4874, %v4919
    %v4955 = vmul.f32 %v4875, %v4923
    %v4956 = vmul.f32 %v4876, %v4927
    %v4957 = vmul.f32 %v4877, %v4931
    %v4958 = vmul.f32 %v4878, %v4935
    %v4959 = vmul.f32 %v4879, %v4939
    %v4960 = vmul.f32 %v4880, %v4943
    %v4961 = vld [vmem:[%s91 + $0x20] sm:$0xff]
    %v4962 = vld [vmem:[%s91 + $0x28] sm:$0xff]
    %v4963 = vld [vmem:[%s91 + $0x30] sm:$0xff]
    %v4964 = vld [vmem:[%s91 + $0x38] sm:$0xff]
    %v4966 = vsel %vm441, %v4945, 0
    %v4969 = vsel %vm441, %v4946, 0
    %v4972 = vsel %vm441, %v4947, 0
    %v4975 = vsel %vm441, %v4948, 0
    %v4978 = vsel %vm441, %v4949, 0
    %v4981 = vsel %vm441, %v4950, 0
    %v4984 = vsel %vm441, %v4951, 0
    %v4987 = vsel %vm441, %v4952, 0
    %v4990 = vsel %vm441, %v4953, 0
    %v4993 = vsel %vm441, %v4954, 0
    %v4996 = vsel %vm441, %v4955, 0
    %v4999 = vsel %vm441, %v4956, 0
    %v5002 = vsel %vm441, %v4957, 0
    %v5005 = vsel %vm441, %v4958, 0
    %v5008 = vsel %vm441, %v4959, 0
    %v5011 = vsel %vm441, %v4960, 0
    %5013 = vmatprep.subr.mxu0 0.0
    %5014 = vmatpush1.msra.mxu0 %v4961
    %5015 = vmatprep.subr.mxu0 0.0
    %5016 = vmatpush1.msra.mxu0 %v4962
    %5017 = vmatprep.subr.mxu0 0.0
    %5018 = vmatpush1.msra.mxu0 %v4963
    %5019 = vmatprep.subr.mxu0 0.0
    %5020 = vmatpush1.msra.mxu0 %v4964
    %5021 = vmatprep.subr.mxu0 0.0
    %5022 = vmatpush1.msra.mxu0 0.0
    %5023 = vmatprep.subr.mxu0 0.0
    %5024 = vmatpush1.msra.mxu0 0.0
    %5025 = vmatprep.subr.mxu0 0.0
    %5026 = vmatpush1.msra.mxu0 0.0
    %5027 = vmatprep.subr.mxu0 0.0
    %5028 = vmatpush1.msra.mxu0 0.0
    %5029 = vmatprep.subr.mxu0 0.0
    %5030 = vmatpush1.msra.mxu0 0.0
    %5031 = vmatprep.subr.mxu0 0.0
    %5032 = vmatpush1.msra.mxu0 0.0
    %5033 = vmatprep.subr.mxu0 0.0
    %5034 = vmatpush1.msra.mxu0 0.0
    %5035 = vmatprep.subr.mxu0 0.0
    %5036 = vmatpush1.msra.mxu0 0.0
    %5037 = vmatprep.subr.mxu0 0.0
    %5038 = vmatpush1.msra.mxu0 0.0
    %5039 = vmatprep.subr.mxu0 0.0
    %5040 = vmatpush1.msra.mxu0 0.0
    %5041 = vmatprep.subr.mxu0 0.0
    %5042 = vmatpush1.msra.mxu0 0.0
    %5043 = vmatprep.subr.mxu0 0.0
    %5044 = vmatpush1.msra.mxu0 0.0
    %5045 = vmatprep.subr.mxu0 0.0
    %5046 = vmatpush1.msra.mxu0 0.0
    %5047 = vmatprep.subr.mxu0 0.0
    %5048 = vmatpush1.msra.mxu0 0.0
    %5049 = vmatprep.subr.mxu0 0.0
    %5050 = vmatpush1.msra.mxu0 0.0
    %5051 = vmatprep.subr.mxu0 0.0
    %5052 = vmatpush1.msra.mxu0 0.0
    %5053 = vmatprep.subr.mxu0 0.0
    %5054 = vmatpush1.msra.mxu0 0.0
    %5055 = vmatprep.subr.mxu0 0.0
    %5056 = vmatpush1.msra.mxu0 0.0
    %5057 = vmatprep.subr.mxu0 0.0
    %5058 = vmatpush1.msra.mxu0 0.0
    %5059 = vmatprep.subr.mxu0 0.0
    %5060 = vmatpush1.msra.mxu0 0.0
    %5061 = vmatprep.subr.mxu0 0.0
    %5062 = vmatpush1.msra.mxu0 0.0
    %5063 = vmatprep.subr.mxu0 0.0
    %5064 = vmatpush1.msra.mxu0 0.0
    %5065 = vmatprep.subr.mxu0 0.0
    %5066 = vmatpush1.msra.mxu0 0.0
    %5067 = vmatprep.subr.mxu0 0.0
    %5068 = vmatpush1.msra.mxu0 0.0
    %5069 = vmatprep.subr.mxu0 0.0
    %5070 = vmatpush1.msra.mxu0 0.0
    %5071 = vmatprep.subr.mxu0 0.0
    %5072 = vmatpush1.msra.mxu0 0.0
    %5073 = vmatprep.subr.mxu0 0.0
    %5074 = vmatpush1.msra.mxu0 0.0
    %5075 = vmatprep.subr.mxu0 0.0
    %5076 = vmatpush1.msra.mxu0 0.0
    %5077 = vmatprep.mubr.f32.mxu0 0.0
    %5078 = vmatmul.mubr.f32.gmra.mrb[0].mxu0 %v4966
    %v5079 = vpop.f32.mrb[0].mxu0
    %v5080 = vadd.f32 0.0, %v5079
    %v5081 = vpop.f32.mrb[0].mxu0
    %5082 = vmatprep.mubr.f32.mxu0 0.0
    %5083 = vmatmul.mubr.f32.gmra.mrb[0].mxu0 %v4969
    %v5084 = vpop.f32.mrb[0].mxu0
    %v5085 = vadd.f32 0.0, %v5084
    %v5086 = vpop.f32.mrb[0].mxu0
    %5087 = vmatprep.mubr.f32.mxu0 0.0
    %5088 = vmatmul.mubr.f32.gmra.mrb[0].mxu0 %v4972
    %v5089 = vpop.f32.mrb[0].mxu0
    %v5090 = vadd.f32 0.0, %v5089
    %v5091 = vpop.f32.mrb[0].mxu0
    %5092 = vmatprep.mubr.f32.mxu0 0.0
    %5093 = vmatmul.mubr.f32.gmra.mrb[0].mxu0 %v4975
    %v5094 = vpop.f32.mrb[0].mxu0
    %v5095 = vadd.f32 0.0, %v5094
    %v5096 = vpop.f32.mrb[0].mxu0
    %5097 = vmatprep.mubr.f32.mxu0 0.0
    %5098 = vmatmul.mubr.f32.gmra.mrb[0].mxu0 %v4978
    %v5099 = vpop.f32.mrb[0].mxu0
    %v5100 = vadd.f32 0.0, %v5099
    %v5101 = vpop.f32.mrb[0].mxu0
    %5102 = vmatprep.mubr.f32.mxu0 0.0
    %5103 = vmatmul.mubr.f32.gmra.mrb[0].mxu0 %v4981
    %v5104 = vpop.f32.mrb[0].mxu0
    %v5105 = vadd.f32 0.0, %v5104
    %v5106 = vpop.f32.mrb[0].mxu0
    %5107 = vmatprep.mubr.f32.mxu0 0.0
    %5108 = vmatmul.mubr.f32.gmra.mrb[0].mxu0 %v4984
    %v5109 = vpop.f32.mrb[0].mxu0
    %v5110 = vadd.f32 0.0, %v5109
    %v5111 = vpop.f32.mrb[0].mxu0
    %5112 = vmatprep.mubr.f32.mxu0 0.0
    %5113 = vmatmul.mubr.f32.gmra.mrb[0].mxu0 %v4987
    %v5114 = vpop.f32.mrb[0].mxu0
    %v5115 = vadd.f32 0.0, %v5114
    %v5116 = vpop.f32.mrb[0].mxu0
    %5117 = vmatprep.mubr.f32.mxu0 0.0
    %5118 = vmatmul.mubr.f32.gmra.mrb[0].mxu0 %v4990
    %v5119 = vpop.f32.mrb[0].mxu0
    %v5120 = vadd.f32 0.0, %v5119
    %v5121 = vpop.f32.mrb[0].mxu0
    %5122 = vmatprep.mubr.f32.mxu0 0.0
    %5123 = vmatmul.mubr.f32.gmra.mrb[0].mxu0 %v4993
    %v5124 = vpop.f32.mrb[0].mxu0
    %v5125 = vadd.f32 0.0, %v5124
    %v5126 = vpop.f32.mrb[0].mxu0
    %5127 = vmatprep.mubr.f32.mxu0 0.0
    %5128 = vmatmul.mubr.f32.gmra.mrb[0].mxu0 %v4996
    %v5129 = vpop.f32.mrb[0].mxu0
    %v5130 = vadd.f32 0.0, %v5129
    %v5131 = vpop.f32.mrb[0].mxu0
    %5132 = vmatprep.mubr.f32.mxu0 0.0
    %5133 = vmatmul.mubr.f32.gmra.mrb[0].mxu0 %v4999
    %v5134 = vpop.f32.mrb[0].mxu0
    %v5135 = vadd.f32 0.0, %v5134
    %v5136 = vpop.f32.mrb[0].mxu0
    %5137 = vmatprep.mubr.f32.mxu0 0.0
    %5138 = vmatmul.mubr.f32.gmra.mrb[0].mxu0 %v5002
    %v5139 = vpop.f32.mrb[0].mxu0
    %v5140 = vadd.f32 0.0, %v5139
    %v5141 = vpop.f32.mrb[0].mxu0
    %5142 = vmatprep.mubr.f32.mxu0 0.0
    %5143 = vmatmul.mubr.f32.gmra.mrb[0].mxu0 %v5005
    %v5144 = vpop.f32.mrb[0].mxu0
    %v5145 = vadd.f32 0.0, %v5144
    %v5146 = vpop.f32.mrb[0].mxu0
    %5147 = vmatprep.mubr.f32.mxu0 0.0
    %5148 = vmatmul.mubr.f32.gmra.mrb[0].mxu0 %v5008
    %v5149 = vpop.f32.mrb[0].mxu0
    %v5150 = vadd.f32 0.0, %v5149
    %v5151 = vpop.f32.mrb[0].mxu0
    %5152 = vmatprep.mubr.f32.mxu0 0.0
    %5153 = vmatmul.mubr.f32.gmra.mrb[0].mxu0 %v5011
    %v5154 = vpop.f32.mrb[0].mxu0
    %v5155 = vadd.f32 0.0, %v5154
    %v5156 = vpop.f32.mrb[0].mxu0
    %5157 = vdwg.mxu0
    %v5159 = vsel %vm441, %v4845, 0
    %v5162 = vsel %vm441, %v4846, 0
    %v5165 = vsel %vm441, %v4847, 0
    %v5168 = vsel %vm441, %v4848, 0
    %v5171 = vsel %vm441, %v4849, 0
    %v5174 = vsel %vm441, %v4850, 0
    %v5177 = vsel %vm441, %v4851, 0
    %v5180 = vsel %vm441, %v4852, 0
    %v5183 = vsel %vm441, %v4853, 0
    %v5186 = vsel %vm441, %v4854, 0
    %v5189 = vsel %vm441, %v4855, 0
    %v5192 = vsel %vm441, %v4856, 0
    %v5195 = vsel %vm441, %v4857, 0
    %v5198 = vsel %vm441, %v4858, 0
    %v5201 = vsel %vm441, %v4859, 0
    %v5204 = vsel %vm441, %v4860, 0
    %5206 = vmatprep.subr.mxu0 0.0
    %5207 = vmatpush1.msra.mxu0 %v4861
    %5208 = vmatprep.subr.mxu0 0.0
    %5209 = vmatpush1.msra.mxu0 %v4862
    %5210 = vmatprep.subr.mxu0 0.0
    %5211 = vmatpush1.msra.mxu0 %v4863
    %5212 = vmatprep.subr.mxu0 0.0
    %5213 = vmatpush1.msra.mxu0 %v4864
    %5214 = vmatprep.subr.mxu0 0.0
    %5215 = vmatpush1.msra.mxu0 0.0
    %5216 = vmatprep.subr.mxu0 0.0
    %5217 = vmatpush1.msra.mxu0 0.0
    %5218 = vmatprep.subr.mxu0 0.0
    %5219 = vmatpush1.msra.mxu0 0.0
    %5220 = vmatprep.subr.mxu0 0.0
    %5221 = vmatpush1.msra.mxu0 0.0
    %5222 = vmatprep.subr.mxu0 0.0
    %5223 = vmatpush1.msra.mxu0 0.0
    %5224 = vmatprep.subr.mxu0 0.0
    %5225 = vmatpush1.msra.mxu0 0.0
    %5226 = vmatprep.subr.mxu0 0.0
    %5227 = vmatpush1.msra.mxu0 0.0
    %5228 = vmatprep.subr.mxu0 0.0
    %5229 = vmatpush1.msra.mxu0 0.0
    %5230 = vmatprep.subr.mxu0 0.0
    %5231 = vmatpush1.msra.mxu0 0.0
    %5232 = vmatprep.subr.mxu0 0.0
    %5233 = vmatpush1.msra.mxu0 0.0
    %5234 = vmatprep.subr.mxu0 0.0
    %5235 = vmatpush1.msra.mxu0 0.0
    %5236 = vmatprep.subr.mxu0 0.0
    %5237 = vmatpush1.msra.mxu0 0.0
    %5238 = vmatprep.subr.mxu0 0.0
    %5239 = vmatpush1.msra.mxu0 0.0
    %5240 = vmatprep.subr.mxu0 0.0
    %5241 = vmatpush1.msra.mxu0 0.0
    %5242 = vmatprep.subr.mxu0 0.0
    %5243 = vmatpush1.msra.mxu0 0.0
    %5244 = vmatprep.subr.mxu0 0.0
    %5245 = vmatpush1.msra.mxu0 0.0
    %5246 = vmatprep.subr.mxu0 0.0
    %5247 = vmatpush1.msra.mxu0 0.0
    %5248 = vmatprep.subr.mxu0 0.0
    %5249 = vmatpush1.msra.mxu0 0.0
    %5250 = vmatprep.subr.mxu0 0.0
    %5251 = vmatpush1.msra.mxu0 0.0
    %5252 = vmatprep.subr.mxu0 0.0
    %5253 = vmatpush1.msra.mxu0 0.0
    %5254 = vmatprep.subr.mxu0 0.0
    %5255 = vmatpush1.msra.mxu0 0.0
    %5256 = vmatprep.subr.mxu0 0.0
    %5257 = vmatpush1.msra.mxu0 0.0
    %5258 = vmatprep.subr.mxu0 0.0
    %5259 = vmatpush1.msra.mxu0 0.0
    %5260 = vmatprep.subr.mxu0 0.0
    %5261 = vmatpush1.msra.mxu0 0.0
    %5262 = vmatprep.subr.mxu0 0.0
    %5263 = vmatpush1.msra.mxu0 0.0
    %5264 = vmatprep.subr.mxu0 0.0
    %5265 = vmatpush1.msra.mxu0 0.0
    %5266 = vmatprep.subr.mxu0 0.0
    %5267 = vmatpush1.msra.mxu0 0.0
    %5268 = vmatprep.subr.mxu0 0.0
    %5269 = vmatpush1.msra.mxu0 0.0
    %5270 = vmatprep.mubr.f32.mxu0 0.0
    %5271 = vmatmul.mubr.f32.gmra.mrb[0].mxu0 %v5159
    %v5272 = vpop.f32.mrb[0].mxu0
    %v5273 = vadd.f32 %v5080, %v5272
    %v5274 = vpop.f32.mrb[0].mxu0
    %5275 = vmatprep.mubr.f32.mxu0 0.0
    %5276 = vmatmul.mubr.f32.gmra.mrb[0].mxu0 %v5162
    %v5277 = vpop.f32.mrb[0].mxu0
    %v5278 = vadd.f32 %v5085, %v5277
    %v5279 = vpop.f32.mrb[0].mxu0
    %5280 = vmatprep.mubr.f32.mxu0 0.0
    %5281 = vmatmul.mubr.f32.gmra.mrb[0].mxu0 %v5165
    %v5282 = vpop.f32.mrb[0].mxu0
    %v5283 = vadd.f32 %v5090, %v5282
    %v5284 = vpop.f32.mrb[0].mxu0
    %5285 = vmatprep.mubr.f32.mxu0 0.0
    %5286 = vmatmul.mubr.f32.gmra.mrb[0].mxu0 %v5168
    %v5287 = vpop.f32.mrb[0].mxu0
    %v5288 = vadd.f32 %v5095, %v5287
    %v5289 = vpop.f32.mrb[0].mxu0
    %5290 = vmatprep.mubr.f32.mxu0 0.0
    %5291 = vmatmul.mubr.f32.gmra.mrb[0].mxu0 %v5171
    %v5292 = vpop.f32.mrb[0].mxu0
    %v5293 = vadd.f32 %v5100, %v5292
    %v5294 = vpop.f32.mrb[0].mxu0
    %5295 = vmatprep.mubr.f32.mxu0 0.0
    %5296 = vmatmul.mubr.f32.gmra.mrb[0].mxu0 %v5174
    %v5297 = vpop.f32.mrb[0].mxu0
    %v5298 = vadd.f32 %v5105, %v5297
    %v5299 = vpop.f32.mrb[0].mxu0
    %5300 = vmatprep.mubr.f32.mxu0 0.0
    %5301 = vmatmul.mubr.f32.gmra.mrb[0].mxu0 %v5177
    %v5302 = vpop.f32.mrb[0].mxu0
    %v5303 = vadd.f32 %v5110, %v5302
    %v5304 = vpop.f32.mrb[0].mxu0
    %5305 = vmatprep.mubr.f32.mxu0 0.0
    %5306 = vmatmul.mubr.f32.gmra.mrb[0].mxu0 %v5180
    %v5307 = vpop.f32.mrb[0].mxu0
    %v5308 = vadd.f32 %v5115, %v5307
    %v5309 = vpop.f32.mrb[0].mxu0
    %5310 = vmatprep.mubr.f32.mxu0 0.0
    %5311 = vmatmul.mubr.f32.gmra.mrb[0].mxu0 %v5183
    %v5312 = vpop.f32.mrb[0].mxu0
    %v5313 = vadd.f32 %v5120, %v5312
    %v5314 = vpop.f32.mrb[0].mxu0
    %5315 = vmatprep.mubr.f32.mxu0 0.0
    %5316 = vmatmul.mubr.f32.gmra.mrb[0].mxu0 %v5186
    %v5317 = vpop.f32.mrb[0].mxu0
    %v5318 = vadd.f32 %v5125, %v5317
    %v5319 = vpop.f32.mrb[0].mxu0
    %5320 = vmatprep.mubr.f32.mxu0 0.0
    %5321 = vmatmul.mubr.f32.gmra.mrb[0].mxu0 %v5189
    %v5322 = vpop.f32.mrb[0].mxu0
    %v5323 = vadd.f32 %v5130, %v5322
    %v5324 = vpop.f32.mrb[0].mxu0
    %5325 = vmatprep.mubr.f32.mxu0 0.0
    %5326 = vmatmul.mubr.f32.gmra.mrb[0].mxu0 %v5192
    %v5327 = vpop.f32.mrb[0].mxu0
    %v5328 = vadd.f32 %v5135, %v5327
    %v5329 = vpop.f32.mrb[0].mxu0
    %5330 = vmatprep.mubr.f32.mxu0 0.0
    %5331 = vmatmul.mubr.f32.gmra.mrb[0].mxu0 %v5195
    %v5332 = vpop.f32.mrb[0].mxu0
    %v5333 = vadd.f32 %v5140, %v5332
    %v5334 = vpop.f32.mrb[0].mxu0
    %5335 = vmatprep.mubr.f32.mxu0 0.0
    %5336 = vmatmul.mubr.f32.gmra.mrb[0].mxu0 %v5198
    %v5337 = vpop.f32.mrb[0].mxu0
    %v5338 = vadd.f32 %v5145, %v5337
    %v5339 = vpop.f32.mrb[0].mxu0
    %5340 = vmatprep.mubr.f32.mxu0 0.0
    %5341 = vmatmul.mubr.f32.gmra.mrb[0].mxu0 %v5201
    %v5342 = vpop.f32.mrb[0].mxu0
    %v5343 = vadd.f32 %v5150, %v5342
    %v5344 = vpop.f32.mrb[0].mxu0
    %5345 = vmatprep.mubr.f32.mxu0 0.0
    %5346 = vmatmul.mubr.f32.gmra.mrb[0].mxu0 %v5204
    %v5347 = vpop.f32.mrb[0].mxu0
    %v5348 = vadd.f32 %v5155, %v5347
    %v5349 = vpop.f32.mrb[0].mxu0
    %5350 = vdwg.mxu0
    %v5351 = vld [vmem:[#allocation4 + $0x2] sm:$0xff]
    %v5352 = vld [vmem:[#allocation4 + $0xa] sm:$0xff]
    %v5353 = vld [vmem:[#allocation4 + $0x12] sm:$0xff]
    %v5354 = vld [vmem:[#allocation4 + $0x1a] sm:$0xff]
    %v5355 = vld [vmem:[#allocation4 + $0x22] sm:$0xff]
    %v5356 = vld [vmem:[#allocation4 + $0x2a] sm:$0xff]
    %v5357 = vld [vmem:[#allocation4 + $0x32] sm:$0xff]
    %v5358 = vld [vmem:[#allocation4 + $0x3a] sm:$0xff]
    %v5359 = vld [vmem:[#allocation4 + $0x42] sm:$0xff]
    %v5360 = vld [vmem:[#allocation4 + $0x4a] sm:$0xff]
    %v5361 = vld [vmem:[#allocation4 + $0x52] sm:$0xff]
    %v5362 = vld [vmem:[#allocation4 + $0x5a] sm:$0xff]
    %v5363 = vld [vmem:[#allocation4 + $0x62] sm:$0xff]
    %v5364 = vld [vmem:[#allocation4 + $0x6a] sm:$0xff]
    %v5365 = vld [vmem:[#allocation4 + $0x72] sm:$0xff]
    %v5366 = vld [vmem:[#allocation4 + $0x7a] sm:$0xff]
    %5367 = vset.pattern.permute.xlu0 2
    %5368 = vperm.xlu0 %5367, %v4749
    %v5369 = vpop.permute.xlu0 %5368
    %5371 = vset.pattern.permute.xlu0 2
    %5372 = vperm.xlu0 %5371, %v4750
    %v5373 = vpop.permute.xlu0 %5372
    %5375 = vset.pattern.permute.xlu0 2
    %5376 = vperm.xlu0 %5375, %v4751
    %v5377 = vpop.permute.xlu0 %5376
    %5379 = vset.pattern.permute.xlu0 2
    %5380 = vperm.xlu0 %5379, %v4752
    %v5381 = vpop.permute.xlu0 %5380
    %5383 = vset.pattern.permute.xlu0 2
    %5384 = vperm.xlu0 %5383, %v4753
    %v5385 = vpop.permute.xlu0 %5384
    %5387 = vset.pattern.permute.xlu0 2
    %5388 = vperm.xlu0 %5387, %v4754
    %v5389 = vpop.permute.xlu0 %5388
    %5391 = vset.pattern.permute.xlu0 2
    %5392 = vperm.xlu0 %5391, %v4755
    %v5393 = vpop.permute.xlu0 %5392
    %5395 = vset.pattern.permute.xlu0 2
    %5396 = vperm.xlu0 %5395, %v4756
    %v5397 = vpop.permute.xlu0 %5396
    %5399 = vset.pattern.permute.xlu0 2
    %5400 = vperm.xlu0 %5399, %v4757
    %v5401 = vpop.permute.xlu0 %5400
    %5403 = vset.pattern.permute.xlu0 2
    %5404 = vperm.xlu0 %5403, %v4758
    %v5405 = vpop.permute.xlu0 %5404
    %5407 = vset.pattern.permute.xlu0 2
    %5408 = vperm.xlu0 %5407, %v4759
    %v5409 = vpop.permute.xlu0 %5408
    %5411 = vset.pattern.permute.xlu0 2
    %5412 = vperm.xlu0 %5411, %v4760
    %v5413 = vpop.permute.xlu0 %5412
    %5415 = vset.pattern.permute.xlu0 2
    %5416 = vperm.xlu0 %5415, %v4761
    %v5417 = vpop.permute.xlu0 %5416
    %5419 = vset.pattern.permute.xlu0 2
    %5420 = vperm.xlu0 %5419, %v4762
    %v5421 = vpop.permute.xlu0 %5420
    %5423 = vset.pattern.permute.xlu0 2
    %5424 = vperm.xlu0 %5423, %v4763
    %v5425 = vpop.permute.xlu0 %5424
    %5427 = vset.pattern.permute.xlu0 2
    %5428 = vperm.xlu0 %5427, %v4764
    %v5429 = vpop.permute.xlu0 %5428
    %v5431 = vmul.f32 %v5351, %v5369
    %v5432 = vmul.f32 %v5352, %v5373
    %v5433 = vmul.f32 %v5353, %v5377
    %v5434 = vmul.f32 %v5354, %v5381
    %v5435 = vmul.f32 %v5355, %v5385
    %v5436 = vmul.f32 %v5356, %v5389
    %v5437 = vmul.f32 %v5357, %v5393
    %v5438 = vmul.f32 %v5358, %v5397
    %v5439 = vmul.f32 %v5359, %v5401
    %v5440 = vmul.f32 %v5360, %v5405
    %v5441 = vmul.f32 %v5361, %v5409
    %v5442 = vmul.f32 %v5362, %v5413
    %v5443 = vmul.f32 %v5363, %v5417
    %v5444 = vmul.f32 %v5364, %v5421
    %v5445 = vmul.f32 %v5365, %v5425
    %v5446 = vmul.f32 %v5366, %v5429
    %v5447 = vld [vmem:[%s91 + $0x40] sm:$0xff]
    %v5448 = vld [vmem:[%s91 + $0x48] sm:$0xff]
    %v5449 = vld [vmem:[%s91 + $0x50] sm:$0xff]
    %v5450 = vld [vmem:[%s91 + $0x58] sm:$0xff]
    %v5452 = vsel %vm441, %v5431, 0
    %v5455 = vsel %vm441, %v5432, 0
    %v5458 = vsel %vm441, %v5433, 0
    %v5461 = vsel %vm441, %v5434, 0
    %v5464 = vsel %vm441, %v5435, 0
    %v5467 = vsel %vm441, %v5436, 0
    %v5470 = vsel %vm441, %v5437, 0
    %v5473 = vsel %vm441, %v5438, 0
    %v5476 = vsel %vm441, %v5439, 0
    %v5479 = vsel %vm441, %v5440, 0
    %v5482 = vsel %vm441, %v5441, 0
    %v5485 = vsel %vm441, %v5442, 0
    %v5488 = vsel %vm441, %v5443, 0
    %v5491 = vsel %vm441, %v5444, 0
    %v5494 = vsel %vm441, %v5445, 0
    %v5497 = vsel %vm441, %v5446, 0
    %5499 = vmatprep.subr.mxu0 0.0
    %5500 = vmatpush1.msra.mxu0 %v5447
    %5501 = vmatprep.subr.mxu0 0.0
    %5502 = vmatpush1.msra.mxu0 %v5448
    %5503 = vmatprep.subr.mxu0 0.0
    %5504 = vmatpush1.msra.mxu0 %v5449
    %5505 = vmatprep.subr.mxu0 0.0
    %5506 = vmatpush1.msra.mxu0 %v5450
    %5507 = vmatprep.subr.mxu0 0.0
    %5508 = vmatpush1.msra.mxu0 0.0
    %5509 = vmatprep.subr.mxu0 0.0
    %5510 = vmatpush1.msra.mxu0 0.0
    %5511 = vmatprep.subr.mxu0 0.0
    %5512 = vmatpush1.msra.mxu0 0.0
    %5513 = vmatprep.subr.mxu0 0.0
    %5514 = vmatpush1.msra.mxu0 0.0
    %5515 = vmatprep.subr.mxu0 0.0
    %5516 = vmatpush1.msra.mxu0 0.0
    %5517 = vmatprep.subr.mxu0 0.0
    %5518 = vmatpush1.msra.mxu0 0.0
    %5519 = vmatprep.subr.mxu0 0.0
    %5520 = vmatpush1.msra.mxu0 0.0
    %5521 = vmatprep.subr.mxu0 0.0
    %5522 = vmatpush1.msra.mxu0 0.0
    %5523 = vmatprep.subr.mxu0 0.0
    %5524 = vmatpush1.msra.mxu0 0.0
    %5525 = vmatprep.subr.mxu0 0.0
    %5526 = vmatpush1.msra.mxu0 0.0
    %5527 = vmatprep.subr.mxu0 0.0
    %5528 = vmatpush1.msra.mxu0 0.0
    %5529 = vmatprep.subr.mxu0 0.0
    %5530 = vmatpush1.msra.mxu0 0.0
    %5531 = vmatprep.subr.mxu0 0.0
    %5532 = vmatpush1.msra.mxu0 0.0
    %5533 = vmatprep.subr.mxu0 0.0
    %5534 = vmatpush1.msra.mxu0 0.0
    %5535 = vmatprep.subr.mxu0 0.0
    %5536 = vmatpush1.msra.mxu0 0.0
    %5537 = vmatprep.subr.mxu0 0.0
    %5538 = vmatpush1.msra.mxu0 0.0
    %5539 = vmatprep.subr.mxu0 0.0
    %5540 = vmatpush1.msra.mxu0 0.0
    %5541 = vmatprep.subr.mxu0 0.0
    %5542 = vmatpush1.msra.mxu0 0.0
    %5543 = vmatprep.subr.mxu0 0.0
    %5544 = vmatpush1.msra.mxu0 0.0
    %5545 = vmatprep.subr.mxu0 0.0
    %5546 = vmatpush1.msra.mxu0 0.0
    %5547 = vmatprep.subr.mxu0 0.0
    %5548 = vmatpush1.msra.mxu0 0.0
    %5549 = vmatprep.subr.mxu0 0.0
    %5550 = vmatpush1.msra.mxu0 0.0
    %5551 = vmatprep.subr.mxu0 0.0
    %5552 = vmatpush1.msra.mxu0 0.0
    %5553 = vmatprep.subr.mxu0 0.0
    %5554 = vmatpush1.msra.mxu0 0.0
    %5555 = vmatprep.subr.mxu0 0.0
    %5556 = vmatpush1.msra.mxu0 0.0
    %5557 = vmatprep.subr.mxu0 0.0
    %5558 = vmatpush1.msra.mxu0 0.0
    %5559 = vmatprep.subr.mxu0 0.0
    %5560 = vmatpush1.msra.mxu0 0.0
    %5561 = vmatprep.subr.mxu0 0.0
    %5562 = vmatpush1.msra.mxu0 0.0
    %5563 = vmatprep.mubr.f32.mxu0 0.0
    %5564 = vmatmul.mubr.f32.gmra.mrb[0].mxu0 %v5452
    %v5565 = vpop.f32.mrb[0].mxu0
    %v5566 = vadd.f32 0.0, %v5565
    %v5567 = vpop.f32.mrb[0].mxu0
    %5568 = vmatprep.mubr.f32.mxu0 0.0
    %5569 = vmatmul.mubr.f32.gmra.mrb[0].mxu0 %v5455
    %v5570 = vpop.f32.mrb[0].mxu0
    %v5571 = vadd.f32 0.0, %v5570
    %v5572 = vpop.f32.mrb[0].mxu0
    %5573 = vmatprep.mubr.f32.mxu0 0.0
    %5574 = vmatmul.mubr.f32.gmra.mrb[0].mxu0 %v5458
    %v5575 = vpop.f32.mrb[0].mxu0
    %v5576 = vadd.f32 0.0, %v5575
    %v5577 = vpop.f32.mrb[0].mxu0
    %5578 = vmatprep.mubr.f32.mxu0 0.0
    %5579 = vmatmul.mubr.f32.gmra.mrb[0].mxu0 %v5461
    %v5580 = vpop.f32.mrb[0].mxu0
    %v5581 = vadd.f32 0.0, %v5580
    %v5582 = vpop.f32.mrb[0].mxu0
    %5583 = vmatprep.mubr.f32.mxu0 0.0
    %5584 = vmatmul.mubr.f32.gmra.mrb[0].mxu0 %v5464
    %v5585 = vpop.f32.mrb[0].mxu0
    %v5586 = vadd.f32 0.0, %v5585
    %v5587 = vpop.f32.mrb[0].mxu0
    %5588 = vmatprep.mubr.f32.mxu0 0.0
    %5589 = vmatmul.mubr.f32.gmra.mrb[0].mxu0 %v5467
    %v5590 = vpop.f32.mrb[0].mxu0
    %v5591 = vadd.f32 0.0, %v5590
    %v5592 = vpop.f32.mrb[0].mxu0
    %5593 = vmatprep.mubr.f32.mxu0 0.0
    %5594 = vmatmul.mubr.f32.gmra.mrb[0].mxu0 %v5470
    %v5595 = vpop.f32.mrb[0].mxu0
    %v5596 = vadd.f32 0.0, %v5595
    %v5597 = vpop.f32.mrb[0].mxu0
    %5598 = vmatprep.mubr.f32.mxu0 0.0
    %5599 = vmatmul.mubr.f32.gmra.mrb[0].mxu0 %v5473
    %v5600 = vpop.f32.mrb[0].mxu0
    %v5601 = vadd.f32 0.0, %v5600
    %v5602 = vpop.f32.mrb[0].mxu0
    %5603 = vmatprep.mubr.f32.mxu0 0.0
    %5604 = vmatmul.mubr.f32.gmra.mrb[0].mxu0 %v5476
    %v5605 = vpop.f32.mrb[0].mxu0
    %v5606 = vadd.f32 0.0, %v5605
    %v5607 = vpop.f32.mrb[0].mxu0
    %5608 = vmatprep.mubr.f32.mxu0 0.0
    %5609 = vmatmul.mubr.f32.gmra.mrb[0].mxu0 %v5479
    %v5610 = vpop.f32.mrb[0].mxu0
    %v5611 = vadd.f32 0.0, %v5610
    %v5612 = vpop.f32.mrb[0].mxu0
    %5613 = vmatprep.mubr.f32.mxu0 0.0
    %5614 = vmatmul.mubr.f32.gmra.mrb[0].mxu0 %v5482
    %v5615 = vpop.f32.mrb[0].mxu0
    %v5616 = vadd.f32 0.0, %v5615
    %v5617 = vpop.f32.mrb[0].mxu0
    %5618 = vmatprep.mubr.f32.mxu0 0.0
    %5619 = vmatmul.mubr.f32.gmra.mrb[0].mxu0 %v5485
    %v5620 = vpop.f32.mrb[0].mxu0
    %v5621 = vadd.f32 0.0, %v5620
    %v5622 = vpop.f32.mrb[0].mxu0
    %5623 = vmatprep.mubr.f32.mxu0 0.0
    %5624 = vmatmul.mubr.f32.gmra.mrb[0].mxu0 %v5488
    %v5625 = vpop.f32.mrb[0].mxu0
    %v5626 = vadd.f32 0.0, %v5625
    %v5627 = vpop.f32.mrb[0].mxu0
    %5628 = vmatprep.mubr.f32.mxu0 0.0
    %5629 = vmatmul.mubr.f32.gmra.mrb[0].mxu0 %v5491
    %v5630 = vpop.f32.mrb[0].mxu0
    %v5631 = vadd.f32 0.0, %v5630
    %v5632 = vpop.f32.mrb[0].mxu0
    %5633 = vmatprep.mubr.f32.mxu0 0.0
    %5634 = vmatmul.mubr.f32.gmra.mrb[0].mxu0 %v5494
    %v5635 = vpop.f32.mrb[0].mxu0
    %v5636 = vadd.f32 0.0, %v5635
    %v5637 = vpop.f32.mrb[0].mxu0
    %5638 = vmatprep.mubr.f32.mxu0 0.0
    %5639 = vmatmul.mubr.f32.gmra.mrb[0].mxu0 %v5497
    %v5640 = vpop.f32.mrb[0].mxu0
    %v5641 = vadd.f32 0.0, %v5640
    %v5642 = vpop.f32.mrb[0].mxu0
    %5643 = vdwg.mxu0
    %v5644 = vadd.f32 %v5273, %v5566
    %v5645 = vadd.f32 %v5278, %v5571
    %v5646 = vadd.f32 %v5283, %v5576
    %v5647 = vadd.f32 %v5288, %v5581
    %v5648 = vadd.f32 %v5293, %v5586
    %v5649 = vadd.f32 %v5298, %v5591
    %v5650 = vadd.f32 %v5303, %v5596
    %v5651 = vadd.f32 %v5308, %v5601
    %v5652 = vadd.f32 %v5313, %v5606
    %v5653 = vadd.f32 %v5318, %v5611
    %v5654 = vadd.f32 %v5323, %v5616
    %v5655 = vadd.f32 %v5328, %v5621
    %v5656 = vadd.f32 %v5333, %v5626
    %v5657 = vadd.f32 %v5338, %v5631
    %v5658 = vadd.f32 %v5343, %v5636
    %v5659 = vadd.f32 %v5348, %v5641
    %v5660 = vld [vmem:[#allocation4 + $0x8] sm:$0xff]
    %v5661 = vld [vmem:[#allocation4 + $0x10] sm:$0xff]
    %v5662 = vld [vmem:[#allocation4 + $0x18] sm:$0xff]
    %v5663 = vld [vmem:[#allocation4 + $0x20] sm:$0xff]
    %v5664 = vld [vmem:[#allocation4 + $0x28] sm:$0xff]
    %v5665 = vld [vmem:[#allocation4 + $0x30] sm:$0xff]
    %v5666 = vld [vmem:[#allocation4 + $0x38] sm:$0xff]
    %v5667 = vld [vmem:[#allocation4 + $0x40] sm:$0xff]
    %v5668 = vld [vmem:[#allocation4 + $0x48] sm:$0xff]
    %v5669 = vld [vmem:[#allocation4 + $0x50] sm:$0xff]
    %v5670 = vld [vmem:[#allocation4 + $0x58] sm:$0xff]
    %v5671 = vld [vmem:[#allocation4 + $0x60] sm:$0xff]
    %v5672 = vld [vmem:[#allocation4 + $0x68] sm:$0xff]
    %v5673 = vld [vmem:[#allocation4 + $0x70] sm:$0xff]
    %v5674 = vld [vmem:[#allocation4 + $0x78] sm:$0xff]
    %v5675 = vld [vmem:[#allocation4 + $0x80] sm:$0xff]
    %5676 = vset.pattern.permute.xlu0 3
    %5677 = vperm.xlu0 %5676, %v4749
    %v5678 = vpop.permute.xlu0 %5677
    %5680 = vset.pattern.permute.xlu0 3
    %5681 = vperm.xlu0 %5680, %v4750
    %v5682 = vpop.permute.xlu0 %5681
    %5684 = vset.pattern.permute.xlu0 3
    %5685 = vperm.xlu0 %5684, %v4751
    %v5686 = vpop.permute.xlu0 %5685
    %5688 = vset.pattern.permute.xlu0 3
    %5689 = vperm.xlu0 %5688, %v4752
    %v5690 = vpop.permute.xlu0 %5689
    %5692 = vset.pattern.permute.xlu0 3
    %5693 = vperm.xlu0 %5692, %v4753
    %v5694 = vpop.permute.xlu0 %5693
    %5696 = vset.pattern.permute.xlu0 3
    %5697 = vperm.xlu0 %5696, %v4754
    %v5698 = vpop.permute.xlu0 %5697
    %5700 = vset.pattern.permute.xlu0 3
    %5701 = vperm.xlu0 %5700, %v4755
    %v5702 = vpop.permute.xlu0 %5701
    %5704 = vset.pattern.permute.xlu0 3
    %5705 = vperm.xlu0 %5704, %v4756
    %v5706 = vpop.permute.xlu0 %5705
    %5708 = vset.pattern.permute.xlu0 3
    %5709 = vperm.xlu0 %5708, %v4757
    %v5710 = vpop.permute.xlu0 %5709
    %5712 = vset.pattern.permute.xlu0 3
    %5713 = vperm.xlu0 %5712, %v4758
    %v5714 = vpop.permute.xlu0 %5713
    %5716 = vset.pattern.permute.xlu0 3
    %5717 = vperm.xlu0 %5716, %v4759
    %v5718 = vpop.permute.xlu0 %5717
    %5720 = vset.pattern.permute.xlu0 3
    %5721 = vperm.xlu0 %5720, %v4760
    %v5722 = vpop.permute.xlu0 %5721
    %5724 = vset.pattern.permute.xlu0 3
    %5725 = vperm.xlu0 %5724, %v4761
    %v5726 = vpop.permute.xlu0 %5725
    %5728 = vset.pattern.permute.xlu0 3
    %5729 = vperm.xlu0 %5728, %v4762
    %v5730 = vpop.permute.xlu0 %5729
    %5732 = vset.pattern.permute.xlu0 3
    %5733 = vperm.xlu0 %5732, %v4763
    %v5734 = vpop.permute.xlu0 %5733
    %5736 = vset.pattern.permute.xlu0 3
    %5737 = vperm.xlu0 %5736, %v4764
    %v5738 = vpop.permute.xlu0 %5737
    %v5740 = vmul.f32 %v5660, %v5678
    %v5741 = vmul.f32 %v5661, %v5682
    %v5742 = vmul.f32 %v5662, %v5686
    %v5743 = vmul.f32 %v5663, %v5690
    %v5744 = vmul.f32 %v5664, %v5694
    %v5745 = vmul.f32 %v5665, %v5698
    %v5746 = vmul.f32 %v5666, %v5702
    %v5747 = vmul.f32 %v5667, %v5706
    %v5748 = vmul.f32 %v5668, %v5710
    %v5749 = vmul.f32 %v5669, %v5714
    %v5750 = vmul.f32 %v5670, %v5718
    %v5751 = vmul.f32 %v5671, %v5722
    %v5752 = vmul.f32 %v5672, %v5726
    %v5753 = vmul.f32 %v5673, %v5730
    %v5754 = vmul.f32 %v5674, %v5734
    %v5755 = vmul.f32 %v5675, %v5738
    %v5756 = vld [vmem:[%s91 + $0x60] sm:$0xff]
    %v5757 = vld [vmem:[%s91 + $0x68] sm:$0xff]
    %v5758 = vld [vmem:[%s91 + $0x70] sm:$0xff]
    %v5759 = vld [vmem:[%s91 + $0x78] sm:$0xff]
    %v5761 = vsel %vm441, %v5740, 0
    %v5764 = vsel %vm441, %v5741, 0
    %v5767 = vsel %vm441, %v5742, 0
    %v5770 = vsel %vm441, %v5743, 0
    %v5773 = vsel %vm441, %v5744, 0
    %v5776 = vsel %vm441, %v5745, 0
    %v5779 = vsel %vm441, %v5746, 0
    %v5782 = vsel %vm441, %v5747, 0
    %v5785 = vsel %vm441, %v5748, 0
    %v5788 = vsel %vm441, %v5749, 0
    %v5791 = vsel %vm441, %v5750, 0
    %v5794 = vsel %vm441, %v5751, 0
    %v5797 = vsel %vm441, %v5752, 0
    %v5800 = vsel %vm441, %v5753, 0
    %v5803 = vsel %vm441, %v5754, 0
    %v5806 = vsel %vm441, %v5755, 0
    %5808 = vmatprep.subr.mxu0 0.0
    %5809 = vmatpush1.msra.mxu0 %v5756
    %5810 = vmatprep.subr.mxu0 0.0
    %5811 = vmatpush1.msra.mxu0 %v5757
    %5812 = vmatprep.subr.mxu0 0.0
    %5813 = vmatpush1.msra.mxu0 %v5758
    %5814 = vmatprep.subr.mxu0 0.0
    %5815 = vmatpush1.msra.mxu0 %v5759
    %5816 = vmatprep.subr.mxu0 0.0
    %5817 = vmatpush1.msra.mxu0 0.0
    %5818 = vmatprep.subr.mxu0 0.0
    %5819 = vmatpush1.msra.mxu0 0.0
    %5820 = vmatprep.subr.mxu0 0.0
    %5821 = vmatpush1.msra.mxu0 0.0
    %5822 = vmatprep.subr.mxu0 0.0
    %5823 = vmatpush1.msra.mxu0 0.0
    %5824 = vmatprep.subr.mxu0 0.0
    %5825 = vmatpush1.msra.mxu0 0.0
    %5826 = vmatprep.subr.mxu0 0.0
    %5827 = vmatpush1.msra.mxu0 0.0
    %5828 = vmatprep.subr.mxu0 0.0
    %5829 = vmatpush1.msra.mxu0 0.0
    %5830 = vmatprep.subr.mxu0 0.0
    %5831 = vmatpush1.msra.mxu0 0.0
    %5832 = vmatprep.subr.mxu0 0.0
    %5833 = vmatpush1.msra.mxu0 0.0
    %5834 = vmatprep.subr.mxu0 0.0
    %5835 = vmatpush1.msra.mxu0 0.0
    %5836 = vmatprep.subr.mxu0 0.0
    %5837 = vmatpush1.msra.mxu0 0.0
    %5838 = vmatprep.subr.mxu0 0.0
    %5839 = vmatpush1.msra.mxu0 0.0
    %5840 = vmatprep.subr.mxu0 0.0
    %5841 = vmatpush1.msra.mxu0 0.0
    %5842 = vmatprep.subr.mxu0 0.0
    %5843 = vmatpush1.msra.mxu0 0.0
    %5844 = vmatprep.subr.mxu0 0.0
    %5845 = vmatpush1.msra.mxu0 0.0
    %5846 = vmatprep.subr.mxu0 0.0
    %5847 = vmatpush1.msra.mxu0 0.0
    %5848 = vmatprep.subr.mxu0 0.0
    %5849 = vmatpush1.msra.mxu0 0.0
    %5850 = vmatprep.subr.mxu0 0.0
    %5851 = vmatpush1.msra.mxu0 0.0
    %5852 = vmatprep.subr.mxu0 0.0
    %5853 = vmatpush1.msra.mxu0 0.0
    %5854 = vmatprep.subr.mxu0 0.0
    %5855 = vmatpush1.msra.mxu0 0.0
    %5856 = vmatprep.subr.mxu0 0.0
    %5857 = vmatpush1.msra.mxu0 0.0
    %5858 = vmatprep.subr.mxu0 0.0
    %5859 = vmatpush1.msra.mxu0 0.0
    %5860 = vmatprep.subr.mxu0 0.0
    %5861 = vmatpush1.msra.mxu0 0.0
    %5862 = vmatprep.subr.mxu0 0.0
    %5863 = vmatpush1.msra.mxu0 0.0
    %5864 = vmatprep.subr.mxu0 0.0
    %5865 = vmatpush1.msra.mxu0 0.0
    %5866 = vmatprep.subr.mxu0 0.0
    %5867 = vmatpush1.msra.mxu0 0.0
    %5868 = vmatprep.subr.mxu0 0.0
    %5869 = vmatpush1.msra.mxu0 0.0
    %5870 = vmatprep.subr.mxu0 0.0
    %5871 = vmatpush1.msra.mxu0 0.0
    %5872 = vmatprep.mubr.f32.mxu0 0.0
    %5873 = vmatmul.mubr.f32.gmra.mrb[0].mxu0 %v5761
    %v5874 = vpop.f32.mrb[0].mxu0
    %v5875 = vadd.f32 0.0, %v5874
    %v5876 = vpop.f32.mrb[0].mxu0
    %5877 = vmatprep.mubr.f32.mxu0 0.0
    %5878 = vmatmul.mubr.f32.gmra.mrb[0].mxu0 %v5764
    %v5879 = vpop.f32.mrb[0].mxu0
    %v5880 = vadd.f32 0.0, %v5879
    %v5881 = vpop.f32.mrb[0].mxu0
    %5882 = vmatprep.mubr.f32.mxu0 0.0
    %5883 = vmatmul.mubr.f32.gmra.mrb[0].mxu0 %v5767
    %v5884 = vpop.f32.mrb[0].mxu0
    %v5885 = vadd.f32 0.0, %v5884
    %v5886 = vpop.f32.mrb[0].mxu0
    %5887 = vmatprep.mubr.f32.mxu0 0.0
    %5888 = vmatmul.mubr.f32.gmra.mrb[0].mxu0 %v5770
    %v5889 = vpop.f32.mrb[0].mxu0
    %v5890 = vadd.f32 0.0, %v5889
    %v5891 = vpop.f32.mrb[0].mxu0
    %5892 = vmatprep.mubr.f32.mxu0 0.0
    %5893 = vmatmul.mubr.f32.gmra.mrb[0].mxu0 %v5773
    %v5894 = vpop.f32.mrb[0].mxu0
    %v5895 = vadd.f32 0.0, %v5894
    %v5896 = vpop.f32.mrb[0].mxu0
    %5897 = vmatprep.mubr.f32.mxu0 0.0
    %5898 = vmatmul.mubr.f32.gmra.mrb[0].mxu0 %v5776
    %v5899 = vpop.f32.mrb[0].mxu0
    %v5900 = vadd.f32 0.0, %v5899
    %v5901 = vpop.f32.mrb[0].mxu0
    %5902 = vmatprep.mubr.f32.mxu0 0.0
    %5903 = vmatmul.mubr.f32.gmra.mrb[0].mxu0 %v5779
    %v5904 = vpop.f32.mrb[0].mxu0
    %v5905 = vadd.f32 0.0, %v5904
    %v5906 = vpop.f32.mrb[0].mxu0
    %5907 = vmatprep.mubr.f32.mxu0 0.0
    %5908 = vmatmul.mubr.f32.gmra.mrb[0].mxu0 %v5782
    %v5909 = vpop.f32.mrb[0].mxu0
    %v5910 = vadd.f32 0.0, %v5909
    %v5911 = vpop.f32.mrb[0].mxu0
    %5912 = vmatprep.mubr.f32.mxu0 0.0
    %5913 = vmatmul.mubr.f32.gmra.mrb[0].mxu0 %v5785
    %v5914 = vpop.f32.mrb[0].mxu0
    %v5915 = vadd.f32 0.0, %v5914
    %v5916 = vpop.f32.mrb[0].mxu0
    %5917 = vmatprep.mubr.f32.mxu0 0.0
    %5918 = vmatmul.mubr.f32.gmra.mrb[0].mxu0 %v5788
    %v5919 = vpop.f32.mrb[0].mxu0
    %v5920 = vadd.f32 0.0, %v5919
    %v5921 = vpop.f32.mrb[0].mxu0
    %5922 = vmatprep.mubr.f32.mxu0 0.0
    %5923 = vmatmul.mubr.f32.gmra.mrb[0].mxu0 %v5791
    %v5924 = vpop.f32.mrb[0].mxu0
    %v5925 = vadd.f32 0.0, %v5924
    %v5926 = vpop.f32.mrb[0].mxu0
    %5927 = vmatprep.mubr.f32.mxu0 0.0
    %5928 = vmatmul.mubr.f32.gmra.mrb[0].mxu0 %v5794
    %v5929 = vpop.f32.mrb[0].mxu0
    %v5930 = vadd.f32 0.0, %v5929
    %v5931 = vpop.f32.mrb[0].mxu0
    %5932 = vmatprep.mubr.f32.mxu0 0.0
    %5933 = vmatmul.mubr.f32.gmra.mrb[0].mxu0 %v5797
    %v5934 = vpop.f32.mrb[0].mxu0
    %v5935 = vadd.f32 0.0, %v5934
    %v5936 = vpop.f32.mrb[0].mxu0
    %5937 = vmatprep.mubr.f32.mxu0 0.0
    %5938 = vmatmul.mubr.f32.gmra.mrb[0].mxu0 %v5800
    %v5939 = vpop.f32.mrb[0].mxu0
    %v5940 = vadd.f32 0.0, %v5939
    %v5941 = vpop.f32.mrb[0].mxu0
    %5942 = vmatprep.mubr.f32.mxu0 0.0
    %5943 = vmatmul.mubr.f32.gmra.mrb[0].mxu0 %v5803
    %v5944 = vpop.f32.mrb[0].mxu0
    %v5945 = vadd.f32 0.0, %v5944
    %v5946 = vpop.f32.mrb[0].mxu0
    %5947 = vmatprep.mubr.f32.mxu0 0.0
    %5948 = vmatmul.mubr.f32.gmra.mrb[0].mxu0 %v5806
    %v5949 = vpop.f32.mrb[0].mxu0
    %v5950 = vadd.f32 0.0, %v5949
    %v5951 = vpop.f32.mrb[0].mxu0
    %5952 = vdwg.mxu0
    %v5953 = vadd.f32 %v5644, %v5875
    %v5954 = vadd.f32 %v5645, %v5880
    %v5955 = vadd.f32 %v5646, %v5885
    %v5956 = vadd.f32 %v5647, %v5890
    %v5957 = vadd.f32 %v5648, %v5895
    %v5958 = vadd.f32 %v5649, %v5900
    %v5959 = vadd.f32 %v5650, %v5905
    %v5960 = vadd.f32 %v5651, %v5910
    %v5961 = vadd.f32 %v5652, %v5915
    %v5962 = vadd.f32 %v5653, %v5920
    %v5963 = vadd.f32 %v5654, %v5925
    %v5964 = vadd.f32 %v5655, %v5930
    %v5965 = vadd.f32 %v5656, %v5935
    %v5966 = vadd.f32 %v5657, %v5940
    %v5967 = vadd.f32 %v5658, %v5945
    %v5968 = vadd.f32 %v5659, %v5950
    %v5969 = vld [vmem:[#allocation4 + $0x9] sm:$0xff]
    %v5970 = vld [vmem:[#allocation4 + $0x11] sm:$0xff]
    %v5971 = vld [vmem:[#allocation4 + $0x19] sm:$0xff]
    %v5972 = vld [vmem:[#allocation4 + $0x21] sm:$0xff]
    %v5973 = vld [vmem:[#allocation4 + $0x29] sm:$0xff]
    %v5974 = vld [vmem:[#allocation4 + $0x31] sm:$0xff]
    %v5975 = vld [vmem:[#allocation4 + $0x39] sm:$0xff]
    %v5976 = vld [vmem:[#allocation4 + $0x41] sm:$0xff]
    %v5977 = vld [vmem:[#allocation4 + $0x49] sm:$0xff]
    %v5978 = vld [vmem:[#allocation4 + $0x51] sm:$0xff]
    %v5979 = vld [vmem:[#allocation4 + $0x59] sm:$0xff]
    %v5980 = vld [vmem:[#allocation4 + $0x61] sm:$0xff]
    %v5981 = vld [vmem:[#allocation4 + $0x69] sm:$0xff]
    %v5982 = vld [vmem:[#allocation4 + $0x71] sm:$0xff]
    %v5983 = vld [vmem:[#allocation4 + $0x79] sm:$0xff]
    %v5984 = vld [vmem:[#allocation4 + $0x81] sm:$0xff]
    %5985 = vset.pattern.permute.xlu0 4
    %5986 = vperm.xlu0 %5985, %v4749
    %v5987 = vpop.permute.xlu0 %5986
    %5989 = vset.pattern.permute.xlu0 4
    %5990 = vperm.xlu0 %5989, %v4750
    %v5991 = vpop.permute.xlu0 %5990
    %5993 = vset.pattern.permute.xlu0 4
    %5994 = vperm.xlu0 %5993, %v4751
    %v5995 = vpop.permute.xlu0 %5994
    %5997 = vset.pattern.permute.xlu0 4
    %5998 = vperm.xlu0 %5997, %v4752
    %v5999 = vpop.permute.xlu0 %5998
    %6001 = vset.pattern.permute.xlu0 4
    %6002 = vperm.xlu0 %6001, %v4753
    %v6003 = vpop.permute.xlu0 %6002
    %6005 = vset.pattern.permute.xlu0 4
    %6006 = vperm.xlu0 %6005, %v4754
    %v6007 = vpop.permute.xlu0 %6006
    %6009 = vset.pattern.permute.xlu0 4
    %6010 = vperm.xlu0 %6009, %v4755
    %v6011 = vpop.permute.xlu0 %6010
    %6013 = vset.pattern.permute.xlu0 4
    %6014 = vperm.xlu0 %6013, %v4756
    %v6015 = vpop.permute.xlu0 %6014
    %6017 = vset.pattern.permute.xlu0 4
    %6018 = vperm.xlu0 %6017, %v4757
    %v6019 = vpop.permute.xlu0 %6018
    %6021 = vset.pattern.permute.xlu0 4
    %6022 = vperm.xlu0 %6021, %v4758
    %v6023 = vpop.permute.xlu0 %6022
    %6025 = vset.pattern.permute.xlu0 4
    %6026 = vperm.xlu0 %6025, %v4759
    %v6027 = vpop.permute.xlu0 %6026
    %6029 = vset.pattern.permute.xlu0 4
    %6030 = vperm.xlu0 %6029, %v4760
    %v6031 = vpop.permute.xlu0 %6030
    %6033 = vset.pattern.permute.xlu0 4
    %6034 = vperm.xlu0 %6033, %v4761
    %v6035 = vpop.permute.xlu0 %6034
    %6037 = vset.pattern.permute.xlu0 4
    %6038 = vperm.xlu0 %6037, %v4762
    %v6039 = vpop.permute.xlu0 %6038
    %6041 = vset.pattern.permute.xlu0 4
    %6042 = vperm.xlu0 %6041, %v4763
    %v6043 = vpop.permute.xlu0 %6042
    %6045 = vset.pattern.permute.xlu0 4
    %6046 = vperm.xlu0 %6045, %v4764
    %v6047 = vpop.permute.xlu0 %6046
    %v6049 = vmul.f32 %v5969, %v5987
    %v6050 = vmul.f32 %v5970, %v5991
    %v6051 = vmul.f32 %v5971, %v5995
    %v6052 = vmul.f32 %v5972, %v5999
    %v6053 = vmul.f32 %v5973, %v6003
    %v6054 = vmul.f32 %v5974, %v6007
    %v6055 = vmul.f32 %v5975, %v6011
    %v6056 = vmul.f32 %v5976, %v6015
    %v6057 = vmul.f32 %v5977, %v6019
    %v6058 = vmul.f32 %v5978, %v6023
    %v6059 = vmul.f32 %v5979, %v6027
    %v6060 = vmul.f32 %v5980, %v6031
    %v6061 = vmul.f32 %v5981, %v6035
    %v6062 = vmul.f32 %v5982, %v6039
    %v6063 = vmul.f32 %v5983, %v6043
    %v6064 = vmul.f32 %v5984, %v6047
    %v6065 = vld [vmem:[%s91 + $0x80] sm:$0xff]
    %v6066 = vld [vmem:[%s91 + $0x88] sm:$0xff]
    %v6067 = vld [vmem:[%s91 + $0x90] sm:$0xff]
    %v6068 = vld [vmem:[%s91 + $0x98] sm:$0xff]
    %v6070 = vsel %vm441, %v6049, 0
    %v6073 = vsel %vm441, %v6050, 0
    %v6076 = vsel %vm441, %v6051, 0
    %v6079 = vsel %vm441, %v6052, 0
    %v6082 = vsel %vm441, %v6053, 0
    %v6085 = vsel %vm441, %v6054, 0
    %v6088 = vsel %vm441, %v6055, 0
    %v6091 = vsel %vm441, %v6056, 0
    %v6094 = vsel %vm441, %v6057, 0
    %v6097 = vsel %vm441, %v6058, 0
    %v6100 = vsel %vm441, %v6059, 0
    %v6103 = vsel %vm441, %v6060, 0
    %v6106 = vsel %vm441, %v6061, 0
    %v6109 = vsel %vm441, %v6062, 0
    %v6112 = vsel %vm441, %v6063, 0
    %v6115 = vsel %vm441, %v6064, 0
    %6117 = vmatprep.subr.mxu0 0.0
    %6118 = vmatpush1.msra.mxu0 %v6065
    %6119 = vmatprep.subr.mxu0 0.0
    %6120 = vmatpush1.msra.mxu0 %v6066
    %6121 = vmatprep.subr.mxu0 0.0
    %6122 = vmatpush1.msra.mxu0 %v6067
    %6123 = vmatprep.subr.mxu0 0.0
    %6124 = vmatpush1.msra.mxu0 %v6068
    %6125 = vmatprep.subr.mxu0 0.0
    %6126 = vmatpush1.msra.mxu0 0.0
    %6127 = vmatprep.subr.mxu0 0.0
    %6128 = vmatpush1.msra.mxu0 0.0
    %6129 = vmatprep.subr.mxu0 0.0
    %6130 = vmatpush1.msra.mxu0 0.0
    %6131 = vmatprep.subr.mxu0 0.0
    %6132 = vmatpush1.msra.mxu0 0.0
    %6133 = vmatprep.subr.mxu0 0.0
    %6134 = vmatpush1.msra.mxu0 0.0
    %6135 = vmatprep.subr.mxu0 0.0
    %6136 = vmatpush1.msra.mxu0 0.0
    %6137 = vmatprep.subr.mxu0 0.0
    %6138 = vmatpush1.msra.mxu0 0.0
    %6139 = vmatprep.subr.mxu0 0.0
    %6140 = vmatpush1.msra.mxu0 0.0
    %6141 = vmatprep.subr.mxu0 0.0
    %6142 = vmatpush1.msra.mxu0 0.0
    %6143 = vmatprep.subr.mxu0 0.0
    %6144 = vmatpush1.msra.mxu0 0.0
    %6145 = vmatprep.subr.mxu0 0.0
    %6146 = vmatpush1.msra.mxu0 0.0
    %6147 = vmatprep.subr.mxu0 0.0
    %6148 = vmatpush1.msra.mxu0 0.0
    %6149 = vmatprep.subr.mxu0 0.0
    %6150 = vmatpush1.msra.mxu0 0.0
    %6151 = vmatprep.subr.mxu0 0.0
    %6152 = vmatpush1.msra.mxu0 0.0
    %6153 = vmatprep.subr.mxu0 0.0
    %6154 = vmatpush1.msra.mxu0 0.0
    %6155 = vmatprep.subr.mxu0 0.0
    %6156 = vmatpush1.msra.mxu0 0.0
    %6157 = vmatprep.subr.mxu0 0.0
    %6158 = vmatpush1.msra.mxu0 0.0
    %6159 = vmatprep.subr.mxu0 0.0
    %6160 = vmatpush1.msra.mxu0 0.0
    %6161 = vmatprep.subr.mxu0 0.0
    %6162 = vmatpush1.msra.mxu0 0.0
    %6163 = vmatprep.subr.mxu0 0.0
    %6164 = vmatpush1.msra.mxu0 0.0
    %6165 = vmatprep.subr.mxu0 0.0
    %6166 = vmatpush1.msra.mxu0 0.0
    %6167 = vmatprep.subr.mxu0 0.0
    %6168 = vmatpush1.msra.mxu0 0.0
    %6169 = vmatprep.subr.mxu0 0.0
    %6170 = vmatpush1.msra.mxu0 0.0
    %6171 = vmatprep.subr.mxu0 0.0
    %6172 = vmatpush1.msra.mxu0 0.0
    %6173 = vmatprep.subr.mxu0 0.0
    %6174 = vmatpush1.msra.mxu0 0.0
    %6175 = vmatprep.subr.mxu0 0.0
    %6176 = vmatpush1.msra.mxu0 0.0
    %6177 = vmatprep.subr.mxu0 0.0
    %6178 = vmatpush1.msra.mxu0 0.0
    %6179 = vmatprep.subr.mxu0 0.0
    %6180 = vmatpush1.msra.mxu0 0.0
    %6181 = vmatprep.mubr.f32.mxu0 0.0
    %6182 = vmatmul.mubr.f32.gmra.mrb[0].mxu0 %v6070
    %v6183 = vpop.f32.mrb[0].mxu0
    %v6184 = vadd.f32 0.0, %v6183
    %v6185 = vpop.f32.mrb[0].mxu0
    %6186 = vmatprep.mubr.f32.mxu0 0.0
    %6187 = vmatmul.mubr.f32.gmra.mrb[0].mxu0 %v6073
    %v6188 = vpop.f32.mrb[0].mxu0
    %v6189 = vadd.f32 0.0, %v6188
    %v6190 = vpop.f32.mrb[0].mxu0
    %6191 = vmatprep.mubr.f32.mxu0 0.0
    %6192 = vmatmul.mubr.f32.gmra.mrb[0].mxu0 %v6076
    %v6193 = vpop.f32.mrb[0].mxu0
    %v6194 = vadd.f32 0.0, %v6193
    %v6195 = vpop.f32.mrb[0].mxu0
    %6196 = vmatprep.mubr.f32.mxu0 0.0
    %6197 = vmatmul.mubr.f32.gmra.mrb[0].mxu0 %v6079
    %v6198 = vpop.f32.mrb[0].mxu0
    %v6199 = vadd.f32 0.0, %v6198
    %v6200 = vpop.f32.mrb[0].mxu0
    %6201 = vmatprep.mubr.f32.mxu0 0.0
    %6202 = vmatmul.mubr.f32.gmra.mrb[0].mxu0 %v6082
    %v6203 = vpop.f32.mrb[0].mxu0
    %v6204 = vadd.f32 0.0, %v6203
    %v6205 = vpop.f32.mrb[0].mxu0
    %6206 = vmatprep.mubr.f32.mxu0 0.0
    %6207 = vmatmul.mubr.f32.gmra.mrb[0].mxu0 %v6085
    %v6208 = vpop.f32.mrb[0].mxu0
    %v6209 = vadd.f32 0.0, %v6208
    %v6210 = vpop.f32.mrb[0].mxu0
    %6211 = vmatprep.mubr.f32.mxu0 0.0
    %6212 = vmatmul.mubr.f32.gmra.mrb[0].mxu0 %v6088
    %v6213 = vpop.f32.mrb[0].mxu0
    %v6214 = vadd.f32 0.0, %v6213
    %v6215 = vpop.f32.mrb[0].mxu0
    %6216 = vmatprep.mubr.f32.mxu0 0.0
    %6217 = vmatmul.mubr.f32.gmra.mrb[0].mxu0 %v6091
    %v6218 = vpop.f32.mrb[0].mxu0
    %v6219 = vadd.f32 0.0, %v6218
    %v6220 = vpop.f32.mrb[0].mxu0
    %6221 = vmatprep.mubr.f32.mxu0 0.0
    %6222 = vmatmul.mubr.f32.gmra.mrb[0].mxu0 %v6094
    %v6223 = vpop.f32.mrb[0].mxu0
    %v6224 = vadd.f32 0.0, %v6223
    %v6225 = vpop.f32.mrb[0].mxu0
    %6226 = vmatprep.mubr.f32.mxu0 0.0
    %6227 = vmatmul.mubr.f32.gmra.mrb[0].mxu0 %v6097
    %v6228 = vpop.f32.mrb[0].mxu0
    %v6229 = vadd.f32 0.0, %v6228
    %v6230 = vpop.f32.mrb[0].mxu0
    %6231 = vmatprep.mubr.f32.mxu0 0.0
    %6232 = vmatmul.mubr.f32.gmra.mrb[0].mxu0 %v6100
    %v6233 = vpop.f32.mrb[0].mxu0
    %v6234 = vadd.f32 0.0, %v6233
    %v6235 = vpop.f32.mrb[0].mxu0
    %6236 = vmatprep.mubr.f32.mxu0 0.0
    %6237 = vmatmul.mubr.f32.gmra.mrb[0].mxu0 %v6103
    %v6238 = vpop.f32.mrb[0].mxu0
    %v6239 = vadd.f32 0.0, %v6238
    %v6240 = vpop.f32.mrb[0].mxu0
    %6241 = vmatprep.mubr.f32.mxu0 0.0
    %6242 = vmatmul.mubr.f32.gmra.mrb[0].mxu0 %v6106
    %v6243 = vpop.f32.mrb[0].mxu0
    %v6244 = vadd.f32 0.0, %v6243
    %v6245 = vpop.f32.mrb[0].mxu0
    %6246 = vmatprep.mubr.f32.mxu0 0.0
    %6247 = vmatmul.mubr.f32.gmra.mrb[0].mxu0 %v6109
    %v6248 = vpop.f32.mrb[0].mxu0
    %v6249 = vadd.f32 0.0, %v6248
    %v6250 = vpop.f32.mrb[0].mxu0
    %6251 = vmatprep.mubr.f32.mxu0 0.0
    %6252 = vmatmul.mubr.f32.gmra.mrb[0].mxu0 %v6112
    %v6253 = vpop.f32.mrb[0].mxu0
    %v6254 = vadd.f32 0.0, %v6253
    %v6255 = vpop.f32.mrb[0].mxu0
    %6256 = vmatprep.mubr.f32.mxu0 0.0
    %6257 = vmatmul.mubr.f32.gmra.mrb[0].mxu0 %v6115
    %v6258 = vpop.f32.mrb[0].mxu0
    %v6259 = vadd.f32 0.0, %v6258
    %v6260 = vpop.f32.mrb[0].mxu0
    %6261 = vdwg.mxu0
    %v6262 = vadd.f32 %v5953, %v6184
    %v6263 = vadd.f32 %v5954, %v6189
    %v6264 = vadd.f32 %v5955, %v6194
    %v6265 = vadd.f32 %v5956, %v6199
    %v6266 = vadd.f32 %v5957, %v6204
    %v6267 = vadd.f32 %v5958, %v6209
    %v6268 = vadd.f32 %v5959, %v6214
    %v6269 = vadd.f32 %v5960, %v6219
    %v6270 = vadd.f32 %v5961, %v6224
    %v6271 = vadd.f32 %v5962, %v6229
    %v6272 = vadd.f32 %v5963, %v6234
    %v6273 = vadd.f32 %v5964, %v6239
    %v6274 = vadd.f32 %v5965, %v6244
    %v6275 = vadd.f32 %v5966, %v6249
    %v6276 = vadd.f32 %v5967, %v6254
    %v6277 = vadd.f32 %v5968, %v6259
    %v6278 = vld [vmem:[#allocation4 + $0xa] sm:$0xff]
    %v6279 = vld [vmem:[#allocation4 + $0x12] sm:$0xff]
    %v6280 = vld [vmem:[#allocation4 + $0x1a] sm:$0xff]
    %v6281 = vld [vmem:[#allocation4 + $0x22] sm:$0xff]
    %v6282 = vld [vmem:[#allocation4 + $0x2a] sm:$0xff]
    %v6283 = vld [vmem:[#allocation4 + $0x32] sm:$0xff]
    %v6284 = vld [vmem:[#allocation4 + $0x3a] sm:$0xff]
    %v6285 = vld [vmem:[#allocation4 + $0x42] sm:$0xff]
    %v6286 = vld [vmem:[#allocation4 + $0x4a] sm:$0xff]
    %v6287 = vld [vmem:[#allocation4 + $0x52] sm:$0xff]
    %v6288 = vld [vmem:[#allocation4 + $0x5a] sm:$0xff]
    %v6289 = vld [vmem:[#allocation4 + $0x62] sm:$0xff]
    %v6290 = vld [vmem:[#allocation4 + $0x6a] sm:$0xff]
    %v6291 = vld [vmem:[#allocation4 + $0x72] sm:$0xff]
    %v6292 = vld [vmem:[#allocation4 + $0x7a] sm:$0xff]
    %v6293 = vld [vmem:[#allocation4 + $0x82] sm:$0xff]
    %6294 = vset.pattern.permute.xlu0 5
    %6295 = vperm.xlu0 %6294, %v4749
    %v6296 = vpop.permute.xlu0 %6295
    %6298 = vset.pattern.permute.xlu0 5
    %6299 = vperm.xlu0 %6298, %v4750
    %v6300 = vpop.permute.xlu0 %6299
    %6302 = vset.pattern.permute.xlu0 5
    %6303 = vperm.xlu0 %6302, %v4751
    %v6304 = vpop.permute.xlu0 %6303
    %6306 = vset.pattern.permute.xlu0 5
    %6307 = vperm.xlu0 %6306, %v4752
    %v6308 = vpop.permute.xlu0 %6307
    %6310 = vset.pattern.permute.xlu0 5
    %6311 = vperm.xlu0 %6310, %v4753
    %v6312 = vpop.permute.xlu0 %6311
    %6314 = vset.pattern.permute.xlu0 5
    %6315 = vperm.xlu0 %6314, %v4754
    %v6316 = vpop.permute.xlu0 %6315
    %6318 = vset.pattern.permute.xlu0 5
    %6319 = vperm.xlu0 %6318, %v4755
    %v6320 = vpop.permute.xlu0 %6319
    %6322 = vset.pattern.permute.xlu0 5
    %6323 = vperm.xlu0 %6322, %v4756
    %v6324 = vpop.permute.xlu0 %6323
    %6326 = vset.pattern.permute.xlu0 5
    %6327 = vperm.xlu0 %6326, %v4757
    %v6328 = vpop.permute.xlu0 %6327
    %6330 = vset.pattern.permute.xlu0 5
    %6331 = vperm.xlu0 %6330, %v4758
    %v6332 = vpop.permute.xlu0 %6331
    %6334 = vset.pattern.permute.xlu0 5
    %6335 = vperm.xlu0 %6334, %v4759
    %v6336 = vpop.permute.xlu0 %6335
    %6338 = vset.pattern.permute.xlu0 5
    %6339 = vperm.xlu0 %6338, %v4760
    %v6340 = vpop.permute.xlu0 %6339
    %6342 = vset.pattern.permute.xlu0 5
    %6343 = vperm.xlu0 %6342, %v4761
    %v6344 = vpop.permute.xlu0 %6343
    %6346 = vset.pattern.permute.xlu0 5
    %6347 = vperm.xlu0 %6346, %v4762
    %v6348 = vpop.permute.xlu0 %6347
    %6350 = vset.pattern.permute.xlu0 5
    %6351 = vperm.xlu0 %6350, %v4763
    %v6352 = vpop.permute.xlu0 %6351
    %6354 = vset.pattern.permute.xlu0 5
    %6355 = vperm.xlu0 %6354, %v4764
    %v6356 = vpop.permute.xlu0 %6355
    %v6358 = vmul.f32 %v6278, %v6296
    %v6359 = vmul.f32 %v6279, %v6300
    %v6360 = vmul.f32 %v6280, %v6304
    %v6361 = vmul.f32 %v6281, %v6308
    %v6362 = vmul.f32 %v6282, %v6312
    %v6363 = vmul.f32 %v6283, %v6316
    %v6364 = vmul.f32 %v6284, %v6320
    %v6365 = vmul.f32 %v6285, %v6324
    %v6366 = vmul.f32 %v6286, %v6328
    %v6367 = vmul.f32 %v6287, %v6332
    %v6368 = vmul.f32 %v6288, %v6336
    %v6369 = vmul.f32 %v6289, %v6340
    %v6370 = vmul.f32 %v6290, %v6344
    %v6371 = vmul.f32 %v6291, %v6348
    %v6372 = vmul.f32 %v6292, %v6352
    %v6373 = vmul.f32 %v6293, %v6356
    %v6374 = vld [vmem:[%s91 + $0xa0] sm:$0xff]
    %v6375 = vld [vmem:[%s91 + $0xa8] sm:$0xff]
    %v6376 = vld [vmem:[%s91 + $0xb0] sm:$0xff]
    %v6377 = vld [vmem:[%s91 + $0xb8] sm:$0xff]
    %v6379 = vsel %vm441, %v6358, 0
    %v6382 = vsel %vm441, %v6359, 0
    %v6385 = vsel %vm441, %v6360, 0
    %v6388 = vsel %vm441, %v6361, 0
    %v6391 = vsel %vm441, %v6362, 0
    %v6394 = vsel %vm441, %v6363, 0
    %v6397 = vsel %vm441, %v6364, 0
    %v6400 = vsel %vm441, %v6365, 0
    %v6403 = vsel %vm441, %v6366, 0
    %v6406 = vsel %vm441, %v6367, 0
    %v6409 = vsel %vm441, %v6368, 0
    %v6412 = vsel %vm441, %v6369, 0
    %v6415 = vsel %vm441, %v6370, 0
    %v6418 = vsel %vm441, %v6371, 0
    %v6421 = vsel %vm441, %v6372, 0
    %v6424 = vsel %vm441, %v6373, 0
    %6426 = vmatprep.subr.mxu0 0.0
    %6427 = vmatpush1.msra.mxu0 %v6374
    %6428 = vmatprep.subr.mxu0 0.0
    %6429 = vmatpush1.msra.mxu0 %v6375
    %6430 = vmatprep.subr.mxu0 0.0
    %6431 = vmatpush1.msra.mxu0 %v6376
    %6432 = vmatprep.subr.mxu0 0.0
    %6433 = vmatpush1.msra.mxu0 %v6377
    %6434 = vmatprep.subr.mxu0 0.0
    %6435 = vmatpush1.msra.mxu0 0.0
    %6436 = vmatprep.subr.mxu0 0.0
    %6437 = vmatpush1.msra.mxu0 0.0
    %6438 = vmatprep.subr.mxu0 0.0
    %6439 = vmatpush1.msra.mxu0 0.0
    %6440 = vmatprep.subr.mxu0 0.0
    %6441 = vmatpush1.msra.mxu0 0.0
    %6442 = vmatprep.subr.mxu0 0.0
    %6443 = vmatpush1.msra.mxu0 0.0
    %6444 = vmatprep.subr.mxu0 0.0
    %6445 = vmatpush1.msra.mxu0 0.0
    %6446 = vmatprep.subr.mxu0 0.0
    %6447 = vmatpush1.msra.mxu0 0.0
    %6448 = vmatprep.subr.mxu0 0.0
    %6449 = vmatpush1.msra.mxu0 0.0
    %6450 = vmatprep.subr.mxu0 0.0
    %6451 = vmatpush1.msra.mxu0 0.0
    %6452 = vmatprep.subr.mxu0 0.0
    %6453 = vmatpush1.msra.mxu0 0.0
    %6454 = vmatprep.subr.mxu0 0.0
    %6455 = vmatpush1.msra.mxu0 0.0
    %6456 = vmatprep.subr.mxu0 0.0
    %6457 = vmatpush1.msra.mxu0 0.0
    %6458 = vmatprep.subr.mxu0 0.0
    %6459 = vmatpush1.msra.mxu0 0.0
    %6460 = vmatprep.subr.mxu0 0.0
    %6461 = vmatpush1.msra.mxu0 0.0
    %6462 = vmatprep.subr.mxu0 0.0
    %6463 = vmatpush1.msra.mxu0 0.0
    %6464 = vmatprep.subr.mxu0 0.0
    %6465 = vmatpush1.msra.mxu0 0.0
    %6466 = vmatprep.subr.mxu0 0.0
    %6467 = vmatpush1.msra.mxu0 0.0
    %6468 = vmatprep.subr.mxu0 0.0
    %6469 = vmatpush1.msra.mxu0 0.0
    %6470 = vmatprep.subr.mxu0 0.0
    %6471 = vmatpush1.msra.mxu0 0.0
    %6472 = vmatprep.subr.mxu0 0.0
    %6473 = vmatpush1.msra.mxu0 0.0
    %6474 = vmatprep.subr.mxu0 0.0
    %6475 = vmatpush1.msra.mxu0 0.0
    %6476 = vmatprep.subr.mxu0 0.0
    %6477 = vmatpush1.msra.mxu0 0.0
    %6478 = vmatprep.subr.mxu0 0.0
    %6479 = vmatpush1.msra.mxu0 0.0
    %6480 = vmatprep.subr.mxu0 0.0
    %6481 = vmatpush1.msra.mxu0 0.0
    %6482 = vmatprep.subr.mxu0 0.0
    %6483 = vmatpush1.msra.mxu0 0.0
    %6484 = vmatprep.subr.mxu0 0.0
    %6485 = vmatpush1.msra.mxu0 0.0
    %6486 = vmatprep.subr.mxu0 0.0
    %6487 = vmatpush1.msra.mxu0 0.0
    %6488 = vmatprep.subr.mxu0 0.0
    %6489 = vmatpush1.msra.mxu0 0.0
    %6490 = vmatprep.mubr.f32.mxu0 0.0
    %6491 = vmatmul.mubr.f32.gmra.mrb[0].mxu0 %v6379
    %v6492 = vpop.f32.mrb[0].mxu0
    %v6493 = vadd.f32 0.0, %v6492
    %v6494 = vpop.f32.mrb[0].mxu0
    %6495 = vmatprep.mubr.f32.mxu0 0.0
    %6496 = vmatmul.mubr.f32.gmra.mrb[0].mxu0 %v6382
    %v6497 = vpop.f32.mrb[0].mxu0
    %v6498 = vadd.f32 0.0, %v6497
    %v6499 = vpop.f32.mrb[0].mxu0
    %6500 = vmatprep.mubr.f32.mxu0 0.0
    %6501 = vmatmul.mubr.f32.gmra.mrb[0].mxu0 %v6385
    %v6502 = vpop.f32.mrb[0].mxu0
    %v6503 = vadd.f32 0.0, %v6502
    %v6504 = vpop.f32.mrb[0].mxu0
    %6505 = vmatprep.mubr.f32.mxu0 0.0
    %6506 = vmatmul.mubr.f32.gmra.mrb[0].mxu0 %v6388
    %v6507 = vpop.f32.mrb[0].mxu0
    %v6508 = vadd.f32 0.0, %v6507
    %v6509 = vpop.f32.mrb[0].mxu0
    %6510 = vmatprep.mubr.f32.mxu0 0.0
    %6511 = vmatmul.mubr.f32.gmra.mrb[0].mxu0 %v6391
    %v6512 = vpop.f32.mrb[0].mxu0
    %v6513 = vadd.f32 0.0, %v6512
    %v6514 = vpop.f32.mrb[0].mxu0
    %6515 = vmatprep.mubr.f32.mxu0 0.0
    %6516 = vmatmul.mubr.f32.gmra.mrb[0].mxu0 %v6394
    %v6517 = vpop.f32.mrb[0].mxu0
    %v6518 = vadd.f32 0.0, %v6517
    %v6519 = vpop.f32.mrb[0].mxu0
    %6520 = vmatprep.mubr.f32.mxu0 0.0
    %6521 = vmatmul.mubr.f32.gmra.mrb[0].mxu0 %v6397
    %v6522 = vpop.f32.mrb[0].mxu0
    %v6523 = vadd.f32 0.0, %v6522
    %v6524 = vpop.f32.mrb[0].mxu0
    %6525 = vmatprep.mubr.f32.mxu0 0.0
    %6526 = vmatmul.mubr.f32.gmra.mrb[0].mxu0 %v6400
    %v6527 = vpop.f32.mrb[0].mxu0
    %v6528 = vadd.f32 0.0, %v6527
    %v6529 = vpop.f32.mrb[0].mxu0
    %6530 = vmatprep.mubr.f32.mxu0 0.0
    %6531 = vmatmul.mubr.f32.gmra.mrb[0].mxu0 %v6403
    %v6532 = vpop.f32.mrb[0].mxu0
    %v6533 = vadd.f32 0.0, %v6532
    %v6534 = vpop.f32.mrb[0].mxu0
    %6535 = vmatprep.mubr.f32.mxu0 0.0
    %6536 = vmatmul.mubr.f32.gmra.mrb[0].mxu0 %v6406
    %v6537 = vpop.f32.mrb[0].mxu0
    %v6538 = vadd.f32 0.0, %v6537
    %v6539 = vpop.f32.mrb[0].mxu0
    %6540 = vmatprep.mubr.f32.mxu0 0.0
    %6541 = vmatmul.mubr.f32.gmra.mrb[0].mxu0 %v6409
    %v6542 = vpop.f32.mrb[0].mxu0
    %v6543 = vadd.f32 0.0, %v6542
    %v6544 = vpop.f32.mrb[0].mxu0
    %6545 = vmatprep.mubr.f32.mxu0 0.0
    %6546 = vmatmul.mubr.f32.gmra.mrb[0].mxu0 %v6412
    %v6547 = vpop.f32.mrb[0].mxu0
    %v6548 = vadd.f32 0.0, %v6547
    %v6549 = vpop.f32.mrb[0].mxu0
    %6550 = vmatprep.mubr.f32.mxu0 0.0
    %6551 = vmatmul.mubr.f32.gmra.mrb[0].mxu0 %v6415
    %v6552 = vpop.f32.mrb[0].mxu0
    %v6553 = vadd.f32 0.0, %v6552
    %v6554 = vpop.f32.mrb[0].mxu0
    %6555 = vmatprep.mubr.f32.mxu0 0.0
    %6556 = vmatmul.mubr.f32.gmra.mrb[0].mxu0 %v6418
    %v6557 = vpop.f32.mrb[0].mxu0
    %v6558 = vadd.f32 0.0, %v6557
    %v6559 = vpop.f32.mrb[0].mxu0
    %6560 = vmatprep.mubr.f32.mxu0 0.0
    %6561 = vmatmul.mubr.f32.gmra.mrb[0].mxu0 %v6421
    %v6562 = vpop.f32.mrb[0].mxu0
    %v6563 = vadd.f32 0.0, %v6562
    %v6564 = vpop.f32.mrb[0].mxu0
    %6565 = vmatprep.mubr.f32.mxu0 0.0
    %6566 = vmatmul.mubr.f32.gmra.mrb[0].mxu0 %v6424
    %v6567 = vpop.f32.mrb[0].mxu0
    %v6568 = vadd.f32 0.0, %v6567
    %v6569 = vpop.f32.mrb[0].mxu0
    %6570 = vdwg.mxu0
    %v6571 = vadd.f32 %v6262, %v6493
    %v6572 = vadd.f32 %v6263, %v6498
    %v6573 = vadd.f32 %v6264, %v6503
    %v6574 = vadd.f32 %v6265, %v6508
    %v6575 = vadd.f32 %v6266, %v6513
    %v6576 = vadd.f32 %v6267, %v6518
    %v6577 = vadd.f32 %v6268, %v6523
    %v6578 = vadd.f32 %v6269, %v6528
    %v6579 = vadd.f32 %v6270, %v6533
    %v6580 = vadd.f32 %v6271, %v6538
    %v6581 = vadd.f32 %v6272, %v6543
    %v6582 = vadd.f32 %v6273, %v6548
    %v6583 = vadd.f32 %v6274, %v6553
    %v6584 = vadd.f32 %v6275, %v6558
    %v6585 = vadd.f32 %v6276, %v6563
    %v6586 = vadd.f32 %v6277, %v6568
    %v6587 = vld [vmem:[#allocation4 + $0x10] sm:$0xff]
    %v6588 = vld [vmem:[#allocation4 + $0x18] sm:$0xff]
    %v6589 = vld [vmem:[#allocation4 + $0x20] sm:$0xff]
    %v6590 = vld [vmem:[#allocation4 + $0x28] sm:$0xff]
    %v6591 = vld [vmem:[#allocation4 + $0x30] sm:$0xff]
    %v6592 = vld [vmem:[#allocation4 + $0x38] sm:$0xff]
    %v6593 = vld [vmem:[#allocation4 + $0x40] sm:$0xff]
    %v6594 = vld [vmem:[#allocation4 + $0x48] sm:$0xff]
    %v6595 = vld [vmem:[#allocation4 + $0x50] sm:$0xff]
    %v6596 = vld [vmem:[#allocation4 + $0x58] sm:$0xff]
    %v6597 = vld [vmem:[#allocation4 + $0x60] sm:$0xff]
    %v6598 = vld [vmem:[#allocation4 + $0x68] sm:$0xff]
    %v6599 = vld [vmem:[#allocation4 + $0x70] sm:$0xff]
    %v6600 = vld [vmem:[#allocation4 + $0x78] sm:$0xff]
    %v6601 = vld [vmem:[#allocation4 + $0x80] sm:$0xff]
    %v6602 = vld [vmem:[#allocation4 + $0x88] sm:$0xff]
    %6603 = vset.pattern.permute.xlu0 6
    %6604 = vperm.xlu0 %6603, %v4749
    %v6605 = vpop.permute.xlu0 %6604
    %6607 = vset.pattern.permute.xlu0 6
    %6608 = vperm.xlu0 %6607, %v4750
    %v6609 = vpop.permute.xlu0 %6608
    %6611 = vset.pattern.permute.xlu0 6
    %6612 = vperm.xlu0 %6611, %v4751
    %v6613 = vpop.permute.xlu0 %6612
    %6615 = vset.pattern.permute.xlu0 6
    %6616 = vperm.xlu0 %6615, %v4752
    %v6617 = vpop.permute.xlu0 %6616
    %6619 = vset.pattern.permute.xlu0 6
    %6620 = vperm.xlu0 %6619, %v4753
    %v6621 = vpop.permute.xlu0 %6620
    %6623 = vset.pattern.permute.xlu0 6
    %6624 = vperm.xlu0 %6623, %v4754
    %v6625 = vpop.permute.xlu0 %6624
    %6627 = vset.pattern.permute.xlu0 6
    %6628 = vperm.xlu0 %6627, %v4755
    %v6629 = vpop.permute.xlu0 %6628
    %6631 = vset.pattern.permute.xlu0 6
    %6632 = vperm.xlu0 %6631, %v4756
    %v6633 = vpop.permute.xlu0 %6632
    %6635 = vset.pattern.permute.xlu0 6
    %6636 = vperm.xlu0 %6635, %v4757
    %v6637 = vpop.permute.xlu0 %6636
    %6639 = vset.pattern.permute.xlu0 6
    %6640 = vperm.xlu0 %6639, %v4758
    %v6641 = vpop.permute.xlu0 %6640
    %6643 = vset.pattern.permute.xlu0 6
    %6644 = vperm.xlu0 %6643, %v4759
    %v6645 = vpop.permute.xlu0 %6644
    %6647 = vset.pattern.permute.xlu0 6
    %6648 = vperm.xlu0 %6647, %v4760
    %v6649 = vpop.permute.xlu0 %6648
    %6651 = vset.pattern.permute.xlu0 6
    %6652 = vperm.xlu0 %6651, %v4761
    %v6653 = vpop.permute.xlu0 %6652
    %6655 = vset.pattern.permute.xlu0 6
    %6656 = vperm.xlu0 %6655, %v4762
    %v6657 = vpop.permute.xlu0 %6656
    %6659 = vset.pattern.permute.xlu0 6
    %6660 = vperm.xlu0 %6659, %v4763
    %v6661 = vpop.permute.xlu0 %6660
    %6663 = vset.pattern.permute.xlu0 6
    %6664 = vperm.xlu0 %6663, %v4764
    %v6665 = vpop.permute.xlu0 %6664
    %v6667 = vmul.f32 %v6587, %v6605
    %v6668 = vmul.f32 %v6588, %v6609
    %v6669 = vmul.f32 %v6589, %v6613
    %v6670 = vmul.f32 %v6590, %v6617
    %v6671 = vmul.f32 %v6591, %v6621
    %v6672 = vmul.f32 %v6592, %v6625
    %v6673 = vmul.f32 %v6593, %v6629
    %v6674 = vmul.f32 %v6594, %v6633
    %v6675 = vmul.f32 %v6595, %v6637
    %v6676 = vmul.f32 %v6596, %v6641
    %v6677 = vmul.f32 %v6597, %v6645
    %v6678 = vmul.f32 %v6598, %v6649
    %v6679 = vmul.f32 %v6599, %v6653
    %v6680 = vmul.f32 %v6600, %v6657
    %v6681 = vmul.f32 %v6601, %v6661
    %v6682 = vmul.f32 %v6602, %v6665
    %v6683 = vld [vmem:[%s91 + $0xc0] sm:$0xff]
    %v6684 = vld [vmem:[%s91 + $0xc8] sm:$0xff]
    %v6685 = vld [vmem:[%s91 + $0xd0] sm:$0xff]
    %v6686 = vld [vmem:[%s91 + $0xd8] sm:$0xff]
    %v6688 = vsel %vm441, %v6667, 0
    %v6691 = vsel %vm441, %v6668, 0
    %v6694 = vsel %vm441, %v6669, 0
    %v6697 = vsel %vm441, %v6670, 0
    %v6700 = vsel %vm441, %v6671, 0
    %v6703 = vsel %vm441, %v6672, 0
    %v6706 = vsel %vm441, %v6673, 0
    %v6709 = vsel %vm441, %v6674, 0
    %v6712 = vsel %vm441, %v6675, 0
    %v6715 = vsel %vm441, %v6676, 0
    %v6718 = vsel %vm441, %v6677, 0
    %v6721 = vsel %vm441, %v6678, 0
    %v6724 = vsel %vm441, %v6679, 0
    %v6727 = vsel %vm441, %v6680, 0
    %v6730 = vsel %vm441, %v6681, 0
    %v6733 = vsel %vm441, %v6682, 0
    %6735 = vmatprep.subr.mxu0 0.0
    %6736 = vmatpush1.msra.mxu0 %v6683
    %6737 = vmatprep.subr.mxu0 0.0
    %6738 = vmatpush1.msra.mxu0 %v6684
    %6739 = vmatprep.subr.mxu0 0.0
    %6740 = vmatpush1.msra.mxu0 %v6685
    %6741 = vmatprep.subr.mxu0 0.0
    %6742 = vmatpush1.msra.mxu0 %v6686
    %6743 = vmatprep.subr.mxu0 0.0
    %6744 = vmatpush1.msra.mxu0 0.0
    %6745 = vmatprep.subr.mxu0 0.0
    %6746 = vmatpush1.msra.mxu0 0.0
    %6747 = vmatprep.subr.mxu0 0.0
    %6748 = vmatpush1.msra.mxu0 0.0
    %6749 = vmatprep.subr.mxu0 0.0
    %6750 = vmatpush1.msra.mxu0 0.0
    %6751 = vmatprep.subr.mxu0 0.0
    %6752 = vmatpush1.msra.mxu0 0.0
    %6753 = vmatprep.subr.mxu0 0.0
    %6754 = vmatpush1.msra.mxu0 0.0
    %6755 = vmatprep.subr.mxu0 0.0
    %6756 = vmatpush1.msra.mxu0 0.0
    %6757 = vmatprep.subr.mxu0 0.0
    %6758 = vmatpush1.msra.mxu0 0.0
    %6759 = vmatprep.subr.mxu0 0.0
    %6760 = vmatpush1.msra.mxu0 0.0
    %6761 = vmatprep.subr.mxu0 0.0
    %6762 = vmatpush1.msra.mxu0 0.0
    %6763 = vmatprep.subr.mxu0 0.0
    %6764 = vmatpush1.msra.mxu0 0.0
    %6765 = vmatprep.subr.mxu0 0.0
    %6766 = vmatpush1.msra.mxu0 0.0
    %6767 = vmatprep.subr.mxu0 0.0
    %6768 = vmatpush1.msra.mxu0 0.0
    %6769 = vmatprep.subr.mxu0 0.0
    %6770 = vmatpush1.msra.mxu0 0.0
    %6771 = vmatprep.subr.mxu0 0.0
    %6772 = vmatpush1.msra.mxu0 0.0
    %6773 = vmatprep.subr.mxu0 0.0
    %6774 = vmatpush1.msra.mxu0 0.0
    %6775 = vmatprep.subr.mxu0 0.0
    %6776 = vmatpush1.msra.mxu0 0.0
    %6777 = vmatprep.subr.mxu0 0.0
    %6778 = vmatpush1.msra.mxu0 0.0
    %6779 = vmatprep.subr.mxu0 0.0
    %6780 = vmatpush1.msra.mxu0 0.0
    %6781 = vmatprep.subr.mxu0 0.0
    %6782 = vmatpush1.msra.mxu0 0.0
    %6783 = vmatprep.subr.mxu0 0.0
    %6784 = vmatpush1.msra.mxu0 0.0
    %6785 = vmatprep.subr.mxu0 0.0
    %6786 = vmatpush1.msra.mxu0 0.0
    %6787 = vmatprep.subr.mxu0 0.0
    %6788 = vmatpush1.msra.mxu0 0.0
    %6789 = vmatprep.subr.mxu0 0.0
    %6790 = vmatpush1.msra.mxu0 0.0
    %6791 = vmatprep.subr.mxu0 0.0
    %6792 = vmatpush1.msra.mxu0 0.0
    %6793 = vmatprep.subr.mxu0 0.0
    %6794 = vmatpush1.msra.mxu0 0.0
    %6795 = vmatprep.subr.mxu0 0.0
    %6796 = vmatpush1.msra.mxu0 0.0
    %6797 = vmatprep.subr.mxu0 0.0
    %6798 = vmatpush1.msra.mxu0 0.0
    %6799 = vmatprep.mubr.f32.mxu0 0.0
    %6800 = vmatmul.mubr.f32.gmra.mrb[0].mxu0 %v6688
    %v6801 = vpop.f32.mrb[0].mxu0
    %v6802 = vadd.f32 0.0, %v6801
    %v6803 = vpop.f32.mrb[0].mxu0
    %6804 = vmatprep.mubr.f32.mxu0 0.0
    %6805 = vmatmul.mubr.f32.gmra.mrb[0].mxu0 %v6691
    %v6806 = vpop.f32.mrb[0].mxu0
    %v6807 = vadd.f32 0.0, %v6806
    %v6808 = vpop.f32.mrb[0].mxu0
    %6809 = vmatprep.mubr.f32.mxu0 0.0
    %6810 = vmatmul.mubr.f32.gmra.mrb[0].mxu0 %v6694
    %v6811 = vpop.f32.mrb[0].mxu0
    %v6812 = vadd.f32 0.0, %v6811
    %v6813 = vpop.f32.mrb[0].mxu0
    %6814 = vmatprep.mubr.f32.mxu0 0.0
    %6815 = vmatmul.mubr.f32.gmra.mrb[0].mxu0 %v6697
    %v6816 = vpop.f32.mrb[0].mxu0
    %v6817 = vadd.f32 0.0, %v6816
    %v6818 = vpop.f32.mrb[0].mxu0
    %6819 = vmatprep.mubr.f32.mxu0 0.0
    %6820 = vmatmul.mubr.f32.gmra.mrb[0].mxu0 %v6700
    %v6821 = vpop.f32.mrb[0].mxu0
    %v6822 = vadd.f32 0.0, %v6821
    %v6823 = vpop.f32.mrb[0].mxu0
    %6824 = vmatprep.mubr.f32.mxu0 0.0
    %6825 = vmatmul.mubr.f32.gmra.mrb[0].mxu0 %v6703
    %v6826 = vpop.f32.mrb[0].mxu0
    %v6827 = vadd.f32 0.0, %v6826
    %v6828 = vpop.f32.mrb[0].mxu0
    %6829 = vmatprep.mubr.f32.mxu0 0.0
    %6830 = vmatmul.mubr.f32.gmra.mrb[0].mxu0 %v6706
    %v6831 = vpop.f32.mrb[0].mxu0
    %v6832 = vadd.f32 0.0, %v6831
    %v6833 = vpop.f32.mrb[0].mxu0
    %6834 = vmatprep.mubr.f32.mxu0 0.0
    %6835 = vmatmul.mubr.f32.gmra.mrb[0].mxu0 %v6709
    %v6836 = vpop.f32.mrb[0].mxu0
    %v6837 = vadd.f32 0.0, %v6836
    %v6838 = vpop.f32.mrb[0].mxu0
    %6839 = vmatprep.mubr.f32.mxu0 0.0
    %6840 = vmatmul.mubr.f32.gmra.mrb[0].mxu0 %v6712
    %v6841 = vpop.f32.mrb[0].mxu0
    %v6842 = vadd.f32 0.0, %v6841
    %v6843 = vpop.f32.mrb[0].mxu0
    %6844 = vmatprep.mubr.f32.mxu0 0.0
    %6845 = vmatmul.mubr.f32.gmra.mrb[0].mxu0 %v6715
    %v6846 = vpop.f32.mrb[0].mxu0
    %v6847 = vadd.f32 0.0, %v6846
    %v6848 = vpop.f32.mrb[0].mxu0
    %6849 = vmatprep.mubr.f32.mxu0 0.0
    %6850 = vmatmul.mubr.f32.gmra.mrb[0].mxu0 %v6718
    %v6851 = vpop.f32.mrb[0].mxu0
    %v6852 = vadd.f32 0.0, %v6851
    %v6853 = vpop.f32.mrb[0].mxu0
    %6854 = vmatprep.mubr.f32.mxu0 0.0
    %6855 = vmatmul.mubr.f32.gmra.mrb[0].mxu0 %v6721
    %v6856 = vpop.f32.mrb[0].mxu0
    %v6857 = vadd.f32 0.0, %v6856
    %v6858 = vpop.f32.mrb[0].mxu0
    %6859 = vmatprep.mubr.f32.mxu0 0.0
    %6860 = vmatmul.mubr.f32.gmra.mrb[0].mxu0 %v6724
    %v6861 = vpop.f32.mrb[0].mxu0
    %v6862 = vadd.f32 0.0, %v6861
    %v6863 = vpop.f32.mrb[0].mxu0
    %6864 = vmatprep.mubr.f32.mxu0 0.0
    %6865 = vmatmul.mubr.f32.gmra.mrb[0].mxu0 %v6727
    %v6866 = vpop.f32.mrb[0].mxu0
    %v6867 = vadd.f32 0.0, %v6866
    %v6868 = vpop.f32.mrb[0].mxu0
    %6869 = vmatprep.mubr.f32.mxu0 0.0
    %6870 = vmatmul.mubr.f32.gmra.mrb[0].mxu0 %v6730
    %v6871 = vpop.f32.mrb[0].mxu0
    %v6872 = vadd.f32 0.0, %v6871
    %v6873 = vpop.f32.mrb[0].mxu0
    %6874 = vmatprep.mubr.f32.mxu0 0.0
    %6875 = vmatmul.mubr.f32.gmra.mrb[0].mxu0 %v6733
    %v6876 = vpop.f32.mrb[0].mxu0
    %v6877 = vadd.f32 0.0, %v6876
    %v6878 = vpop.f32.mrb[0].mxu0
    %6879 = vdwg.mxu0
    %v6880 = vadd.f32 %v6571, %v6802
    %v6881 = vadd.f32 %v6572, %v6807
    %v6882 = vadd.f32 %v6573, %v6812
    %v6883 = vadd.f32 %v6574, %v6817
    %v6884 = vadd.f32 %v6575, %v6822
    %v6885 = vadd.f32 %v6576, %v6827
    %v6886 = vadd.f32 %v6577, %v6832
    %v6887 = vadd.f32 %v6578, %v6837
    %v6888 = vadd.f32 %v6579, %v6842
    %v6889 = vadd.f32 %v6580, %v6847
    %v6890 = vadd.f32 %v6581, %v6852
    %v6891 = vadd.f32 %v6582, %v6857
    %v6892 = vadd.f32 %v6583, %v6862
    %v6893 = vadd.f32 %v6584, %v6867
    %v6894 = vadd.f32 %v6585, %v6872
    %v6895 = vadd.f32 %v6586, %v6877
    %v6896 = vld [vmem:[#allocation4 + $0x11] sm:$0xff]
    %v6897 = vld [vmem:[#allocation4 + $0x19] sm:$0xff]
    %v6898 = vld [vmem:[#allocation4 + $0x21] sm:$0xff]
    %v6899 = vld [vmem:[#allocation4 + $0x29] sm:$0xff]
    %v6900 = vld [vmem:[#allocation4 + $0x31] sm:$0xff]
    %v6901 = vld [vmem:[#allocation4 + $0x39] sm:$0xff]
    %v6902 = vld [vmem:[#allocation4 + $0x41] sm:$0xff]
    %v6903 = vld [vmem:[#allocation4 + $0x49] sm:$0xff]
    %v6904 = vld [vmem:[#allocation4 + $0x51] sm:$0xff]
    %v6905 = vld [vmem:[#allocation4 + $0x59] sm:$0xff]
    %v6906 = vld [vmem:[#allocation4 + $0x61] sm:$0xff]
    %v6907 = vld [vmem:[#allocation4 + $0x69] sm:$0xff]
    %v6908 = vld [vmem:[#allocation4 + $0x71] sm:$0xff]
    %v6909 = vld [vmem:[#allocation4 + $0x79] sm:$0xff]
    %v6910 = vld [vmem:[#allocation4 + $0x81] sm:$0xff]
    %v6911 = vld [vmem:[#allocation4 + $0x89] sm:$0xff]
    %6912 = vset.pattern.permute.xlu0 7
    %6913 = vperm.xlu0 %6912, %v4749
    %v6914 = vpop.permute.xlu0 %6913
    %6916 = vset.pattern.permute.xlu0 7
    %6917 = vperm.xlu0 %6916, %v4750
    %v6918 = vpop.permute.xlu0 %6917
    %6920 = vset.pattern.permute.xlu0 7
    %6921 = vperm.xlu0 %6920, %v4751
    %v6922 = vpop.permute.xlu0 %6921
    %6924 = vset.pattern.permute.xlu0 7
    %6925 = vperm.xlu0 %6924, %v4752
    %v6926 = vpop.permute.xlu0 %6925
    %6928 = vset.pattern.permute.xlu0 7
    %6929 = vperm.xlu0 %6928, %v4753
    %v6930 = vpop.permute.xlu0 %6929
    %6932 = vset.pattern.permute.xlu0 7
    %6933 = vperm.xlu0 %6932, %v4754
    %v6934 = vpop.permute.xlu0 %6933
    %6936 = vset.pattern.permute.xlu0 7
    %6937 = vperm.xlu0 %6936, %v4755
    %v6938 = vpop.permute.xlu0 %6937
    %6940 = vset.pattern.permute.xlu0 7
    %6941 = vperm.xlu0 %6940, %v4756
    %v6942 = vpop.permute.xlu0 %6941
    %6944 = vset.pattern.permute.xlu0 7
    %6945 = vperm.xlu0 %6944, %v4757
    %v6946 = vpop.permute.xlu0 %6945
    %6948 = vset.pattern.permute.xlu0 7
    %6949 = vperm.xlu0 %6948, %v4758
    %v6950 = vpop.permute.xlu0 %6949
    %6952 = vset.pattern.permute.xlu0 7
    %6953 = vperm.xlu0 %6952, %v4759
    %v6954 = vpop.permute.xlu0 %6953
    %6956 = vset.pattern.permute.xlu0 7
    %6957 = vperm.xlu0 %6956, %v4760
    %v6958 = vpop.permute.xlu0 %6957
    %6960 = vset.pattern.permute.xlu0 7
    %6961 = vperm.xlu0 %6960, %v4761
    %v6962 = vpop.permute.xlu0 %6961
    %6964 = vset.pattern.permute.xlu0 7
    %6965 = vperm.xlu0 %6964, %v4762
    %v6966 = vpop.permute.xlu0 %6965
    %6968 = vset.pattern.permute.xlu0 7
    %6969 = vperm.xlu0 %6968, %v4763
    %v6970 = vpop.permute.xlu0 %6969
    %6972 = vset.pattern.permute.xlu0 7
    %6973 = vperm.xlu0 %6972, %v4764
    %v6974 = vpop.permute.xlu0 %6973
    %v6976 = vmul.f32 %v6896, %v6914
    %v6977 = vmul.f32 %v6897, %v6918
    %v6978 = vmul.f32 %v6898, %v6922
    %v6979 = vmul.f32 %v6899, %v6926
    %v6980 = vmul.f32 %v6900, %v6930
    %v6981 = vmul.f32 %v6901, %v6934
    %v6982 = vmul.f32 %v6902, %v6938
    %v6983 = vmul.f32 %v6903, %v6942
    %v6984 = vmul.f32 %v6904, %v6946
    %v6985 = vmul.f32 %v6905, %v6950
    %v6986 = vmul.f32 %v6906, %v6954
    %v6987 = vmul.f32 %v6907, %v6958
    %v6988 = vmul.f32 %v6908, %v6962
    %v6989 = vmul.f32 %v6909, %v6966
    %v6990 = vmul.f32 %v6910, %v6970
    %v6991 = vmul.f32 %v6911, %v6974
    %v6992 = vld [vmem:[%s91 + $0xe0] sm:$0xff]
    %v6993 = vld [vmem:[%s91 + $0xe8] sm:$0xff]
    %v6994 = vld [vmem:[%s91 + $0xf0] sm:$0xff]
    %v6995 = vld [vmem:[%s91 + $0xf8] sm:$0xff]
    %v6997 = vsel %vm441, %v6976, 0
    %v7000 = vsel %vm441, %v6977, 0
    %v7003 = vsel %vm441, %v6978, 0
    %v7006 = vsel %vm441, %v6979, 0
    %v7009 = vsel %vm441, %v6980, 0
    %v7012 = vsel %vm441, %v6981, 0
    %v7015 = vsel %vm441, %v6982, 0
    %v7018 = vsel %vm441, %v6983, 0
    %v7021 = vsel %vm441, %v6984, 0
    %v7024 = vsel %vm441, %v6985, 0
    %v7027 = vsel %vm441, %v6986, 0
    %v7030 = vsel %vm441, %v6987, 0
    %v7033 = vsel %vm441, %v6988, 0
    %v7036 = vsel %vm441, %v6989, 0
    %v7039 = vsel %vm441, %v6990, 0
    %v7042 = vsel %vm441, %v6991, 0
    %7044 = vmatprep.subr.mxu0 0.0
    %7045 = vmatpush1.msra.mxu0 %v6992
    %7046 = vmatprep.subr.mxu0 0.0
    %7047 = vmatpush1.msra.mxu0 %v6993
    %7048 = vmatprep.subr.mxu0 0.0
    %7049 = vmatpush1.msra.mxu0 %v6994
    %7050 = vmatprep.subr.mxu0 0.0
    %7051 = vmatpush1.msra.mxu0 %v6995
    %7052 = vmatprep.subr.mxu0 0.0
    %7053 = vmatpush1.msra.mxu0 0.0
    %7054 = vmatprep.subr.mxu0 0.0
    %7055 = vmatpush1.msra.mxu0 0.0
    %7056 = vmatprep.subr.mxu0 0.0
    %7057 = vmatpush1.msra.mxu0 0.0
    %7058 = vmatprep.subr.mxu0 0.0
    %7059 = vmatpush1.msra.mxu0 0.0
    %7060 = vmatprep.subr.mxu0 0.0
    %7061 = vmatpush1.msra.mxu0 0.0
    %7062 = vmatprep.subr.mxu0 0.0
    %7063 = vmatpush1.msra.mxu0 0.0
    %7064 = vmatprep.subr.mxu0 0.0
    %7065 = vmatpush1.msra.mxu0 0.0
    %7066 = vmatprep.subr.mxu0 0.0
    %7067 = vmatpush1.msra.mxu0 0.0
    %7068 = vmatprep.subr.mxu0 0.0
    %7069 = vmatpush1.msra.mxu0 0.0
    %7070 = vmatprep.subr.mxu0 0.0
    %7071 = vmatpush1.msra.mxu0 0.0
    %7072 = vmatprep.subr.mxu0 0.0
    %7073 = vmatpush1.msra.mxu0 0.0
    %7074 = vmatprep.subr.mxu0 0.0
    %7075 = vmatpush1.msra.mxu0 0.0
    %7076 = vmatprep.subr.mxu0 0.0
    %7077 = vmatpush1.msra.mxu0 0.0
    %7078 = vmatprep.subr.mxu0 0.0
    %7079 = vmatpush1.msra.mxu0 0.0
    %7080 = vmatprep.subr.mxu0 0.0
    %7081 = vmatpush1.msra.mxu0 0.0
    %7082 = vmatprep.subr.mxu0 0.0
    %7083 = vmatpush1.msra.mxu0 0.0
    %7084 = vmatprep.subr.mxu0 0.0
    %7085 = vmatpush1.msra.mxu0 0.0
    %7086 = vmatprep.subr.mxu0 0.0
    %7087 = vmatpush1.msra.mxu0 0.0
    %7088 = vmatprep.subr.mxu0 0.0
    %7089 = vmatpush1.msra.mxu0 0.0
    %7090 = vmatprep.subr.mxu0 0.0
    %7091 = vmatpush1.msra.mxu0 0.0
    %7092 = vmatprep.subr.mxu0 0.0
    %7093 = vmatpush1.msra.mxu0 0.0
    %7094 = vmatprep.subr.mxu0 0.0
    %7095 = vmatpush1.msra.mxu0 0.0
    %7096 = vmatprep.subr.mxu0 0.0
    %7097 = vmatpush1.msra.mxu0 0.0
    %7098 = vmatprep.subr.mxu0 0.0
    %7099 = vmatpush1.msra.mxu0 0.0
    %7100 = vmatprep.subr.mxu0 0.0
    %7101 = vmatpush1.msra.mxu0 0.0
    %7102 = vmatprep.subr.mxu0 0.0
    %7103 = vmatpush1.msra.mxu0 0.0
    %7104 = vmatprep.subr.mxu0 0.0
    %7105 = vmatpush1.msra.mxu0 0.0
    %7106 = vmatprep.subr.mxu0 0.0
    %7107 = vmatpush1.msra.mxu0 0.0
    %7108 = vmatprep.mubr.f32.mxu0 0.0
    %7109 = vmatmul.mubr.f32.gmra.mrb[0].mxu0 %v6997
    %v7110 = vpop.f32.mrb[0].mxu0
    %v7111 = vadd.f32 0.0, %v7110
    %v7112 = vpop.f32.mrb[0].mxu0
    %7113 = vmatprep.mubr.f32.mxu0 0.0
    %7114 = vmatmul.mubr.f32.gmra.mrb[0].mxu0 %v7000
    %v7115 = vpop.f32.mrb[0].mxu0
    %v7116 = vadd.f32 0.0, %v7115
    %v7117 = vpop.f32.mrb[0].mxu0
    %7118 = vmatprep.mubr.f32.mxu0 0.0
    %7119 = vmatmul.mubr.f32.gmra.mrb[0].mxu0 %v7003
    %v7120 = vpop.f32.mrb[0].mxu0
    %v7121 = vadd.f32 0.0, %v7120
    %v7122 = vpop.f32.mrb[0].mxu0
    %7123 = vmatprep.mubr.f32.mxu0 0.0
    %7124 = vmatmul.mubr.f32.gmra.mrb[0].mxu0 %v7006
    %v7125 = vpop.f32.mrb[0].mxu0
    %v7126 = vadd.f32 0.0, %v7125
    %v7127 = vpop.f32.mrb[0].mxu0
    %7128 = vmatprep.mubr.f32.mxu0 0.0
    %7129 = vmatmul.mubr.f32.gmra.mrb[0].mxu0 %v7009
    %v7130 = vpop.f32.mrb[0].mxu0
    %v7131 = vadd.f32 0.0, %v7130
    %v7132 = vpop.f32.mrb[0].mxu0
    %7133 = vmatprep.mubr.f32.mxu0 0.0
    %7134 = vmatmul.mubr.f32.gmra.mrb[0].mxu0 %v7012
    %v7135 = vpop.f32.mrb[0].mxu0
    %v7136 = vadd.f32 0.0, %v7135
    %v7137 = vpop.f32.mrb[0].mxu0
    %7138 = vmatprep.mubr.f32.mxu0 0.0
    %7139 = vmatmul.mubr.f32.gmra.mrb[0].mxu0 %v7015
    %v7140 = vpop.f32.mrb[0].mxu0
    %v7141 = vadd.f32 0.0, %v7140
    %v7142 = vpop.f32.mrb[0].mxu0
    %7143 = vmatprep.mubr.f32.mxu0 0.0
    %7144 = vmatmul.mubr.f32.gmra.mrb[0].mxu0 %v7018
    %v7145 = vpop.f32.mrb[0].mxu0
    %v7146 = vadd.f32 0.0, %v7145
    %v7147 = vpop.f32.mrb[0].mxu0
    %7148 = vmatprep.mubr.f32.mxu0 0.0
    %7149 = vmatmul.mubr.f32.gmra.mrb[0].mxu0 %v7021
    %v7150 = vpop.f32.mrb[0].mxu0
    %v7151 = vadd.f32 0.0, %v7150
    %v7152 = vpop.f32.mrb[0].mxu0
    %7153 = vmatprep.mubr.f32.mxu0 0.0
    %7154 = vmatmul.mubr.f32.gmra.mrb[0].mxu0 %v7024
    %v7155 = vpop.f32.mrb[0].mxu0
    %v7156 = vadd.f32 0.0, %v7155
    %v7157 = vpop.f32.mrb[0].mxu0
    %7158 = vmatprep.mubr.f32.mxu0 0.0
    %7159 = vmatmul.mubr.f32.gmra.mrb[0].mxu0 %v7027
    %v7160 = vpop.f32.mrb[0].mxu0
    %v7161 = vadd.f32 0.0, %v7160
    %v7162 = vpop.f32.mrb[0].mxu0
    %7163 = vmatprep.mubr.f32.mxu0 0.0
    %7164 = vmatmul.mubr.f32.gmra.mrb[0].mxu0 %v7030
    %v7165 = vpop.f32.mrb[0].mxu0
    %v7166 = vadd.f32 0.0, %v7165
    %v7167 = vpop.f32.mrb[0].mxu0
    %7168 = vmatprep.mubr.f32.mxu0 0.0
    %7169 = vmatmul.mubr.f32.gmra.mrb[0].mxu0 %v7033
    %v7170 = vpop.f32.mrb[0].mxu0
    %v7171 = vadd.f32 0.0, %v7170
    %v7172 = vpop.f32.mrb[0].mxu0
    %7173 = vmatprep.mubr.f32.mxu0 0.0
    %7174 = vmatmul.mubr.f32.gmra.mrb[0].mxu0 %v7036
    %v7175 = vpop.f32.mrb[0].mxu0
    %v7176 = vadd.f32 0.0, %v7175
    %v7177 = vpop.f32.mrb[0].mxu0
    %7178 = vmatprep.mubr.f32.mxu0 0.0
    %7179 = vmatmul.mubr.f32.gmra.mrb[0].mxu0 %v7039
    %v7180 = vpop.f32.mrb[0].mxu0
    %v7181 = vadd.f32 0.0, %v7180
    %v7182 = vpop.f32.mrb[0].mxu0
    %7183 = vmatprep.mubr.f32.mxu0 0.0
    %7184 = vmatmul.mubr.f32.gmra.mrb[0].mxu0 %v7042
    %v7185 = vpop.f32.mrb[0].mxu0
    %v7186 = vadd.f32 0.0, %v7185
    %v7187 = vpop.f32.mrb[0].mxu0
    %7188 = vdwg.mxu0
    %v7189 = vadd.f32 %v6880, %v7111
    %v7190 = vadd.f32 %v6881, %v7116
    %v7191 = vadd.f32 %v6882, %v7121
    %v7192 = vadd.f32 %v6883, %v7126
    %v7193 = vadd.f32 %v6884, %v7131
    %v7194 = vadd.f32 %v6885, %v7136
    %v7195 = vadd.f32 %v6886, %v7141
    %v7196 = vadd.f32 %v6887, %v7146
    %v7197 = vadd.f32 %v6888, %v7151
    %v7198 = vadd.f32 %v6889, %v7156
    %v7199 = vadd.f32 %v6890, %v7161
    %v7200 = vadd.f32 %v6891, %v7166
    %v7201 = vadd.f32 %v6892, %v7171
    %v7202 = vadd.f32 %v6893, %v7176
    %v7203 = vadd.f32 %v6894, %v7181
    %v7204 = vadd.f32 %v6895, %v7186
    %v7205 = vld [vmem:[#allocation4 + $0x12] sm:$0xff]
    %v7206 = vld [vmem:[#allocation4 + $0x1a] sm:$0xff]
    %v7207 = vld [vmem:[#allocation4 + $0x22] sm:$0xff]
    %v7208 = vld [vmem:[#allocation4 + $0x2a] sm:$0xff]
    %v7209 = vld [vmem:[#allocation4 + $0x32] sm:$0xff]
    %v7210 = vld [vmem:[#allocation4 + $0x3a] sm:$0xff]
    %v7211 = vld [vmem:[#allocation4 + $0x42] sm:$0xff]
    %v7212 = vld [vmem:[#allocation4 + $0x4a] sm:$0xff]
    %v7213 = vld [vmem:[#allocation4 + $0x52] sm:$0xff]
    %v7214 = vld [vmem:[#allocation4 + $0x5a] sm:$0xff]
    %v7215 = vld [vmem:[#allocation4 + $0x62] sm:$0xff]
    %v7216 = vld [vmem:[#allocation4 + $0x6a] sm:$0xff]
    %v7217 = vld [vmem:[#allocation4 + $0x72] sm:$0xff]
    %v7218 = vld [vmem:[#allocation4 + $0x7a] sm:$0xff]
    %v7219 = vld [vmem:[#allocation4 + $0x82] sm:$0xff]
    %v7220 = vld [vmem:[#allocation4 + $0x8a] sm:$0xff]
    %7221 = vset.pattern.permute.xlu0 8
    %7222 = vperm.xlu0 %7221, %v4749
    %v7223 = vpop.permute.xlu0 %7222
    %7225 = vset.pattern.permute.xlu0 8
    %7226 = vperm.xlu0 %7225, %v4750
    %v7227 = vpop.permute.xlu0 %7226
    %7229 = vset.pattern.permute.xlu0 8
    %7230 = vperm.xlu0 %7229, %v4751
    %v7231 = vpop.permute.xlu0 %7230
    %7233 = vset.pattern.permute.xlu0 8
    %7234 = vperm.xlu0 %7233, %v4752
    %v7235 = vpop.permute.xlu0 %7234
    %7237 = vset.pattern.permute.xlu0 8
    %7238 = vperm.xlu0 %7237, %v4753
    %v7239 = vpop.permute.xlu0 %7238
    %7241 = vset.pattern.permute.xlu0 8
    %7242 = vperm.xlu0 %7241, %v4754
    %v7243 = vpop.permute.xlu0 %7242
    %7245 = vset.pattern.permute.xlu0 8
    %7246 = vperm.xlu0 %7245, %v4755
    %v7247 = vpop.permute.xlu0 %7246
    %7249 = vset.pattern.permute.xlu0 8
    %7250 = vperm.xlu0 %7249, %v4756
    %v7251 = vpop.permute.xlu0 %7250
    %7253 = vset.pattern.permute.xlu0 8
    %7254 = vperm.xlu0 %7253, %v4757
    %v7255 = vpop.permute.xlu0 %7254
    %7257 = vset.pattern.permute.xlu0 8
    %7258 = vperm.xlu0 %7257, %v4758
    %v7259 = vpop.permute.xlu0 %7258
    %7261 = vset.pattern.permute.xlu0 8
    %7262 = vperm.xlu0 %7261, %v4759
    %v7263 = vpop.permute.xlu0 %7262
    %7265 = vset.pattern.permute.xlu0 8
    %7266 = vperm.xlu0 %7265, %v4760
    %v7267 = vpop.permute.xlu0 %7266
    %7269 = vset.pattern.permute.xlu0 8
    %7270 = vperm.xlu0 %7269, %v4761
    %v7271 = vpop.permute.xlu0 %7270
    %7273 = vset.pattern.permute.xlu0 8
    %7274 = vperm.xlu0 %7273, %v4762
    %v7275 = vpop.permute.xlu0 %7274
    %7277 = vset.pattern.permute.xlu0 8
    %7278 = vperm.xlu0 %7277, %v4763
    %v7279 = vpop.permute.xlu0 %7278
    %7281 = vset.pattern.permute.xlu0 8
    %7282 = vperm.xlu0 %7281, %v4764
    %v7283 = vpop.permute.xlu0 %7282
    %v7285 = vmul.f32 %v7205, %v7223
    %v7286 = vmul.f32 %v7206, %v7227
    %v7287 = vmul.f32 %v7207, %v7231
    %v7288 = vmul.f32 %v7208, %v7235
    %v7289 = vmul.f32 %v7209, %v7239
    %v7290 = vmul.f32 %v7210, %v7243
    %v7291 = vmul.f32 %v7211, %v7247
    %v7292 = vmul.f32 %v7212, %v7251
    %v7293 = vmul.f32 %v7213, %v7255
    %v7294 = vmul.f32 %v7214, %v7259
    %v7295 = vmul.f32 %v7215, %v7263
    %v7296 = vmul.f32 %v7216, %v7267
    %v7297 = vmul.f32 %v7217, %v7271
    %v7298 = vmul.f32 %v7218, %v7275
    %v7299 = vmul.f32 %v7219, %v7279
    %v7300 = vmul.f32 %v7220, %v7283
    %v7301 = vld [vmem:[%s91 + $0x100] sm:$0xff]
    %v7302 = vld [vmem:[%s91 + $0x108] sm:$0xff]
    %v7303 = vld [vmem:[%s91 + $0x110] sm:$0xff]
    %v7304 = vld [vmem:[%s91 + $0x118] sm:$0xff]
    %v7306 = vsel %vm441, %v7285, 0
    %v7309 = vsel %vm441, %v7286, 0
    %v7312 = vsel %vm441, %v7287, 0
    %v7315 = vsel %vm441, %v7288, 0
    %v7318 = vsel %vm441, %v7289, 0
    %v7321 = vsel %vm441, %v7290, 0
    %v7324 = vsel %vm441, %v7291, 0
    %v7327 = vsel %vm441, %v7292, 0
    %v7330 = vsel %vm441, %v7293, 0
    %v7333 = vsel %vm441, %v7294, 0
    %v7336 = vsel %vm441, %v7295, 0
    %v7339 = vsel %vm441, %v7296, 0
    %v7342 = vsel %vm441, %v7297, 0
    %v7345 = vsel %vm441, %v7298, 0
    %v7348 = vsel %vm441, %v7299, 0
    %v7351 = vsel %vm441, %v7300, 0
    %7353 = vmatprep.subr.mxu0 0.0
    %7354 = vmatpush1.msra.mxu0 %v7301
    %7355 = vmatprep.subr.mxu0 0.0
    %7356 = vmatpush1.msra.mxu0 %v7302
    %7357 = vmatprep.subr.mxu0 0.0
    %7358 = vmatpush1.msra.mxu0 %v7303
    %7359 = vmatprep.subr.mxu0 0.0
    %7360 = vmatpush1.msra.mxu0 %v7304
    %7361 = vmatprep.subr.mxu0 0.0
    %7362 = vmatpush1.msra.mxu0 0.0
    %7363 = vmatprep.subr.mxu0 0.0
    %7364 = vmatpush1.msra.mxu0 0.0
    %7365 = vmatprep.subr.mxu0 0.0
    %7366 = vmatpush1.msra.mxu0 0.0
    %7367 = vmatprep.subr.mxu0 0.0
    %7368 = vmatpush1.msra.mxu0 0.0
    %7369 = vmatprep.subr.mxu0 0.0
    %7370 = vmatpush1.msra.mxu0 0.0
    %7371 = vmatprep.subr.mxu0 0.0
    %7372 = vmatpush1.msra.mxu0 0.0
    %7373 = vmatprep.subr.mxu0 0.0
    %7374 = vmatpush1.msra.mxu0 0.0
    %7375 = vmatprep.subr.mxu0 0.0
    %7376 = vmatpush1.msra.mxu0 0.0
    %7377 = vmatprep.subr.mxu0 0.0
    %7378 = vmatpush1.msra.mxu0 0.0
    %7379 = vmatprep.subr.mxu0 0.0
    %7380 = vmatpush1.msra.mxu0 0.0
    %7381 = vmatprep.subr.mxu0 0.0
    %7382 = vmatpush1.msra.mxu0 0.0
    %7383 = vmatprep.subr.mxu0 0.0
    %7384 = vmatpush1.msra.mxu0 0.0
    %7385 = vmatprep.subr.mxu0 0.0
    %7386 = vmatpush1.msra.mxu0 0.0
    %7387 = vmatprep.subr.mxu0 0.0
    %7388 = vmatpush1.msra.mxu0 0.0
    %7389 = vmatprep.subr.mxu0 0.0
    %7390 = vmatpush1.msra.mxu0 0.0
    %7391 = vmatprep.subr.mxu0 0.0
    %7392 = vmatpush1.msra.mxu0 0.0
    %7393 = vmatprep.subr.mxu0 0.0
    %7394 = vmatpush1.msra.mxu0 0.0
    %7395 = vmatprep.subr.mxu0 0.0
    %7396 = vmatpush1.msra.mxu0 0.0
    %7397 = vmatprep.subr.mxu0 0.0
    %7398 = vmatpush1.msra.mxu0 0.0
    %7399 = vmatprep.subr.mxu0 0.0
    %7400 = vmatpush1.msra.mxu0 0.0
    %7401 = vmatprep.subr.mxu0 0.0
    %7402 = vmatpush1.msra.mxu0 0.0
    %7403 = vmatprep.subr.mxu0 0.0
    %7404 = vmatpush1.msra.mxu0 0.0
    %7405 = vmatprep.subr.mxu0 0.0
    %7406 = vmatpush1.msra.mxu0 0.0
    %7407 = vmatprep.subr.mxu0 0.0
    %7408 = vmatpush1.msra.mxu0 0.0
    %7409 = vmatprep.subr.mxu0 0.0
    %7410 = vmatpush1.msra.mxu0 0.0
    %7411 = vmatprep.subr.mxu0 0.0
    %7412 = vmatpush1.msra.mxu0 0.0
    %7413 = vmatprep.subr.mxu0 0.0
    %7414 = vmatpush1.msra.mxu0 0.0
    %7415 = vmatprep.subr.mxu0 0.0
    %7416 = vmatpush1.msra.mxu0 0.0
    %7417 = vmatprep.mubr.f32.mxu0 0.0
    %7418 = vmatmul.mubr.f32.gmra.mrb[0].mxu0 %v7306
    %v7419 = vpop.f32.mrb[0].mxu0
    %v7420 = vadd.f32 0.0, %v7419
    %v7421 = vpop.f32.mrb[0].mxu0
    %7422 = vmatprep.mubr.f32.mxu0 0.0
    %7423 = vmatmul.mubr.f32.gmra.mrb[0].mxu0 %v7309
    %v7424 = vpop.f32.mrb[0].mxu0
    %v7425 = vadd.f32 0.0, %v7424
    %v7426 = vpop.f32.mrb[0].mxu0
    %7427 = vmatprep.mubr.f32.mxu0 0.0
    %7428 = vmatmul.mubr.f32.gmra.mrb[0].mxu0 %v7312
    %v7429 = vpop.f32.mrb[0].mxu0
    %v7430 = vadd.f32 0.0, %v7429
    %v7431 = vpop.f32.mrb[0].mxu0
    %7432 = vmatprep.mubr.f32.mxu0 0.0
    %7433 = vmatmul.mubr.f32.gmra.mrb[0].mxu0 %v7315
    %v7434 = vpop.f32.mrb[0].mxu0
    %v7435 = vadd.f32 0.0, %v7434
    %v7436 = vpop.f32.mrb[0].mxu0
    %7437 = vmatprep.mubr.f32.mxu0 0.0
    %7438 = vmatmul.mubr.f32.gmra.mrb[0].mxu0 %v7318
    %v7439 = vpop.f32.mrb[0].mxu0
    %v7440 = vadd.f32 0.0, %v7439
    %v7441 = vpop.f32.mrb[0].mxu0
    %7442 = vmatprep.mubr.f32.mxu0 0.0
    %7443 = vmatmul.mubr.f32.gmra.mrb[0].mxu0 %v7321
    %v7444 = vpop.f32.mrb[0].mxu0
    %v7445 = vadd.f32 0.0, %v7444
    %v7446 = vpop.f32.mrb[0].mxu0
    %7447 = vmatprep.mubr.f32.mxu0 0.0
    %7448 = vmatmul.mubr.f32.gmra.mrb[0].mxu0 %v7324
    %v7449 = vpop.f32.mrb[0].mxu0
    %v7450 = vadd.f32 0.0, %v7449
    %v7451 = vpop.f32.mrb[0].mxu0
    %7452 = vmatprep.mubr.f32.mxu0 0.0
    %7453 = vmatmul.mubr.f32.gmra.mrb[0].mxu0 %v7327
    %v7454 = vpop.f32.mrb[0].mxu0
    %v7455 = vadd.f32 0.0, %v7454
    %v7456 = vpop.f32.mrb[0].mxu0
    %7457 = vmatprep.mubr.f32.mxu0 0.0
    %7458 = vmatmul.mubr.f32.gmra.mrb[0].mxu0 %v7330
    %v7459 = vpop.f32.mrb[0].mxu0
    %v7460 = vadd.f32 0.0, %v7459
    %v7461 = vpop.f32.mrb[0].mxu0
    %7462 = vmatprep.mubr.f32.mxu0 0.0
    %7463 = vmatmul.mubr.f32.gmra.mrb[0].mxu0 %v7333
    %v7464 = vpop.f32.mrb[0].mxu0
    %v7465 = vadd.f32 0.0, %v7464
    %v7466 = vpop.f32.mrb[0].mxu0
    %7467 = vmatprep.mubr.f32.mxu0 0.0
    %7468 = vmatmul.mubr.f32.gmra.mrb[0].mxu0 %v7336
    %v7469 = vpop.f32.mrb[0].mxu0
    %v7470 = vadd.f32 0.0, %v7469
    %v7471 = vpop.f32.mrb[0].mxu0
    %7472 = vmatprep.mubr.f32.mxu0 0.0
    %7473 = vmatmul.mubr.f32.gmra.mrb[0].mxu0 %v7339
    %v7474 = vpop.f32.mrb[0].mxu0
    %v7475 = vadd.f32 0.0, %v7474
    %v7476 = vpop.f32.mrb[0].mxu0
    %7477 = vmatprep.mubr.f32.mxu0 0.0
    %7478 = vmatmul.mubr.f32.gmra.mrb[0].mxu0 %v7342
    %v7479 = vpop.f32.mrb[0].mxu0
    %v7480 = vadd.f32 0.0, %v7479
    %v7481 = vpop.f32.mrb[0].mxu0
    %7482 = vmatprep.mubr.f32.mxu0 0.0
    %7483 = vmatmul.mubr.f32.gmra.mrb[0].mxu0 %v7345
    %v7484 = vpop.f32.mrb[0].mxu0
    %v7485 = vadd.f32 0.0, %v7484
    %v7486 = vpop.f32.mrb[0].mxu0
    %7487 = vmatprep.mubr.f32.mxu0 0.0
    %7488 = vmatmul.mubr.f32.gmra.mrb[0].mxu0 %v7348
    %v7489 = vpop.f32.mrb[0].mxu0
    %v7490 = vadd.f32 0.0, %v7489
    %v7491 = vpop.f32.mrb[0].mxu0
    %7492 = vmatprep.mubr.f32.mxu0 0.0
    %7493 = vmatmul.mubr.f32.gmra.mrb[0].mxu0 %v7351
    %v7494 = vpop.f32.mrb[0].mxu0
    %v7495 = vadd.f32 0.0, %v7494
    %v7496 = vpop.f32.mrb[0].mxu0
    %7497 = vdwg.mxu0
    %v7498 = vadd.f32 %v7189, %v7420
    %v7499 = vadd.f32 %v7190, %v7425
    %v7500 = vadd.f32 %v7191, %v7430
    %v7501 = vadd.f32 %v7192, %v7435
    %v7502 = vadd.f32 %v7193, %v7440
    %v7503 = vadd.f32 %v7194, %v7445
    %v7504 = vadd.f32 %v7195, %v7450
    %v7505 = vadd.f32 %v7196, %v7455
    %v7506 = vadd.f32 %v7197, %v7460
    %v7507 = vadd.f32 %v7198, %v7465
    %v7508 = vadd.f32 %v7199, %v7470
    %v7509 = vadd.f32 %v7200, %v7475
    %v7510 = vadd.f32 %v7201, %v7480
    %v7511 = vadd.f32 %v7202, %v7485
    %v7512 = vadd.f32 %v7203, %v7490
    %v7513 = vadd.f32 %v7204, %v7495
    %v7514 = vld [vmem:[#allocation16] sm:$0x1]
    %v7516 = vlaneseq
    %v7517 = vshrl.u32 %v7516, 7
    %v7518 = vsub.s32 0, %v7517
    %v7519 = vrot.slane %v7514, %v7518
    %v7521 = vadd.f32 %v7498, %v7519
    %v7522 = vadd.f32 %v7499, %v7519
    %v7523 = vadd.f32 %v7500, %v7519
    %v7524 = vadd.f32 %v7501, %v7519
    %v7525 = vadd.f32 %v7502, %v7519
    %v7526 = vadd.f32 %v7503, %v7519
    %v7527 = vadd.f32 %v7504, %v7519
    %v7528 = vadd.f32 %v7505, %v7519
    %v7529 = vadd.f32 %v7506, %v7519
    %v7530 = vadd.f32 %v7507, %v7519
    %v7531 = vadd.f32 %v7508, %v7519
    %v7532 = vadd.f32 %v7509, %v7519
    %v7533 = vadd.f32 %v7510, %v7519
    %v7534 = vadd.f32 %v7511, %v7519
    %v7535 = vadd.f32 %v7512, %v7519
    %v7536 = vadd.f32 %v7513, %v7519
    %v7537 = vmax.f32 %v7521, 0.0
    %v7538 = vmax.f32 %v7522, 0.0
    %v7539 = vmax.f32 %v7523, 0.0
    %v7540 = vmax.f32 %v7524, 0.0
    %v7541 = vmax.f32 %v7525, 0.0
    %v7542 = vmax.f32 %v7526, 0.0
    %v7543 = vmax.f32 %v7527, 0.0
    %v7544 = vmax.f32 %v7528, 0.0
    %v7545 = vmax.f32 %v7529, 0.0
    %v7546 = vmax.f32 %v7530, 0.0
    %v7547 = vmax.f32 %v7531, 0.0
    %v7548 = vmax.f32 %v7532, 0.0
    %v7549 = vmax.f32 %v7533, 0.0
    %v7550 = vmax.f32 %v7534, 0.0
    %v7551 = vmax.f32 %v7535, 0.0
    %v7552 = vmax.f32 %v7536, 0.0
    %v7553 = vld [vmem:[%s95] sm:$0xff]
    %v7554 = vld [vmem:[%s95 + $0x8] sm:$0xff]
    %v7555 = vld [vmem:[%s95 + $0x10] sm:$0xff]
    %v7556 = vld [vmem:[%s95 + $0x18] sm:$0xff]
    %v7557 = vld [vmem:[#allocation17] sm:$0x1]
    %v7559 = vlaneseq
    %v7560 = vshrl.u32 %v7559, 7
    %v7561 = vsub.s32 0, %v7560
    %v7562 = vrot.slane %v7557, %v7561
    %v7565 = vsel %vm441, %v7537, 0
    %v7568 = vsel %vm441, %v7538, 0
    %v7571 = vsel %vm441, %v7539, 0
    %v7574 = vsel %vm441, %v7540, 0
    %v7577 = vsel %vm441, %v7541, 0
    %v7580 = vsel %vm441, %v7542, 0
    %v7583 = vsel %vm441, %v7543, 0
    %v7586 = vsel %vm441, %v7544, 0
    %v7589 = vsel %vm441, %v7545, 0
    %v7592 = vsel %vm441, %v7546, 0
    %v7595 = vsel %vm441, %v7547, 0
    %v7598 = vsel %vm441, %v7548, 0
    %v7601 = vsel %vm441, %v7549, 0
    %v7604 = vsel %vm441, %v7550, 0
    %v7607 = vsel %vm441, %v7551, 0
    %v7610 = vsel %vm441, %v7552, 0
    %7612 = vmatprep.subr.mxu0 0.0
    %7613 = vmatpush1.msra.mxu0 %v7553
    %7614 = vmatprep.subr.mxu0 0.0
    %7615 = vmatpush1.msra.mxu0 %v7554
    %7616 = vmatprep.subr.mxu0 0.0
    %7617 = vmatpush1.msra.mxu0 %v7555
    %7618 = vmatprep.subr.mxu0 0.0
    %7619 = vmatpush1.msra.mxu0 %v7556
    %7620 = vmatprep.subr.mxu0 0.0
    %7621 = vmatpush1.msra.mxu0 0.0
    %7622 = vmatprep.subr.mxu0 0.0
    %7623 = vmatpush1.msra.mxu0 0.0
    %7624 = vmatprep.subr.mxu0 0.0
    %7625 = vmatpush1.msra.mxu0 0.0
    %7626 = vmatprep.subr.mxu0 0.0
    %7627 = vmatpush1.msra.mxu0 0.0
    %7628 = vmatprep.subr.mxu0 0.0
    %7629 = vmatpush1.msra.mxu0 0.0
    %7630 = vmatprep.subr.mxu0 0.0
    %7631 = vmatpush1.msra.mxu0 0.0
    %7632 = vmatprep.subr.mxu0 0.0
    %7633 = vmatpush1.msra.mxu0 0.0
    %7634 = vmatprep.subr.mxu0 0.0
    %7635 = vmatpush1.msra.mxu0 0.0
    %7636 = vmatprep.subr.mxu0 0.0
    %7637 = vmatpush1.msra.mxu0 0.0
    %7638 = vmatprep.subr.mxu0 0.0
    %7639 = vmatpush1.msra.mxu0 0.0
    %7640 = vmatprep.subr.mxu0 0.0
    %7641 = vmatpush1.msra.mxu0 0.0
    %7642 = vmatprep.subr.mxu0 0.0
    %7643 = vmatpush1.msra.mxu0 0.0
    %7644 = vmatprep.subr.mxu0 0.0
    %7645 = vmatpush1.msra.mxu0 0.0
    %7646 = vmatprep.subr.mxu0 0.0
    %7647 = vmatpush1.msra.mxu0 0.0
    %7648 = vmatprep.subr.mxu0 0.0
    %7649 = vmatpush1.msra.mxu0 0.0
    %7650 = vmatprep.subr.mxu0 0.0
    %7651 = vmatpush1.msra.mxu0 0.0
    %7652 = vmatprep.subr.mxu0 0.0
    %7653 = vmatpush1.msra.mxu0 0.0
    %7654 = vmatprep.subr.mxu0 0.0
    %7655 = vmatpush1.msra.mxu0 0.0
    %7656 = vmatprep.subr.mxu0 0.0
    %7657 = vmatpush1.msra.mxu0 0.0
    %7658 = vmatprep.subr.mxu0 0.0
    %7659 = vmatpush1.msra.mxu0 0.0
    %7660 = vmatprep.subr.mxu0 0.0
    %7661 = vmatpush1.msra.mxu0 0.0
    %7662 = vmatprep.subr.mxu0 0.0
    %7663 = vmatpush1.msra.mxu0 0.0
    %7664 = vmatprep.subr.mxu0 0.0
    %7665 = vmatpush1.msra.mxu0 0.0
    %7666 = vmatprep.subr.mxu0 0.0
    %7667 = vmatpush1.msra.mxu0 0.0
    %7668 = vmatprep.subr.mxu0 0.0
    %7669 = vmatpush1.msra.mxu0 0.0
    %7670 = vmatprep.subr.mxu0 0.0
    %7671 = vmatpush1.msra.mxu0 0.0
    %7672 = vmatprep.subr.mxu0 0.0
    %7673 = vmatpush1.msra.mxu0 0.0
    %7674 = vmatprep.subr.mxu0 0.0
    %7675 = vmatpush1.msra.mxu0 0.0
    %7676 = vmatprep.mubr.f32.mxu0 0.0
    %7677 = vmatmul.mubr.f32.gmra.mrb[0].mxu0 %v7565
    %v7678 = vpop.f32.mrb[0].mxu0
    %v7679 = vadd.f32 %v7562, %v7678
    %v7680 = vpop.f32.mrb[0].mxu0
    %7681 = vmatprep.mubr.f32.mxu0 0.0
    %7682 = vmatmul.mubr.f32.gmra.mrb[0].mxu0 %v7568
    %v7683 = vpop.f32.mrb[0].mxu0
    %v7684 = vadd.f32 %v7562, %v7683
    %v7685 = vpop.f32.mrb[0].mxu0
    %7686 = vmatprep.mubr.f32.mxu0 0.0
    %7687 = vmatmul.mubr.f32.gmra.mrb[0].mxu0 %v7571
    %v7688 = vpop.f32.mrb[0].mxu0
    %v7689 = vadd.f32 %v7562, %v7688
    %v7690 = vpop.f32.mrb[0].mxu0
    %7691 = vmatprep.mubr.f32.mxu0 0.0
    %7692 = vmatmul.mubr.f32.gmra.mrb[0].mxu0 %v7574
    %v7693 = vpop.f32.mrb[0].mxu0
    %v7694 = vadd.f32 %v7562, %v7693
    %v7695 = vpop.f32.mrb[0].mxu0
    %7696 = vmatprep.mubr.f32.mxu0 0.0
    %7697 = vmatmul.mubr.f32.gmra.mrb[0].mxu0 %v7577
    %v7698 = vpop.f32.mrb[0].mxu0
    %v7699 = vadd.f32 %v7562, %v7698
    %v7700 = vpop.f32.mrb[0].mxu0
    %7701 = vmatprep.mubr.f32.mxu0 0.0
    %7702 = vmatmul.mubr.f32.gmra.mrb[0].mxu0 %v7580
    %v7703 = vpop.f32.mrb[0].mxu0
    %v7704 = vadd.f32 %v7562, %v7703
    %v7705 = vpop.f32.mrb[0].mxu0
    %7706 = vmatprep.mubr.f32.mxu0 0.0
    %7707 = vmatmul.mubr.f32.gmra.mrb[0].mxu0 %v7583
    %v7708 = vpop.f32.mrb[0].mxu0
    %v7709 = vadd.f32 %v7562, %v7708
    %v7710 = vpop.f32.mrb[0].mxu0
    %7711 = vmatprep.mubr.f32.mxu0 0.0
    %7712 = vmatmul.mubr.f32.gmra.mrb[0].mxu0 %v7586
    %v7713 = vpop.f32.mrb[0].mxu0
    %v7714 = vadd.f32 %v7562, %v7713
    %v7715 = vpop.f32.mrb[0].mxu0
    %7716 = vmatprep.mubr.f32.mxu0 0.0
    %7717 = vmatmul.mubr.f32.gmra.mrb[0].mxu0 %v7589
    %v7718 = vpop.f32.mrb[0].mxu0
    %v7719 = vadd.f32 %v7562, %v7718
    %v7720 = vpop.f32.mrb[0].mxu0
    %7721 = vmatprep.mubr.f32.mxu0 0.0
    %7722 = vmatmul.mubr.f32.gmra.mrb[0].mxu0 %v7592
    %v7723 = vpop.f32.mrb[0].mxu0
    %v7724 = vadd.f32 %v7562, %v7723
    %v7725 = vpop.f32.mrb[0].mxu0
    %7726 = vmatprep.mubr.f32.mxu0 0.0
    %7727 = vmatmul.mubr.f32.gmra.mrb[0].mxu0 %v7595
    %v7728 = vpop.f32.mrb[0].mxu0
    %v7729 = vadd.f32 %v7562, %v7728
    %v7730 = vpop.f32.mrb[0].mxu0
    %7731 = vmatprep.mubr.f32.mxu0 0.0
    %7732 = vmatmul.mubr.f32.gmra.mrb[0].mxu0 %v7598
    %v7733 = vpop.f32.mrb[0].mxu0
    %v7734 = vadd.f32 %v7562, %v7733
    %v7735 = vpop.f32.mrb[0].mxu0
    %7736 = vmatprep.mubr.f32.mxu0 0.0
    %7737 = vmatmul.mubr.f32.gmra.mrb[0].mxu0 %v7601
    %v7738 = vpop.f32.mrb[0].mxu0
    %v7739 = vadd.f32 %v7562, %v7738
    %v7740 = vpop.f32.mrb[0].mxu0
    %7741 = vmatprep.mubr.f32.mxu0 0.0
    %7742 = vmatmul.mubr.f32.gmra.mrb[0].mxu0 %v7604
    %v7743 = vpop.f32.mrb[0].mxu0
    %v7744 = vadd.f32 %v7562, %v7743
    %v7745 = vpop.f32.mrb[0].mxu0
    %7746 = vmatprep.mubr.f32.mxu0 0.0
    %7747 = vmatmul.mubr.f32.gmra.mrb[0].mxu0 %v7607
    %v7748 = vpop.f32.mrb[0].mxu0
    %v7749 = vadd.f32 %v7562, %v7748
    %v7750 = vpop.f32.mrb[0].mxu0
    %7751 = vmatprep.mubr.f32.mxu0 0.0
    %7752 = vmatmul.mubr.f32.gmra.mrb[0].mxu0 %v7610
    %v7753 = vpop.f32.mrb[0].mxu0
    %v7754 = vadd.f32 %v7562, %v7753
    %v7755 = vpop.f32.mrb[0].mxu0
    %7756 = vdwg.mxu0
    %v7757 = vmax.f32 %v7679, 0.0
    %v7758 = vmax.f32 %v7684, 0.0
    %v7759 = vmax.f32 %v7689, 0.0
    %v7760 = vmax.f32 %v7694, 0.0
    %v7761 = vmax.f32 %v7699, 0.0
    %v7762 = vmax.f32 %v7704, 0.0
    %v7763 = vmax.f32 %v7709, 0.0
    %v7764 = vmax.f32 %v7714, 0.0
    %v7765 = vmax.f32 %v7719, 0.0
    %v7766 = vmax.f32 %v7724, 0.0
    %v7767 = vmax.f32 %v7729, 0.0
    %v7768 = vmax.f32 %v7734, 0.0
    %v7769 = vmax.f32 %v7739, 0.0
    %v7770 = vmax.f32 %v7744, 0.0
    %v7771 = vmax.f32 %v7749, 0.0
    %v7772 = vmax.f32 %v7754, 0.0
    %v7773 = vld [vmem:[%s99] sm:$0xff]
    %v7774 = vld [vmem:[%s99 + $0x8] sm:$0xff]
    %v7775 = vld [vmem:[%s99 + $0x10] sm:$0xff]
    %v7776 = vld [vmem:[%s99 + $0x18] sm:$0xff]
    %v7777 = vld [vmem:[#allocation19] sm:$0x1]
    %v7779 = vlaneseq
    %v7780 = vshrl.u32 %v7779, 7
    %v7781 = vsub.s32 0, %v7780
    %v7782 = vrot.slane %v7777, %v7781
    %v7785 = vsel %vm441, %v7757, 0
    %v7788 = vsel %vm441, %v7758, 0
    %v7791 = vsel %vm441, %v7759, 0
    %v7794 = vsel %vm441, %v7760, 0
    %v7797 = vsel %vm441, %v7761, 0
    %v7800 = vsel %vm441, %v7762, 0
    %v7803 = vsel %vm441, %v7763, 0
    %v7806 = vsel %vm441, %v7764, 0
    %v7809 = vsel %vm441, %v7765, 0
    %v7812 = vsel %vm441, %v7766, 0
    %v7815 = vsel %vm441, %v7767, 0
    %v7818 = vsel %vm441, %v7768, 0
    %v7821 = vsel %vm441, %v7769, 0
    %v7824 = vsel %vm441, %v7770, 0
    %v7827 = vsel %vm441, %v7771, 0
    %v7830 = vsel %vm441, %v7772, 0
    %7832 = vmatprep.subr.mxu0 0.0
    %7833 = vmatpush1.msra.mxu0 %v7773
    %7834 = vmatprep.subr.mxu0 0.0
    %7835 = vmatpush1.msra.mxu0 %v7774
    %7836 = vmatprep.subr.mxu0 0.0
    %7837 = vmatpush1.msra.mxu0 %v7775
    %7838 = vmatprep.subr.mxu0 0.0
    %7839 = vmatpush1.msra.mxu0 %v7776
    %7840 = vmatprep.subr.mxu0 0.0
    %7841 = vmatpush1.msra.mxu0 0.0
    %7842 = vmatprep.subr.mxu0 0.0
    %7843 = vmatpush1.msra.mxu0 0.0
    %7844 = vmatprep.subr.mxu0 0.0
    %7845 = vmatpush1.msra.mxu0 0.0
    %7846 = vmatprep.subr.mxu0 0.0
    %7847 = vmatpush1.msra.mxu0 0.0
    %7848 = vmatprep.subr.mxu0 0.0
    %7849 = vmatpush1.msra.mxu0 0.0
    %7850 = vmatprep.subr.mxu0 0.0
    %7851 = vmatpush1.msra.mxu0 0.0
    %7852 = vmatprep.subr.mxu0 0.0
    %7853 = vmatpush1.msra.mxu0 0.0
    %7854 = vmatprep.subr.mxu0 0.0
    %7855 = vmatpush1.msra.mxu0 0.0
    %7856 = vmatprep.subr.mxu0 0.0
    %7857 = vmatpush1.msra.mxu0 0.0
    %7858 = vmatprep.subr.mxu0 0.0
    %7859 = vmatpush1.msra.mxu0 0.0
    %7860 = vmatprep.subr.mxu0 0.0
    %7861 = vmatpush1.msra.mxu0 0.0
    %7862 = vmatprep.subr.mxu0 0.0
    %7863 = vmatpush1.msra.mxu0 0.0
    %7864 = vmatprep.subr.mxu0 0.0
    %7865 = vmatpush1.msra.mxu0 0.0
    %7866 = vmatprep.subr.mxu0 0.0
    %7867 = vmatpush1.msra.mxu0 0.0
    %7868 = vmatprep.subr.mxu0 0.0
    %7869 = vmatpush1.msra.mxu0 0.0
    %7870 = vmatprep.subr.mxu0 0.0
    %7871 = vmatpush1.msra.mxu0 0.0
    %7872 = vmatprep.subr.mxu0 0.0
    %7873 = vmatpush1.msra.mxu0 0.0
    %7874 = vmatprep.subr.mxu0 0.0
    %7875 = vmatpush1.msra.mxu0 0.0
    %7876 = vmatprep.subr.mxu0 0.0
    %7877 = vmatpush1.msra.mxu0 0.0
    %7878 = vmatprep.subr.mxu0 0.0
    %7879 = vmatpush1.msra.mxu0 0.0
    %7880 = vmatprep.subr.mxu0 0.0
    %7881 = vmatpush1.msra.mxu0 0.0
    %7882 = vmatprep.subr.mxu0 0.0
    %7883 = vmatpush1.msra.mxu0 0.0
    %7884 = vmatprep.subr.mxu0 0.0
    %7885 = vmatpush1.msra.mxu0 0.0
    %7886 = vmatprep.subr.mxu0 0.0
    %7887 = vmatpush1.msra.mxu0 0.0
    %7888 = vmatprep.subr.mxu0 0.0
    %7889 = vmatpush1.msra.mxu0 0.0
    %7890 = vmatprep.subr.mxu0 0.0
    %7891 = vmatpush1.msra.mxu0 0.0
    %7892 = vmatprep.subr.mxu0 0.0
    %7893 = vmatpush1.msra.mxu0 0.0
    %7894 = vmatprep.subr.mxu0 0.0
    %7895 = vmatpush1.msra.mxu0 0.0
    %7896 = vmatprep.mubr.f32.mxu0 0.0
    %7897 = vmatmul.mubr.f32.gmra.mrb[0].mxu0 %v7785
    %v7898 = vpop.f32.mrb[0].mxu0
    %v7899 = vadd.f32 %v7782, %v7898
    %v7900 = vpop.f32.mrb[0].mxu0
    %7901 = vmatprep.mubr.f32.mxu0 0.0
    %7902 = vmatmul.mubr.f32.gmra.mrb[0].mxu0 %v7788
    %v7903 = vpop.f32.mrb[0].mxu0
    %v7904 = vadd.f32 %v7782, %v7903
    %v7905 = vpop.f32.mrb[0].mxu0
    %7906 = vmatprep.mubr.f32.mxu0 0.0
    %7907 = vmatmul.mubr.f32.gmra.mrb[0].mxu0 %v7791
    %v7908 = vpop.f32.mrb[0].mxu0
    %v7909 = vadd.f32 %v7782, %v7908
    %v7910 = vpop.f32.mrb[0].mxu0
    %7911 = vmatprep.mubr.f32.mxu0 0.0
    %7912 = vmatmul.mubr.f32.gmra.mrb[0].mxu0 %v7794
    %v7913 = vpop.f32.mrb[0].mxu0
    %v7914 = vadd.f32 %v7782, %v7913
    %v7915 = vpop.f32.mrb[0].mxu0
    %7916 = vmatprep.mubr.f32.mxu0 0.0
    %7917 = vmatmul.mubr.f32.gmra.mrb[0].mxu0 %v7797
    %v7918 = vpop.f32.mrb[0].mxu0
    %v7919 = vadd.f32 %v7782, %v7918
    %v7920 = vpop.f32.mrb[0].mxu0
    %7921 = vmatprep.mubr.f32.mxu0 0.0
    %7922 = vmatmul.mubr.f32.gmra.mrb[0].mxu0 %v7800
    %v7923 = vpop.f32.mrb[0].mxu0
    %v7924 = vadd.f32 %v7782, %v7923
    %v7925 = vpop.f32.mrb[0].mxu0
    %7926 = vmatprep.mubr.f32.mxu0 0.0
    %7927 = vmatmul.mubr.f32.gmra.mrb[0].mxu0 %v7803
    %v7928 = vpop.f32.mrb[0].mxu0
    %v7929 = vadd.f32 %v7782, %v7928
    %v7930 = vpop.f32.mrb[0].mxu0
    %7931 = vmatprep.mubr.f32.mxu0 0.0
    %7932 = vmatmul.mubr.f32.gmra.mrb[0].mxu0 %v7806
    %v7933 = vpop.f32.mrb[0].mxu0
    %v7934 = vadd.f32 %v7782, %v7933
    %v7935 = vpop.f32.mrb[0].mxu0
    %7936 = vmatprep.mubr.f32.mxu0 0.0
    %7937 = vmatmul.mubr.f32.gmra.mrb[0].mxu0 %v7809
    %v7938 = vpop.f32.mrb[0].mxu0
    %v7939 = vadd.f32 %v7782, %v7938
    %v7940 = vpop.f32.mrb[0].mxu0
    %7941 = vmatprep.mubr.f32.mxu0 0.0
    %7942 = vmatmul.mubr.f32.gmra.mrb[0].mxu0 %v7812
    %v7943 = vpop.f32.mrb[0].mxu0
    %v7944 = vadd.f32 %v7782, %v7943
    %v7945 = vpop.f32.mrb[0].mxu0
    %7946 = vmatprep.mubr.f32.mxu0 0.0
    %7947 = vmatmul.mubr.f32.gmra.mrb[0].mxu0 %v7815
    %v7948 = vpop.f32.mrb[0].mxu0
    %v7949 = vadd.f32 %v7782, %v7948
    %v7950 = vpop.f32.mrb[0].mxu0
    %7951 = vmatprep.mubr.f32.mxu0 0.0
    %7952 = vmatmul.mubr.f32.gmra.mrb[0].mxu0 %v7818
    %v7953 = vpop.f32.mrb[0].mxu0
    %v7954 = vadd.f32 %v7782, %v7953
    %v7955 = vpop.f32.mrb[0].mxu0
    %7956 = vmatprep.mubr.f32.mxu0 0.0
    %7957 = vmatmul.mubr.f32.gmra.mrb[0].mxu0 %v7821
    %v7958 = vpop.f32.mrb[0].mxu0
    %v7959 = vadd.f32 %v7782, %v7958
    %v7960 = vpop.f32.mrb[0].mxu0
    %7961 = vmatprep.mubr.f32.mxu0 0.0
    %7962 = vmatmul.mubr.f32.gmra.mrb[0].mxu0 %v7824
    %v7963 = vpop.f32.mrb[0].mxu0
    %v7964 = vadd.f32 %v7782, %v7963
    %v7965 = vpop.f32.mrb[0].mxu0
    %7966 = vmatprep.mubr.f32.mxu0 0.0
    %7967 = vmatmul.mubr.f32.gmra.mrb[0].mxu0 %v7827
    %v7968 = vpop.f32.mrb[0].mxu0
    %v7969 = vadd.f32 %v7782, %v7968
    %v7970 = vpop.f32.mrb[0].mxu0
    %7971 = vmatprep.mubr.f32.mxu0 0.0
    %7972 = vmatmul.mubr.f32.gmra.mrb[0].mxu0 %v7830
    %v7973 = vpop.f32.mrb[0].mxu0
    %v7974 = vadd.f32 %v7782, %v7973
    %v7975 = vpop.f32.mrb[0].mxu0
    %7976 = vdwg.mxu0
    %v7977 = vmax.f32 %v7899, 0.0
    %v7978 = vmax.f32 %v7904, 0.0
    %v7979 = vmax.f32 %v7909, 0.0
    %v7980 = vmax.f32 %v7914, 0.0
    %v7981 = vmax.f32 %v7919, 0.0
    %v7982 = vmax.f32 %v7924, 0.0
    %v7983 = vmax.f32 %v7929, 0.0
    %v7984 = vmax.f32 %v7934, 0.0
    %v7985 = vmax.f32 %v7939, 0.0
    %v7986 = vmax.f32 %v7944, 0.0
    %v7987 = vmax.f32 %v7949, 0.0
    %v7988 = vmax.f32 %v7954, 0.0
    %v7989 = vmax.f32 %v7959, 0.0
    %v7990 = vmax.f32 %v7964, 0.0
    %v7991 = vmax.f32 %v7969, 0.0
    %v7992 = vmax.f32 %v7974, 0.0
    %v7993 = vld [vmem:[%s103] sm:$0xff]
    %v7994 = vld [vmem:[%s103 + $0x8] sm:$0xff]
    %v7995 = vld [vmem:[%s103 + $0x10] sm:$0xff]
    %v7996 = vld [vmem:[%s103 + $0x18] sm:$0xff]
    %v7997 = vld [vmem:[#allocation20] sm:$0x1]
    %v7999 = vlaneseq
    %v8000 = vshrl.u32 %v7999, 7
    %v8001 = vsub.s32 0, %v8000
    %v8002 = vrot.slane %v7997, %v8001
    %v8005 = vsel %vm441, %v7977, 0
    %v8008 = vsel %vm441, %v7978, 0
    %v8011 = vsel %vm441, %v7979, 0
    %v8014 = vsel %vm441, %v7980, 0
    %v8017 = vsel %vm441, %v7981, 0
    %v8020 = vsel %vm441, %v7982, 0
    %v8023 = vsel %vm441, %v7983, 0
    %v8026 = vsel %vm441, %v7984, 0
    %v8029 = vsel %vm441, %v7985, 0
    %v8032 = vsel %vm441, %v7986, 0
    %v8035 = vsel %vm441, %v7987, 0
    %v8038 = vsel %vm441, %v7988, 0
    %v8041 = vsel %vm441, %v7989, 0
    %v8044 = vsel %vm441, %v7990, 0
    %v8047 = vsel %vm441, %v7991, 0
    %v8050 = vsel %vm441, %v7992, 0
    %8052 = vmatprep.subr.mxu0 0.0
    %8053 = vmatpush1.msra.mxu0 %v7993
    %8054 = vmatprep.subr.mxu0 0.0
    %8055 = vmatpush1.msra.mxu0 %v7994
    %8056 = vmatprep.subr.mxu0 0.0
    %8057 = vmatpush1.msra.mxu0 %v7995
    %8058 = vmatprep.subr.mxu0 0.0
    %8059 = vmatpush1.msra.mxu0 %v7996
    %8060 = vmatprep.subr.mxu0 0.0
    %8061 = vmatpush1.msra.mxu0 0.0
    %8062 = vmatprep.subr.mxu0 0.0
    %8063 = vmatpush1.msra.mxu0 0.0
    %8064 = vmatprep.subr.mxu0 0.0
    %8065 = vmatpush1.msra.mxu0 0.0
    %8066 = vmatprep.subr.mxu0 0.0
    %8067 = vmatpush1.msra.mxu0 0.0
    %8068 = vmatprep.subr.mxu0 0.0
    %8069 = vmatpush1.msra.mxu0 0.0
    %8070 = vmatprep.subr.mxu0 0.0
    %8071 = vmatpush1.msra.mxu0 0.0
    %8072 = vmatprep.subr.mxu0 0.0
    %8073 = vmatpush1.msra.mxu0 0.0
    %8074 = vmatprep.subr.mxu0 0.0
    %8075 = vmatpush1.msra.mxu0 0.0
    %8076 = vmatprep.subr.mxu0 0.0
    %8077 = vmatpush1.msra.mxu0 0.0
    %8078 = vmatprep.subr.mxu0 0.0
    %8079 = vmatpush1.msra.mxu0 0.0
    %8080 = vmatprep.subr.mxu0 0.0
    %8081 = vmatpush1.msra.mxu0 0.0
    %8082 = vmatprep.subr.mxu0 0.0
    %8083 = vmatpush1.msra.mxu0 0.0
    %8084 = vmatprep.subr.mxu0 0.0
    %8085 = vmatpush1.msra.mxu0 0.0
    %8086 = vmatprep.subr.mxu0 0.0
    %8087 = vmatpush1.msra.mxu0 0.0
    %8088 = vmatprep.subr.mxu0 0.0
    %8089 = vmatpush1.msra.mxu0 0.0
    %8090 = vmatprep.subr.mxu0 0.0
    %8091 = vmatpush1.msra.mxu0 0.0
    %8092 = vmatprep.subr.mxu0 0.0
    %8093 = vmatpush1.msra.mxu0 0.0
    %8094 = vmatprep.subr.mxu0 0.0
    %8095 = vmatpush1.msra.mxu0 0.0
    %8096 = vmatprep.subr.mxu0 0.0
    %8097 = vmatpush1.msra.mxu0 0.0
    %8098 = vmatprep.subr.mxu0 0.0
    %8099 = vmatpush1.msra.mxu0 0.0
    %8100 = vmatprep.subr.mxu0 0.0
    %8101 = vmatpush1.msra.mxu0 0.0
    %8102 = vmatprep.subr.mxu0 0.0
    %8103 = vmatpush1.msra.mxu0 0.0
    %8104 = vmatprep.subr.mxu0 0.0
    %8105 = vmatpush1.msra.mxu0 0.0
    %8106 = vmatprep.subr.mxu0 0.0
    %8107 = vmatpush1.msra.mxu0 0.0
    %8108 = vmatprep.subr.mxu0 0.0
    %8109 = vmatpush1.msra.mxu0 0.0
    %8110 = vmatprep.subr.mxu0 0.0
    %8111 = vmatpush1.msra.mxu0 0.0
    %8112 = vmatprep.subr.mxu0 0.0
    %8113 = vmatpush1.msra.mxu0 0.0
    %8114 = vmatprep.subr.mxu0 0.0
    %8115 = vmatpush1.msra.mxu0 0.0
    %8116 = vmatprep.mubr.f32.mxu0 0.0
    %8117 = vmatmul.mubr.f32.gmra.mrb[0].mxu0 %v8005
    %v8118 = vpop.f32.mrb[0].mxu0
    %v8119 = vadd.f32 %v8002, %v8118
    %v8120 = vpop.f32.mrb[0].mxu0
    %8121 = vmatprep.mubr.f32.mxu0 0.0
    %8122 = vmatmul.mubr.f32.gmra.mrb[0].mxu0 %v8008
    %v8123 = vpop.f32.mrb[0].mxu0
    %v8124 = vadd.f32 %v8002, %v8123
    %v8125 = vpop.f32.mrb[0].mxu0
    %8126 = vmatprep.mubr.f32.mxu0 0.0
    %8127 = vmatmul.mubr.f32.gmra.mrb[0].mxu0 %v8011
    %v8128 = vpop.f32.mrb[0].mxu0
    %v8129 = vadd.f32 %v8002, %v8128
    %v8130 = vpop.f32.mrb[0].mxu0
    %8131 = vmatprep.mubr.f32.mxu0 0.0
    %8132 = vmatmul.mubr.f32.gmra.mrb[0].mxu0 %v8014
    %v8133 = vpop.f32.mrb[0].mxu0
    %v8134 = vadd.f32 %v8002, %v8133
    %v8135 = vpop.f32.mrb[0].mxu0
    %8136 = vmatprep.mubr.f32.mxu0 0.0
    %8137 = vmatmul.mubr.f32.gmra.mrb[0].mxu0 %v8017
    %v8138 = vpop.f32.mrb[0].mxu0
    %v8139 = vadd.f32 %v8002, %v8138
    %v8140 = vpop.f32.mrb[0].mxu0
    %8141 = vmatprep.mubr.f32.mxu0 0.0
    %8142 = vmatmul.mubr.f32.gmra.mrb[0].mxu0 %v8020
    %v8143 = vpop.f32.mrb[0].mxu0
    %v8144 = vadd.f32 %v8002, %v8143
    %v8145 = vpop.f32.mrb[0].mxu0
    %8146 = vmatprep.mubr.f32.mxu0 0.0
    %8147 = vmatmul.mubr.f32.gmra.mrb[0].mxu0 %v8023
    %v8148 = vpop.f32.mrb[0].mxu0
    %v8149 = vadd.f32 %v8002, %v8148
    %v8150 = vpop.f32.mrb[0].mxu0
    %8151 = vmatprep.mubr.f32.mxu0 0.0
    %8152 = vmatmul.mubr.f32.gmra.mrb[0].mxu0 %v8026
    %v8153 = vpop.f32.mrb[0].mxu0
    %v8154 = vadd.f32 %v8002, %v8153
    %v8155 = vpop.f32.mrb[0].mxu0
    %8156 = vmatprep.mubr.f32.mxu0 0.0
    %8157 = vmatmul.mubr.f32.gmra.mrb[0].mxu0 %v8029
    %v8158 = vpop.f32.mrb[0].mxu0
    %v8159 = vadd.f32 %v8002, %v8158
    %v8160 = vpop.f32.mrb[0].mxu0
    %8161 = vmatprep.mubr.f32.mxu0 0.0
    %8162 = vmatmul.mubr.f32.gmra.mrb[0].mxu0 %v8032
    %v8163 = vpop.f32.mrb[0].mxu0
    %v8164 = vadd.f32 %v8002, %v8163
    %v8165 = vpop.f32.mrb[0].mxu0
    %8166 = vmatprep.mubr.f32.mxu0 0.0
    %8167 = vmatmul.mubr.f32.gmra.mrb[0].mxu0 %v8035
    %v8168 = vpop.f32.mrb[0].mxu0
    %v8169 = vadd.f32 %v8002, %v8168
    %v8170 = vpop.f32.mrb[0].mxu0
    %8171 = vmatprep.mubr.f32.mxu0 0.0
    %8172 = vmatmul.mubr.f32.gmra.mrb[0].mxu0 %v8038
    %v8173 = vpop.f32.mrb[0].mxu0
    %v8174 = vadd.f32 %v8002, %v8173
    %v8175 = vpop.f32.mrb[0].mxu0
    %8176 = vmatprep.mubr.f32.mxu0 0.0
    %8177 = vmatmul.mubr.f32.gmra.mrb[0].mxu0 %v8041
    %v8178 = vpop.f32.mrb[0].mxu0
    %v8179 = vadd.f32 %v8002, %v8178
    %v8180 = vpop.f32.mrb[0].mxu0
    %8181 = vmatprep.mubr.f32.mxu0 0.0
    %8182 = vmatmul.mubr.f32.gmra.mrb[0].mxu0 %v8044
    %v8183 = vpop.f32.mrb[0].mxu0
    %v8184 = vadd.f32 %v8002, %v8183
    %v8185 = vpop.f32.mrb[0].mxu0
    %8186 = vmatprep.mubr.f32.mxu0 0.0
    %8187 = vmatmul.mubr.f32.gmra.mrb[0].mxu0 %v8047
    %v8188 = vpop.f32.mrb[0].mxu0
    %v8189 = vadd.f32 %v8002, %v8188
    %v8190 = vpop.f32.mrb[0].mxu0
    %8191 = vmatprep.mubr.f32.mxu0 0.0
    %8192 = vmatmul.mubr.f32.gmra.mrb[0].mxu0 %v8050
    %v8193 = vpop.f32.mrb[0].mxu0
    %v8194 = vadd.f32 %v8002, %v8193
    %v8195 = vpop.f32.mrb[0].mxu0
    %8196 = vdwg.mxu0
    %8197 = vst [vmem:[#allocation25] sm:$0xff] %v8119
    %8198 = vst [vmem:[#allocation25 + $0x8] sm:$0xff] %v8124
    %8199 = vst [vmem:[#allocation25 + $0x10] sm:$0xff] %v8129
    %8200 = vst [vmem:[#allocation25 + $0x18] sm:$0xff] %v8134
    %8201 = vst [vmem:[#allocation25 + $0x20] sm:$0xff] %v8139
    %8202 = vst [vmem:[#allocation25 + $0x28] sm:$0xff] %v8144
    %8203 = vst [vmem:[#allocation25 + $0x30] sm:$0xff] %v8149
    %8204 = vst [vmem:[#allocation25 + $0x38] sm:$0xff] %v8154
    %8205 = vst [vmem:[#allocation25 + $0x40] sm:$0xff] %v8159
    %8206 = vst [vmem:[#allocation25 + $0x48] sm:$0xff] %v8164
    %8207 = vst [vmem:[#allocation25 + $0x50] sm:$0xff] %v8169
    %8208 = vst [vmem:[#allocation25 + $0x58] sm:$0xff] %v8174
    %8209 = vst [vmem:[#allocation25 + $0x60] sm:$0xff] %v8179
    %8210 = vst [vmem:[#allocation25 + $0x68] sm:$0xff] %v8184
    %8211 = vst [vmem:[#allocation25 + $0x70] sm:$0xff] %v8189
    %8212 = vst [vmem:[#allocation25 + $0x78] sm:$0xff] %v8194
    // Predicated region
    $region254: #{grounding_forward.1} parent=1 // pred_check
      _
    $region255: #{grounding_forward.1} parent=1 // pred_check_branch
      %8214 = sbr.rel (0) target = $region257
    $region256: #{grounding_forward.1} parent=1 // pred_region
      %s8216 = ssub.s32 128, 128
      %8217 = vsyncadd [#allocation7], %s8216
      %s8219 = sshll.u32 [#allocation22], 4
      %s8220 = int_to_ptr.vmem [resolvable:$true] %s8219
      %8222 = dma.vmem_to_hbm [thread:$0]  %s8220, 128, %s107, [#allocation7]
    $region257: #{grounding_forward.1} parent=1 // pred_fallthru
      _
    // Predicated region
    $region258: #{grounding_forward.1} parent=1 // pred_check
      _
    $region259: #{grounding_forward.1} parent=1 // pred_check_branch
      %8224 = sbr.rel (0) target = $region261
    $region260: #{grounding_forward.1} parent=1 // pred_region
      %s8226 = ssub.s32 512, 512
      %8227 = vsyncadd [#allocation24], %s8226
      %s8228 = sshll.u32 [#allocation23], 4
      %s8229 = int_to_ptr.vmem [resolvable:$true] %s8228
      %8234 = dma.vmem_to_hbm [thread:$0]  %s8229, 512, %s109, [#allocation24], 128, 128, 8
    $region261: #{grounding_forward.1} parent=1 // pred_fallthru
      _
    // Predicated region
    $region262: #{grounding_forward.1} parent=1 // pred_check
      _
    $region263: #{grounding_forward.1} parent=1 // pred_check_branch
      %8236 = sbr.rel (0) target = $region265
    $region264: #{grounding_forward.1} parent=1 // pred_region
      %s8238 = ssub.s32 2048, 2048
      %8239 = vsyncadd [#allocation24], %s8238
      %s8240 = sshll.u32 [#allocation25], 4
      %s8241 = int_to_ptr.vmem [resolvable:$true] %s8240
      %8246 = dma.vmem_to_hbm [thread:$0]  %s8241, 2048, %s111, [#allocation24], 128, 128, 8
    $region265: #{grounding_forward.1} parent=1 // pred_fallthru
      _
    // Predicated region
    $region266: #{grounding_forward.1} parent=1 // pred_check
      _
    $region267: #{grounding_forward.1} parent=1 // pred_check_branch
      %8248 = sbr.rel (0) target = $region269
    $region268: #{grounding_forward.1} parent=1 // pred_region
      %8249 = dma.done [#allocation7], 128
    $region269: #{grounding_forward.1} parent=1 // pred_fallthru
      _
    // Predicated region
    $region270: #{grounding_forward.1} parent=1 // pred_check
      _
    $region271: #{grounding_forward.1} parent=1 // pred_check_branch
      %8251 = sbr.rel (0) target = $region273
    $region272: #{grounding_forward.1} parent=1 // pred_region
      %8252 = dma.done [#allocation24], 512
    $region273: #{grounding_forward.1} parent=1 // pred_fallthru
      _
    // Predicated region
    $region274: #{grounding_forward.1} parent=1 // pred_check
      _
    $region275: #{grounding_forward.1} parent=1 // pred_check_branch
      %8254 = sbr.rel (0) target = $region277
    $region276: #{grounding_forward.1} parent=1 // pred_region
      %8255 = dma.done [#allocation24], 2048
    $region277: #{grounding_forward.1} parent=1 // pred_fallthru
      _
    %8256 = vsyncpa [#allocation6], 1
    %8257 = vsyncpa [#allocation9], 1
    %8258 = vsyncpa [#allocation12], 1
    %8259 = vsyncpa [#allocation15], 1
    %8260 = vsyncpa [#allocation18], 1
    %8261 = vsyncpa [#allocation21], 1
    %8262 = vsyncpa [#allocation7], 1
    %8263 = vsyncpa [#allocation24], 1

</llo_original>
